<compile_context>
chip_gen: v7x
topology: tpu7x:2x2x1
jax: 0.10.0
libtpu: 0.0.40
codegen_flags: <defaults>
</compile_context>

<pallas_src>
import jax
import jax.numpy as jnp
from jax.experimental import pallas as pl
from jax.experimental.pallas import tpu as pltpu

# ----- Model hyper-parameters (Model_Net defaults / module globals) -----
METAL_DIM = 63
IN_DIM = 1048            # sequence feature dim (seq_bm / seq_am)
IN_PAD = 1056            # IN_DIM padded to a multiple of 32 (int8 sublane tile)
OUT_DIM = 512
COMMON_DIM = 512
STRUCT_DIM = 512
LAYER_DIMS = [512, 256, 128, 64, 32, 16, 1]
LN_EPS = 1e-5            # torch LayerNorm default eps
OUT_LANES = 128          # lane-dense output slab (scalar broadcast across lanes)

# ----- packed wide f32 vector params: [VW_ROWS, IN_DIM] -----
RW_B1, RW_G1, RW_BE1, RW_S1 = 0, 1, 2, 3       # linear1 bias, LN1 gamma/beta, w1 col-scales
VW_ROWS = 8

# ----- packed narrow f32 vector params: [VN_ROWS, 512] -----
RN_B2, RN_G2, RN_BE2, RN_S2 = 0, 1, 2, 3       # linear2 bias, LN2 gamma/beta, w2 col-scales
RN_PV1B, RN_SPV1 = 4, 5                        # project_v1 bias / col-scales
RN_PV2B, RN_SPV2 = 6, 7                        # project_v2 bias / col-scales (seq part)
RN_GW1, RN_GW2, RN_GB = 8, 9, 10               # gate Linear(1024,1) split + bias
RN_SH0, RN_SH1 = 11, 12                        # head layer 0 / 1 col-scales
RN_H = 13                                      # head layer i (0..5): bias, gamma, beta at RN_H+3i..
RN_W6, RN_B6 = 31, 32                          # final Linear(16,1) weight row + bias
VN_ROWS = 40

# ----- packed bf16 small weights: [SW_ROWS, 512], lane-dense -----
SW_PV2M = 0      # rows  0:64,  lanes   0:512 -> project_v2 metal part [63,512] (+1 zero row)
SW_H = 64        # rows 64:320: lanes   0:128 -> head Linear(256,128)
                 #              lanes 128:192 -> head Linear(128, 64)  (rows 64:192)
                 #              lanes 256:288 -> head Linear( 64, 32)  (rows 64:128)
                 #              lanes 384:400 -> head Linear( 32, 16)  (rows 64: 96)
SW_ROWS = 320


def _gelu(x):
    # tanh-approximate GELU (runs on the otherwise-idle EUP slot).
    # TODO(synk): torch F.gelu default is exact erf-based; tanh approx differs by ~1e-3.
    return 0.5 * x * (1.0 + jnp.tanh(0.7978845608028654 * (x + 0.044715 * x * x * x)))


def _sigmoid(x):
    return 1.0 / (1.0 + jnp.exp(-x))


def _layernorm(x, g, b):
    mu = jnp.mean(x, axis=-1, keepdims=True)
    var = jnp.mean(jnp.square(x - mu), axis=-1, keepdims=True)
    return (x - mu) * jax.lax.rsqrt(var + LN_EPS) * g + b


def model_net_kernel(seq_bm_ref, seq_am_ref, metal_ref, struct_ref,
                     w1a_ref, w1b_ref, w2_ref, pv1_ref, pv2s_ref,
                     h0_ref, h1_ref, smallw_ref, vecw_ref, vecn_ref,
                     out_ref):
    vw = vecw_ref[...]                         # f32 [VW_ROWS, IN_DIM]
    vn = vecn_ref[...]                         # f32 [VN_ROWS, 512]

    def wide(r):
        return vw[r:r + 1, :]

    def nrow(r, d):
        return vn[r:r + 1, :d]

    def deq(ref):
        # int8 weight -> bf16 (values |q| <= 127 are exact in bf16); per-column
        # scale is applied to the matmul RESULT, not per weight element.
        return ref[...].astype(jnp.bfloat16)

    def mm(x, w):
        return jnp.dot(x.astype(jnp.bfloat16), w, preferred_element_type=jnp.float32)

    # ---- seq_difference: Linear(2*1048,1048) split over the concat ----
    # cat([seq_bm, seq_am]) @ W1 == seq_bm @ W1a + seq_am @ W1b
    h = mm(seq_bm_ref[0], deq(w1a_ref)) + mm(seq_am_ref[0], deq(w1b_ref))
    h = h * wide(RW_S1) + wide(RW_B1)
    h = _gelu(_layernorm(h, wide(RW_G1), wide(RW_BE1)))
    x = mm(h, deq(w2_ref)) * nrow(RN_S2, OUT_DIM) + nrow(RN_B2, OUT_DIM)
    seq = _gelu(_layernorm(x, nrow(RN_G2, OUT_DIM), nrow(RN_BE2, OUT_DIM)))

    # ---- gated fusion ----
    v1 = (mm(struct_ref[0], deq(pv1_ref)) * nrow(RN_SPV1, COMMON_DIM)
          + nrow(RN_PV1B, COMMON_DIM))
    v2 = (mm(seq, deq(pv2s_ref)) * nrow(RN_SPV2, COMMON_DIM)
          + mm(metal_ref[0], smallw_ref[SW_PV2M:SW_PV2M + 64, :COMMON_DIM])
          + nrow(RN_PV2B, COMMON_DIM))
    # gate: Linear(2*common, 1) as two lane-reduces (cat split), then sigmoid
    gate = _sigmoid(
        jnp.sum(v1 * nrow(RN_GW1, COMMON_DIM), axis=-1, keepdims=True)
        + jnp.sum(v2 * nrow(RN_GW2, COMMON_DIM), axis=-1, keepdims=True)
        + vn[RN_GB:RN_GB + 1, :1])
    x = gate * v1 + (1.0 - gate) * v2

    # ---- MLP head: Linear -> LayerNorm -> gelu (x6), then Linear(16,1) -> sigmoid ----
    for i in range(6):
        d = LAYER_DIMS[i]
        r = RN_H + 3 * i
        if i == 0:
            y = mm(x, deq(h0_ref)) * nrow(RN_SH0, 512)
        elif i == 1:
            y = mm(x, deq(h1_ref)) * nrow(RN_SH1, 256)
        elif i == 2:
            y = mm(x, smallw_ref[SW_H:SW_H + 256, 0:128])
        elif i == 3:
            y = mm(x, smallw_ref[SW_H:SW_H + 128, 128:192])
        elif i == 4:
            y = mm(x, smallw_ref[SW_H:SW_H + 64, 256:288])
        else:
            y = mm(x, smallw_ref[SW_H:SW_H + 32, 384:400])
        x = y + nrow(r, d)
        x = _gelu(_layernorm(x, nrow(r + 1, d), nrow(r + 2, d)))

    # final Linear(16, 1) as multiply + lane-reduce, then sigmoid
    y = jnp.sum(x * nrow(RN_W6, 16), axis=-1, keepdims=True) + vn[RN_B6:RN_B6 + 1, :1]
    out_ref[0] = jnp.broadcast_to(_sigmoid(y), (1, OUT_LANES))


# ----- deterministic parameter construction (torch Linear-style init) + packing -----
# NOTE: weights are built directly as [in, out]; torch stores [out, in], and the
# concat-order split assumptions (seq_bm|seq_am, seq|metal, v1|v2) are baked in.
def _linear(key, d_in, d_out):
    kw, kb = jax.random.split(key)
    bound = 1.0 / (d_in ** 0.5)
    w = jax.random.uniform(kw, (d_in, d_out), jnp.float32, -bound, bound)
    b = jax.random.uniform(kb, (d_out,), jnp.float32, -bound, bound)
    return w, b


def _quant_cols(w):
    # symmetric per-output-column int8 quantization
    s = jnp.max(jnp.abs(w), axis=0) / 127.0
    s = jnp.where(s > 0.0, s, 1.0)
    q = jnp.clip(jnp.round(w / s[None, :]), -127.0, 127.0).astype(jnp.int8)
    return q, s.astype(jnp.float32)


def init_params(key):
    ks = jax.random.split(key, 12)
    # seq_difference
    w1, b1 = _linear(ks[0], 2 * IN_DIM, IN_DIM)
    w2, b2 = _linear(ks[1], IN_DIM, OUT_DIM)
    # projections + gate
    pv1_w, pv1_b = _linear(ks[2], 2 * STRUCT_DIM, COMMON_DIM)
    pv2_w, pv2_b = _linear(ks[3], OUT_DIM + METAL_DIM, COMMON_DIM)
    gw, gb = _linear(ks[4], 2 * COMMON_DIM, 1)
    # MLP head
    head = []
    cur = OUT_DIM
    for i, d in enumerate(LAYER_DIMS):
        head.append(_linear(ks[5 + i], cur, d))
        cur = d

    # --- int8 large weights (column scales shared across the w1 concat halves) ---
    w1_q, s_w1 = _quant_cols(w1)
    pad_k = lambda q: jnp.pad(q, ((0, IN_PAD - IN_DIM), (0, 0)))
    w1a = pad_k(w1_q[:IN_DIM])
    w1b = pad_k(w1_q[IN_DIM:])
    w2_q, s_w2 = _quant_cols(w2)
    pv1_q, s_pv1 = _quant_cols(pv1_w)
    pv2s_q, s_pv2s = _quant_cols(pv2_w[:OUT_DIM])
    h0_q, s_h0 = _quant_cols(head[0][0])
    h1_q, s_h1 = _quant_cols(head[1][0])

    # --- packed bf16 small weights (lane-dense) ---
    smallw = jnp.zeros((SW_ROWS, 512), jnp.float32)
    smallw = smallw.at[SW_PV2M:SW_PV2M + METAL_DIM, :COMMON_DIM].set(pv2_w[OUT_DIM:])
    smallw = smallw.at[SW_H:SW_H + 256, 0:128].set(head[2][0])
    smallw = smallw.at[SW_H:SW_H + 128, 128:192].set(head[3][0])
    smallw = smallw.at[SW_H:SW_H + 64, 256:288].set(head[4][0])
    smallw = smallw.at[SW_H:SW_H + 32, 384:400].set(head[5][0])
    smallw = smallw.astype(jnp.bfloat16)

    # --- packed f32 vector params ---
    vecw = jnp.zeros((VW_ROWS, IN_DIM), jnp.float32)
    vecw = vecw.at[RW_B1, :].set(b1)
    vecw = vecw.at[RW_G1, :].set(1.0)          # LN gamma=1, beta row stays 0 (torch init)
    vecw = vecw.at[RW_S1, :].set(s_w1)

    vecn = jnp.zeros((VN_ROWS, 512), jnp.float32)

    def setn(v, r, arr):
        return v.at[r, :arr.shape[0]].set(arr)

    vecn = setn(vecn, RN_B2, b2)
    vecn = vecn.at[RN_G2, :OUT_DIM].set(1.0)
    vecn = setn(vecn, RN_S2, s_w2)
    vecn = setn(vecn, RN_PV1B, pv1_b)
    vecn = setn(vecn, RN_SPV1, s_pv1)
    vecn = setn(vecn, RN_PV2B, pv2_b)
    vecn = setn(vecn, RN_SPV2, s_pv2s)
    vecn = setn(vecn, RN_GW1, gw[:COMMON_DIM, 0])
    vecn = setn(vecn, RN_GW2, gw[COMMON_DIM:, 0])
    vecn = setn(vecn, RN_GB, gb)
    vecn = setn(vecn, RN_SH0, s_h0)
    vecn = setn(vecn, RN_SH1, s_h1)
    for i in range(6):
        d = LAYER_DIMS[i]
        r = RN_H + 3 * i
        vecn = setn(vecn, r, head[i][1])
        vecn = vecn.at[r + 1, :d].set(1.0)
    vecn = setn(vecn, RN_W6, head[6][0][:, 0])
    vecn = setn(vecn, RN_B6, head[6][1])

    return {
        "w1a": w1a, "w1b": w1b, "w2": w2_q, "pv1": pv1_q, "pv2s": pv2s_q,
        "h0": h0_q, "h1": h1_q, "smallw": smallw, "vecw": vecw, "vecn": vecn,
    }


def model_net_forward(seq_bm, seq_am, metal, struct_metal_fea, params):
    """1-D inputs: single sample (torch semantics, returns shape [1]).
    2-D [B, ...] inputs: batched over a 'parallel' grid axis, returns [B, 1]."""
    single = seq_bm.ndim == 1
    to2d = lambda v: v.reshape(1, -1) if v.ndim == 1 else v
    seq_bm, seq_am, metal, struct = map(to2d, (seq_bm, seq_am, metal, struct_metal_fea))
    B = seq_bm.shape[0]

    def prep(v, n):
        v = v.astype(jnp.float32)
        v = jnp.pad(v, ((0, 0), (0, n - v.shape[-1])))
        return v[:, None, :]                       # (B, 1, n): keeps block dims tile-legal

    seq_bm_p = prep(seq_bm, IN_PAD)
    seq_am_p = prep(seq_am, IN_PAD)
    metal_p = prep(metal, 64)
    struct_p = prep(struct, 2 * STRUCT_DIM)

    cw = lambda b: (0, 0)          # weights: VMEM-resident, batch-invariant (no re-DMA)
    cv = lambda b: (b, 0, 0)       # per-sample activations / output

    out = pl.pallas_call(
        model_net_kernel,
        out_shape=jax.ShapeDtypeStruct((B, 1, OUT_LANES), jnp.float32),
        grid_spec=pltpu.PrefetchScalarGridSpec(
            num_scalar_prefetch=0,
            grid=(B,),
            in_specs=[
                pl.BlockSpec((1, 1, IN_PAD), cv),                    # seq_bm (padded)
                pl.BlockSpec((1, 1, IN_PAD), cv),                    # seq_am (padded)
                pl.BlockSpec((1, 1, 64), cv),                        # metal (padded)
                pl.BlockSpec((1, 1, 2 * STRUCT_DIM), cv),            # struct_metal_fea
                pl.BlockSpec((IN_PAD, IN_DIM), cw),                  # w1a int8
                pl.BlockSpec((IN_PAD, IN_DIM), cw),                  # w1b int8
                pl.BlockSpec((IN_DIM, OUT_DIM), cw),                 # w2 int8
                pl.BlockSpec((2 * STRUCT_DIM, COMMON_DIM), cw),      # project_v1 int8
                pl.BlockSpec((OUT_DIM, COMMON_DIM), cw),             # project_v2 seq part int8
                pl.BlockSpec((512, 512), cw),                        # head Linear(512,512) int8
                pl.BlockSpec((512, 256), cw),                        # head Linear(512,256) int8
                pl.BlockSpec((SW_ROWS, 512), cw),                    # packed small weights bf16
                pl.BlockSpec((VW_ROWS, IN_DIM), cw),                 # wide f32 vector params
                pl.BlockSpec((VN_ROWS, 512), cw),                    # narrow f32 vector params
            ],
            out_specs=pl.BlockSpec((1, 1, OUT_LANES), cv),
        ),
        compiler_params=pltpu.CompilerParams(
            dimension_semantics=("parallel",),
            vmem_limit_bytes=32 * 1024 * 1024,
        ),
    )(seq_bm_p, seq_am_p, metal_p, struct_p,
      params["w1a"], params["w1b"], params["w2"], params["pv1"], params["pv2s"],
      params["h0"], params["h1"], params["smallw"], params["vecw"], params["vecn"])

    res = out[:, 0, :1]                            # (B, 1)
    return res[0] if single else res


if __name__ == "__main__":
    key = jax.random.PRNGKey(0)
    k_in, k_par = jax.random.split(key)
    ks = jax.random.split(k_in, 4)
    seq_bm = jax.random.normal(ks[0], (IN_DIM,), jnp.float32)
    seq_am = jax.random.normal(ks[1], (IN_DIM,), jnp.float32)
    metal = jax.random.normal(ks[2], (METAL_DIM,), jnp.float32)
    # TODO(synk): stand-in for DMPNN(graph, Atom_GTN(...)) output, shape [2*struct_dim]
    struct_metal_fea = jax.random.normal(ks[3], (STRUCT_DIM * 2,), jnp.float32)

    params = init_params(k_par)

    # single-sample path (exact Model_Net.forward semantics, output shape [1])
    out1 = model_net_forward(seq_bm, seq_am, metal, struct_metal_fea, params)
    jax.block_until_ready(out1)
    assert out1.shape == (1,)
    assert bool(jnp.all(jnp.isfinite(out1)))
    assert bool(jnp.all((out1 >= 0.0) & (out1 <= 1.0)))

    # batched path (B=2) exercising the 'parallel' batch grid axis
    stk = lambda v: jnp.stack([v, 0.5 * v])
    out_b = model_net_forward(stk(seq_bm), stk(seq_am), stk(metal),
                              stk(struct_metal_fea), params)
    jax.block_until_ready(out_b)
    assert out_b.shape == (2, 1)
    assert bool(jnp.all(jnp.isfinite(out_b)))
    assert bool(jnp.all((out_b >= 0.0) & (out_b <= 1.0)))

    print("KERNEL_OK")
</pallas_src>

<mosaic_0001>
module attributes {stable_mosaic.version = 11 : i64} {
  func.func @model_net_kernel(%arg0: i32, %arg1: memref<1x1x1056xf32, #tpu.memory_space<vmem>>, %arg2: memref<1x1x1056xf32, #tpu.memory_space<vmem>>, %arg3: memref<1x1x64xf32, #tpu.memory_space<vmem>>, %arg4: memref<1x1x1024xf32, #tpu.memory_space<vmem>>, %arg5: memref<1056x1048xi8, #tpu.memory_space<vmem>>, %arg6: memref<1056x1048xi8, #tpu.memory_space<vmem>>, %arg7: memref<1048x512xi8, #tpu.memory_space<vmem>>, %arg8: memref<1024x512xi8, #tpu.memory_space<vmem>>, %arg9: memref<512x512xi8, #tpu.memory_space<vmem>>, %arg10: memref<512x512xi8, #tpu.memory_space<vmem>>, %arg11: memref<512x256xi8, #tpu.memory_space<vmem>>, %arg12: memref<320x512xbf16, #tpu.memory_space<vmem>>, %arg13: memref<8x1048xf32, #tpu.memory_space<vmem>>, %arg14: memref<40x512xf32, #tpu.memory_space<vmem>>, %arg15: memref<1x1x128xf32, #tpu.memory_space<vmem>>) attributes {dimension_semantics = [#tpu.dimension_semantics<parallel>], iteration_bounds = array<i64: 1>, scalar_prefetch = 0 : i64, scratch_operands = 0 : i64, tpu.core_type = #tpu.core_type<tc>, window_params = [{transform_indices = @transform_0, window_bounds = array<i64: 1, 1, 1056>}, {transform_indices = @transform_1, window_bounds = array<i64: 1, 1, 1056>}, {transform_indices = @transform_2, window_bounds = array<i64: 1, 1, 64>}, {transform_indices = @transform_3, window_bounds = array<i64: 1, 1, 1024>}, {pipeline_mode = #tpu.pipeline_mode<synchronous>, transform_indices = @transform_4, window_bounds = array<i64: 1056, 1048>}, {pipeline_mode = #tpu.pipeline_mode<synchronous>, transform_indices = @transform_5, window_bounds = array<i64: 1056, 1048>}, {pipeline_mode = #tpu.pipeline_mode<synchronous>, transform_indices = @transform_6, window_bounds = array<i64: 1048, 512>}, {pipeline_mode = #tpu.pipeline_mode<synchronous>, transform_indices = @transform_7, window_bounds = array<i64: 1024, 512>}, {pipeline_mode = #tpu.pipeline_mode<synchronous>, transform_indices = @transform_8, window_bounds = array<i64: 512, 512>}, {pipeline_mode = #tpu.pipeline_mode<synchronous>, transform_indices = @transform_9, window_bounds = array<i64: 512, 512>}, {pipeline_mode = #tpu.pipeline_mode<synchronous>, transform_indices = @transform_10, window_bounds = array<i64: 512, 256>}, {pipeline_mode = #tpu.pipeline_mode<synchronous>, transform_indices = @transform_11, window_bounds = array<i64: 320, 512>}, {pipeline_mode = #tpu.pipeline_mode<synchronous>, transform_indices = @transform_12, window_bounds = array<i64: 8, 1048>}, {pipeline_mode = #tpu.pipeline_mode<synchronous>, transform_indices = @transform_13, window_bounds = array<i64: 40, 512>}, {transform_indices = @transform_14, window_bounds = array<i64: 1, 1, 128>}]} {
    %c0 = arith.constant 0 : index
    %c0_0 = arith.constant 0 : index
    %0 = vector.load %arg13[%c0, %c0_0] : memref<8x1048xf32, #tpu.memory_space<vmem>>, vector<8x1048xf32>
    %c0_1 = arith.constant 0 : index
    %c0_2 = arith.constant 0 : index
    %1 = vector.load %arg14[%c0_1, %c0_2] : memref<40x512xf32, #tpu.memory_space<vmem>>, vector<40x512xf32>
    %c0_3 = arith.constant 0 : index
    %c0_4 = arith.constant 0 : index
    %c0_5 = arith.constant 0 : index
    %2 = vector.load %arg1[%c0_3, %c0_4, %c0_5] : memref<1x1x1056xf32, #tpu.memory_space<vmem>>, vector<1x1x1056xf32>
    %3 = vector.shape_cast %2 : vector<1x1x1056xf32> to vector<1x1056xf32>
    %c0_6 = arith.constant 0 : index
    %c0_7 = arith.constant 0 : index
    %4 = vector.load %arg5[%c0_6, %c0_7] : memref<1056x1048xi8, #tpu.memory_space<vmem>>, vector<1056x1048xi8>
    %5 = arith.sitofp %4 : vector<1056x1048xi8> to vector<1056x1048xbf16>
    %6 = arith.truncf %3 : vector<1x1056xf32> to vector<1x1056xbf16>
    %cst = arith.constant dense<0.000000e+00> : vector<1x1048xf32>
    %7 = tpu.matmul %6, %5, %cst {dimension_numbers = #tpu.dot_dimension_numbers<[1], [0], [0], [1], [0, 0, 1, 1], [], []>} : vector<1x1056xbf16>, vector<1056x1048xbf16>, vector<1x1048xf32> -> vector<1x1048xf32>
    %c0_8 = arith.constant 0 : index
    %c0_9 = arith.constant 0 : index
    %c0_10 = arith.constant 0 : index
    %8 = vector.load %arg2[%c0_8, %c0_9, %c0_10] : memref<1x1x1056xf32, #tpu.memory_space<vmem>>, vector<1x1x1056xf32>
    %9 = vector.shape_cast %8 : vector<1x1x1056xf32> to vector<1x1056xf32>
    %c0_11 = arith.constant 0 : index
    %c0_12 = arith.constant 0 : index
    %10 = vector.load %arg6[%c0_11, %c0_12] : memref<1056x1048xi8, #tpu.memory_space<vmem>>, vector<1056x1048xi8>
    %11 = arith.sitofp %10 : vector<1056x1048xi8> to vector<1056x1048xbf16>
    %12 = arith.truncf %9 : vector<1x1056xf32> to vector<1x1056xbf16>
    %cst_13 = arith.constant dense<0.000000e+00> : vector<1x1048xf32>
    %13 = tpu.matmul %12, %11, %cst_13 {dimension_numbers = #tpu.dot_dimension_numbers<[1], [0], [0], [1], [0, 0, 1, 1], [], []>} : vector<1x1056xbf16>, vector<1056x1048xbf16>, vector<1x1048xf32> -> vector<1x1048xf32>
    %14 = arith.addf %7, %13 : vector<1x1048xf32>
    %15 = vector.extract_strided_slice %0 {offsets = [3, 0], sizes = [1, 1048], strides = [1, 1]} : vector<8x1048xf32> to vector<1x1048xf32>
    %16 = arith.mulf %14, %15 : vector<1x1048xf32>
    %17 = vector.extract_strided_slice %0 {offsets = [0, 0], sizes = [1, 1048], strides = [1, 1]} : vector<8x1048xf32> to vector<1x1048xf32>
    %18 = arith.addf %16, %17 : vector<1x1048xf32>
    %19 = vector.extract_strided_slice %0 {offsets = [1, 0], sizes = [1, 1048], strides = [1, 1]} : vector<8x1048xf32> to vector<1x1048xf32>
    %20 = vector.extract_strided_slice %0 {offsets = [2, 0], sizes = [1, 1048], strides = [1, 1]} : vector<8x1048xf32> to vector<1x1048xf32>
    %cst_14 = arith.constant dense<0.000000e+00> : vector<1xf32>
    %21 = vector.multi_reduction <add>, %18, %cst_14 [1] : vector<1x1048xf32> to vector<1xf32>
    %22 = vector.shape_cast %21 : vector<1xf32> to vector<1x1xf32>
    %cst_15 = arith.constant 1.048000e+03 : f32
    %23 = vector.broadcast %cst_15 : f32 to vector<1x1xf32>
    %24 = arith.divf %22, %23 : vector<1x1xf32>
    %25 = vector.broadcast %24 : vector<1x1xf32> to vector<1x1048xf32>
    %26 = arith.subf %18, %25 : vector<1x1048xf32>
    %27 = arith.mulf %26, %26 : vector<1x1048xf32>
    %cst_16 = arith.constant dense<0.000000e+00> : vector<1xf32>
    %28 = vector.multi_reduction <add>, %27, %cst_16 [1] : vector<1x1048xf32> to vector<1xf32>
    %29 = vector.shape_cast %28 : vector<1xf32> to vector<1x1xf32>
    %cst_17 = arith.constant 1.048000e+03 : f32
    %30 = vector.broadcast %cst_17 : f32 to vector<1x1xf32>
    %31 = arith.divf %29, %30 : vector<1x1xf32>
    %32 = vector.broadcast %24 : vector<1x1xf32> to vector<1x1048xf32>
    %33 = arith.subf %18, %32 : vector<1x1048xf32>
    %cst_18 = arith.constant 9.99999974E-6 : f32
    %34 = vector.broadcast %cst_18 : f32 to vector<1x1xf32>
    %35 = arith.addf %31, %34 : vector<1x1xf32>
    %36 = math.rsqrt %35 : vector<1x1xf32>
    %37 = vector.broadcast %36 : vector<1x1xf32> to vector<1x1048xf32>
    %38 = arith.mulf %33, %37 : vector<1x1048xf32>
    %39 = arith.mulf %38, %19 : vector<1x1048xf32>
    %40 = arith.addf %39, %20 : vector<1x1048xf32>
    %cst_19 = arith.constant 5.000000e-01 : f32
    %41 = vector.broadcast %cst_19 : f32 to vector<1x1048xf32>
    %42 = arith.mulf %41, %40 : vector<1x1048xf32>
    %cst_20 = arith.constant 4.471500e-02 : f32
    %43 = vector.broadcast %cst_20 : f32 to vector<1x1048xf32>
    %44 = arith.mulf %43, %40 : vector<1x1048xf32>
    %45 = arith.mulf %44, %40 : vector<1x1048xf32>
    %46 = arith.mulf %45, %40 : vector<1x1048xf32>
    %47 = arith.addf %40, %46 : vector<1x1048xf32>
    %cst_21 = arith.constant 0.797884583 : f32
    %48 = vector.broadcast %cst_21 : f32 to vector<1x1048xf32>
    %49 = arith.mulf %48, %47 : vector<1x1048xf32>
    %50 = math.tanh %49 : vector<1x1048xf32>
    %cst_22 = arith.constant 1.000000e+00 : f32
    %51 = vector.broadcast %cst_22 : f32 to vector<1x1048xf32>
    %52 = arith.addf %51, %50 : vector<1x1048xf32>
    %53 = arith.mulf %42, %52 : vector<1x1048xf32>
    %c0_23 = arith.constant 0 : index
    %c0_24 = arith.constant 0 : index
    %54 = vector.load %arg7[%c0_23, %c0_24] : memref<1048x512xi8, #tpu.memory_space<vmem>>, vector<1048x512xi8>
    %55 = arith.sitofp %54 : vector<1048x512xi8> to vector<1048x512xbf16>
    %56 = arith.truncf %53 : vector<1x1048xf32> to vector<1x1048xbf16>
    %cst_25 = arith.constant dense<0.000000e+00> : vector<1x512xf32>
    %57 = tpu.matmul %56, %55, %cst_25 {dimension_numbers = #tpu.dot_dimension_numbers<[1], [0], [0], [1], [0, 0, 1, 1], [], []>} : vector<1x1048xbf16>, vector<1048x512xbf16>, vector<1x512xf32> -> vector<1x512xf32>
    %58 = vector.extract_strided_slice %1 {offsets = [3, 0], sizes = [1, 512], strides = [1, 1]} : vector<40x512xf32> to vector<1x512xf32>
    %59 = arith.mulf %57, %58 : vector<1x512xf32>
    %60 = vector.extract_strided_slice %1 {offsets = [0, 0], sizes = [1, 512], strides = [1, 1]} : vector<40x512xf32> to vector<1x512xf32>
    %61 = arith.addf %59, %60 : vector<1x512xf32>
    %62 = vector.extract_strided_slice %1 {offsets = [1, 0], sizes = [1, 512], strides = [1, 1]} : vector<40x512xf32> to vector<1x512xf32>
    %63 = vector.extract_strided_slice %1 {offsets = [2, 0], sizes = [1, 512], strides = [1, 1]} : vector<40x512xf32> to vector<1x512xf32>
    %cst_26 = arith.constant dense<0.000000e+00> : vector<1xf32>
    %64 = vector.multi_reduction <add>, %61, %cst_26 [1] : vector<1x512xf32> to vector<1xf32>
    %65 = vector.shape_cast %64 : vector<1xf32> to vector<1x1xf32>
    %cst_27 = arith.constant 5.120000e+02 : f32
    %66 = vector.broadcast %cst_27 : f32 to vector<1x1xf32>
    %67 = arith.divf %65, %66 : vector<1x1xf32>
    %68 = vector.broadcast %67 : vector<1x1xf32> to vector<1x512xf32>
    %69 = arith.subf %61, %68 : vector<1x512xf32>
    %70 = arith.mulf %69, %69 : vector<1x512xf32>
    %cst_28 = arith.constant dense<0.000000e+00> : vector<1xf32>
    %71 = vector.multi_reduction <add>, %70, %cst_28 [1] : vector<1x512xf32> to vector<1xf32>
    %72 = vector.shape_cast %71 : vector<1xf32> to vector<1x1xf32>
    %cst_29 = arith.constant 5.120000e+02 : f32
    %73 = vector.broadcast %cst_29 : f32 to vector<1x1xf32>
    %74 = arith.divf %72, %73 : vector<1x1xf32>
    %75 = vector.broadcast %67 : vector<1x1xf32> to vector<1x512xf32>
    %76 = arith.subf %61, %75 : vector<1x512xf32>
    %cst_30 = arith.constant 9.99999974E-6 : f32
    %77 = vector.broadcast %cst_30 : f32 to vector<1x1xf32>
    %78 = arith.addf %74, %77 : vector<1x1xf32>
    %79 = math.rsqrt %78 : vector<1x1xf32>
    %80 = vector.broadcast %79 : vector<1x1xf32> to vector<1x512xf32>
    %81 = arith.mulf %76, %80 : vector<1x512xf32>
    %82 = arith.mulf %81, %62 : vector<1x512xf32>
    %83 = arith.addf %82, %63 : vector<1x512xf32>
    %cst_31 = arith.constant 5.000000e-01 : f32
    %84 = vector.broadcast %cst_31 : f32 to vector<1x512xf32>
    %85 = arith.mulf %84, %83 : vector<1x512xf32>
    %cst_32 = arith.constant 4.471500e-02 : f32
    %86 = vector.broadcast %cst_32 : f32 to vector<1x512xf32>
    %87 = arith.mulf %86, %83 : vector<1x512xf32>
    %88 = arith.mulf %87, %83 : vector<1x512xf32>
    %89 = arith.mulf %88, %83 : vector<1x512xf32>
    %90 = arith.addf %83, %89 : vector<1x512xf32>
    %cst_33 = arith.constant 0.797884583 : f32
    %91 = vector.broadcast %cst_33 : f32 to vector<1x512xf32>
    %92 = arith.mulf %91, %90 : vector<1x512xf32>
    %93 = math.tanh %92 : vector<1x512xf32>
    %cst_34 = arith.constant 1.000000e+00 : f32
    %94 = vector.broadcast %cst_34 : f32 to vector<1x512xf32>
    %95 = arith.addf %94, %93 : vector<1x512xf32>
    %96 = arith.mulf %85, %95 : vector<1x512xf32>
    %c0_35 = arith.constant 0 : index
    %c0_36 = arith.constant 0 : index
    %c0_37 = arith.constant 0 : index
    %97 = vector.load %arg4[%c0_35, %c0_36, %c0_37] : memref<1x1x1024xf32, #tpu.memory_space<vmem>>, vector<1x1x1024xf32>
    %98 = vector.shape_cast %97 : vector<1x1x1024xf32> to vector<1x1024xf32>
    %c0_38 = arith.constant 0 : index
    %c0_39 = arith.constant 0 : index
    %99 = vector.load %arg8[%c0_38, %c0_39] : memref<1024x512xi8, #tpu.memory_space<vmem>>, vector<1024x512xi8>
    %100 = arith.sitofp %99 : vector<1024x512xi8> to vector<1024x512xbf16>
    %101 = arith.truncf %98 : vector<1x1024xf32> to vector<1x1024xbf16>
    %cst_40 = arith.constant dense<0.000000e+00> : vector<1x512xf32>
    %102 = tpu.matmul %101, %100, %cst_40 {dimension_numbers = #tpu.dot_dimension_numbers<[1], [0], [0], [1], [0, 0, 1, 1], [], []>} : vector<1x1024xbf16>, vector<1024x512xbf16>, vector<1x512xf32> -> vector<1x512xf32>
    %103 = vector.extract_strided_slice %1 {offsets = [5, 0], sizes = [1, 512], strides = [1, 1]} : vector<40x512xf32> to vector<1x512xf32>
    %104 = arith.mulf %102, %103 : vector<1x512xf32>
    %105 = vector.extract_strided_slice %1 {offsets = [4, 0], sizes = [1, 512], strides = [1, 1]} : vector<40x512xf32> to vector<1x512xf32>
    %106 = arith.addf %104, %105 : vector<1x512xf32>
    %c0_41 = arith.constant 0 : index
    %c0_42 = arith.constant 0 : index
    %107 = vector.load %arg9[%c0_41, %c0_42] : memref<512x512xi8, #tpu.memory_space<vmem>>, vector<512x512xi8>
    %108 = arith.sitofp %107 : vector<512x512xi8> to vector<512x512xbf16>
    %109 = arith.truncf %96 : vector<1x512xf32> to vector<1x512xbf16>
    %cst_43 = arith.constant dense<0.000000e+00> : vector<1x512xf32>
    %110 = tpu.matmul %109, %108, %cst_43 {dimension_numbers = #tpu.dot_dimension_numbers<[1], [0], [0], [1], [0, 0, 1, 1], [], []>} : vector<1x512xbf16>, vector<512x512xbf16>, vector<1x512xf32> -> vector<1x512xf32>
    %111 = vector.extract_strided_slice %1 {offsets = [7, 0], sizes = [1, 512], strides = [1, 1]} : vector<40x512xf32> to vector<1x512xf32>
    %112 = arith.mulf %110, %111 : vector<1x512xf32>
    %c0_44 = arith.constant 0 : index
    %c0_45 = arith.constant 0 : index
    %c0_46 = arith.constant 0 : index
    %113 = vector.load %arg3[%c0_44, %c0_45, %c0_46] : memref<1x1x64xf32, #tpu.memory_space<vmem>>, vector<1x1x64xf32>
    %114 = vector.shape_cast %113 : vector<1x1x64xf32> to vector<1x64xf32>
    %c0_47 = arith.constant 0 : index
    %c0_48 = arith.constant 0 : index
    %115 = vector.load %arg12[%c0_47, %c0_48] : memref<320x512xbf16, #tpu.memory_space<vmem>>, vector<64x512xbf16>
    %116 = arith.truncf %114 : vector<1x64xf32> to vector<1x64xbf16>
    %cst_49 = arith.constant dense<0.000000e+00> : vector<1x512xf32>
    %117 = tpu.matmul %116, %115, %cst_49 {dimension_numbers = #tpu.dot_dimension_numbers<[1], [0], [0], [1], [0, 0, 1, 1], [], []>} : vector<1x64xbf16>, vector<64x512xbf16>, vector<1x512xf32> -> vector<1x512xf32>
    %118 = arith.addf %112, %117 : vector<1x512xf32>
    %119 = vector.extract_strided_slice %1 {offsets = [6, 0], sizes = [1, 512], strides = [1, 1]} : vector<40x512xf32> to vector<1x512xf32>
    %120 = arith.addf %118, %119 : vector<1x512xf32>
    %121 = vector.extract_strided_slice %1 {offsets = [8, 0], sizes = [1, 512], strides = [1, 1]} : vector<40x512xf32> to vector<1x512xf32>
    %122 = arith.mulf %106, %121 : vector<1x512xf32>
    %cst_50 = arith.constant dense<0.000000e+00> : vector<1xf32>
    %123 = vector.multi_reduction <add>, %122, %cst_50 [1] : vector<1x512xf32> to vector<1xf32>
    %124 = vector.shape_cast %123 : vector<1xf32> to vector<1x1xf32>
    %125 = vector.extract_strided_slice %1 {offsets = [9, 0], sizes = [1, 512], strides = [1, 1]} : vector<40x512xf32> to vector<1x512xf32>
    %126 = arith.mulf %120, %125 : vector<1x512xf32>
    %cst_51 = arith.constant dense<0.000000e+00> : vector<1xf32>
    %127 = vector.multi_reduction <add>, %126, %cst_51 [1] : vector<1x512xf32> to vector<1xf32>
    %128 = vector.shape_cast %127 : vector<1xf32> to vector<1x1xf32>
    %129 = arith.addf %124, %128 : vector<1x1xf32>
    %130 = vector.extract_strided_slice %1 {offsets = [10, 0], sizes = [1, 1], strides = [1, 1]} : vector<40x512xf32> to vector<1x1xf32>
    %131 = arith.addf %129, %130 : vector<1x1xf32>
    %cst_52 = arith.constant 0.000000e+00 : f32
    %132 = vector.broadcast %cst_52 : f32 to vector<1x1xf32>
    %133 = arith.subf %132, %131 : vector<1x1xf32>
    %134 = math.exp %133 : vector<1x1xf32>
    %cst_53 = arith.constant 1.000000e+00 : f32
    %135 = vector.broadcast %cst_53 : f32 to vector<1x1xf32>
    %136 = arith.addf %135, %134 : vector<1x1xf32>
    %cst_54 = arith.constant 1.000000e+00 : f32
    %137 = vector.broadcast %cst_54 : f32 to vector<1x1xf32>
    %138 = arith.divf %137, %136 : vector<1x1xf32>
    %139 = vector.broadcast %138 : vector<1x1xf32> to vector<1x512xf32>
    %140 = arith.mulf %139, %106 : vector<1x512xf32>
    %cst_55 = arith.constant 1.000000e+00 : f32
    %141 = vector.broadcast %cst_55 : f32 to vector<1x1xf32>
    %142 = arith.subf %141, %138 : vector<1x1xf32>
    %143 = vector.broadcast %142 : vector<1x1xf32> to vector<1x512xf32>
    %144 = arith.mulf %143, %120 : vector<1x512xf32>
    %145 = arith.addf %140, %144 : vector<1x512xf32>
    %c0_56 = arith.constant 0 : index
    %c0_57 = arith.constant 0 : index
    %146 = vector.load %arg10[%c0_56, %c0_57] : memref<512x512xi8, #tpu.memory_space<vmem>>, vector<512x512xi8>
    %147 = arith.sitofp %146 : vector<512x512xi8> to vector<512x512xbf16>
    %148 = arith.truncf %145 : vector<1x512xf32> to vector<1x512xbf16>
    %cst_58 = arith.constant dense<0.000000e+00> : vector<1x512xf32>
    %149 = tpu.matmul %148, %147, %cst_58 {dimension_numbers = #tpu.dot_dimension_numbers<[1], [0], [0], [1], [0, 0, 1, 1], [], []>} : vector<1x512xbf16>, vector<512x512xbf16>, vector<1x512xf32> -> vector<1x512xf32>
    %150 = vector.extract_strided_slice %1 {offsets = [11, 0], sizes = [1, 512], strides = [1, 1]} : vector<40x512xf32> to vector<1x512xf32>
    %151 = arith.mulf %149, %150 : vector<1x512xf32>
    %152 = vector.extract_strided_slice %1 {offsets = [13, 0], sizes = [1, 512], strides = [1, 1]} : vector<40x512xf32> to vector<1x512xf32>
    %153 = arith.addf %151, %152 : vector<1x512xf32>
    %154 = vector.extract_strided_slice %1 {offsets = [14, 0], sizes = [1, 512], strides = [1, 1]} : vector<40x512xf32> to vector<1x512xf32>
    %155 = vector.extract_strided_slice %1 {offsets = [15, 0], sizes = [1, 512], strides = [1, 1]} : vector<40x512xf32> to vector<1x512xf32>
    %cst_59 = arith.constant dense<0.000000e+00> : vector<1xf32>
    %156 = vector.multi_reduction <add>, %153, %cst_59 [1] : vector<1x512xf32> to vector<1xf32>
    %157 = vector.shape_cast %156 : vector<1xf32> to vector<1x1xf32>
    %cst_60 = arith.constant 5.120000e+02 : f32
    %158 = vector.broadcast %cst_60 : f32 to vector<1x1xf32>
    %159 = arith.divf %157, %158 : vector<1x1xf32>
    %160 = vector.broadcast %159 : vector<1x1xf32> to vector<1x512xf32>
    %161 = arith.subf %153, %160 : vector<1x512xf32>
    %162 = arith.mulf %161, %161 : vector<1x512xf32>
    %cst_61 = arith.constant dense<0.000000e+00> : vector<1xf32>
    %163 = vector.multi_reduction <add>, %162, %cst_61 [1] : vector<1x512xf32> to vector<1xf32>
    %164 = vector.shape_cast %163 : vector<1xf32> to vector<1x1xf32>
    %cst_62 = arith.constant 5.120000e+02 : f32
    %165 = vector.broadcast %cst_62 : f32 to vector<1x1xf32>
    %166 = arith.divf %164, %165 : vector<1x1xf32>
    %167 = vector.broadcast %159 : vector<1x1xf32> to vector<1x512xf32>
    %168 = arith.subf %153, %167 : vector<1x512xf32>
    %cst_63 = arith.constant 9.99999974E-6 : f32
    %169 = vector.broadcast %cst_63 : f32 to vector<1x1xf32>
    %170 = arith.addf %166, %169 : vector<1x1xf32>
    %171 = math.rsqrt %170 : vector<1x1xf32>
    %172 = vector.broadcast %171 : vector<1x1xf32> to vector<1x512xf32>
    %173 = arith.mulf %168, %172 : vector<1x512xf32>
    %174 = arith.mulf %173, %154 : vector<1x512xf32>
    %175 = arith.addf %174, %155 : vector<1x512xf32>
    %cst_64 = arith.constant 5.000000e-01 : f32
    %176 = vector.broadcast %cst_64 : f32 to vector<1x512xf32>
    %177 = arith.mulf %176, %175 : vector<1x512xf32>
    %cst_65 = arith.constant 4.471500e-02 : f32
    %178 = vector.broadcast %cst_65 : f32 to vector<1x512xf32>
    %179 = arith.mulf %178, %175 : vector<1x512xf32>
    %180 = arith.mulf %179, %175 : vector<1x512xf32>
    %181 = arith.mulf %180, %175 : vector<1x512xf32>
    %182 = arith.addf %175, %181 : vector<1x512xf32>
    %cst_66 = arith.constant 0.797884583 : f32
    %183 = vector.broadcast %cst_66 : f32 to vector<1x512xf32>
    %184 = arith.mulf %183, %182 : vector<1x512xf32>
    %185 = math.tanh %184 : vector<1x512xf32>
    %cst_67 = arith.constant 1.000000e+00 : f32
    %186 = vector.broadcast %cst_67 : f32 to vector<1x512xf32>
    %187 = arith.addf %186, %185 : vector<1x512xf32>
    %188 = arith.mulf %177, %187 : vector<1x512xf32>
    %c0_68 = arith.constant 0 : index
    %c0_69 = arith.constant 0 : index
    %189 = vector.load %arg11[%c0_68, %c0_69] : memref<512x256xi8, #tpu.memory_space<vmem>>, vector<512x256xi8>
    %190 = arith.sitofp %189 : vector<512x256xi8> to vector<512x256xbf16>
    %191 = arith.truncf %188 : vector<1x512xf32> to vector<1x512xbf16>
    %cst_70 = arith.constant dense<0.000000e+00> : vector<1x256xf32>
    %192 = tpu.matmul %191, %190, %cst_70 {dimension_numbers = #tpu.dot_dimension_numbers<[1], [0], [0], [1], [0, 0, 1, 1], [], []>} : vector<1x512xbf16>, vector<512x256xbf16>, vector<1x256xf32> -> vector<1x256xf32>
    %193 = vector.extract_strided_slice %1 {offsets = [12, 0], sizes = [1, 256], strides = [1, 1]} : vector<40x512xf32> to vector<1x256xf32>
    %194 = arith.mulf %192, %193 : vector<1x256xf32>
    %195 = vector.extract_strided_slice %1 {offsets = [16, 0], sizes = [1, 256], strides = [1, 1]} : vector<40x512xf32> to vector<1x256xf32>
    %196 = arith.addf %194, %195 : vector<1x256xf32>
    %197 = vector.extract_strided_slice %1 {offsets = [17, 0], sizes = [1, 256], strides = [1, 1]} : vector<40x512xf32> to vector<1x256xf32>
    %198 = vector.extract_strided_slice %1 {offsets = [18, 0], sizes = [1, 256], strides = [1, 1]} : vector<40x512xf32> to vector<1x256xf32>
    %cst_71 = arith.constant dense<0.000000e+00> : vector<1xf32>
    %199 = vector.multi_reduction <add>, %196, %cst_71 [1] : vector<1x256xf32> to vector<1xf32>
    %200 = vector.shape_cast %199 : vector<1xf32> to vector<1x1xf32>
    %cst_72 = arith.constant 2.560000e+02 : f32
    %201 = vector.broadcast %cst_72 : f32 to vector<1x1xf32>
    %202 = arith.divf %200, %201 : vector<1x1xf32>
    %203 = vector.broadcast %202 : vector<1x1xf32> to vector<1x256xf32>
    %204 = arith.subf %196, %203 : vector<1x256xf32>
    %205 = arith.mulf %204, %204 : vector<1x256xf32>
    %cst_73 = arith.constant dense<0.000000e+00> : vector<1xf32>
    %206 = vector.multi_reduction <add>, %205, %cst_73 [1] : vector<1x256xf32> to vector<1xf32>
    %207 = vector.shape_cast %206 : vector<1xf32> to vector<1x1xf32>
    %cst_74 = arith.constant 2.560000e+02 : f32
    %208 = vector.broadcast %cst_74 : f32 to vector<1x1xf32>
    %209 = arith.divf %207, %208 : vector<1x1xf32>
    %210 = vector.broadcast %202 : vector<1x1xf32> to vector<1x256xf32>
    %211 = arith.subf %196, %210 : vector<1x256xf32>
    %cst_75 = arith.constant 9.99999974E-6 : f32
    %212 = vector.broadcast %cst_75 : f32 to vector<1x1xf32>
    %213 = arith.addf %209, %212 : vector<1x1xf32>
    %214 = math.rsqrt %213 : vector<1x1xf32>
    %215 = vector.broadcast %214 : vector<1x1xf32> to vector<1x256xf32>
    %216 = arith.mulf %211, %215 : vector<1x256xf32>
    %217 = arith.mulf %216, %197 : vector<1x256xf32>
    %218 = arith.addf %217, %198 : vector<1x256xf32>
    %cst_76 = arith.constant 5.000000e-01 : f32
    %219 = vector.broadcast %cst_76 : f32 to vector<1x256xf32>
    %220 = arith.mulf %219, %218 : vector<1x256xf32>
    %cst_77 = arith.constant 4.471500e-02 : f32
    %221 = vector.broadcast %cst_77 : f32 to vector<1x256xf32>
    %222 = arith.mulf %221, %218 : vector<1x256xf32>
    %223 = arith.mulf %222, %218 : vector<1x256xf32>
    %224 = arith.mulf %223, %218 : vector<1x256xf32>
    %225 = arith.addf %218, %224 : vector<1x256xf32>
    %cst_78 = arith.constant 0.797884583 : f32
    %226 = vector.broadcast %cst_78 : f32 to vector<1x256xf32>
    %227 = arith.mulf %226, %225 : vector<1x256xf32>
    %228 = math.tanh %227 : vector<1x256xf32>
    %cst_79 = arith.constant 1.000000e+00 : f32
    %229 = vector.broadcast %cst_79 : f32 to vector<1x256xf32>
    %230 = arith.addf %229, %228 : vector<1x256xf32>
    %231 = arith.mulf %220, %230 : vector<1x256xf32>
    %c64 = arith.constant 64 : index
    %c0_80 = arith.constant 0 : index
    %232 = vector.load %arg12[%c64, %c0_80] : memref<320x512xbf16, #tpu.memory_space<vmem>>, vector<256x128xbf16>
    %233 = arith.truncf %231 : vector<1x256xf32> to vector<1x256xbf16>
    %cst_81 = arith.constant dense<0.000000e+00> : vector<1x128xf32>
    %234 = tpu.matmul %233, %232, %cst_81 {dimension_numbers = #tpu.dot_dimension_numbers<[1], [0], [0], [1], [0, 0, 1, 1], [], []>} : vector<1x256xbf16>, vector<256x128xbf16>, vector<1x128xf32> -> vector<1x128xf32>
    %235 = vector.extract_strided_slice %1 {offsets = [19, 0], sizes = [1, 128], strides = [1, 1]} : vector<40x512xf32> to vector<1x128xf32>
    %236 = arith.addf %234, %235 : vector<1x128xf32>
    %237 = vector.extract_strided_slice %1 {offsets = [20, 0], sizes = [1, 128], strides = [1, 1]} : vector<40x512xf32> to vector<1x128xf32>
    %238 = vector.extract_strided_slice %1 {offsets = [21, 0], sizes = [1, 128], strides = [1, 1]} : vector<40x512xf32> to vector<1x128xf32>
    %cst_82 = arith.constant dense<0.000000e+00> : vector<1xf32>
    %239 = vector.multi_reduction <add>, %236, %cst_82 [1] : vector<1x128xf32> to vector<1xf32>
    %240 = vector.shape_cast %239 : vector<1xf32> to vector<1x1xf32>
    %cst_83 = arith.constant 1.280000e+02 : f32
    %241 = vector.broadcast %cst_83 : f32 to vector<1x1xf32>
    %242 = arith.divf %240, %241 : vector<1x1xf32>
    %243 = vector.broadcast %242 : vector<1x1xf32> to vector<1x128xf32>
    %244 = arith.subf %236, %243 : vector<1x128xf32>
    %245 = arith.mulf %244, %244 : vector<1x128xf32>
    %cst_84 = arith.constant dense<0.000000e+00> : vector<1xf32>
    %246 = vector.multi_reduction <add>, %245, %cst_84 [1] : vector<1x128xf32> to vector<1xf32>
    %247 = vector.shape_cast %246 : vector<1xf32> to vector<1x1xf32>
    %cst_85 = arith.constant 1.280000e+02 : f32
    %248 = vector.broadcast %cst_85 : f32 to vector<1x1xf32>
    %249 = arith.divf %247, %248 : vector<1x1xf32>
    %250 = vector.broadcast %242 : vector<1x1xf32> to vector<1x128xf32>
    %251 = arith.subf %236, %250 : vector<1x128xf32>
    %cst_86 = arith.constant 9.99999974E-6 : f32
    %252 = vector.broadcast %cst_86 : f32 to vector<1x1xf32>
    %253 = arith.addf %249, %252 : vector<1x1xf32>
    %254 = math.rsqrt %253 : vector<1x1xf32>
    %255 = vector.broadcast %254 : vector<1x1xf32> to vector<1x128xf32>
    %256 = arith.mulf %251, %255 : vector<1x128xf32>
    %257 = arith.mulf %256, %237 : vector<1x128xf32>
    %258 = arith.addf %257, %238 : vector<1x128xf32>
    %cst_87 = arith.constant 5.000000e-01 : f32
    %259 = vector.broadcast %cst_87 : f32 to vector<1x128xf32>
    %260 = arith.mulf %259, %258 : vector<1x128xf32>
    %cst_88 = arith.constant 4.471500e-02 : f32
    %261 = vector.broadcast %cst_88 : f32 to vector<1x128xf32>
    %262 = arith.mulf %261, %258 : vector<1x128xf32>
    %263 = arith.mulf %262, %258 : vector<1x128xf32>
    %264 = arith.mulf %263, %258 : vector<1x128xf32>
    %265 = arith.addf %258, %264 : vector<1x128xf32>
    %cst_89 = arith.constant 0.797884583 : f32
    %266 = vector.broadcast %cst_89 : f32 to vector<1x128xf32>
    %267 = arith.mulf %266, %265 : vector<1x128xf32>
    %268 = math.tanh %267 : vector<1x128xf32>
    %cst_90 = arith.constant 1.000000e+00 : f32
    %269 = vector.broadcast %cst_90 : f32 to vector<1x128xf32>
    %270 = arith.addf %269, %268 : vector<1x128xf32>
    %271 = arith.mulf %260, %270 : vector<1x128xf32>
    %c64_91 = arith.constant 64 : index
    %c128 = arith.constant 128 : index
    %272 = vector.load %arg12[%c64_91, %c128] : memref<320x512xbf16, #tpu.memory_space<vmem>>, vector<128x64xbf16>
    %273 = arith.truncf %271 : vector<1x128xf32> to vector<1x128xbf16>
    %cst_92 = arith.constant dense<0.000000e+00> : vector<1x64xf32>
    %274 = tpu.matmul %273, %272, %cst_92 {dimension_numbers = #tpu.dot_dimension_numbers<[1], [0], [0], [1], [0, 0, 1, 1], [], []>} : vector<1x128xbf16>, vector<128x64xbf16>, vector<1x64xf32> -> vector<1x64xf32>
    %275 = vector.extract_strided_slice %1 {offsets = [22, 0], sizes = [1, 64], strides = [1, 1]} : vector<40x512xf32> to vector<1x64xf32>
    %276 = arith.addf %274, %275 : vector<1x64xf32>
    %277 = vector.extract_strided_slice %1 {offsets = [23, 0], sizes = [1, 64], strides = [1, 1]} : vector<40x512xf32> to vector<1x64xf32>
    %278 = vector.extract_strided_slice %1 {offsets = [24, 0], sizes = [1, 64], strides = [1, 1]} : vector<40x512xf32> to vector<1x64xf32>
    %cst_93 = arith.constant dense<0.000000e+00> : vector<1xf32>
    %279 = vector.multi_reduction <add>, %276, %cst_93 [1] : vector<1x64xf32> to vector<1xf32>
    %280 = vector.shape_cast %279 : vector<1xf32> to vector<1x1xf32>
    %cst_94 = arith.constant 6.400000e+01 : f32
    %281 = vector.broadcast %cst_94 : f32 to vector<1x1xf32>
    %282 = arith.divf %280, %281 : vector<1x1xf32>
    %283 = vector.broadcast %282 : vector<1x1xf32> to vector<1x64xf32>
    %284 = arith.subf %276, %283 : vector<1x64xf32>
    %285 = arith.mulf %284, %284 : vector<1x64xf32>
    %cst_95 = arith.constant dense<0.000000e+00> : vector<1xf32>
    %286 = vector.multi_reduction <add>, %285, %cst_95 [1] : vector<1x64xf32> to vector<1xf32>
    %287 = vector.shape_cast %286 : vector<1xf32> to vector<1x1xf32>
    %cst_96 = arith.constant 6.400000e+01 : f32
    %288 = vector.broadcast %cst_96 : f32 to vector<1x1xf32>
    %289 = arith.divf %287, %288 : vector<1x1xf32>
    %290 = vector.broadcast %282 : vector<1x1xf32> to vector<1x64xf32>
    %291 = arith.subf %276, %290 : vector<1x64xf32>
    %cst_97 = arith.constant 9.99999974E-6 : f32
    %292 = vector.broadcast %cst_97 : f32 to vector<1x1xf32>
    %293 = arith.addf %289, %292 : vector<1x1xf32>
    %294 = math.rsqrt %293 : vector<1x1xf32>
    %295 = vector.broadcast %294 : vector<1x1xf32> to vector<1x64xf32>
    %296 = arith.mulf %291, %295 : vector<1x64xf32>
    %297 = arith.mulf %296, %277 : vector<1x64xf32>
    %298 = arith.addf %297, %278 : vector<1x64xf32>
    %cst_98 = arith.constant 5.000000e-01 : f32
    %299 = vector.broadcast %cst_98 : f32 to vector<1x64xf32>
    %300 = arith.mulf %299, %298 : vector<1x64xf32>
    %cst_99 = arith.constant 4.471500e-02 : f32
    %301 = vector.broadcast %cst_99 : f32 to vector<1x64xf32>
    %302 = arith.mulf %301, %298 : vector<1x64xf32>
    %303 = arith.mulf %302, %298 : vector<1x64xf32>
    %304 = arith.mulf %303, %298 : vector<1x64xf32>
    %305 = arith.addf %298, %304 : vector<1x64xf32>
    %cst_100 = arith.constant 0.797884583 : f32
    %306 = vector.broadcast %cst_100 : f32 to vector<1x64xf32>
    %307 = arith.mulf %306, %305 : vector<1x64xf32>
    %308 = math.tanh %307 : vector<1x64xf32>
    %cst_101 = arith.constant 1.000000e+00 : f32
    %309 = vector.broadcast %cst_101 : f32 to vector<1x64xf32>
    %310 = arith.addf %309, %308 : vector<1x64xf32>
    %311 = arith.mulf %300, %310 : vector<1x64xf32>
    %c64_102 = arith.constant 64 : index
    %c256 = arith.constant 256 : index
    %312 = vector.load %arg12[%c64_102, %c256] : memref<320x512xbf16, #tpu.memory_space<vmem>>, vector<64x32xbf16>
    %313 = arith.truncf %311 : vector<1x64xf32> to vector<1x64xbf16>
    %cst_103 = arith.constant dense<0.000000e+00> : vector<1x32xf32>
    %314 = tpu.matmul %313, %312, %cst_103 {dimension_numbers = #tpu.dot_dimension_numbers<[1], [0], [0], [1], [0, 0, 1, 1], [], []>} : vector<1x64xbf16>, vector<64x32xbf16>, vector<1x32xf32> -> vector<1x32xf32>
    %315 = vector.extract_strided_slice %1 {offsets = [25, 0], sizes = [1, 32], strides = [1, 1]} : vector<40x512xf32> to vector<1x32xf32>
    %316 = arith.addf %314, %315 : vector<1x32xf32>
    %317 = vector.extract_strided_slice %1 {offsets = [26, 0], sizes = [1, 32], strides = [1, 1]} : vector<40x512xf32> to vector<1x32xf32>
    %318 = vector.extract_strided_slice %1 {offsets = [27, 0], sizes = [1, 32], strides = [1, 1]} : vector<40x512xf32> to vector<1x32xf32>
    %cst_104 = arith.constant dense<0.000000e+00> : vector<1xf32>
    %319 = vector.multi_reduction <add>, %316, %cst_104 [1] : vector<1x32xf32> to vector<1xf32>
    %320 = vector.shape_cast %319 : vector<1xf32> to vector<1x1xf32>
    %cst_105 = arith.constant 3.200000e+01 : f32
    %321 = vector.broadcast %cst_105 : f32 to vector<1x1xf32>
    %322 = arith.divf %320, %321 : vector<1x1xf32>
    %323 = vector.broadcast %322 : vector<1x1xf32> to vector<1x32xf32>
    %324 = arith.subf %316, %323 : vector<1x32xf32>
    %325 = arith.mulf %324, %324 : vector<1x32xf32>
    %cst_106 = arith.constant dense<0.000000e+00> : vector<1xf32>
    %326 = vector.multi_reduction <add>, %325, %cst_106 [1] : vector<1x32xf32> to vector<1xf32>
    %327 = vector.shape_cast %326 : vector<1xf32> to vector<1x1xf32>
    %cst_107 = arith.constant 3.200000e+01 : f32
    %328 = vector.broadcast %cst_107 : f32 to vector<1x1xf32>
    %329 = arith.divf %327, %328 : vector<1x1xf32>
    %330 = vector.broadcast %322 : vector<1x1xf32> to vector<1x32xf32>
    %331 = arith.subf %316, %330 : vector<1x32xf32>
    %cst_108 = arith.constant 9.99999974E-6 : f32
    %332 = vector.broadcast %cst_108 : f32 to vector<1x1xf32>
    %333 = arith.addf %329, %332 : vector<1x1xf32>
    %334 = math.rsqrt %333 : vector<1x1xf32>
    %335 = vector.broadcast %334 : vector<1x1xf32> to vector<1x32xf32>
    %336 = arith.mulf %331, %335 : vector<1x32xf32>
    %337 = arith.mulf %336, %317 : vector<1x32xf32>
    %338 = arith.addf %337, %318 : vector<1x32xf32>
    %cst_109 = arith.constant 5.000000e-01 : f32
    %339 = vector.broadcast %cst_109 : f32 to vector<1x32xf32>
    %340 = arith.mulf %339, %338 : vector<1x32xf32>
    %cst_110 = arith.constant 4.471500e-02 : f32
    %341 = vector.broadcast %cst_110 : f32 to vector<1x32xf32>
    %342 = arith.mulf %341, %338 : vector<1x32xf32>
    %343 = arith.mulf %342, %338 : vector<1x32xf32>
    %344 = arith.mulf %343, %338 : vector<1x32xf32>
    %345 = arith.addf %338, %344 : vector<1x32xf32>
    %cst_111 = arith.constant 0.797884583 : f32
    %346 = vector.broadcast %cst_111 : f32 to vector<1x32xf32>
    %347 = arith.mulf %346, %345 : vector<1x32xf32>
    %348 = math.tanh %347 : vector<1x32xf32>
    %cst_112 = arith.constant 1.000000e+00 : f32
    %349 = vector.broadcast %cst_112 : f32 to vector<1x32xf32>
    %350 = arith.addf %349, %348 : vector<1x32xf32>
    %351 = arith.mulf %340, %350 : vector<1x32xf32>
    %c64_113 = arith.constant 64 : index
    %c384 = arith.constant 384 : index
    %352 = vector.load %arg12[%c64_113, %c384] : memref<320x512xbf16, #tpu.memory_space<vmem>>, vector<32x16xbf16>
    %353 = arith.truncf %351 : vector<1x32xf32> to vector<1x32xbf16>
    %cst_114 = arith.constant dense<0.000000e+00> : vector<1x16xf32>
    %354 = tpu.matmul %353, %352, %cst_114 {dimension_numbers = #tpu.dot_dimension_numbers<[1], [0], [0], [1], [0, 0, 1, 1], [], []>} : vector<1x32xbf16>, vector<32x16xbf16>, vector<1x16xf32> -> vector<1x16xf32>
    %355 = vector.extract_strided_slice %1 {offsets = [28, 0], sizes = [1, 16], strides = [1, 1]} : vector<40x512xf32> to vector<1x16xf32>
    %356 = arith.addf %354, %355 : vector<1x16xf32>
    %357 = vector.extract_strided_slice %1 {offsets = [29, 0], sizes = [1, 16], strides = [1, 1]} : vector<40x512xf32> to vector<1x16xf32>
    %358 = vector.extract_strided_slice %1 {offsets = [30, 0], sizes = [1, 16], strides = [1, 1]} : vector<40x512xf32> to vector<1x16xf32>
    %cst_115 = arith.constant dense<0.000000e+00> : vector<1xf32>
    %359 = vector.multi_reduction <add>, %356, %cst_115 [1] : vector<1x16xf32> to vector<1xf32>
    %360 = vector.shape_cast %359 : vector<1xf32> to vector<1x1xf32>
    %cst_116 = arith.constant 1.600000e+01 : f32
    %361 = vector.broadcast %cst_116 : f32 to vector<1x1xf32>
    %362 = arith.divf %360, %361 : vector<1x1xf32>
    %363 = vector.broadcast %362 : vector<1x1xf32> to vector<1x16xf32>
    %364 = arith.subf %356, %363 : vector<1x16xf32>
    %365 = arith.mulf %364, %364 : vector<1x16xf32>
    %cst_117 = arith.constant dense<0.000000e+00> : vector<1xf32>
    %366 = vector.multi_reduction <add>, %365, %cst_117 [1] : vector<1x16xf32> to vector<1xf32>
    %367 = vector.shape_cast %366 : vector<1xf32> to vector<1x1xf32>
    %cst_118 = arith.constant 1.600000e+01 : f32
    %368 = vector.broadcast %cst_118 : f32 to vector<1x1xf32>
    %369 = arith.divf %367, %368 : vector<1x1xf32>
    %370 = vector.broadcast %362 : vector<1x1xf32> to vector<1x16xf32>
    %371 = arith.subf %356, %370 : vector<1x16xf32>
    %cst_119 = arith.constant 9.99999974E-6 : f32
    %372 = vector.broadcast %cst_119 : f32 to vector<1x1xf32>
    %373 = arith.addf %369, %372 : vector<1x1xf32>
    %374 = math.rsqrt %373 : vector<1x1xf32>
    %375 = vector.broadcast %374 : vector<1x1xf32> to vector<1x16xf32>
    %376 = arith.mulf %371, %375 : vector<1x16xf32>
    %377 = arith.mulf %376, %357 : vector<1x16xf32>
    %378 = arith.addf %377, %358 : vector<1x16xf32>
    %cst_120 = arith.constant 5.000000e-01 : f32
    %379 = vector.broadcast %cst_120 : f32 to vector<1x16xf32>
    %380 = arith.mulf %379, %378 : vector<1x16xf32>
    %cst_121 = arith.constant 4.471500e-02 : f32
    %381 = vector.broadcast %cst_121 : f32 to vector<1x16xf32>
    %382 = arith.mulf %381, %378 : vector<1x16xf32>
    %383 = arith.mulf %382, %378 : vector<1x16xf32>
    %384 = arith.mulf %383, %378 : vector<1x16xf32>
    %385 = arith.addf %378, %384 : vector<1x16xf32>
    %cst_122 = arith.constant 0.797884583 : f32
    %386 = vector.broadcast %cst_122 : f32 to vector<1x16xf32>
    %387 = arith.mulf %386, %385 : vector<1x16xf32>
    %388 = math.tanh %387 : vector<1x16xf32>
    %cst_123 = arith.constant 1.000000e+00 : f32
    %389 = vector.broadcast %cst_123 : f32 to vector<1x16xf32>
    %390 = arith.addf %389, %388 : vector<1x16xf32>
    %391 = arith.mulf %380, %390 : vector<1x16xf32>
    %392 = vector.extract_strided_slice %1 {offsets = [31, 0], sizes = [1, 16], strides = [1, 1]} : vector<40x512xf32> to vector<1x16xf32>
    %393 = arith.mulf %391, %392 : vector<1x16xf32>
    %cst_124 = arith.constant dense<0.000000e+00> : vector<1xf32>
    %394 = vector.multi_reduction <add>, %393, %cst_124 [1] : vector<1x16xf32> to vector<1xf32>
    %395 = vector.shape_cast %394 : vector<1xf32> to vector<1x1xf32>
    %396 = vector.extract_strided_slice %1 {offsets = [32, 0], sizes = [1, 1], strides = [1, 1]} : vector<40x512xf32> to vector<1x1xf32>
    %397 = arith.addf %395, %396 : vector<1x1xf32>
    %cst_125 = arith.constant 0.000000e+00 : f32
    %398 = vector.broadcast %cst_125 : f32 to vector<1x1xf32>
    %399 = arith.subf %398, %397 : vector<1x1xf32>
    %400 = math.exp %399 : vector<1x1xf32>
    %cst_126 = arith.constant 1.000000e+00 : f32
    %401 = vector.broadcast %cst_126 : f32 to vector<1x1xf32>
    %402 = arith.addf %401, %400 : vector<1x1xf32>
    %cst_127 = arith.constant 1.000000e+00 : f32
    %403 = vector.broadcast %cst_127 : f32 to vector<1x1xf32>
    %404 = arith.divf %403, %402 : vector<1x1xf32>
    %405 = vector.shape_cast %404 : vector<1x1xf32> to vector<1x1xf32>
    %406 = vector.broadcast %405 : vector<1x1xf32> to vector<1x128xf32>
    %c0_128 = arith.constant 0 : index
    %c0_129 = arith.constant 0 : index
    %c0_130 = arith.constant 0 : index
    %407 = vector.load %arg15[%c0_128, %c0_129, %c0_130] : memref<1x1x128xf32, #tpu.memory_space<vmem>>, vector<1x1x128xf32>
    %408 = vector.shape_cast %407 : vector<1x1x128xf32> to vector<1x128xf32>
    %409 = vector.shape_cast %406 : vector<1x128xf32> to vector<1x1x128xf32>
    tpu.vector_store %arg15[%c0_128, %c0_129, %c0_130], %409 {strides = array<i32>} : memref<1x1x128xf32, #tpu.memory_space<vmem>>, vector<1x1x128xf32>,
    return
  }
  func.func @transform_0(%arg0: i32) -> (i32, i32, i32) {
    %c0_i32 = arith.constant 0 : i32
    %c0_i32_0 = arith.constant 0 : i32
    %c0_i32_1 = arith.constant 0 : i32
    return %arg0, %c0_i32, %c0_i32_0 : i32, i32, i32
  }
  func.func @transform_1(%arg0: i32) -> (i32, i32, i32) {
    %c0_i32 = arith.constant 0 : i32
    %c0_i32_0 = arith.constant 0 : i32
    %c0_i32_1 = arith.constant 0 : i32
    return %arg0, %c0_i32, %c0_i32_0 : i32, i32, i32
  }
  func.func @transform_2(%arg0: i32) -> (i32, i32, i32) {
    %c0_i32 = arith.constant 0 : i32
    %c0_i32_0 = arith.constant 0 : i32
    %c0_i32_1 = arith.constant 0 : i32
    return %arg0, %c0_i32, %c0_i32_0 : i32, i32, i32
  }
  func.func @transform_3(%arg0: i32) -> (i32, i32, i32) {
    %c0_i32 = arith.constant 0 : i32
    %c0_i32_0 = arith.constant 0 : i32
    %c0_i32_1 = arith.constant 0 : i32
    return %arg0, %c0_i32, %c0_i32_0 : i32, i32, i32
  }
  func.func @transform_4(%arg0: i32) -> (i32, i32) {
    %c0_i32 = arith.constant 0 : i32
    %c0_i32_0 = arith.constant 0 : i32
    %c0_i32_1 = arith.constant 0 : i32
    return %c0_i32, %c0_i32_0 : i32, i32
  }
  func.func @transform_5(%arg0: i32) -> (i32, i32) {
    %c0_i32 = arith.constant 0 : i32
    %c0_i32_0 = arith.constant 0 : i32
    %c0_i32_1 = arith.constant 0 : i32
    return %c0_i32, %c0_i32_0 : i32, i32
  }
  func.func @transform_6(%arg0: i32) -> (i32, i32) {
    %c0_i32 = arith.constant 0 : i32
    %c0_i32_0 = arith.constant 0 : i32
    %c0_i32_1 = arith.constant 0 : i32
    return %c0_i32, %c0_i32_0 : i32, i32
  }
  func.func @transform_7(%arg0: i32) -> (i32, i32) {
    %c0_i32 = arith.constant 0 : i32
    %c0_i32_0 = arith.constant 0 : i32
    %c0_i32_1 = arith.constant 0 : i32
    return %c0_i32, %c0_i32_0 : i32, i32
  }
  func.func @transform_8(%arg0: i32) -> (i32, i32) {
    %c0_i32 = arith.constant 0 : i32
    %c0_i32_0 = arith.constant 0 : i32
    %c0_i32_1 = arith.constant 0 : i32
    return %c0_i32, %c0_i32_0 : i32, i32
  }
  func.func @transform_9(%arg0: i32) -> (i32, i32) {
    %c0_i32 = arith.constant 0 : i32
    %c0_i32_0 = arith.constant 0 : i32
    %c0_i32_1 = arith.constant 0 : i32
    return %c0_i32, %c0_i32_0 : i32, i32
  }
  func.func @transform_10(%arg0: i32) -> (i32, i32) {
    %c0_i32 = arith.constant 0 : i32
    %c0_i32_0 = arith.constant 0 : i32
    %c0_i32_1 = arith.constant 0 : i32
    return %c0_i32, %c0_i32_0 : i32, i32
  }
  func.func @transform_11(%arg0: i32) -> (i32, i32) {
    %c0_i32 = arith.constant 0 : i32
    %c0_i32_0 = arith.constant 0 : i32
    %c0_i32_1 = arith.constant 0 : i32
    return %c0_i32, %c0_i32_0 : i32, i32
  }
  func.func @transform_12(%arg0: i32) -> (i32, i32) {
    %c0_i32 = arith.constant 0 : i32
    %c0_i32_0 = arith.constant 0 : i32
    %c0_i32_1 = arith.constant 0 : i32
    return %c0_i32, %c0_i32_0 : i32, i32
  }
  func.func @transform_13(%arg0: i32) -> (i32, i32) {
    %c0_i32 = arith.constant 0 : i32
    %c0_i32_0 = arith.constant 0 : i32
    %c0_i32_1 = arith.constant 0 : i32
    return %c0_i32, %c0_i32_0 : i32, i32
  }
  func.func @transform_14(%arg0: i32) -> (i32, i32, i32) {
    %c0_i32 = arith.constant 0 : i32
    %c0_i32_0 = arith.constant 0 : i32
    %c0_i32_1 = arith.constant 0 : i32
    return %arg0, %c0_i32, %c0_i32_0 : i32, i32, i32
  }
}

</mosaic_0001>

<llo_original>
// kernel: tpu_custom_call.1
$region0: #{tpu_custom_call.1}
  #allocation0 [shape = 'u32[]', space=smem, size = 0x4, offset = 0x4, fixed_abs, tag = 'smem constant byte address 0x4 - core index']
  #allocation1 [shape = 'u32[144,128]{1,0:T(1,128)}', space=vmem, size = 0x12000, scoped, tag = 'internal scratch']
  %s0 = inlined_call_operand.vmem [shape: f32[1,1,1056], index: 0, kind: input, shape index: {}]
  %s1 = inlined_call_operand.vmem [shape: f32[1,1,1056], index: 1, kind: input, shape index: {}]
  %s2 = inlined_call_operand.vmem [shape: f32[1,1,64], index: 2, kind: input, shape index: {}]
  %s3 = inlined_call_operand.vmem [shape: f32[1,1,1024], index: 3, kind: input, shape index: {}]
  %s4 = inlined_call_operand.vmem [shape: s8[1056,1048], index: 4, kind: input, shape index: {}]
  %s5 = inlined_call_operand.vmem [shape: s8[1056,1048], index: 5, kind: input, shape index: {}]
  %s6 = inlined_call_operand.vmem [shape: s8[1048,512], index: 6, kind: input, shape index: {}]
  %s7 = inlined_call_operand.vmem [shape: s8[1024,512], index: 7, kind: input, shape index: {}]
  %s8 = inlined_call_operand.vmem [shape: s8[512,512], index: 8, kind: input, shape index: {}]
  %s9 = inlined_call_operand.vmem [shape: s8[512,512], index: 9, kind: input, shape index: {}]
  %s10 = inlined_call_operand.vmem [shape: s8[512,256], index: 10, kind: input, shape index: {}]
  %s11 = inlined_call_operand.vmem [shape: bf16[320,512], index: 11, kind: input, shape index: {}]
  %s12 = inlined_call_operand.vmem [shape: f32[8,1048], index: 12, kind: input, shape index: {}]
  %s13 = inlined_call_operand.vmem [shape: f32[40,512], index: 13, kind: input, shape index: {}]
  %s14 = inlined_call_operand.hbm [shape: f32[1,1,128], index: 14, kind: output, shape index: {}]
  %s15 = sld [smem:[#allocation0]]
  $region66: #{tpu_custom_call.1} parent=0
    _
  %s17 = ssub.s32 1, %s15
  %s18 = scalar_select 0, %s17, %s15
  $region1: #{tpu_custom_call.1} parent=0
    #allocation2 [shape = 'u8[512]{0}', space=vmem, size = 0x400, scoped, tag = 'output window, operand 0, single buffered']
    #allocation3 [shape = 's32[1]{0}', space=sflag, size = 0x4, scoped, tag = 'scoped memory for tpu_custom_call.1']
    %19 = vsyncpa [#allocation3], 0
    // Predicated region
    $region2: #{tpu_custom_call.1} parent=1 // pred_check
      _
    $region3: #{tpu_custom_call.1} parent=1 // pred_check_branch
      %21 = sbr.rel (0) target = $region5
    $region4: #{tpu_custom_call.1} parent=1 // pred_region
      _
    $region5: #{tpu_custom_call.1} parent=1 // pred_fallthru
      _
    // Predicated region
    $region6: #{tpu_custom_call.1} parent=1 // pred_check
      _
    $region7: #{tpu_custom_call.1} parent=1 // pred_check_branch
      %23 = sbr.rel (0) target = $region9
    $region8: #{tpu_custom_call.1} parent=1 // pred_region
      _
    $region9: #{tpu_custom_call.1} parent=1 // pred_fallthru
      _
    // Predicated region
    $region10: #{tpu_custom_call.1} parent=1 // pred_check
      _
    $region11: #{tpu_custom_call.1} parent=1 // pred_check_branch
      %25 = sbr.rel (0) target = $region13
    $region12: #{tpu_custom_call.1} parent=1 // pred_region
      _
    $region13: #{tpu_custom_call.1} parent=1 // pred_fallthru
      _
    // Predicated region
    $region14: #{tpu_custom_call.1} parent=1 // pred_check
      _
    $region15: #{tpu_custom_call.1} parent=1 // pred_check_branch
      %27 = sbr.rel (0) target = $region17
    $region16: #{tpu_custom_call.1} parent=1 // pred_region
      _
    $region17: #{tpu_custom_call.1} parent=1 // pred_fallthru
      _
    // Predicated region
    $region18: #{tpu_custom_call.1} parent=1 // pred_check
      _
    $region19: #{tpu_custom_call.1} parent=1 // pred_check_branch
      %29 = sbr.rel (0) target = $region21
    $region20: #{tpu_custom_call.1} parent=1 // pred_region
      _
    $region21: #{tpu_custom_call.1} parent=1 // pred_fallthru
      _
    // Predicated region
    $region22: #{tpu_custom_call.1} parent=1 // pred_check
      _
    $region23: #{tpu_custom_call.1} parent=1 // pred_check_branch
      %31 = sbr.rel (0) target = $region25
    $region24: #{tpu_custom_call.1} parent=1 // pred_region
      _
    $region25: #{tpu_custom_call.1} parent=1 // pred_fallthru
      _
    // Predicated region
    $region26: #{tpu_custom_call.1} parent=1 // pred_check
      _
    $region27: #{tpu_custom_call.1} parent=1 // pred_check_branch
      %33 = sbr.rel (0) target = $region29
    $region28: #{tpu_custom_call.1} parent=1 // pred_region
      _
    $region29: #{tpu_custom_call.1} parent=1 // pred_fallthru
      _
    // Predicated region
    $region30: #{tpu_custom_call.1} parent=1 // pred_check
      _
    $region31: #{tpu_custom_call.1} parent=1 // pred_check_branch
      %35 = sbr.rel (0) target = $region33
    $region32: #{tpu_custom_call.1} parent=1 // pred_region
      _
    $region33: #{tpu_custom_call.1} parent=1 // pred_fallthru
      _
    // Predicated region
    $region34: #{tpu_custom_call.1} parent=1 // pred_check
      _
    $region35: #{tpu_custom_call.1} parent=1 // pred_check_branch
      %37 = sbr.rel (0) target = $region37
    $region36: #{tpu_custom_call.1} parent=1 // pred_region
      _
    $region37: #{tpu_custom_call.1} parent=1 // pred_fallthru
      _
    // Predicated region
    $region38: #{tpu_custom_call.1} parent=1 // pred_check
      _
    $region39: #{tpu_custom_call.1} parent=1 // pred_check_branch
      %39 = sbr.rel (0) target = $region41
    $region40: #{tpu_custom_call.1} parent=1 // pred_region
      _
    $region41: #{tpu_custom_call.1} parent=1 // pred_fallthru
      _
    // Predicated region
    $region42: #{tpu_custom_call.1} parent=1 // pred_check
      _
    $region43: #{tpu_custom_call.1} parent=1 // pred_check_branch
      %41 = sbr.rel (0) target = $region45
    $region44: #{tpu_custom_call.1} parent=1 // pred_region
      _
    $region45: #{tpu_custom_call.1} parent=1 // pred_fallthru
      _
    // Predicated region
    $region46: #{tpu_custom_call.1} parent=1 // pred_check
      _
    $region47: #{tpu_custom_call.1} parent=1 // pred_check_branch
      %43 = sbr.rel (0) target = $region49
    $region48: #{tpu_custom_call.1} parent=1 // pred_region
      _
    $region49: #{tpu_custom_call.1} parent=1 // pred_fallthru
      _
    // Predicated region
    $region50: #{tpu_custom_call.1} parent=1 // pred_check
      _
    $region51: #{tpu_custom_call.1} parent=1 // pred_check_branch
      %45 = sbr.rel (0) target = $region53
    $region52: #{tpu_custom_call.1} parent=1 // pred_region
      _
    $region53: #{tpu_custom_call.1} parent=1 // pred_fallthru
      _
    // Predicated region
    $region54: #{tpu_custom_call.1} parent=1 // pred_check
      _
    $region55: #{tpu_custom_call.1} parent=1 // pred_check_branch
      %47 = sbr.rel (0) target = $region57
    $region56: #{tpu_custom_call.1} parent=1 // pred_region
      _
    $region57: #{tpu_custom_call.1} parent=1 // pred_fallthru
      _
    %v49 = vld [vmem:[%s12] sm:$0xff]
    %v50 = vld [vmem:[%s12 + $0x8] sm:$0xff]
    %v51 = vld [vmem:[%s12 + $0x10] sm:$0xff]
    %v52 = vld [vmem:[%s12 + $0x18] sm:$0xff]
    %v53 = vld [vmem:[%s12 + $0x20] sm:$0xff]
    %v54 = vld [vmem:[%s12 + $0x28] sm:$0xff]
    %v55 = vld [vmem:[%s12 + $0x30] sm:$0xff]
    %v56 = vld [vmem:[%s12 + $0x38] sm:$0xff]
    %v57 = vld [vmem:[%s12 + $0x40] sm:$0xff]
    %v58 = vld [vmem:[%s13] sm:$0xff]
    %v59 = vld [vmem:[%s13 + $0x8] sm:$0xff]
    %v60 = vld [vmem:[%s13 + $0x10] sm:$0xff]
    %v61 = vld [vmem:[%s13 + $0x18] sm:$0xff]
    %v62 = vld [vmem:[%s13 + $0x20] sm:$0xff]
    %v63 = vld [vmem:[%s13 + $0x28] sm:$0xff]
    %v64 = vld [vmem:[%s13 + $0x30] sm:$0xff]
    %v65 = vld [vmem:[%s13 + $0x38] sm:$0xff]
    %v66 = vld [vmem:[%s13 + $0x40] sm:$0xff]
    %v67 = vld [vmem:[%s13 + $0x48] sm:$0xff]
    %v68 = vld [vmem:[%s13 + $0x60] sm:$0xff]
    %v69 = vld [vmem:[%s13 + $0x80] sm:$0xff]
    %v70 = vld [vmem:[%s0] sm:$0xff]
    %v71 = vld [vmem:[%s0 + $0x8] sm:$0x1]
    %v72 = vld [vmem:[%s4] sm:$0xff]
    %v73 = vld [vmem:[%s4 + $0x8] sm:$0xff]
    %v74 = vld [vmem:[%s4 + $0x10] sm:$0xff]
    %v75 = vld [vmem:[%s4 + $0x18] sm:$0xff]
    %v76 = vld [vmem:[%s4 + $0x20] sm:$0xff]
    %v77 = vld [vmem:[%s4 + $0x28] sm:$0xff]
    %v78 = vld [vmem:[%s4 + $0x30] sm:$0xff]
    %v79 = vld [vmem:[%s4 + $0x38] sm:$0xff]
    %v80 = vld [vmem:[%s4 + $0x40] sm:$0xff]
    %v81 = vld [vmem:[%s4 + $0x48] sm:$0xff]
    %v82 = vld [vmem:[%s4 + $0x50] sm:$0xff]
    %v83 = vld [vmem:[%s4 + $0x58] sm:$0xff]
    %v84 = vld [vmem:[%s4 + $0x60] sm:$0xff]
    %v85 = vld [vmem:[%s4 + $0x68] sm:$0xff]
    %v86 = vld [vmem:[%s4 + $0x70] sm:$0xff]
    %v87 = vld [vmem:[%s4 + $0x78] sm:$0xff]
    %v88 = vld [vmem:[%s4 + $0x80] sm:$0xff]
    %v89 = vld [vmem:[%s4 + $0x88] sm:$0xff]
    %v90 = vld [vmem:[%s4 + $0x90] sm:$0xff]
    %v91 = vld [vmem:[%s4 + $0x98] sm:$0xff]
    %v92 = vld [vmem:[%s4 + $0xa0] sm:$0xff]
    %v93 = vld [vmem:[%s4 + $0xa8] sm:$0xff]
    %v94 = vld [vmem:[%s4 + $0xb0] sm:$0xff]
    %v95 = vld [vmem:[%s4 + $0xb8] sm:$0xff]
    %v96 = vld [vmem:[%s4 + $0xc0] sm:$0xff]
    %v97 = vld [vmem:[%s4 + $0xc8] sm:$0xff]
    %v98 = vld [vmem:[%s4 + $0xd0] sm:$0xff]
    %v99 = vld [vmem:[%s4 + $0xd8] sm:$0xff]
    %v100 = vld [vmem:[%s4 + $0xe0] sm:$0xff]
    %v101 = vld [vmem:[%s4 + $0xe8] sm:$0xff]
    %v102 = vld [vmem:[%s4 + $0xf0] sm:$0xff]
    %v103 = vld [vmem:[%s4 + $0xf8] sm:$0xff]
    %v104 = vld [vmem:[%s4 + $0x100] sm:$0xff]
    %v105 = vld [vmem:[%s4 + $0x108] sm:$0xff]
    %v106 = vld [vmem:[%s4 + $0x110] sm:$0xff]
    %v107 = vld [vmem:[%s4 + $0x118] sm:$0xff]
    %v108 = vld [vmem:[%s4 + $0x120] sm:$0xff]
    %v109 = vld [vmem:[%s4 + $0x128] sm:$0xff]
    %v110 = vld [vmem:[%s4 + $0x130] sm:$0xff]
    %v111 = vld [vmem:[%s4 + $0x138] sm:$0xff]
    %v112 = vld [vmem:[%s4 + $0x140] sm:$0xff]
    %v113 = vld [vmem:[%s4 + $0x148] sm:$0xff]
    %v114 = vld [vmem:[%s4 + $0x150] sm:$0xff]
    %v115 = vld [vmem:[%s4 + $0x158] sm:$0xff]
    %v116 = vld [vmem:[%s4 + $0x160] sm:$0xff]
    %v117 = vld [vmem:[%s4 + $0x168] sm:$0xff]
    %v118 = vld [vmem:[%s4 + $0x170] sm:$0xff]
    %v119 = vld [vmem:[%s4 + $0x178] sm:$0xff]
    %v120 = vld [vmem:[%s4 + $0x180] sm:$0xff]
    %v121 = vld [vmem:[%s4 + $0x188] sm:$0xff]
    %v122 = vld [vmem:[%s4 + $0x190] sm:$0xff]
    %v123 = vld [vmem:[%s4 + $0x198] sm:$0xff]
    %v124 = vld [vmem:[%s4 + $0x1a0] sm:$0xff]
    %v125 = vld [vmem:[%s4 + $0x1a8] sm:$0xff]
    %v126 = vld [vmem:[%s4 + $0x1b0] sm:$0xff]
    %v127 = vld [vmem:[%s4 + $0x1b8] sm:$0xff]
    %v128 = vld [vmem:[%s4 + $0x1c0] sm:$0xff]
    %v129 = vld [vmem:[%s4 + $0x1c8] sm:$0xff]
    %v130 = vld [vmem:[%s4 + $0x1d0] sm:$0xff]
    %v131 = vld [vmem:[%s4 + $0x1d8] sm:$0xff]
    %v132 = vld [vmem:[%s4 + $0x1e0] sm:$0xff]
    %v133 = vld [vmem:[%s4 + $0x1e8] sm:$0xff]
    %v134 = vld [vmem:[%s4 + $0x1f0] sm:$0xff]
    %v135 = vld [vmem:[%s4 + $0x1f8] sm:$0xff]
    %v136 = vld [vmem:[%s4 + $0x200] sm:$0xff]
    %v137 = vld [vmem:[%s4 + $0x208] sm:$0xff]
    %v138 = vld [vmem:[%s4 + $0x210] sm:$0xff]
    %v139 = vld [vmem:[%s4 + $0x218] sm:$0xff]
    %v140 = vld [vmem:[%s4 + $0x220] sm:$0xff]
    %v141 = vld [vmem:[%s4 + $0x228] sm:$0xff]
    %v142 = vld [vmem:[%s4 + $0x230] sm:$0xff]
    %v143 = vld [vmem:[%s4 + $0x238] sm:$0xff]
    %v144 = vld [vmem:[%s4 + $0x240] sm:$0xff]
    %v145 = vld [vmem:[%s4 + $0x248] sm:$0xff]
    %v146 = vld [vmem:[%s4 + $0x250] sm:$0xff]
    %v147 = vld [vmem:[%s4 + $0x258] sm:$0xff]
    %v148 = vld [vmem:[%s4 + $0x260] sm:$0xff]
    %v149 = vld [vmem:[%s4 + $0x268] sm:$0xff]
    %v150 = vld [vmem:[%s4 + $0x270] sm:$0xff]
    %v151 = vld [vmem:[%s4 + $0x278] sm:$0xff]
    %v152 = vld [vmem:[%s4 + $0x280] sm:$0xff]
    %v153 = vld [vmem:[%s4 + $0x288] sm:$0xff]
    %v154 = vld [vmem:[%s4 + $0x290] sm:$0xff]
    %v155 = vld [vmem:[%s4 + $0x298] sm:$0xff]
    %v156 = vld [vmem:[%s4 + $0x2a0] sm:$0xff]
    %v157 = vld [vmem:[%s4 + $0x2a8] sm:$0xff]
    %v158 = vld [vmem:[%s4 + $0x2b0] sm:$0xff]
    %v159 = vld [vmem:[%s4 + $0x2b8] sm:$0xff]
    %v160 = vld [vmem:[%s4 + $0x2c0] sm:$0xff]
    %v161 = vld [vmem:[%s4 + $0x2c8] sm:$0xff]
    %v162 = vld [vmem:[%s4 + $0x2d0] sm:$0xff]
    %v163 = vld [vmem:[%s4 + $0x2d8] sm:$0xff]
    %v164 = vld [vmem:[%s4 + $0x2e0] sm:$0xff]
    %v165 = vld [vmem:[%s4 + $0x2e8] sm:$0xff]
    %v166 = vld [vmem:[%s4 + $0x2f0] sm:$0xff]
    %v167 = vld [vmem:[%s4 + $0x2f8] sm:$0xff]
    %v168 = vld [vmem:[%s4 + $0x300] sm:$0xff]
    %v169 = vld [vmem:[%s4 + $0x308] sm:$0xff]
    %v170 = vld [vmem:[%s4 + $0x310] sm:$0xff]
    %v171 = vld [vmem:[%s4 + $0x318] sm:$0xff]
    %v172 = vld [vmem:[%s4 + $0x320] sm:$0xff]
    %v173 = vld [vmem:[%s4 + $0x328] sm:$0xff]
    %v174 = vld [vmem:[%s4 + $0x330] sm:$0xff]
    %v175 = vld [vmem:[%s4 + $0x338] sm:$0xff]
    %v176 = vld [vmem:[%s4 + $0x340] sm:$0xff]
    %v177 = vld [vmem:[%s4 + $0x348] sm:$0xff]
    %v178 = vld [vmem:[%s4 + $0x350] sm:$0xff]
    %v179 = vld [vmem:[%s4 + $0x358] sm:$0xff]
    %v180 = vld [vmem:[%s4 + $0x360] sm:$0xff]
    %v181 = vld [vmem:[%s4 + $0x368] sm:$0xff]
    %v182 = vld [vmem:[%s4 + $0x370] sm:$0xff]
    %v183 = vld [vmem:[%s4 + $0x378] sm:$0xff]
    %v184 = vld [vmem:[%s4 + $0x380] sm:$0xff]
    %v185 = vld [vmem:[%s4 + $0x388] sm:$0xff]
    %v186 = vld [vmem:[%s4 + $0x390] sm:$0xff]
    %v187 = vld [vmem:[%s4 + $0x398] sm:$0xff]
    %v188 = vld [vmem:[%s4 + $0x3a0] sm:$0xff]
    %v189 = vld [vmem:[%s4 + $0x3a8] sm:$0xff]
    %v190 = vld [vmem:[%s4 + $0x3b0] sm:$0xff]
    %v191 = vld [vmem:[%s4 + $0x3b8] sm:$0xff]
    %v192 = vld [vmem:[%s4 + $0x3c0] sm:$0xff]
    %v193 = vld [vmem:[%s4 + $0x3c8] sm:$0xff]
    %v194 = vld [vmem:[%s4 + $0x3d0] sm:$0xff]
    %v195 = vld [vmem:[%s4 + $0x3d8] sm:$0xff]
    %v196 = vld [vmem:[%s4 + $0x3e0] sm:$0xff]
    %v197 = vld [vmem:[%s4 + $0x3e8] sm:$0xff]
    %v198 = vld [vmem:[%s4 + $0x3f0] sm:$0xff]
    %v199 = vld [vmem:[%s4 + $0x3f8] sm:$0xff]
    %v200 = vld [vmem:[%s4 + $0x400] sm:$0xff]
    %v201 = vld [vmem:[%s4 + $0x408] sm:$0xff]
    %v202 = vld [vmem:[%s4 + $0x410] sm:$0xff]
    %v203 = vld [vmem:[%s4 + $0x418] sm:$0xff]
    %v204 = vld [vmem:[%s4 + $0x420] sm:$0xff]
    %v205 = vld [vmem:[%s4 + $0x428] sm:$0xff]
    %v206 = vld [vmem:[%s4 + $0x430] sm:$0xff]
    %v207 = vld [vmem:[%s4 + $0x438] sm:$0xff]
    %v208 = vld [vmem:[%s4 + $0x440] sm:$0xff]
    %v209 = vld [vmem:[%s4 + $0x448] sm:$0xff]
    %v210 = vld [vmem:[%s4 + $0x450] sm:$0xff]
    %v211 = vld [vmem:[%s4 + $0x458] sm:$0xff]
    %v212 = vld [vmem:[%s4 + $0x460] sm:$0xff]
    %v213 = vld [vmem:[%s4 + $0x468] sm:$0xff]
    %v214 = vld [vmem:[%s4 + $0x470] sm:$0xff]
    %v215 = vld [vmem:[%s4 + $0x478] sm:$0xff]
    %v216 = vld [vmem:[%s4 + $0x480] sm:$0xff]
    %v217 = vld [vmem:[%s4 + $0x488] sm:$0xff]
    %v218 = vld [vmem:[%s4 + $0x490] sm:$0xff]
    %v219 = vld [vmem:[%s4 + $0x498] sm:$0xff]
    %v220 = vld [vmem:[%s4 + $0x4a0] sm:$0xff]
    %v221 = vld [vmem:[%s4 + $0x4a8] sm:$0xff]
    %v222 = vld [vmem:[%s4 + $0x4b0] sm:$0xff]
    %v223 = vld [vmem:[%s4 + $0x4b8] sm:$0xff]
    %v224 = vld [vmem:[%s4 + $0x4c0] sm:$0xff]
    %v225 = vld [vmem:[%s4 + $0x4c8] sm:$0xff]
    %v226 = vld [vmem:[%s4 + $0x4d0] sm:$0xff]
    %v227 = vld [vmem:[%s4 + $0x4d8] sm:$0xff]
    %v228 = vld [vmem:[%s4 + $0x4e0] sm:$0xff]
    %v229 = vld [vmem:[%s4 + $0x4e8] sm:$0xff]
    %v230 = vld [vmem:[%s4 + $0x4f0] sm:$0xff]
    %v231 = vld [vmem:[%s4 + $0x4f8] sm:$0xff]
    %v232 = vld [vmem:[%s4 + $0x500] sm:$0xff]
    %v233 = vld [vmem:[%s4 + $0x508] sm:$0xff]
    %v234 = vld [vmem:[%s4 + $0x510] sm:$0xff]
    %v235 = vld [vmem:[%s4 + $0x518] sm:$0xff]
    %v236 = vld [vmem:[%s4 + $0x520] sm:$0xff]
    %v237 = vld [vmem:[%s4 + $0x528] sm:$0xff]
    %v238 = vld [vmem:[%s4 + $0x530] sm:$0xff]
    %v239 = vld [vmem:[%s4 + $0x538] sm:$0xff]
    %v240 = vld [vmem:[%s4 + $0x540] sm:$0xff]
    %v241 = vld [vmem:[%s4 + $0x548] sm:$0xff]
    %v242 = vld [vmem:[%s4 + $0x550] sm:$0xff]
    %v243 = vld [vmem:[%s4 + $0x558] sm:$0xff]
    %v244 = vld [vmem:[%s4 + $0x560] sm:$0xff]
    %v245 = vld [vmem:[%s4 + $0x568] sm:$0xff]
    %v246 = vld [vmem:[%s4 + $0x570] sm:$0xff]
    %v247 = vld [vmem:[%s4 + $0x578] sm:$0xff]
    %v248 = vld [vmem:[%s4 + $0x580] sm:$0xff]
    %v249 = vld [vmem:[%s4 + $0x588] sm:$0xff]
    %v250 = vld [vmem:[%s4 + $0x590] sm:$0xff]
    %v251 = vld [vmem:[%s4 + $0x598] sm:$0xff]
    %v252 = vld [vmem:[%s4 + $0x5a0] sm:$0xff]
    %v253 = vld [vmem:[%s4 + $0x5a8] sm:$0xff]
    %v254 = vld [vmem:[%s4 + $0x5b0] sm:$0xff]
    %v255 = vld [vmem:[%s4 + $0x5b8] sm:$0xff]
    %v256 = vld [vmem:[%s4 + $0x5c0] sm:$0xff]
    %v257 = vld [vmem:[%s4 + $0x5c8] sm:$0xff]
    %v258 = vld [vmem:[%s4 + $0x5d0] sm:$0xff]
    %v259 = vld [vmem:[%s4 + $0x5d8] sm:$0xff]
    %v260 = vld [vmem:[%s4 + $0x5e0] sm:$0xff]
    %v261 = vld [vmem:[%s4 + $0x5e8] sm:$0xff]
    %v262 = vld [vmem:[%s4 + $0x5f0] sm:$0xff]
    %v263 = vld [vmem:[%s4 + $0x5f8] sm:$0xff]
    %v264 = vld [vmem:[%s4 + $0x600] sm:$0xff]
    %v265 = vld [vmem:[%s4 + $0x608] sm:$0xff]
    %v266 = vld [vmem:[%s4 + $0x610] sm:$0xff]
    %v267 = vld [vmem:[%s4 + $0x618] sm:$0xff]
    %v268 = vld [vmem:[%s4 + $0x620] sm:$0xff]
    %v269 = vld [vmem:[%s4 + $0x628] sm:$0xff]
    %v270 = vld [vmem:[%s4 + $0x630] sm:$0xff]
    %v271 = vld [vmem:[%s4 + $0x638] sm:$0xff]
    %v272 = vld [vmem:[%s4 + $0x640] sm:$0xff]
    %v273 = vld [vmem:[%s4 + $0x648] sm:$0xff]
    %v274 = vld [vmem:[%s4 + $0x650] sm:$0xff]
    %v275 = vld [vmem:[%s4 + $0x658] sm:$0xff]
    %v276 = vld [vmem:[%s4 + $0x660] sm:$0xff]
    %v277 = vld [vmem:[%s4 + $0x668] sm:$0xff]
    %v278 = vld [vmem:[%s4 + $0x670] sm:$0xff]
    %v279 = vld [vmem:[%s4 + $0x678] sm:$0xff]
    %v280 = vld [vmem:[%s4 + $0x680] sm:$0xff]
    %v281 = vld [vmem:[%s4 + $0x688] sm:$0xff]
    %v282 = vld [vmem:[%s4 + $0x690] sm:$0xff]
    %v283 = vld [vmem:[%s4 + $0x698] sm:$0xff]
    %v284 = vld [vmem:[%s4 + $0x6a0] sm:$0xff]
    %v285 = vld [vmem:[%s4 + $0x6a8] sm:$0xff]
    %v286 = vld [vmem:[%s4 + $0x6b0] sm:$0xff]
    %v287 = vld [vmem:[%s4 + $0x6b8] sm:$0xff]
    %v288 = vld [vmem:[%s4 + $0x6c0] sm:$0xff]
    %v289 = vld [vmem:[%s4 + $0x6c8] sm:$0xff]
    %v290 = vld [vmem:[%s4 + $0x6d0] sm:$0xff]
    %v291 = vld [vmem:[%s4 + $0x6d8] sm:$0xff]
    %v292 = vld [vmem:[%s4 + $0x6e0] sm:$0xff]
    %v293 = vld [vmem:[%s4 + $0x6e8] sm:$0xff]
    %v294 = vld [vmem:[%s4 + $0x6f0] sm:$0xff]
    %v295 = vld [vmem:[%s4 + $0x6f8] sm:$0xff]
    %v296 = vld [vmem:[%s4 + $0x700] sm:$0xff]
    %v297 = vld [vmem:[%s4 + $0x708] sm:$0xff]
    %v298 = vld [vmem:[%s4 + $0x710] sm:$0xff]
    %v299 = vld [vmem:[%s4 + $0x718] sm:$0xff]
    %v300 = vld [vmem:[%s4 + $0x720] sm:$0xff]
    %v301 = vld [vmem:[%s4 + $0x728] sm:$0xff]
    %v302 = vld [vmem:[%s4 + $0x730] sm:$0xff]
    %v303 = vld [vmem:[%s4 + $0x738] sm:$0xff]
    %v304 = vld [vmem:[%s4 + $0x740] sm:$0xff]
    %v305 = vld [vmem:[%s4 + $0x748] sm:$0xff]
    %v306 = vld [vmem:[%s4 + $0x750] sm:$0xff]
    %v307 = vld [vmem:[%s4 + $0x758] sm:$0xff]
    %v308 = vld [vmem:[%s4 + $0x760] sm:$0xff]
    %v309 = vld [vmem:[%s4 + $0x768] sm:$0xff]
    %v310 = vld [vmem:[%s4 + $0x770] sm:$0xff]
    %v311 = vld [vmem:[%s4 + $0x778] sm:$0xff]
    %v312 = vld [vmem:[%s4 + $0x780] sm:$0xff]
    %v313 = vld [vmem:[%s4 + $0x788] sm:$0xff]
    %v314 = vld [vmem:[%s4 + $0x790] sm:$0xff]
    %v315 = vld [vmem:[%s4 + $0x798] sm:$0xff]
    %v316 = vld [vmem:[%s4 + $0x7a0] sm:$0xff]
    %v317 = vld [vmem:[%s4 + $0x7a8] sm:$0xff]
    %v318 = vld [vmem:[%s4 + $0x7b0] sm:$0xff]
    %v319 = vld [vmem:[%s4 + $0x7b8] sm:$0xff]
    %v320 = vld [vmem:[%s4 + $0x7c0] sm:$0xff]
    %v321 = vld [vmem:[%s4 + $0x7c8] sm:$0xff]
    %v322 = vld [vmem:[%s4 + $0x7d0] sm:$0xff]
    %v323 = vld [vmem:[%s4 + $0x7d8] sm:$0xff]
    %v324 = vld [vmem:[%s4 + $0x7e0] sm:$0xff]
    %v325 = vld [vmem:[%s4 + $0x7e8] sm:$0xff]
    %v326 = vld [vmem:[%s4 + $0x7f0] sm:$0xff]
    %v327 = vld [vmem:[%s4 + $0x7f8] sm:$0xff]
    %v328 = vld [vmem:[%s4 + $0x800] sm:$0xff]
    %v329 = vld [vmem:[%s4 + $0x808] sm:$0xff]
    %v330 = vld [vmem:[%s4 + $0x810] sm:$0xff]
    %v331 = vld [vmem:[%s4 + $0x818] sm:$0xff]
    %v332 = vld [vmem:[%s4 + $0x820] sm:$0xff]
    %v333 = vld [vmem:[%s4 + $0x828] sm:$0xff]
    %v334 = vld [vmem:[%s4 + $0x830] sm:$0xff]
    %v335 = vld [vmem:[%s4 + $0x838] sm:$0xff]
    %v336 = vld [vmem:[%s4 + $0x840] sm:$0xff]
    %v337 = vld [vmem:[%s4 + $0x848] sm:$0xff]
    %v338 = vld [vmem:[%s4 + $0x850] sm:$0xff]
    %v339 = vld [vmem:[%s4 + $0x858] sm:$0xff]
    %v340 = vld [vmem:[%s4 + $0x860] sm:$0xff]
    %v341 = vld [vmem:[%s4 + $0x868] sm:$0xff]
    %v342 = vld [vmem:[%s4 + $0x870] sm:$0xff]
    %v343 = vld [vmem:[%s4 + $0x878] sm:$0xff]
    %v344 = vld [vmem:[%s4 + $0x880] sm:$0xff]
    %v345 = vld [vmem:[%s4 + $0x888] sm:$0xff]
    %v346 = vld [vmem:[%s4 + $0x890] sm:$0xff]
    %v347 = vld [vmem:[%s4 + $0x898] sm:$0xff]
    %v348 = vld [vmem:[%s4 + $0x8a0] sm:$0xff]
    %v349 = vld [vmem:[%s4 + $0x8a8] sm:$0xff]
    %v350 = vld [vmem:[%s4 + $0x8b0] sm:$0xff]
    %v351 = vld [vmem:[%s4 + $0x8b8] sm:$0xff]
    %v352 = vld [vmem:[%s4 + $0x8c0] sm:$0xff]
    %v353 = vld [vmem:[%s4 + $0x8c8] sm:$0xff]
    %v354 = vld [vmem:[%s4 + $0x8d0] sm:$0xff]
    %v355 = vld [vmem:[%s4 + $0x8d8] sm:$0xff]
    %v356 = vld [vmem:[%s4 + $0x8e0] sm:$0xff]
    %v357 = vld [vmem:[%s4 + $0x8e8] sm:$0xff]
    %v358 = vld [vmem:[%s4 + $0x8f0] sm:$0xff]
    %v359 = vld [vmem:[%s4 + $0x8f8] sm:$0xff]
    %v360 = vld [vmem:[%s4 + $0x900] sm:$0xff]
    %v361 = vld [vmem:[%s4 + $0x908] sm:$0xff]
    %v362 = vld [vmem:[%s4 + $0x910] sm:$0xff]
    %v363 = vld [vmem:[%s4 + $0x918] sm:$0xff]
    %v364 = vld [vmem:[%s4 + $0x920] sm:$0xff]
    %v365 = vld [vmem:[%s4 + $0x928] sm:$0xff]
    %v366 = vld [vmem:[%s4 + $0x930] sm:$0xff]
    %v367 = vld [vmem:[%s4 + $0x938] sm:$0xff]
    %v368 = vld [vmem:[%s4 + $0x940] sm:$0xff]
    %v369 = vunpack.c.l.s8.bf16 %v72
    %v370 = vunpack.c.l.s8.bf16 %v73
    %v371 = vunpack.c.l.s8.bf16 %v74
    %v372 = vunpack.c.l.s8.bf16 %v75
    %v373 = vunpack.c.l.s8.bf16 %v76
    %v374 = vunpack.c.l.s8.bf16 %v77
    %v375 = vunpack.c.l.s8.bf16 %v78
    %v376 = vunpack.c.l.s8.bf16 %v79
    %v377 = vunpack.c.l.s8.bf16 %v80
    %v378 = vunpack.c.h.s8.bf16 %v72
    %v379 = vunpack.c.h.s8.bf16 %v73
    %v380 = vunpack.c.h.s8.bf16 %v74
    %v381 = vunpack.c.h.s8.bf16 %v75
    %v382 = vunpack.c.h.s8.bf16 %v76
    %v383 = vunpack.c.h.s8.bf16 %v77
    %v384 = vunpack.c.h.s8.bf16 %v78
    %v385 = vunpack.c.h.s8.bf16 %v79
    %v386 = vunpack.c.h.s8.bf16 %v80
    %v387 = vunpack.c.l.s8.bf16 %v81
    %v388 = vunpack.c.l.s8.bf16 %v82
    %v389 = vunpack.c.l.s8.bf16 %v83
    %v390 = vunpack.c.l.s8.bf16 %v84
    %v391 = vunpack.c.l.s8.bf16 %v85
    %v392 = vunpack.c.l.s8.bf16 %v86
    %v393 = vunpack.c.l.s8.bf16 %v87
    %v394 = vunpack.c.l.s8.bf16 %v88
    %v395 = vunpack.c.l.s8.bf16 %v89
    %v396 = vunpack.c.h.s8.bf16 %v81
    %v397 = vunpack.c.h.s8.bf16 %v82
    %v398 = vunpack.c.h.s8.bf16 %v83
    %v399 = vunpack.c.h.s8.bf16 %v84
    %v400 = vunpack.c.h.s8.bf16 %v85
    %v401 = vunpack.c.h.s8.bf16 %v86
    %v402 = vunpack.c.h.s8.bf16 %v87
    %v403 = vunpack.c.h.s8.bf16 %v88
    %v404 = vunpack.c.h.s8.bf16 %v89
    %v405 = vunpack.c.l.s8.bf16 %v90
    %v406 = vunpack.c.l.s8.bf16 %v91
    %v407 = vunpack.c.l.s8.bf16 %v92
    %v408 = vunpack.c.l.s8.bf16 %v93
    %v409 = vunpack.c.l.s8.bf16 %v94
    %v410 = vunpack.c.l.s8.bf16 %v95
    %v411 = vunpack.c.l.s8.bf16 %v96
    %v412 = vunpack.c.l.s8.bf16 %v97
    %v413 = vunpack.c.l.s8.bf16 %v98
    %v414 = vunpack.c.h.s8.bf16 %v90
    %v415 = vunpack.c.h.s8.bf16 %v91
    %v416 = vunpack.c.h.s8.bf16 %v92
    %v417 = vunpack.c.h.s8.bf16 %v93
    %v418 = vunpack.c.h.s8.bf16 %v94
    %v419 = vunpack.c.h.s8.bf16 %v95
    %v420 = vunpack.c.h.s8.bf16 %v96
    %v421 = vunpack.c.h.s8.bf16 %v97
    %v422 = vunpack.c.h.s8.bf16 %v98
    %v423 = vunpack.c.l.s8.bf16 %v99
    %v424 = vunpack.c.l.s8.bf16 %v100
    %v425 = vunpack.c.l.s8.bf16 %v101
    %v426 = vunpack.c.l.s8.bf16 %v102
    %v427 = vunpack.c.l.s8.bf16 %v103
    %v428 = vunpack.c.l.s8.bf16 %v104
    %v429 = vunpack.c.l.s8.bf16 %v105
    %v430 = vunpack.c.l.s8.bf16 %v106
    %v431 = vunpack.c.l.s8.bf16 %v107
    %v432 = vunpack.c.h.s8.bf16 %v99
    %v433 = vunpack.c.h.s8.bf16 %v100
    %v434 = vunpack.c.h.s8.bf16 %v101
    %v435 = vunpack.c.h.s8.bf16 %v102
    %v436 = vunpack.c.h.s8.bf16 %v103
    %v437 = vunpack.c.h.s8.bf16 %v104
    %v438 = vunpack.c.h.s8.bf16 %v105
    %v439 = vunpack.c.h.s8.bf16 %v106
    %v440 = vunpack.c.h.s8.bf16 %v107
    %v441 = vunpack.c.l.s8.bf16 %v108
    %v442 = vunpack.c.l.s8.bf16 %v109
    %v443 = vunpack.c.l.s8.bf16 %v110
    %v444 = vunpack.c.l.s8.bf16 %v111
    %v445 = vunpack.c.l.s8.bf16 %v112
    %v446 = vunpack.c.l.s8.bf16 %v113
    %v447 = vunpack.c.l.s8.bf16 %v114
    %v448 = vunpack.c.l.s8.bf16 %v115
    %v449 = vunpack.c.l.s8.bf16 %v116
    %v450 = vunpack.c.h.s8.bf16 %v108
    %v451 = vunpack.c.h.s8.bf16 %v109
    %v452 = vunpack.c.h.s8.bf16 %v110
    %v453 = vunpack.c.h.s8.bf16 %v111
    %v454 = vunpack.c.h.s8.bf16 %v112
    %v455 = vunpack.c.h.s8.bf16 %v113
    %v456 = vunpack.c.h.s8.bf16 %v114
    %v457 = vunpack.c.h.s8.bf16 %v115
    %v458 = vunpack.c.h.s8.bf16 %v116
    %v459 = vunpack.c.l.s8.bf16 %v117
    %v460 = vunpack.c.l.s8.bf16 %v118
    %v461 = vunpack.c.l.s8.bf16 %v119
    %v462 = vunpack.c.l.s8.bf16 %v120
    %v463 = vunpack.c.l.s8.bf16 %v121
    %v464 = vunpack.c.l.s8.bf16 %v122
    %v465 = vunpack.c.l.s8.bf16 %v123
    %v466 = vunpack.c.l.s8.bf16 %v124
    %v467 = vunpack.c.l.s8.bf16 %v125
    %v468 = vunpack.c.h.s8.bf16 %v117
    %v469 = vunpack.c.h.s8.bf16 %v118
    %v470 = vunpack.c.h.s8.bf16 %v119
    %v471 = vunpack.c.h.s8.bf16 %v120
    %v472 = vunpack.c.h.s8.bf16 %v121
    %v473 = vunpack.c.h.s8.bf16 %v122
    %v474 = vunpack.c.h.s8.bf16 %v123
    %v475 = vunpack.c.h.s8.bf16 %v124
    %v476 = vunpack.c.h.s8.bf16 %v125
    %v477 = vunpack.c.l.s8.bf16 %v126
    %v478 = vunpack.c.l.s8.bf16 %v127
    %v479 = vunpack.c.l.s8.bf16 %v128
    %v480 = vunpack.c.l.s8.bf16 %v129
    %v481 = vunpack.c.l.s8.bf16 %v130
    %v482 = vunpack.c.l.s8.bf16 %v131
    %v483 = vunpack.c.l.s8.bf16 %v132
    %v484 = vunpack.c.l.s8.bf16 %v133
    %v485 = vunpack.c.l.s8.bf16 %v134
    %v486 = vunpack.c.h.s8.bf16 %v126
    %v487 = vunpack.c.h.s8.bf16 %v127
    %v488 = vunpack.c.h.s8.bf16 %v128
    %v489 = vunpack.c.h.s8.bf16 %v129
    %v490 = vunpack.c.h.s8.bf16 %v130
    %v491 = vunpack.c.h.s8.bf16 %v131
    %v492 = vunpack.c.h.s8.bf16 %v132
    %v493 = vunpack.c.h.s8.bf16 %v133
    %v494 = vunpack.c.h.s8.bf16 %v134
    %v495 = vunpack.c.l.s8.bf16 %v135
    %v496 = vunpack.c.l.s8.bf16 %v136
    %v497 = vunpack.c.l.s8.bf16 %v137
    %v498 = vunpack.c.l.s8.bf16 %v138
    %v499 = vunpack.c.l.s8.bf16 %v139
    %v500 = vunpack.c.l.s8.bf16 %v140
    %v501 = vunpack.c.l.s8.bf16 %v141
    %v502 = vunpack.c.l.s8.bf16 %v142
    %v503 = vunpack.c.l.s8.bf16 %v143
    %v504 = vunpack.c.h.s8.bf16 %v135
    %v505 = vunpack.c.h.s8.bf16 %v136
    %v506 = vunpack.c.h.s8.bf16 %v137
    %v507 = vunpack.c.h.s8.bf16 %v138
    %v508 = vunpack.c.h.s8.bf16 %v139
    %v509 = vunpack.c.h.s8.bf16 %v140
    %v510 = vunpack.c.h.s8.bf16 %v141
    %v511 = vunpack.c.h.s8.bf16 %v142
    %v512 = vunpack.c.h.s8.bf16 %v143
    %v513 = vunpack.c.l.s8.bf16 %v144
    %v514 = vunpack.c.l.s8.bf16 %v145
    %v515 = vunpack.c.l.s8.bf16 %v146
    %v516 = vunpack.c.l.s8.bf16 %v147
    %v517 = vunpack.c.l.s8.bf16 %v148
    %v518 = vunpack.c.l.s8.bf16 %v149
    %v519 = vunpack.c.l.s8.bf16 %v150
    %v520 = vunpack.c.l.s8.bf16 %v151
    %v521 = vunpack.c.l.s8.bf16 %v152
    %v522 = vunpack.c.h.s8.bf16 %v144
    %v523 = vunpack.c.h.s8.bf16 %v145
    %v524 = vunpack.c.h.s8.bf16 %v146
    %v525 = vunpack.c.h.s8.bf16 %v147
    %v526 = vunpack.c.h.s8.bf16 %v148
    %v527 = vunpack.c.h.s8.bf16 %v149
    %v528 = vunpack.c.h.s8.bf16 %v150
    %v529 = vunpack.c.h.s8.bf16 %v151
    %v530 = vunpack.c.h.s8.bf16 %v152
    %v531 = vunpack.c.l.s8.bf16 %v153
    %v532 = vunpack.c.l.s8.bf16 %v154
    %v533 = vunpack.c.l.s8.bf16 %v155
    %v534 = vunpack.c.l.s8.bf16 %v156
    %v535 = vunpack.c.l.s8.bf16 %v157
    %v536 = vunpack.c.l.s8.bf16 %v158
    %v537 = vunpack.c.l.s8.bf16 %v159
    %v538 = vunpack.c.l.s8.bf16 %v160
    %v539 = vunpack.c.l.s8.bf16 %v161
    %v540 = vunpack.c.h.s8.bf16 %v153
    %v541 = vunpack.c.h.s8.bf16 %v154
    %v542 = vunpack.c.h.s8.bf16 %v155
    %v543 = vunpack.c.h.s8.bf16 %v156
    %v544 = vunpack.c.h.s8.bf16 %v157
    %v545 = vunpack.c.h.s8.bf16 %v158
    %v546 = vunpack.c.h.s8.bf16 %v159
    %v547 = vunpack.c.h.s8.bf16 %v160
    %v548 = vunpack.c.h.s8.bf16 %v161
    %v549 = vunpack.c.l.s8.bf16 %v162
    %v550 = vunpack.c.l.s8.bf16 %v163
    %v551 = vunpack.c.l.s8.bf16 %v164
    %v552 = vunpack.c.l.s8.bf16 %v165
    %v553 = vunpack.c.l.s8.bf16 %v166
    %v554 = vunpack.c.l.s8.bf16 %v167
    %v555 = vunpack.c.l.s8.bf16 %v168
    %v556 = vunpack.c.l.s8.bf16 %v169
    %v557 = vunpack.c.l.s8.bf16 %v170
    %v558 = vunpack.c.h.s8.bf16 %v162
    %v559 = vunpack.c.h.s8.bf16 %v163
    %v560 = vunpack.c.h.s8.bf16 %v164
    %v561 = vunpack.c.h.s8.bf16 %v165
    %v562 = vunpack.c.h.s8.bf16 %v166
    %v563 = vunpack.c.h.s8.bf16 %v167
    %v564 = vunpack.c.h.s8.bf16 %v168
    %v565 = vunpack.c.h.s8.bf16 %v169
    %v566 = vunpack.c.h.s8.bf16 %v170
    %v567 = vunpack.c.l.s8.bf16 %v171
    %v568 = vunpack.c.l.s8.bf16 %v172
    %v569 = vunpack.c.l.s8.bf16 %v173
    %v570 = vunpack.c.l.s8.bf16 %v174
    %v571 = vunpack.c.l.s8.bf16 %v175
    %v572 = vunpack.c.l.s8.bf16 %v176
    %v573 = vunpack.c.l.s8.bf16 %v177
    %v574 = vunpack.c.l.s8.bf16 %v178
    %v575 = vunpack.c.l.s8.bf16 %v179
    %v576 = vunpack.c.h.s8.bf16 %v171
    %v577 = vunpack.c.h.s8.bf16 %v172
    %v578 = vunpack.c.h.s8.bf16 %v173
    %v579 = vunpack.c.h.s8.bf16 %v174
    %v580 = vunpack.c.h.s8.bf16 %v175
    %v581 = vunpack.c.h.s8.bf16 %v176
    %v582 = vunpack.c.h.s8.bf16 %v177
    %v583 = vunpack.c.h.s8.bf16 %v178
    %v584 = vunpack.c.h.s8.bf16 %v179
    %v585 = vunpack.c.l.s8.bf16 %v180
    %v586 = vunpack.c.l.s8.bf16 %v181
    %v587 = vunpack.c.l.s8.bf16 %v182
    %v588 = vunpack.c.l.s8.bf16 %v183
    %v589 = vunpack.c.l.s8.bf16 %v184
    %v590 = vunpack.c.l.s8.bf16 %v185
    %v591 = vunpack.c.l.s8.bf16 %v186
    %v592 = vunpack.c.l.s8.bf16 %v187
    %v593 = vunpack.c.l.s8.bf16 %v188
    %v594 = vunpack.c.h.s8.bf16 %v180
    %v595 = vunpack.c.h.s8.bf16 %v181
    %v596 = vunpack.c.h.s8.bf16 %v182
    %v597 = vunpack.c.h.s8.bf16 %v183
    %v598 = vunpack.c.h.s8.bf16 %v184
    %v599 = vunpack.c.h.s8.bf16 %v185
    %v600 = vunpack.c.h.s8.bf16 %v186
    %v601 = vunpack.c.h.s8.bf16 %v187
    %v602 = vunpack.c.h.s8.bf16 %v188
    %v603 = vunpack.c.l.s8.bf16 %v189
    %v604 = vunpack.c.l.s8.bf16 %v190
    %v605 = vunpack.c.l.s8.bf16 %v191
    %v606 = vunpack.c.l.s8.bf16 %v192
    %v607 = vunpack.c.l.s8.bf16 %v193
    %v608 = vunpack.c.l.s8.bf16 %v194
    %v609 = vunpack.c.l.s8.bf16 %v195
    %v610 = vunpack.c.l.s8.bf16 %v196
    %v611 = vunpack.c.l.s8.bf16 %v197
    %v612 = vunpack.c.h.s8.bf16 %v189
    %v613 = vunpack.c.h.s8.bf16 %v190
    %v614 = vunpack.c.h.s8.bf16 %v191
    %v615 = vunpack.c.h.s8.bf16 %v192
    %v616 = vunpack.c.h.s8.bf16 %v193
    %v617 = vunpack.c.h.s8.bf16 %v194
    %v618 = vunpack.c.h.s8.bf16 %v195
    %v619 = vunpack.c.h.s8.bf16 %v196
    %v620 = vunpack.c.h.s8.bf16 %v197
    %v621 = vunpack.c.l.s8.bf16 %v198
    %v622 = vunpack.c.l.s8.bf16 %v199
    %v623 = vunpack.c.l.s8.bf16 %v200
    %v624 = vunpack.c.l.s8.bf16 %v201
    %v625 = vunpack.c.l.s8.bf16 %v202
    %v626 = vunpack.c.l.s8.bf16 %v203
    %v627 = vunpack.c.l.s8.bf16 %v204
    %v628 = vunpack.c.l.s8.bf16 %v205
    %v629 = vunpack.c.l.s8.bf16 %v206
    %v630 = vunpack.c.h.s8.bf16 %v198
    %v631 = vunpack.c.h.s8.bf16 %v199
    %v632 = vunpack.c.h.s8.bf16 %v200
    %v633 = vunpack.c.h.s8.bf16 %v201
    %v634 = vunpack.c.h.s8.bf16 %v202
    %v635 = vunpack.c.h.s8.bf16 %v203
    %v636 = vunpack.c.h.s8.bf16 %v204
    %v637 = vunpack.c.h.s8.bf16 %v205
    %v638 = vunpack.c.h.s8.bf16 %v206
    %v639 = vunpack.c.l.s8.bf16 %v207
    %v640 = vunpack.c.l.s8.bf16 %v208
    %v641 = vunpack.c.l.s8.bf16 %v209
    %v642 = vunpack.c.l.s8.bf16 %v210
    %v643 = vunpack.c.l.s8.bf16 %v211
    %v644 = vunpack.c.l.s8.bf16 %v212
    %v645 = vunpack.c.l.s8.bf16 %v213
    %v646 = vunpack.c.l.s8.bf16 %v214
    %v647 = vunpack.c.l.s8.bf16 %v215
    %v648 = vunpack.c.h.s8.bf16 %v207
    %v649 = vunpack.c.h.s8.bf16 %v208
    %v650 = vunpack.c.h.s8.bf16 %v209
    %v651 = vunpack.c.h.s8.bf16 %v210
    %v652 = vunpack.c.h.s8.bf16 %v211
    %v653 = vunpack.c.h.s8.bf16 %v212
    %v654 = vunpack.c.h.s8.bf16 %v213
    %v655 = vunpack.c.h.s8.bf16 %v214
    %v656 = vunpack.c.h.s8.bf16 %v215
    %v657 = vunpack.c.l.s8.bf16 %v216
    %v658 = vunpack.c.l.s8.bf16 %v217
    %v659 = vunpack.c.l.s8.bf16 %v218
    %v660 = vunpack.c.l.s8.bf16 %v219
    %v661 = vunpack.c.l.s8.bf16 %v220
    %v662 = vunpack.c.l.s8.bf16 %v221
    %v663 = vunpack.c.l.s8.bf16 %v222
    %v664 = vunpack.c.l.s8.bf16 %v223
    %v665 = vunpack.c.l.s8.bf16 %v224
    %v666 = vunpack.c.h.s8.bf16 %v216
    %v667 = vunpack.c.h.s8.bf16 %v217
    %v668 = vunpack.c.h.s8.bf16 %v218
    %v669 = vunpack.c.h.s8.bf16 %v219
    %v670 = vunpack.c.h.s8.bf16 %v220
    %v671 = vunpack.c.h.s8.bf16 %v221
    %v672 = vunpack.c.h.s8.bf16 %v222
    %v673 = vunpack.c.h.s8.bf16 %v223
    %v674 = vunpack.c.h.s8.bf16 %v224
    %v675 = vunpack.c.l.s8.bf16 %v225
    %v676 = vunpack.c.l.s8.bf16 %v226
    %v677 = vunpack.c.l.s8.bf16 %v227
    %v678 = vunpack.c.l.s8.bf16 %v228
    %v679 = vunpack.c.l.s8.bf16 %v229
    %v680 = vunpack.c.l.s8.bf16 %v230
    %v681 = vunpack.c.l.s8.bf16 %v231
    %v682 = vunpack.c.l.s8.bf16 %v232
    %v683 = vunpack.c.l.s8.bf16 %v233
    %v684 = vunpack.c.h.s8.bf16 %v225
    %v685 = vunpack.c.h.s8.bf16 %v226
    %v686 = vunpack.c.h.s8.bf16 %v227
    %v687 = vunpack.c.h.s8.bf16 %v228
    %v688 = vunpack.c.h.s8.bf16 %v229
    %v689 = vunpack.c.h.s8.bf16 %v230
    %v690 = vunpack.c.h.s8.bf16 %v231
    %v691 = vunpack.c.h.s8.bf16 %v232
    %v692 = vunpack.c.h.s8.bf16 %v233
    %v693 = vunpack.c.l.s8.bf16 %v234
    %v694 = vunpack.c.l.s8.bf16 %v235
    %v695 = vunpack.c.l.s8.bf16 %v236
    %v696 = vunpack.c.l.s8.bf16 %v237
    %v697 = vunpack.c.l.s8.bf16 %v238
    %v698 = vunpack.c.l.s8.bf16 %v239
    %v699 = vunpack.c.l.s8.bf16 %v240
    %v700 = vunpack.c.l.s8.bf16 %v241
    %v701 = vunpack.c.l.s8.bf16 %v242
    %v702 = vunpack.c.h.s8.bf16 %v234
    %v703 = vunpack.c.h.s8.bf16 %v235
    %v704 = vunpack.c.h.s8.bf16 %v236
    %v705 = vunpack.c.h.s8.bf16 %v237
    %v706 = vunpack.c.h.s8.bf16 %v238
    %v707 = vunpack.c.h.s8.bf16 %v239
    %v708 = vunpack.c.h.s8.bf16 %v240
    %v709 = vunpack.c.h.s8.bf16 %v241
    %v710 = vunpack.c.h.s8.bf16 %v242
    %v711 = vunpack.c.l.s8.bf16 %v243
    %v712 = vunpack.c.l.s8.bf16 %v244
    %v713 = vunpack.c.l.s8.bf16 %v245
    %v714 = vunpack.c.l.s8.bf16 %v246
    %v715 = vunpack.c.l.s8.bf16 %v247
    %v716 = vunpack.c.l.s8.bf16 %v248
    %v717 = vunpack.c.l.s8.bf16 %v249
    %v718 = vunpack.c.l.s8.bf16 %v250
    %v719 = vunpack.c.l.s8.bf16 %v251
    %v720 = vunpack.c.h.s8.bf16 %v243
    %v721 = vunpack.c.h.s8.bf16 %v244
    %v722 = vunpack.c.h.s8.bf16 %v245
    %v723 = vunpack.c.h.s8.bf16 %v246
    %v724 = vunpack.c.h.s8.bf16 %v247
    %v725 = vunpack.c.h.s8.bf16 %v248
    %v726 = vunpack.c.h.s8.bf16 %v249
    %v727 = vunpack.c.h.s8.bf16 %v250
    %v728 = vunpack.c.h.s8.bf16 %v251
    %v729 = vunpack.c.l.s8.bf16 %v252
    %v730 = vunpack.c.l.s8.bf16 %v253
    %v731 = vunpack.c.l.s8.bf16 %v254
    %v732 = vunpack.c.l.s8.bf16 %v255
    %v733 = vunpack.c.l.s8.bf16 %v256
    %v734 = vunpack.c.l.s8.bf16 %v257
    %v735 = vunpack.c.l.s8.bf16 %v258
    %v736 = vunpack.c.l.s8.bf16 %v259
    %v737 = vunpack.c.l.s8.bf16 %v260
    %v738 = vunpack.c.h.s8.bf16 %v252
    %v739 = vunpack.c.h.s8.bf16 %v253
    %v740 = vunpack.c.h.s8.bf16 %v254
    %v741 = vunpack.c.h.s8.bf16 %v255
    %v742 = vunpack.c.h.s8.bf16 %v256
    %v743 = vunpack.c.h.s8.bf16 %v257
    %v744 = vunpack.c.h.s8.bf16 %v258
    %v745 = vunpack.c.h.s8.bf16 %v259
    %v746 = vunpack.c.h.s8.bf16 %v260
    %v747 = vunpack.c.l.s8.bf16 %v261
    %v748 = vunpack.c.l.s8.bf16 %v262
    %v749 = vunpack.c.l.s8.bf16 %v263
    %v750 = vunpack.c.l.s8.bf16 %v264
    %v751 = vunpack.c.l.s8.bf16 %v265
    %v752 = vunpack.c.l.s8.bf16 %v266
    %v753 = vunpack.c.l.s8.bf16 %v267
    %v754 = vunpack.c.l.s8.bf16 %v268
    %v755 = vunpack.c.l.s8.bf16 %v269
    %v756 = vunpack.c.h.s8.bf16 %v261
    %v757 = vunpack.c.h.s8.bf16 %v262
    %v758 = vunpack.c.h.s8.bf16 %v263
    %v759 = vunpack.c.h.s8.bf16 %v264
    %v760 = vunpack.c.h.s8.bf16 %v265
    %v761 = vunpack.c.h.s8.bf16 %v266
    %v762 = vunpack.c.h.s8.bf16 %v267
    %v763 = vunpack.c.h.s8.bf16 %v268
    %v764 = vunpack.c.h.s8.bf16 %v269
    %v765 = vunpack.c.l.s8.bf16 %v270
    %v766 = vunpack.c.l.s8.bf16 %v271
    %v767 = vunpack.c.l.s8.bf16 %v272
    %v768 = vunpack.c.l.s8.bf16 %v273
    %v769 = vunpack.c.l.s8.bf16 %v274
    %v770 = vunpack.c.l.s8.bf16 %v275
    %v771 = vunpack.c.l.s8.bf16 %v276
    %v772 = vunpack.c.l.s8.bf16 %v277
    %v773 = vunpack.c.l.s8.bf16 %v278
    %v774 = vunpack.c.h.s8.bf16 %v270
    %v775 = vunpack.c.h.s8.bf16 %v271
    %v776 = vunpack.c.h.s8.bf16 %v272
    %v777 = vunpack.c.h.s8.bf16 %v273
    %v778 = vunpack.c.h.s8.bf16 %v274
    %v779 = vunpack.c.h.s8.bf16 %v275
    %v780 = vunpack.c.h.s8.bf16 %v276
    %v781 = vunpack.c.h.s8.bf16 %v277
    %v782 = vunpack.c.h.s8.bf16 %v278
    %v783 = vunpack.c.l.s8.bf16 %v279
    %v784 = vunpack.c.l.s8.bf16 %v280
    %v785 = vunpack.c.l.s8.bf16 %v281
    %v786 = vunpack.c.l.s8.bf16 %v282
    %v787 = vunpack.c.l.s8.bf16 %v283
    %v788 = vunpack.c.l.s8.bf16 %v284
    %v789 = vunpack.c.l.s8.bf16 %v285
    %v790 = vunpack.c.l.s8.bf16 %v286
    %v791 = vunpack.c.l.s8.bf16 %v287
    %v792 = vunpack.c.h.s8.bf16 %v279
    %v793 = vunpack.c.h.s8.bf16 %v280
    %v794 = vunpack.c.h.s8.bf16 %v281
    %v795 = vunpack.c.h.s8.bf16 %v282
    %v796 = vunpack.c.h.s8.bf16 %v283
    %v797 = vunpack.c.h.s8.bf16 %v284
    %v798 = vunpack.c.h.s8.bf16 %v285
    %v799 = vunpack.c.h.s8.bf16 %v286
    %v800 = vunpack.c.h.s8.bf16 %v287
    %v801 = vunpack.c.l.s8.bf16 %v288
    %v802 = vunpack.c.l.s8.bf16 %v289
    %v803 = vunpack.c.l.s8.bf16 %v290
    %v804 = vunpack.c.l.s8.bf16 %v291
    %v805 = vunpack.c.l.s8.bf16 %v292
    %v806 = vunpack.c.l.s8.bf16 %v293
    %v807 = vunpack.c.l.s8.bf16 %v294
    %v808 = vunpack.c.l.s8.bf16 %v295
    %v809 = vunpack.c.l.s8.bf16 %v296
    %v810 = vunpack.c.h.s8.bf16 %v288
    %v811 = vunpack.c.h.s8.bf16 %v289
    %v812 = vunpack.c.h.s8.bf16 %v290
    %v813 = vunpack.c.h.s8.bf16 %v291
    %v814 = vunpack.c.h.s8.bf16 %v292
    %v815 = vunpack.c.h.s8.bf16 %v293
    %v816 = vunpack.c.h.s8.bf16 %v294
    %v817 = vunpack.c.h.s8.bf16 %v295
    %v818 = vunpack.c.h.s8.bf16 %v296
    %v819 = vunpack.c.l.s8.bf16 %v297
    %v820 = vunpack.c.l.s8.bf16 %v298
    %v821 = vunpack.c.l.s8.bf16 %v299
    %v822 = vunpack.c.l.s8.bf16 %v300
    %v823 = vunpack.c.l.s8.bf16 %v301
    %v824 = vunpack.c.l.s8.bf16 %v302
    %v825 = vunpack.c.l.s8.bf16 %v303
    %v826 = vunpack.c.l.s8.bf16 %v304
    %v827 = vunpack.c.l.s8.bf16 %v305
    %v828 = vunpack.c.h.s8.bf16 %v297
    %v829 = vunpack.c.h.s8.bf16 %v298
    %v830 = vunpack.c.h.s8.bf16 %v299
    %v831 = vunpack.c.h.s8.bf16 %v300
    %v832 = vunpack.c.h.s8.bf16 %v301
    %v833 = vunpack.c.h.s8.bf16 %v302
    %v834 = vunpack.c.h.s8.bf16 %v303
    %v835 = vunpack.c.h.s8.bf16 %v304
    %v836 = vunpack.c.h.s8.bf16 %v305
    %v837 = vunpack.c.l.s8.bf16 %v306
    %v838 = vunpack.c.l.s8.bf16 %v307
    %v839 = vunpack.c.l.s8.bf16 %v308
    %v840 = vunpack.c.l.s8.bf16 %v309
    %v841 = vunpack.c.l.s8.bf16 %v310
    %v842 = vunpack.c.l.s8.bf16 %v311
    %v843 = vunpack.c.l.s8.bf16 %v312
    %v844 = vunpack.c.l.s8.bf16 %v313
    %v845 = vunpack.c.l.s8.bf16 %v314
    %v846 = vunpack.c.h.s8.bf16 %v306
    %v847 = vunpack.c.h.s8.bf16 %v307
    %v848 = vunpack.c.h.s8.bf16 %v308
    %v849 = vunpack.c.h.s8.bf16 %v309
    %v850 = vunpack.c.h.s8.bf16 %v310
    %v851 = vunpack.c.h.s8.bf16 %v311
    %v852 = vunpack.c.h.s8.bf16 %v312
    %v853 = vunpack.c.h.s8.bf16 %v313
    %v854 = vunpack.c.h.s8.bf16 %v314
    %v855 = vunpack.c.l.s8.bf16 %v315
    %v856 = vunpack.c.l.s8.bf16 %v316
    %v857 = vunpack.c.l.s8.bf16 %v317
    %v858 = vunpack.c.l.s8.bf16 %v318
    %v859 = vunpack.c.l.s8.bf16 %v319
    %v860 = vunpack.c.l.s8.bf16 %v320
    %v861 = vunpack.c.l.s8.bf16 %v321
    %v862 = vunpack.c.l.s8.bf16 %v322
    %v863 = vunpack.c.l.s8.bf16 %v323
    %v864 = vunpack.c.h.s8.bf16 %v315
    %v865 = vunpack.c.h.s8.bf16 %v316
    %v866 = vunpack.c.h.s8.bf16 %v317
    %v867 = vunpack.c.h.s8.bf16 %v318
    %v868 = vunpack.c.h.s8.bf16 %v319
    %v869 = vunpack.c.h.s8.bf16 %v320
    %v870 = vunpack.c.h.s8.bf16 %v321
    %v871 = vunpack.c.h.s8.bf16 %v322
    %v872 = vunpack.c.h.s8.bf16 %v323
    %v873 = vunpack.c.l.s8.bf16 %v324
    %v874 = vunpack.c.l.s8.bf16 %v325
    %v875 = vunpack.c.l.s8.bf16 %v326
    %v876 = vunpack.c.l.s8.bf16 %v327
    %v877 = vunpack.c.l.s8.bf16 %v328
    %v878 = vunpack.c.l.s8.bf16 %v329
    %v879 = vunpack.c.l.s8.bf16 %v330
    %v880 = vunpack.c.l.s8.bf16 %v331
    %v881 = vunpack.c.l.s8.bf16 %v332
    %v882 = vunpack.c.h.s8.bf16 %v324
    %v883 = vunpack.c.h.s8.bf16 %v325
    %v884 = vunpack.c.h.s8.bf16 %v326
    %v885 = vunpack.c.h.s8.bf16 %v327
    %v886 = vunpack.c.h.s8.bf16 %v328
    %v887 = vunpack.c.h.s8.bf16 %v329
    %v888 = vunpack.c.h.s8.bf16 %v330
    %v889 = vunpack.c.h.s8.bf16 %v331
    %v890 = vunpack.c.h.s8.bf16 %v332
    %v891 = vunpack.c.l.s8.bf16 %v333
    %v892 = vunpack.c.l.s8.bf16 %v334
    %v893 = vunpack.c.l.s8.bf16 %v335
    %v894 = vunpack.c.l.s8.bf16 %v336
    %v895 = vunpack.c.l.s8.bf16 %v337
    %v896 = vunpack.c.l.s8.bf16 %v338
    %v897 = vunpack.c.l.s8.bf16 %v339
    %v898 = vunpack.c.l.s8.bf16 %v340
    %v899 = vunpack.c.l.s8.bf16 %v341
    %v900 = vunpack.c.h.s8.bf16 %v333
    %v901 = vunpack.c.h.s8.bf16 %v334
    %v902 = vunpack.c.h.s8.bf16 %v335
    %v903 = vunpack.c.h.s8.bf16 %v336
    %v904 = vunpack.c.h.s8.bf16 %v337
    %v905 = vunpack.c.h.s8.bf16 %v338
    %v906 = vunpack.c.h.s8.bf16 %v339
    %v907 = vunpack.c.h.s8.bf16 %v340
    %v908 = vunpack.c.h.s8.bf16 %v341
    %v909 = vunpack.c.l.s8.bf16 %v342
    %v910 = vunpack.c.l.s8.bf16 %v343
    %v911 = vunpack.c.l.s8.bf16 %v344
    %v912 = vunpack.c.l.s8.bf16 %v345
    %v913 = vunpack.c.l.s8.bf16 %v346
    %v914 = vunpack.c.l.s8.bf16 %v347
    %v915 = vunpack.c.l.s8.bf16 %v348
    %v916 = vunpack.c.l.s8.bf16 %v349
    %v917 = vunpack.c.l.s8.bf16 %v350
    %v918 = vunpack.c.h.s8.bf16 %v342
    %v919 = vunpack.c.h.s8.bf16 %v343
    %v920 = vunpack.c.h.s8.bf16 %v344
    %v921 = vunpack.c.h.s8.bf16 %v345
    %v922 = vunpack.c.h.s8.bf16 %v346
    %v923 = vunpack.c.h.s8.bf16 %v347
    %v924 = vunpack.c.h.s8.bf16 %v348
    %v925 = vunpack.c.h.s8.bf16 %v349
    %v926 = vunpack.c.h.s8.bf16 %v350
    %v927 = vunpack.c.l.s8.bf16 %v351
    %v928 = vunpack.c.l.s8.bf16 %v352
    %v929 = vunpack.c.l.s8.bf16 %v353
    %v930 = vunpack.c.l.s8.bf16 %v354
    %v931 = vunpack.c.l.s8.bf16 %v355
    %v932 = vunpack.c.l.s8.bf16 %v356
    %v933 = vunpack.c.l.s8.bf16 %v357
    %v934 = vunpack.c.l.s8.bf16 %v358
    %v935 = vunpack.c.l.s8.bf16 %v359
    %v936 = vunpack.c.h.s8.bf16 %v351
    %v937 = vunpack.c.h.s8.bf16 %v352
    %v938 = vunpack.c.h.s8.bf16 %v353
    %v939 = vunpack.c.h.s8.bf16 %v354
    %v940 = vunpack.c.h.s8.bf16 %v355
    %v941 = vunpack.c.h.s8.bf16 %v356
    %v942 = vunpack.c.h.s8.bf16 %v357
    %v943 = vunpack.c.h.s8.bf16 %v358
    %v944 = vunpack.c.h.s8.bf16 %v359
    %v945 = vunpack.c.l.s8.bf16 %v360
    %v946 = vunpack.c.l.s8.bf16 %v361
    %v947 = vunpack.c.l.s8.bf16 %v362
    %v948 = vunpack.c.l.s8.bf16 %v363
    %v949 = vunpack.c.l.s8.bf16 %v364
    %v950 = vunpack.c.l.s8.bf16 %v365
    %v951 = vunpack.c.l.s8.bf16 %v366
    %v952 = vunpack.c.l.s8.bf16 %v367
    %v953 = vunpack.c.l.s8.bf16 %v368
    %v954 = vunpack.c.h.s8.bf16 %v360
    %v955 = vunpack.c.h.s8.bf16 %v361
    %v956 = vunpack.c.h.s8.bf16 %v362
    %v957 = vunpack.c.h.s8.bf16 %v363
    %v958 = vunpack.c.h.s8.bf16 %v364
    %v959 = vunpack.c.h.s8.bf16 %v365
    %v960 = vunpack.c.h.s8.bf16 %v366
    %v961 = vunpack.c.h.s8.bf16 %v367
    %v962 = vunpack.c.h.s8.bf16 %v368
    %v965 = vlaneseq
    %v966 = vshrl.u32 %v965, 7
    %v967 = vsub.s32 0, %v966
    %v968 = vrot.slane %v70, %v967
    %v969 = vlaneseq
    %v970 = vshrl.u32 %v969, 7
    %v971 = vsub.s32 1, %v970
    %v972 = vrot.slane %v70, %v971
    %v973 = vlaneseq
    %v974 = vshrl.u32 %v973, 7
    %v975 = vsub.s32 2, %v974
    %v976 = vrot.slane %v70, %v975
    %v977 = vlaneseq
    %v978 = vshrl.u32 %v977, 7
    %v979 = vsub.s32 3, %v978
    %v980 = vrot.slane %v70, %v979
    %v981 = vlaneseq
    %v982 = vshrl.u32 %v981, 7
    %v983 = vsub.s32 4, %v982
    %v984 = vrot.slane %v70, %v983
    %v985 = vlaneseq
    %v986 = vshrl.u32 %v985, 7
    %v987 = vsub.s32 5, %v986
    %v988 = vrot.slane %v70, %v987
    %v989 = vlaneseq
    %v990 = vshrl.u32 %v989, 7
    %v991 = vsub.s32 6, %v990
    %v992 = vrot.slane %v70, %v991
    %v993 = vlaneseq
    %v994 = vshrl.u32 %v993, 7
    %v995 = vsub.s32 7, %v994
    %v996 = vrot.slane %v70, %v995
    %v997 = vlaneseq
    %v998 = vshrl.u32 %v997, 7
    %v999 = vsub.s32 0, %v998
    %v1000 = vrot.slane %v71, %v999
    %v1010 = vpack.c.bf16 %v968, %v968
    %v1011 = vpack.c.bf16 %v972, %v972
    %v1012 = vpack.c.bf16 %v976, %v976
    %v1013 = vpack.c.bf16 %v980, %v980
    %v1014 = vpack.c.bf16 %v984, %v984
    %v1015 = vpack.c.bf16 %v988, %v988
    %v1016 = vpack.c.bf16 %v992, %v992
    %v1017 = vpack.c.bf16 %v996, %v996
    %v1018 = vpack.c.bf16 %v1000, %v1000
    %v1019 = vld [vmem:[%s1] sm:$0xff]
    %v1020 = vld [vmem:[%s1 + $0x8] sm:$0x1]
    %v1021 = vld [vmem:[%s5] sm:$0xff]
    %v1022 = vld [vmem:[%s5 + $0x8] sm:$0xff]
    %v1023 = vld [vmem:[%s5 + $0x10] sm:$0xff]
    %v1024 = vld [vmem:[%s5 + $0x18] sm:$0xff]
    %v1025 = vld [vmem:[%s5 + $0x20] sm:$0xff]
    %v1026 = vld [vmem:[%s5 + $0x28] sm:$0xff]
    %v1027 = vld [vmem:[%s5 + $0x30] sm:$0xff]
    %v1028 = vld [vmem:[%s5 + $0x38] sm:$0xff]
    %v1029 = vld [vmem:[%s5 + $0x40] sm:$0xff]
    %v1030 = vld [vmem:[%s5 + $0x48] sm:$0xff]
    %v1031 = vld [vmem:[%s5 + $0x50] sm:$0xff]
    %v1032 = vld [vmem:[%s5 + $0x58] sm:$0xff]
    %v1033 = vld [vmem:[%s5 + $0x60] sm:$0xff]
    %v1034 = vld [vmem:[%s5 + $0x68] sm:$0xff]
    %v1035 = vld [vmem:[%s5 + $0x70] sm:$0xff]
    %v1036 = vld [vmem:[%s5 + $0x78] sm:$0xff]
    %v1037 = vld [vmem:[%s5 + $0x80] sm:$0xff]
    %v1038 = vld [vmem:[%s5 + $0x88] sm:$0xff]
    %v1039 = vld [vmem:[%s5 + $0x90] sm:$0xff]
    %v1040 = vld [vmem:[%s5 + $0x98] sm:$0xff]
    %v1041 = vld [vmem:[%s5 + $0xa0] sm:$0xff]
    %v1042 = vld [vmem:[%s5 + $0xa8] sm:$0xff]
    %v1043 = vld [vmem:[%s5 + $0xb0] sm:$0xff]
    %v1044 = vld [vmem:[%s5 + $0xb8] sm:$0xff]
    %v1045 = vld [vmem:[%s5 + $0xc0] sm:$0xff]
    %v1046 = vld [vmem:[%s5 + $0xc8] sm:$0xff]
    %v1047 = vld [vmem:[%s5 + $0xd0] sm:$0xff]
    %v1048 = vld [vmem:[%s5 + $0xd8] sm:$0xff]
    %v1049 = vld [vmem:[%s5 + $0xe0] sm:$0xff]
    %v1050 = vld [vmem:[%s5 + $0xe8] sm:$0xff]
    %v1051 = vld [vmem:[%s5 + $0xf0] sm:$0xff]
    %v1052 = vld [vmem:[%s5 + $0xf8] sm:$0xff]
    %v1053 = vld [vmem:[%s5 + $0x100] sm:$0xff]
    %v1054 = vld [vmem:[%s5 + $0x108] sm:$0xff]
    %v1055 = vld [vmem:[%s5 + $0x110] sm:$0xff]
    %v1056 = vld [vmem:[%s5 + $0x118] sm:$0xff]
    %v1057 = vld [vmem:[%s5 + $0x120] sm:$0xff]
    %v1058 = vld [vmem:[%s5 + $0x128] sm:$0xff]
    %v1059 = vld [vmem:[%s5 + $0x130] sm:$0xff]
    %v1060 = vld [vmem:[%s5 + $0x138] sm:$0xff]
    %v1061 = vld [vmem:[%s5 + $0x140] sm:$0xff]
    %v1062 = vld [vmem:[%s5 + $0x148] sm:$0xff]
    %v1063 = vld [vmem:[%s5 + $0x150] sm:$0xff]
    %v1064 = vld [vmem:[%s5 + $0x158] sm:$0xff]
    %v1065 = vld [vmem:[%s5 + $0x160] sm:$0xff]
    %v1066 = vld [vmem:[%s5 + $0x168] sm:$0xff]
    %v1067 = vld [vmem:[%s5 + $0x170] sm:$0xff]
    %v1068 = vld [vmem:[%s5 + $0x178] sm:$0xff]
    %v1069 = vld [vmem:[%s5 + $0x180] sm:$0xff]
    %v1070 = vld [vmem:[%s5 + $0x188] sm:$0xff]
    %v1071 = vld [vmem:[%s5 + $0x190] sm:$0xff]
    %v1072 = vld [vmem:[%s5 + $0x198] sm:$0xff]
    %v1073 = vld [vmem:[%s5 + $0x1a0] sm:$0xff]
    %v1074 = vld [vmem:[%s5 + $0x1a8] sm:$0xff]
    %v1075 = vld [vmem:[%s5 + $0x1b0] sm:$0xff]
    %v1076 = vld [vmem:[%s5 + $0x1b8] sm:$0xff]
    %v1077 = vld [vmem:[%s5 + $0x1c0] sm:$0xff]
    %v1078 = vld [vmem:[%s5 + $0x1c8] sm:$0xff]
    %v1079 = vld [vmem:[%s5 + $0x1d0] sm:$0xff]
    %v1080 = vld [vmem:[%s5 + $0x1d8] sm:$0xff]
    %v1081 = vld [vmem:[%s5 + $0x1e0] sm:$0xff]
    %v1082 = vld [vmem:[%s5 + $0x1e8] sm:$0xff]
    %v1083 = vld [vmem:[%s5 + $0x1f0] sm:$0xff]
    %v1084 = vld [vmem:[%s5 + $0x1f8] sm:$0xff]
    %v1085 = vld [vmem:[%s5 + $0x200] sm:$0xff]
    %v1086 = vld [vmem:[%s5 + $0x208] sm:$0xff]
    %v1087 = vld [vmem:[%s5 + $0x210] sm:$0xff]
    %v1088 = vld [vmem:[%s5 + $0x218] sm:$0xff]
    %v1089 = vld [vmem:[%s5 + $0x220] sm:$0xff]
    %v1090 = vld [vmem:[%s5 + $0x228] sm:$0xff]
    %v1091 = vld [vmem:[%s5 + $0x230] sm:$0xff]
    %v1092 = vld [vmem:[%s5 + $0x238] sm:$0xff]
    %v1093 = vld [vmem:[%s5 + $0x240] sm:$0xff]
    %v1094 = vld [vmem:[%s5 + $0x248] sm:$0xff]
    %v1095 = vld [vmem:[%s5 + $0x250] sm:$0xff]
    %v1096 = vld [vmem:[%s5 + $0x258] sm:$0xff]
    %v1097 = vld [vmem:[%s5 + $0x260] sm:$0xff]
    %v1098 = vld [vmem:[%s5 + $0x268] sm:$0xff]
    %v1099 = vld [vmem:[%s5 + $0x270] sm:$0xff]
    %v1100 = vld [vmem:[%s5 + $0x278] sm:$0xff]
    %v1101 = vld [vmem:[%s5 + $0x280] sm:$0xff]
    %v1102 = vld [vmem:[%s5 + $0x288] sm:$0xff]
    %v1103 = vld [vmem:[%s5 + $0x290] sm:$0xff]
    %v1104 = vld [vmem:[%s5 + $0x298] sm:$0xff]
    %v1105 = vld [vmem:[%s5 + $0x2a0] sm:$0xff]
    %v1106 = vld [vmem:[%s5 + $0x2a8] sm:$0xff]
    %v1107 = vld [vmem:[%s5 + $0x2b0] sm:$0xff]
    %v1108 = vld [vmem:[%s5 + $0x2b8] sm:$0xff]
    %v1109 = vld [vmem:[%s5 + $0x2c0] sm:$0xff]
    %v1110 = vld [vmem:[%s5 + $0x2c8] sm:$0xff]
    %v1111 = vld [vmem:[%s5 + $0x2d0] sm:$0xff]
    %v1112 = vld [vmem:[%s5 + $0x2d8] sm:$0xff]
    %v1113 = vld [vmem:[%s5 + $0x2e0] sm:$0xff]
    %v1114 = vld [vmem:[%s5 + $0x2e8] sm:$0xff]
    %v1115 = vld [vmem:[%s5 + $0x2f0] sm:$0xff]
    %v1116 = vld [vmem:[%s5 + $0x2f8] sm:$0xff]
    %v1117 = vld [vmem:[%s5 + $0x300] sm:$0xff]
    %v1118 = vld [vmem:[%s5 + $0x308] sm:$0xff]
    %v1119 = vld [vmem:[%s5 + $0x310] sm:$0xff]
    %v1120 = vld [vmem:[%s5 + $0x318] sm:$0xff]
    %v1121 = vld [vmem:[%s5 + $0x320] sm:$0xff]
    %v1122 = vld [vmem:[%s5 + $0x328] sm:$0xff]
    %v1123 = vld [vmem:[%s5 + $0x330] sm:$0xff]
    %v1124 = vld [vmem:[%s5 + $0x338] sm:$0xff]
    %v1125 = vld [vmem:[%s5 + $0x340] sm:$0xff]
    %v1126 = vld [vmem:[%s5 + $0x348] sm:$0xff]
    %v1127 = vld [vmem:[%s5 + $0x350] sm:$0xff]
    %v1128 = vld [vmem:[%s5 + $0x358] sm:$0xff]
    %v1129 = vld [vmem:[%s5 + $0x360] sm:$0xff]
    %v1130 = vld [vmem:[%s5 + $0x368] sm:$0xff]
    %v1131 = vld [vmem:[%s5 + $0x370] sm:$0xff]
    %v1132 = vld [vmem:[%s5 + $0x378] sm:$0xff]
    %v1133 = vld [vmem:[%s5 + $0x380] sm:$0xff]
    %v1134 = vld [vmem:[%s5 + $0x388] sm:$0xff]
    %v1135 = vld [vmem:[%s5 + $0x390] sm:$0xff]
    %v1136 = vld [vmem:[%s5 + $0x398] sm:$0xff]
    %v1137 = vld [vmem:[%s5 + $0x3a0] sm:$0xff]
    %v1138 = vld [vmem:[%s5 + $0x3a8] sm:$0xff]
    %v1139 = vld [vmem:[%s5 + $0x3b0] sm:$0xff]
    %v1140 = vld [vmem:[%s5 + $0x3b8] sm:$0xff]
    %v1141 = vld [vmem:[%s5 + $0x3c0] sm:$0xff]
    %v1142 = vld [vmem:[%s5 + $0x3c8] sm:$0xff]
    %v1143 = vld [vmem:[%s5 + $0x3d0] sm:$0xff]
    %v1144 = vld [vmem:[%s5 + $0x3d8] sm:$0xff]
    %v1145 = vld [vmem:[%s5 + $0x3e0] sm:$0xff]
    %v1146 = vld [vmem:[%s5 + $0x3e8] sm:$0xff]
    %v1147 = vld [vmem:[%s5 + $0x3f0] sm:$0xff]
    %v1148 = vld [vmem:[%s5 + $0x3f8] sm:$0xff]
    %v1149 = vld [vmem:[%s5 + $0x400] sm:$0xff]
    %v1150 = vld [vmem:[%s5 + $0x408] sm:$0xff]
    %v1151 = vld [vmem:[%s5 + $0x410] sm:$0xff]
    %v1152 = vld [vmem:[%s5 + $0x418] sm:$0xff]
    %v1153 = vld [vmem:[%s5 + $0x420] sm:$0xff]
    %v1154 = vld [vmem:[%s5 + $0x428] sm:$0xff]
    %v1155 = vld [vmem:[%s5 + $0x430] sm:$0xff]
    %v1156 = vld [vmem:[%s5 + $0x438] sm:$0xff]
    %v1157 = vld [vmem:[%s5 + $0x440] sm:$0xff]
    %v1158 = vld [vmem:[%s5 + $0x448] sm:$0xff]
    %v1159 = vld [vmem:[%s5 + $0x450] sm:$0xff]
    %v1160 = vld [vmem:[%s5 + $0x458] sm:$0xff]
    %v1161 = vld [vmem:[%s5 + $0x460] sm:$0xff]
    %v1162 = vld [vmem:[%s5 + $0x468] sm:$0xff]
    %v1163 = vld [vmem:[%s5 + $0x470] sm:$0xff]
    %v1164 = vld [vmem:[%s5 + $0x478] sm:$0xff]
    %v1165 = vld [vmem:[%s5 + $0x480] sm:$0xff]
    %v1166 = vld [vmem:[%s5 + $0x488] sm:$0xff]
    %v1167 = vld [vmem:[%s5 + $0x490] sm:$0xff]
    %v1168 = vld [vmem:[%s5 + $0x498] sm:$0xff]
    %v1169 = vld [vmem:[%s5 + $0x4a0] sm:$0xff]
    %v1170 = vld [vmem:[%s5 + $0x4a8] sm:$0xff]
    %v1171 = vld [vmem:[%s5 + $0x4b0] sm:$0xff]
    %v1172 = vld [vmem:[%s5 + $0x4b8] sm:$0xff]
    %v1173 = vld [vmem:[%s5 + $0x4c0] sm:$0xff]
    %v1174 = vld [vmem:[%s5 + $0x4c8] sm:$0xff]
    %v1175 = vld [vmem:[%s5 + $0x4d0] sm:$0xff]
    %v1176 = vld [vmem:[%s5 + $0x4d8] sm:$0xff]
    %v1177 = vld [vmem:[%s5 + $0x4e0] sm:$0xff]
    %v1178 = vld [vmem:[%s5 + $0x4e8] sm:$0xff]
    %v1179 = vld [vmem:[%s5 + $0x4f0] sm:$0xff]
    %v1180 = vld [vmem:[%s5 + $0x4f8] sm:$0xff]
    %v1181 = vld [vmem:[%s5 + $0x500] sm:$0xff]
    %v1182 = vld [vmem:[%s5 + $0x508] sm:$0xff]
    %v1183 = vld [vmem:[%s5 + $0x510] sm:$0xff]
    %v1184 = vld [vmem:[%s5 + $0x518] sm:$0xff]
    %v1185 = vld [vmem:[%s5 + $0x520] sm:$0xff]
    %v1186 = vld [vmem:[%s5 + $0x528] sm:$0xff]
    %v1187 = vld [vmem:[%s5 + $0x530] sm:$0xff]
    %v1188 = vld [vmem:[%s5 + $0x538] sm:$0xff]
    %v1189 = vld [vmem:[%s5 + $0x540] sm:$0xff]
    %v1190 = vld [vmem:[%s5 + $0x548] sm:$0xff]
    %v1191 = vld [vmem:[%s5 + $0x550] sm:$0xff]
    %v1192 = vld [vmem:[%s5 + $0x558] sm:$0xff]
    %v1193 = vld [vmem:[%s5 + $0x560] sm:$0xff]
    %v1194 = vld [vmem:[%s5 + $0x568] sm:$0xff]
    %v1195 = vld [vmem:[%s5 + $0x570] sm:$0xff]
    %v1196 = vld [vmem:[%s5 + $0x578] sm:$0xff]
    %v1197 = vld [vmem:[%s5 + $0x580] sm:$0xff]
    %v1198 = vld [vmem:[%s5 + $0x588] sm:$0xff]
    %v1199 = vld [vmem:[%s5 + $0x590] sm:$0xff]
    %v1200 = vld [vmem:[%s5 + $0x598] sm:$0xff]
    %v1201 = vld [vmem:[%s5 + $0x5a0] sm:$0xff]
    %v1202 = vld [vmem:[%s5 + $0x5a8] sm:$0xff]
    %v1203 = vld [vmem:[%s5 + $0x5b0] sm:$0xff]
    %v1204 = vld [vmem:[%s5 + $0x5b8] sm:$0xff]
    %v1205 = vld [vmem:[%s5 + $0x5c0] sm:$0xff]
    %v1206 = vld [vmem:[%s5 + $0x5c8] sm:$0xff]
    %v1207 = vld [vmem:[%s5 + $0x5d0] sm:$0xff]
    %v1208 = vld [vmem:[%s5 + $0x5d8] sm:$0xff]
    %v1209 = vld [vmem:[%s5 + $0x5e0] sm:$0xff]
    %v1210 = vld [vmem:[%s5 + $0x5e8] sm:$0xff]
    %v1211 = vld [vmem:[%s5 + $0x5f0] sm:$0xff]
    %v1212 = vld [vmem:[%s5 + $0x5f8] sm:$0xff]
    %v1213 = vld [vmem:[%s5 + $0x600] sm:$0xff]
    %v1214 = vld [vmem:[%s5 + $0x608] sm:$0xff]
    %v1215 = vld [vmem:[%s5 + $0x610] sm:$0xff]
    %v1216 = vld [vmem:[%s5 + $0x618] sm:$0xff]
    %v1217 = vld [vmem:[%s5 + $0x620] sm:$0xff]
    %v1218 = vld [vmem:[%s5 + $0x628] sm:$0xff]
    %v1219 = vld [vmem:[%s5 + $0x630] sm:$0xff]
    %v1220 = vld [vmem:[%s5 + $0x638] sm:$0xff]
    %v1221 = vld [vmem:[%s5 + $0x640] sm:$0xff]
    %v1222 = vld [vmem:[%s5 + $0x648] sm:$0xff]
    %v1223 = vld [vmem:[%s5 + $0x650] sm:$0xff]
    %v1224 = vld [vmem:[%s5 + $0x658] sm:$0xff]
    %v1225 = vld [vmem:[%s5 + $0x660] sm:$0xff]
    %v1226 = vld [vmem:[%s5 + $0x668] sm:$0xff]
    %v1227 = vld [vmem:[%s5 + $0x670] sm:$0xff]
    %v1228 = vld [vmem:[%s5 + $0x678] sm:$0xff]
    %v1229 = vld [vmem:[%s5 + $0x680] sm:$0xff]
    %v1230 = vld [vmem:[%s5 + $0x688] sm:$0xff]
    %v1231 = vld [vmem:[%s5 + $0x690] sm:$0xff]
    %v1232 = vld [vmem:[%s5 + $0x698] sm:$0xff]
    %v1233 = vld [vmem:[%s5 + $0x6a0] sm:$0xff]
    %v1234 = vld [vmem:[%s5 + $0x6a8] sm:$0xff]
    %v1235 = vld [vmem:[%s5 + $0x6b0] sm:$0xff]
    %v1236 = vld [vmem:[%s5 + $0x6b8] sm:$0xff]
    %v1237 = vld [vmem:[%s5 + $0x6c0] sm:$0xff]
    %v1238 = vld [vmem:[%s5 + $0x6c8] sm:$0xff]
    %v1239 = vld [vmem:[%s5 + $0x6d0] sm:$0xff]
    %v1240 = vld [vmem:[%s5 + $0x6d8] sm:$0xff]
    %v1241 = vld [vmem:[%s5 + $0x6e0] sm:$0xff]
    %v1242 = vld [vmem:[%s5 + $0x6e8] sm:$0xff]
    %v1243 = vld [vmem:[%s5 + $0x6f0] sm:$0xff]
    %v1244 = vld [vmem:[%s5 + $0x6f8] sm:$0xff]
    %v1245 = vld [vmem:[%s5 + $0x700] sm:$0xff]
    %v1246 = vld [vmem:[%s5 + $0x708] sm:$0xff]
    %v1247 = vld [vmem:[%s5 + $0x710] sm:$0xff]
    %v1248 = vld [vmem:[%s5 + $0x718] sm:$0xff]
    %v1249 = vld [vmem:[%s5 + $0x720] sm:$0xff]
    %v1250 = vld [vmem:[%s5 + $0x728] sm:$0xff]
    %v1251 = vld [vmem:[%s5 + $0x730] sm:$0xff]
    %v1252 = vld [vmem:[%s5 + $0x738] sm:$0xff]
    %v1253 = vld [vmem:[%s5 + $0x740] sm:$0xff]
    %v1254 = vld [vmem:[%s5 + $0x748] sm:$0xff]
    %v1255 = vld [vmem:[%s5 + $0x750] sm:$0xff]
    %v1256 = vld [vmem:[%s5 + $0x758] sm:$0xff]
    %v1257 = vld [vmem:[%s5 + $0x760] sm:$0xff]
    %v1258 = vld [vmem:[%s5 + $0x768] sm:$0xff]
    %v1259 = vld [vmem:[%s5 + $0x770] sm:$0xff]
    %v1260 = vld [vmem:[%s5 + $0x778] sm:$0xff]
    %v1261 = vld [vmem:[%s5 + $0x780] sm:$0xff]
    %v1262 = vld [vmem:[%s5 + $0x788] sm:$0xff]
    %v1263 = vld [vmem:[%s5 + $0x790] sm:$0xff]
    %v1264 = vld [vmem:[%s5 + $0x798] sm:$0xff]
    %v1265 = vld [vmem:[%s5 + $0x7a0] sm:$0xff]
    %v1266 = vld [vmem:[%s5 + $0x7a8] sm:$0xff]
    %v1267 = vld [vmem:[%s5 + $0x7b0] sm:$0xff]
    %v1268 = vld [vmem:[%s5 + $0x7b8] sm:$0xff]
    %v1269 = vld [vmem:[%s5 + $0x7c0] sm:$0xff]
    %v1270 = vld [vmem:[%s5 + $0x7c8] sm:$0xff]
    %v1271 = vld [vmem:[%s5 + $0x7d0] sm:$0xff]
    %v1272 = vld [vmem:[%s5 + $0x7d8] sm:$0xff]
    %v1273 = vld [vmem:[%s5 + $0x7e0] sm:$0xff]
    %v1274 = vld [vmem:[%s5 + $0x7e8] sm:$0xff]
    %v1275 = vld [vmem:[%s5 + $0x7f0] sm:$0xff]
    %v1276 = vld [vmem:[%s5 + $0x7f8] sm:$0xff]
    %v1277 = vld [vmem:[%s5 + $0x800] sm:$0xff]
    %v1278 = vld [vmem:[%s5 + $0x808] sm:$0xff]
    %v1279 = vld [vmem:[%s5 + $0x810] sm:$0xff]
    %v1280 = vld [vmem:[%s5 + $0x818] sm:$0xff]
    %v1281 = vld [vmem:[%s5 + $0x820] sm:$0xff]
    %v1282 = vld [vmem:[%s5 + $0x828] sm:$0xff]
    %v1283 = vld [vmem:[%s5 + $0x830] sm:$0xff]
    %v1284 = vld [vmem:[%s5 + $0x838] sm:$0xff]
    %v1285 = vld [vmem:[%s5 + $0x840] sm:$0xff]
    %v1286 = vld [vmem:[%s5 + $0x848] sm:$0xff]
    %v1287 = vld [vmem:[%s5 + $0x850] sm:$0xff]
    %v1288 = vld [vmem:[%s5 + $0x858] sm:$0xff]
    %v1289 = vld [vmem:[%s5 + $0x860] sm:$0xff]
    %v1290 = vld [vmem:[%s5 + $0x868] sm:$0xff]
    %v1291 = vld [vmem:[%s5 + $0x870] sm:$0xff]
    %v1292 = vld [vmem:[%s5 + $0x878] sm:$0xff]
    %v1293 = vld [vmem:[%s5 + $0x880] sm:$0xff]
    %v1294 = vld [vmem:[%s5 + $0x888] sm:$0xff]
    %v1295 = vld [vmem:[%s5 + $0x890] sm:$0xff]
    %v1296 = vld [vmem:[%s5 + $0x898] sm:$0xff]
    %v1297 = vld [vmem:[%s5 + $0x8a0] sm:$0xff]
    %v1298 = vld [vmem:[%s5 + $0x8a8] sm:$0xff]
    %v1299 = vld [vmem:[%s5 + $0x8b0] sm:$0xff]
    %v1300 = vld [vmem:[%s5 + $0x8b8] sm:$0xff]
    %v1301 = vld [vmem:[%s5 + $0x8c0] sm:$0xff]
    %v1302 = vld [vmem:[%s5 + $0x8c8] sm:$0xff]
    %v1303 = vld [vmem:[%s5 + $0x8d0] sm:$0xff]
    %v1304 = vld [vmem:[%s5 + $0x8d8] sm:$0xff]
    %v1305 = vld [vmem:[%s5 + $0x8e0] sm:$0xff]
    %v1306 = vld [vmem:[%s5 + $0x8e8] sm:$0xff]
    %v1307 = vld [vmem:[%s5 + $0x8f0] sm:$0xff]
    %v1308 = vld [vmem:[%s5 + $0x8f8] sm:$0xff]
    %v1309 = vld [vmem:[%s5 + $0x900] sm:$0xff]
    %v1310 = vld [vmem:[%s5 + $0x908] sm:$0xff]
    %v1311 = vld [vmem:[%s5 + $0x910] sm:$0xff]
    %v1312 = vld [vmem:[%s5 + $0x918] sm:$0xff]
    %v1313 = vld [vmem:[%s5 + $0x920] sm:$0xff]
    %v1314 = vld [vmem:[%s5 + $0x928] sm:$0xff]
    %v1315 = vld [vmem:[%s5 + $0x930] sm:$0xff]
    %v1316 = vld [vmem:[%s5 + $0x938] sm:$0xff]
    %v1317 = vld [vmem:[%s5 + $0x940] sm:$0xff]
    %v1318 = vunpack.c.l.s8.bf16 %v1021
    %v1319 = vunpack.c.l.s8.bf16 %v1022
    %v1320 = vunpack.c.l.s8.bf16 %v1023
    %v1321 = vunpack.c.l.s8.bf16 %v1024
    %v1322 = vunpack.c.l.s8.bf16 %v1025
    %v1323 = vunpack.c.l.s8.bf16 %v1026
    %v1324 = vunpack.c.l.s8.bf16 %v1027
    %v1325 = vunpack.c.l.s8.bf16 %v1028
    %v1326 = vunpack.c.l.s8.bf16 %v1029
    %v1327 = vunpack.c.h.s8.bf16 %v1021
    %v1328 = vunpack.c.h.s8.bf16 %v1022
    %v1329 = vunpack.c.h.s8.bf16 %v1023
    %v1330 = vunpack.c.h.s8.bf16 %v1024
    %v1331 = vunpack.c.h.s8.bf16 %v1025
    %v1332 = vunpack.c.h.s8.bf16 %v1026
    %v1333 = vunpack.c.h.s8.bf16 %v1027
    %v1334 = vunpack.c.h.s8.bf16 %v1028
    %v1335 = vunpack.c.h.s8.bf16 %v1029
    %v1336 = vunpack.c.l.s8.bf16 %v1030
    %v1337 = vunpack.c.l.s8.bf16 %v1031
    %v1338 = vunpack.c.l.s8.bf16 %v1032
    %v1339 = vunpack.c.l.s8.bf16 %v1033
    %v1340 = vunpack.c.l.s8.bf16 %v1034
    %v1341 = vunpack.c.l.s8.bf16 %v1035
    %v1342 = vunpack.c.l.s8.bf16 %v1036
    %v1343 = vunpack.c.l.s8.bf16 %v1037
    %v1344 = vunpack.c.l.s8.bf16 %v1038
    %v1345 = vunpack.c.h.s8.bf16 %v1030
    %v1346 = vunpack.c.h.s8.bf16 %v1031
    %v1347 = vunpack.c.h.s8.bf16 %v1032
    %v1348 = vunpack.c.h.s8.bf16 %v1033
    %v1349 = vunpack.c.h.s8.bf16 %v1034
    %v1350 = vunpack.c.h.s8.bf16 %v1035
    %v1351 = vunpack.c.h.s8.bf16 %v1036
    %v1352 = vunpack.c.h.s8.bf16 %v1037
    %v1353 = vunpack.c.h.s8.bf16 %v1038
    %v1354 = vunpack.c.l.s8.bf16 %v1039
    %v1355 = vunpack.c.l.s8.bf16 %v1040
    %v1356 = vunpack.c.l.s8.bf16 %v1041
    %v1357 = vunpack.c.l.s8.bf16 %v1042
    %v1358 = vunpack.c.l.s8.bf16 %v1043
    %v1359 = vunpack.c.l.s8.bf16 %v1044
    %v1360 = vunpack.c.l.s8.bf16 %v1045
    %v1361 = vunpack.c.l.s8.bf16 %v1046
    %v1362 = vunpack.c.l.s8.bf16 %v1047
    %v1363 = vunpack.c.h.s8.bf16 %v1039
    %v1364 = vunpack.c.h.s8.bf16 %v1040
    %v1365 = vunpack.c.h.s8.bf16 %v1041
    %v1366 = vunpack.c.h.s8.bf16 %v1042
    %v1367 = vunpack.c.h.s8.bf16 %v1043
    %v1368 = vunpack.c.h.s8.bf16 %v1044
    %v1369 = vunpack.c.h.s8.bf16 %v1045
    %v1370 = vunpack.c.h.s8.bf16 %v1046
    %v1371 = vunpack.c.h.s8.bf16 %v1047
    %v1372 = vunpack.c.l.s8.bf16 %v1048
    %v1373 = vunpack.c.l.s8.bf16 %v1049
    %v1374 = vunpack.c.l.s8.bf16 %v1050
    %v1375 = vunpack.c.l.s8.bf16 %v1051
    %v1376 = vunpack.c.l.s8.bf16 %v1052
    %v1377 = vunpack.c.l.s8.bf16 %v1053
    %v1378 = vunpack.c.l.s8.bf16 %v1054
    %v1379 = vunpack.c.l.s8.bf16 %v1055
    %v1380 = vunpack.c.l.s8.bf16 %v1056
    %v1381 = vunpack.c.h.s8.bf16 %v1048
    %v1382 = vunpack.c.h.s8.bf16 %v1049
    %v1383 = vunpack.c.h.s8.bf16 %v1050
    %v1384 = vunpack.c.h.s8.bf16 %v1051
    %v1385 = vunpack.c.h.s8.bf16 %v1052
    %v1386 = vunpack.c.h.s8.bf16 %v1053
    %v1387 = vunpack.c.h.s8.bf16 %v1054
    %v1388 = vunpack.c.h.s8.bf16 %v1055
    %v1389 = vunpack.c.h.s8.bf16 %v1056
    %v1390 = vunpack.c.l.s8.bf16 %v1057
    %v1391 = vunpack.c.l.s8.bf16 %v1058
    %v1392 = vunpack.c.l.s8.bf16 %v1059
    %v1393 = vunpack.c.l.s8.bf16 %v1060
    %v1394 = vunpack.c.l.s8.bf16 %v1061
    %v1395 = vunpack.c.l.s8.bf16 %v1062
    %v1396 = vunpack.c.l.s8.bf16 %v1063
    %v1397 = vunpack.c.l.s8.bf16 %v1064
    %v1398 = vunpack.c.l.s8.bf16 %v1065
    %v1399 = vunpack.c.h.s8.bf16 %v1057
    %v1400 = vunpack.c.h.s8.bf16 %v1058
    %v1401 = vunpack.c.h.s8.bf16 %v1059
    %v1402 = vunpack.c.h.s8.bf16 %v1060
    %v1403 = vunpack.c.h.s8.bf16 %v1061
    %v1404 = vunpack.c.h.s8.bf16 %v1062
    %v1405 = vunpack.c.h.s8.bf16 %v1063
    %v1406 = vunpack.c.h.s8.bf16 %v1064
    %v1407 = vunpack.c.h.s8.bf16 %v1065
    %v1408 = vunpack.c.l.s8.bf16 %v1066
    %v1409 = vunpack.c.l.s8.bf16 %v1067
    %v1410 = vunpack.c.l.s8.bf16 %v1068
    %v1411 = vunpack.c.l.s8.bf16 %v1069
    %v1412 = vunpack.c.l.s8.bf16 %v1070
    %v1413 = vunpack.c.l.s8.bf16 %v1071
    %v1414 = vunpack.c.l.s8.bf16 %v1072
    %v1415 = vunpack.c.l.s8.bf16 %v1073
    %v1416 = vunpack.c.l.s8.bf16 %v1074
    %v1417 = vunpack.c.h.s8.bf16 %v1066
    %v1418 = vunpack.c.h.s8.bf16 %v1067
    %v1419 = vunpack.c.h.s8.bf16 %v1068
    %v1420 = vunpack.c.h.s8.bf16 %v1069
    %v1421 = vunpack.c.h.s8.bf16 %v1070
    %v1422 = vunpack.c.h.s8.bf16 %v1071
    %v1423 = vunpack.c.h.s8.bf16 %v1072
    %v1424 = vunpack.c.h.s8.bf16 %v1073
    %v1425 = vunpack.c.h.s8.bf16 %v1074
    %v1426 = vunpack.c.l.s8.bf16 %v1075
    %v1427 = vunpack.c.l.s8.bf16 %v1076
    %v1428 = vunpack.c.l.s8.bf16 %v1077
    %v1429 = vunpack.c.l.s8.bf16 %v1078
    %v1430 = vunpack.c.l.s8.bf16 %v1079
    %v1431 = vunpack.c.l.s8.bf16 %v1080
    %v1432 = vunpack.c.l.s8.bf16 %v1081
    %v1433 = vunpack.c.l.s8.bf16 %v1082
    %v1434 = vunpack.c.l.s8.bf16 %v1083
    %v1435 = vunpack.c.h.s8.bf16 %v1075
    %v1436 = vunpack.c.h.s8.bf16 %v1076
    %v1437 = vunpack.c.h.s8.bf16 %v1077
    %v1438 = vunpack.c.h.s8.bf16 %v1078
    %v1439 = vunpack.c.h.s8.bf16 %v1079
    %v1440 = vunpack.c.h.s8.bf16 %v1080
    %v1441 = vunpack.c.h.s8.bf16 %v1081
    %v1442 = vunpack.c.h.s8.bf16 %v1082
    %v1443 = vunpack.c.h.s8.bf16 %v1083
    %v1444 = vunpack.c.l.s8.bf16 %v1084
    %v1445 = vunpack.c.l.s8.bf16 %v1085
    %v1446 = vunpack.c.l.s8.bf16 %v1086
    %v1447 = vunpack.c.l.s8.bf16 %v1087
    %v1448 = vunpack.c.l.s8.bf16 %v1088
    %v1449 = vunpack.c.l.s8.bf16 %v1089
    %v1450 = vunpack.c.l.s8.bf16 %v1090
    %v1451 = vunpack.c.l.s8.bf16 %v1091
    %v1452 = vunpack.c.l.s8.bf16 %v1092
    %v1453 = vunpack.c.h.s8.bf16 %v1084
    %v1454 = vunpack.c.h.s8.bf16 %v1085
    %v1455 = vunpack.c.h.s8.bf16 %v1086
    %v1456 = vunpack.c.h.s8.bf16 %v1087
    %v1457 = vunpack.c.h.s8.bf16 %v1088
    %v1458 = vunpack.c.h.s8.bf16 %v1089
    %v1459 = vunpack.c.h.s8.bf16 %v1090
    %v1460 = vunpack.c.h.s8.bf16 %v1091
    %v1461 = vunpack.c.h.s8.bf16 %v1092
    %v1462 = vunpack.c.l.s8.bf16 %v1093
    %v1463 = vunpack.c.l.s8.bf16 %v1094
    %v1464 = vunpack.c.l.s8.bf16 %v1095
    %v1465 = vunpack.c.l.s8.bf16 %v1096
    %v1466 = vunpack.c.l.s8.bf16 %v1097
    %v1467 = vunpack.c.l.s8.bf16 %v1098
    %v1468 = vunpack.c.l.s8.bf16 %v1099
    %v1469 = vunpack.c.l.s8.bf16 %v1100
    %v1470 = vunpack.c.l.s8.bf16 %v1101
    %v1471 = vunpack.c.h.s8.bf16 %v1093
    %v1472 = vunpack.c.h.s8.bf16 %v1094
    %v1473 = vunpack.c.h.s8.bf16 %v1095
    %v1474 = vunpack.c.h.s8.bf16 %v1096
    %v1475 = vunpack.c.h.s8.bf16 %v1097
    %v1476 = vunpack.c.h.s8.bf16 %v1098
    %v1477 = vunpack.c.h.s8.bf16 %v1099
    %v1478 = vunpack.c.h.s8.bf16 %v1100
    %v1479 = vunpack.c.h.s8.bf16 %v1101
    %v1480 = vunpack.c.l.s8.bf16 %v1102
    %v1481 = vunpack.c.l.s8.bf16 %v1103
    %v1482 = vunpack.c.l.s8.bf16 %v1104
    %v1483 = vunpack.c.l.s8.bf16 %v1105
    %v1484 = vunpack.c.l.s8.bf16 %v1106
    %v1485 = vunpack.c.l.s8.bf16 %v1107
    %v1486 = vunpack.c.l.s8.bf16 %v1108
    %v1487 = vunpack.c.l.s8.bf16 %v1109
    %v1488 = vunpack.c.l.s8.bf16 %v1110
    %v1489 = vunpack.c.h.s8.bf16 %v1102
    %v1490 = vunpack.c.h.s8.bf16 %v1103
    %v1491 = vunpack.c.h.s8.bf16 %v1104
    %v1492 = vunpack.c.h.s8.bf16 %v1105
    %v1493 = vunpack.c.h.s8.bf16 %v1106
    %v1494 = vunpack.c.h.s8.bf16 %v1107
    %v1495 = vunpack.c.h.s8.bf16 %v1108
    %v1496 = vunpack.c.h.s8.bf16 %v1109
    %v1497 = vunpack.c.h.s8.bf16 %v1110
    %v1498 = vunpack.c.l.s8.bf16 %v1111
    %v1499 = vunpack.c.l.s8.bf16 %v1112
    %v1500 = vunpack.c.l.s8.bf16 %v1113
    %v1501 = vunpack.c.l.s8.bf16 %v1114
    %v1502 = vunpack.c.l.s8.bf16 %v1115
    %v1503 = vunpack.c.l.s8.bf16 %v1116
    %v1504 = vunpack.c.l.s8.bf16 %v1117
    %v1505 = vunpack.c.l.s8.bf16 %v1118
    %v1506 = vunpack.c.l.s8.bf16 %v1119
    %v1507 = vunpack.c.h.s8.bf16 %v1111
    %v1508 = vunpack.c.h.s8.bf16 %v1112
    %v1509 = vunpack.c.h.s8.bf16 %v1113
    %v1510 = vunpack.c.h.s8.bf16 %v1114
    %v1511 = vunpack.c.h.s8.bf16 %v1115
    %v1512 = vunpack.c.h.s8.bf16 %v1116
    %v1513 = vunpack.c.h.s8.bf16 %v1117
    %v1514 = vunpack.c.h.s8.bf16 %v1118
    %v1515 = vunpack.c.h.s8.bf16 %v1119
    %v1516 = vunpack.c.l.s8.bf16 %v1120
    %v1517 = vunpack.c.l.s8.bf16 %v1121
    %v1518 = vunpack.c.l.s8.bf16 %v1122
    %v1519 = vunpack.c.l.s8.bf16 %v1123
    %v1520 = vunpack.c.l.s8.bf16 %v1124
    %v1521 = vunpack.c.l.s8.bf16 %v1125
    %v1522 = vunpack.c.l.s8.bf16 %v1126
    %v1523 = vunpack.c.l.s8.bf16 %v1127
    %v1524 = vunpack.c.l.s8.bf16 %v1128
    %v1525 = vunpack.c.h.s8.bf16 %v1120
    %v1526 = vunpack.c.h.s8.bf16 %v1121
    %v1527 = vunpack.c.h.s8.bf16 %v1122
    %v1528 = vunpack.c.h.s8.bf16 %v1123
    %v1529 = vunpack.c.h.s8.bf16 %v1124
    %v1530 = vunpack.c.h.s8.bf16 %v1125
    %v1531 = vunpack.c.h.s8.bf16 %v1126
    %v1532 = vunpack.c.h.s8.bf16 %v1127
    %v1533 = vunpack.c.h.s8.bf16 %v1128
    %v1534 = vunpack.c.l.s8.bf16 %v1129
    %v1535 = vunpack.c.l.s8.bf16 %v1130
    %v1536 = vunpack.c.l.s8.bf16 %v1131
    %v1537 = vunpack.c.l.s8.bf16 %v1132
    %v1538 = vunpack.c.l.s8.bf16 %v1133
    %v1539 = vunpack.c.l.s8.bf16 %v1134
    %v1540 = vunpack.c.l.s8.bf16 %v1135
    %v1541 = vunpack.c.l.s8.bf16 %v1136
    %v1542 = vunpack.c.l.s8.bf16 %v1137
    %v1543 = vunpack.c.h.s8.bf16 %v1129
    %v1544 = vunpack.c.h.s8.bf16 %v1130
    %v1545 = vunpack.c.h.s8.bf16 %v1131
    %v1546 = vunpack.c.h.s8.bf16 %v1132
    %v1547 = vunpack.c.h.s8.bf16 %v1133
    %v1548 = vunpack.c.h.s8.bf16 %v1134
    %v1549 = vunpack.c.h.s8.bf16 %v1135
    %v1550 = vunpack.c.h.s8.bf16 %v1136
    %v1551 = vunpack.c.h.s8.bf16 %v1137
    %v1552 = vunpack.c.l.s8.bf16 %v1138
    %v1553 = vunpack.c.l.s8.bf16 %v1139
    %v1554 = vunpack.c.l.s8.bf16 %v1140
    %v1555 = vunpack.c.l.s8.bf16 %v1141
    %v1556 = vunpack.c.l.s8.bf16 %v1142
    %v1557 = vunpack.c.l.s8.bf16 %v1143
    %v1558 = vunpack.c.l.s8.bf16 %v1144
    %v1559 = vunpack.c.l.s8.bf16 %v1145
    %v1560 = vunpack.c.l.s8.bf16 %v1146
    %v1561 = vunpack.c.h.s8.bf16 %v1138
    %v1562 = vunpack.c.h.s8.bf16 %v1139
    %v1563 = vunpack.c.h.s8.bf16 %v1140
    %v1564 = vunpack.c.h.s8.bf16 %v1141
    %v1565 = vunpack.c.h.s8.bf16 %v1142
    %v1566 = vunpack.c.h.s8.bf16 %v1143
    %v1567 = vunpack.c.h.s8.bf16 %v1144
    %v1568 = vunpack.c.h.s8.bf16 %v1145
    %v1569 = vunpack.c.h.s8.bf16 %v1146
    %v1570 = vunpack.c.l.s8.bf16 %v1147
    %v1571 = vunpack.c.l.s8.bf16 %v1148
    %v1572 = vunpack.c.l.s8.bf16 %v1149
    %v1573 = vunpack.c.l.s8.bf16 %v1150
    %v1574 = vunpack.c.l.s8.bf16 %v1151
    %v1575 = vunpack.c.l.s8.bf16 %v1152
    %v1576 = vunpack.c.l.s8.bf16 %v1153
    %v1577 = vunpack.c.l.s8.bf16 %v1154
    %v1578 = vunpack.c.l.s8.bf16 %v1155
    %v1579 = vunpack.c.h.s8.bf16 %v1147
    %v1580 = vunpack.c.h.s8.bf16 %v1148
    %v1581 = vunpack.c.h.s8.bf16 %v1149
    %v1582 = vunpack.c.h.s8.bf16 %v1150
    %v1583 = vunpack.c.h.s8.bf16 %v1151
    %v1584 = vunpack.c.h.s8.bf16 %v1152
    %v1585 = vunpack.c.h.s8.bf16 %v1153
    %v1586 = vunpack.c.h.s8.bf16 %v1154
    %v1587 = vunpack.c.h.s8.bf16 %v1155
    %v1588 = vunpack.c.l.s8.bf16 %v1156
    %v1589 = vunpack.c.l.s8.bf16 %v1157
    %v1590 = vunpack.c.l.s8.bf16 %v1158
    %v1591 = vunpack.c.l.s8.bf16 %v1159
    %v1592 = vunpack.c.l.s8.bf16 %v1160
    %v1593 = vunpack.c.l.s8.bf16 %v1161
    %v1594 = vunpack.c.l.s8.bf16 %v1162
    %v1595 = vunpack.c.l.s8.bf16 %v1163
    %v1596 = vunpack.c.l.s8.bf16 %v1164
    %v1597 = vunpack.c.h.s8.bf16 %v1156
    %v1598 = vunpack.c.h.s8.bf16 %v1157
    %v1599 = vunpack.c.h.s8.bf16 %v1158
    %v1600 = vunpack.c.h.s8.bf16 %v1159
    %v1601 = vunpack.c.h.s8.bf16 %v1160
    %v1602 = vunpack.c.h.s8.bf16 %v1161
    %v1603 = vunpack.c.h.s8.bf16 %v1162
    %v1604 = vunpack.c.h.s8.bf16 %v1163
    %v1605 = vunpack.c.h.s8.bf16 %v1164
    %v1606 = vunpack.c.l.s8.bf16 %v1165
    %v1607 = vunpack.c.l.s8.bf16 %v1166
    %v1608 = vunpack.c.l.s8.bf16 %v1167
    %v1609 = vunpack.c.l.s8.bf16 %v1168
    %v1610 = vunpack.c.l.s8.bf16 %v1169
    %v1611 = vunpack.c.l.s8.bf16 %v1170
    %v1612 = vunpack.c.l.s8.bf16 %v1171
    %v1613 = vunpack.c.l.s8.bf16 %v1172
    %v1614 = vunpack.c.l.s8.bf16 %v1173
    %v1615 = vunpack.c.h.s8.bf16 %v1165
    %v1616 = vunpack.c.h.s8.bf16 %v1166
    %v1617 = vunpack.c.h.s8.bf16 %v1167
    %v1618 = vunpack.c.h.s8.bf16 %v1168
    %v1619 = vunpack.c.h.s8.bf16 %v1169
    %v1620 = vunpack.c.h.s8.bf16 %v1170
    %v1621 = vunpack.c.h.s8.bf16 %v1171
    %v1622 = vunpack.c.h.s8.bf16 %v1172
    %v1623 = vunpack.c.h.s8.bf16 %v1173
    %v1624 = vunpack.c.l.s8.bf16 %v1174
    %v1625 = vunpack.c.l.s8.bf16 %v1175
    %v1626 = vunpack.c.l.s8.bf16 %v1176
    %v1627 = vunpack.c.l.s8.bf16 %v1177
    %v1628 = vunpack.c.l.s8.bf16 %v1178
    %v1629 = vunpack.c.l.s8.bf16 %v1179
    %v1630 = vunpack.c.l.s8.bf16 %v1180
    %v1631 = vunpack.c.l.s8.bf16 %v1181
    %v1632 = vunpack.c.l.s8.bf16 %v1182
    %v1633 = vunpack.c.h.s8.bf16 %v1174
    %v1634 = vunpack.c.h.s8.bf16 %v1175
    %v1635 = vunpack.c.h.s8.bf16 %v1176
    %v1636 = vunpack.c.h.s8.bf16 %v1177
    %v1637 = vunpack.c.h.s8.bf16 %v1178
    %v1638 = vunpack.c.h.s8.bf16 %v1179
    %v1639 = vunpack.c.h.s8.bf16 %v1180
    %v1640 = vunpack.c.h.s8.bf16 %v1181
    %v1641 = vunpack.c.h.s8.bf16 %v1182
    %v1642 = vunpack.c.l.s8.bf16 %v1183
    %v1643 = vunpack.c.l.s8.bf16 %v1184
    %v1644 = vunpack.c.l.s8.bf16 %v1185
    %v1645 = vunpack.c.l.s8.bf16 %v1186
    %v1646 = vunpack.c.l.s8.bf16 %v1187
    %v1647 = vunpack.c.l.s8.bf16 %v1188
    %v1648 = vunpack.c.l.s8.bf16 %v1189
    %v1649 = vunpack.c.l.s8.bf16 %v1190
    %v1650 = vunpack.c.l.s8.bf16 %v1191
    %v1651 = vunpack.c.h.s8.bf16 %v1183
    %v1652 = vunpack.c.h.s8.bf16 %v1184
    %v1653 = vunpack.c.h.s8.bf16 %v1185
    %v1654 = vunpack.c.h.s8.bf16 %v1186
    %v1655 = vunpack.c.h.s8.bf16 %v1187
    %v1656 = vunpack.c.h.s8.bf16 %v1188
    %v1657 = vunpack.c.h.s8.bf16 %v1189
    %v1658 = vunpack.c.h.s8.bf16 %v1190
    %v1659 = vunpack.c.h.s8.bf16 %v1191
    %v1660 = vunpack.c.l.s8.bf16 %v1192
    %v1661 = vunpack.c.l.s8.bf16 %v1193
    %v1662 = vunpack.c.l.s8.bf16 %v1194
    %v1663 = vunpack.c.l.s8.bf16 %v1195
    %v1664 = vunpack.c.l.s8.bf16 %v1196
    %v1665 = vunpack.c.l.s8.bf16 %v1197
    %v1666 = vunpack.c.l.s8.bf16 %v1198
    %v1667 = vunpack.c.l.s8.bf16 %v1199
    %v1668 = vunpack.c.l.s8.bf16 %v1200
    %v1669 = vunpack.c.h.s8.bf16 %v1192
    %v1670 = vunpack.c.h.s8.bf16 %v1193
    %v1671 = vunpack.c.h.s8.bf16 %v1194
    %v1672 = vunpack.c.h.s8.bf16 %v1195
    %v1673 = vunpack.c.h.s8.bf16 %v1196
    %v1674 = vunpack.c.h.s8.bf16 %v1197
    %v1675 = vunpack.c.h.s8.bf16 %v1198
    %v1676 = vunpack.c.h.s8.bf16 %v1199
    %v1677 = vunpack.c.h.s8.bf16 %v1200
    %v1678 = vunpack.c.l.s8.bf16 %v1201
    %v1679 = vunpack.c.l.s8.bf16 %v1202
    %v1680 = vunpack.c.l.s8.bf16 %v1203
    %v1681 = vunpack.c.l.s8.bf16 %v1204
    %v1682 = vunpack.c.l.s8.bf16 %v1205
    %v1683 = vunpack.c.l.s8.bf16 %v1206
    %v1684 = vunpack.c.l.s8.bf16 %v1207
    %v1685 = vunpack.c.l.s8.bf16 %v1208
    %v1686 = vunpack.c.l.s8.bf16 %v1209
    %v1687 = vunpack.c.h.s8.bf16 %v1201
    %v1688 = vunpack.c.h.s8.bf16 %v1202
    %v1689 = vunpack.c.h.s8.bf16 %v1203
    %v1690 = vunpack.c.h.s8.bf16 %v1204
    %v1691 = vunpack.c.h.s8.bf16 %v1205
    %v1692 = vunpack.c.h.s8.bf16 %v1206
    %v1693 = vunpack.c.h.s8.bf16 %v1207
    %v1694 = vunpack.c.h.s8.bf16 %v1208
    %v1695 = vunpack.c.h.s8.bf16 %v1209
    %v1696 = vunpack.c.l.s8.bf16 %v1210
    %v1697 = vunpack.c.l.s8.bf16 %v1211
    %v1698 = vunpack.c.l.s8.bf16 %v1212
    %v1699 = vunpack.c.l.s8.bf16 %v1213
    %v1700 = vunpack.c.l.s8.bf16 %v1214
    %v1701 = vunpack.c.l.s8.bf16 %v1215
    %v1702 = vunpack.c.l.s8.bf16 %v1216
    %v1703 = vunpack.c.l.s8.bf16 %v1217
    %v1704 = vunpack.c.l.s8.bf16 %v1218
    %v1705 = vunpack.c.h.s8.bf16 %v1210
    %v1706 = vunpack.c.h.s8.bf16 %v1211
    %v1707 = vunpack.c.h.s8.bf16 %v1212
    %v1708 = vunpack.c.h.s8.bf16 %v1213
    %v1709 = vunpack.c.h.s8.bf16 %v1214
    %v1710 = vunpack.c.h.s8.bf16 %v1215
    %v1711 = vunpack.c.h.s8.bf16 %v1216
    %v1712 = vunpack.c.h.s8.bf16 %v1217
    %v1713 = vunpack.c.h.s8.bf16 %v1218
    %v1714 = vunpack.c.l.s8.bf16 %v1219
    %v1715 = vunpack.c.l.s8.bf16 %v1220
    %v1716 = vunpack.c.l.s8.bf16 %v1221
    %v1717 = vunpack.c.l.s8.bf16 %v1222
    %v1718 = vunpack.c.l.s8.bf16 %v1223
    %v1719 = vunpack.c.l.s8.bf16 %v1224
    %v1720 = vunpack.c.l.s8.bf16 %v1225
    %v1721 = vunpack.c.l.s8.bf16 %v1226
    %v1722 = vunpack.c.l.s8.bf16 %v1227
    %v1723 = vunpack.c.h.s8.bf16 %v1219
    %v1724 = vunpack.c.h.s8.bf16 %v1220
    %v1725 = vunpack.c.h.s8.bf16 %v1221
    %v1726 = vunpack.c.h.s8.bf16 %v1222
    %v1727 = vunpack.c.h.s8.bf16 %v1223
    %v1728 = vunpack.c.h.s8.bf16 %v1224
    %v1729 = vunpack.c.h.s8.bf16 %v1225
    %v1730 = vunpack.c.h.s8.bf16 %v1226
    %v1731 = vunpack.c.h.s8.bf16 %v1227
    %v1732 = vunpack.c.l.s8.bf16 %v1228
    %v1733 = vunpack.c.l.s8.bf16 %v1229
    %v1734 = vunpack.c.l.s8.bf16 %v1230
    %v1735 = vunpack.c.l.s8.bf16 %v1231
    %v1736 = vunpack.c.l.s8.bf16 %v1232
    %v1737 = vunpack.c.l.s8.bf16 %v1233
    %v1738 = vunpack.c.l.s8.bf16 %v1234
    %v1739 = vunpack.c.l.s8.bf16 %v1235
    %v1740 = vunpack.c.l.s8.bf16 %v1236
    %v1741 = vunpack.c.h.s8.bf16 %v1228
    %v1742 = vunpack.c.h.s8.bf16 %v1229
    %v1743 = vunpack.c.h.s8.bf16 %v1230
    %v1744 = vunpack.c.h.s8.bf16 %v1231
    %v1745 = vunpack.c.h.s8.bf16 %v1232
    %v1746 = vunpack.c.h.s8.bf16 %v1233
    %v1747 = vunpack.c.h.s8.bf16 %v1234
    %v1748 = vunpack.c.h.s8.bf16 %v1235
    %v1749 = vunpack.c.h.s8.bf16 %v1236
    %v1750 = vunpack.c.l.s8.bf16 %v1237
    %v1751 = vunpack.c.l.s8.bf16 %v1238
    %v1752 = vunpack.c.l.s8.bf16 %v1239
    %v1753 = vunpack.c.l.s8.bf16 %v1240
    %v1754 = vunpack.c.l.s8.bf16 %v1241
    %v1755 = vunpack.c.l.s8.bf16 %v1242
    %v1756 = vunpack.c.l.s8.bf16 %v1243
    %v1757 = vunpack.c.l.s8.bf16 %v1244
    %v1758 = vunpack.c.l.s8.bf16 %v1245
    %v1759 = vunpack.c.h.s8.bf16 %v1237
    %v1760 = vunpack.c.h.s8.bf16 %v1238
    %v1761 = vunpack.c.h.s8.bf16 %v1239
    %v1762 = vunpack.c.h.s8.bf16 %v1240
    %v1763 = vunpack.c.h.s8.bf16 %v1241
    %v1764 = vunpack.c.h.s8.bf16 %v1242
    %v1765 = vunpack.c.h.s8.bf16 %v1243
    %v1766 = vunpack.c.h.s8.bf16 %v1244
    %v1767 = vunpack.c.h.s8.bf16 %v1245
    %v1768 = vunpack.c.l.s8.bf16 %v1246
    %v1769 = vunpack.c.l.s8.bf16 %v1247
    %v1770 = vunpack.c.l.s8.bf16 %v1248
    %v1771 = vunpack.c.l.s8.bf16 %v1249
    %v1772 = vunpack.c.l.s8.bf16 %v1250
    %v1773 = vunpack.c.l.s8.bf16 %v1251
    %v1774 = vunpack.c.l.s8.bf16 %v1252
    %v1775 = vunpack.c.l.s8.bf16 %v1253
    %v1776 = vunpack.c.l.s8.bf16 %v1254
    %v1777 = vunpack.c.h.s8.bf16 %v1246
    %v1778 = vunpack.c.h.s8.bf16 %v1247
    %v1779 = vunpack.c.h.s8.bf16 %v1248
    %v1780 = vunpack.c.h.s8.bf16 %v1249
    %v1781 = vunpack.c.h.s8.bf16 %v1250
    %v1782 = vunpack.c.h.s8.bf16 %v1251
    %v1783 = vunpack.c.h.s8.bf16 %v1252
    %v1784 = vunpack.c.h.s8.bf16 %v1253
    %v1785 = vunpack.c.h.s8.bf16 %v1254
    %v1786 = vunpack.c.l.s8.bf16 %v1255
    %v1787 = vunpack.c.l.s8.bf16 %v1256
    %v1788 = vunpack.c.l.s8.bf16 %v1257
    %v1789 = vunpack.c.l.s8.bf16 %v1258
    %v1790 = vunpack.c.l.s8.bf16 %v1259
    %v1791 = vunpack.c.l.s8.bf16 %v1260
    %v1792 = vunpack.c.l.s8.bf16 %v1261
    %v1793 = vunpack.c.l.s8.bf16 %v1262
    %v1794 = vunpack.c.l.s8.bf16 %v1263
    %v1795 = vunpack.c.h.s8.bf16 %v1255
    %v1796 = vunpack.c.h.s8.bf16 %v1256
    %v1797 = vunpack.c.h.s8.bf16 %v1257
    %v1798 = vunpack.c.h.s8.bf16 %v1258
    %v1799 = vunpack.c.h.s8.bf16 %v1259
    %v1800 = vunpack.c.h.s8.bf16 %v1260
    %v1801 = vunpack.c.h.s8.bf16 %v1261
    %v1802 = vunpack.c.h.s8.bf16 %v1262
    %v1803 = vunpack.c.h.s8.bf16 %v1263
    %v1804 = vunpack.c.l.s8.bf16 %v1264
    %v1805 = vunpack.c.l.s8.bf16 %v1265
    %v1806 = vunpack.c.l.s8.bf16 %v1266
    %v1807 = vunpack.c.l.s8.bf16 %v1267
    %v1808 = vunpack.c.l.s8.bf16 %v1268
    %v1809 = vunpack.c.l.s8.bf16 %v1269
    %v1810 = vunpack.c.l.s8.bf16 %v1270
    %v1811 = vunpack.c.l.s8.bf16 %v1271
    %v1812 = vunpack.c.l.s8.bf16 %v1272
    %v1813 = vunpack.c.h.s8.bf16 %v1264
    %v1814 = vunpack.c.h.s8.bf16 %v1265
    %v1815 = vunpack.c.h.s8.bf16 %v1266
    %v1816 = vunpack.c.h.s8.bf16 %v1267
    %v1817 = vunpack.c.h.s8.bf16 %v1268
    %v1818 = vunpack.c.h.s8.bf16 %v1269
    %v1819 = vunpack.c.h.s8.bf16 %v1270
    %v1820 = vunpack.c.h.s8.bf16 %v1271
    %v1821 = vunpack.c.h.s8.bf16 %v1272
    %v1822 = vunpack.c.l.s8.bf16 %v1273
    %v1823 = vunpack.c.l.s8.bf16 %v1274
    %v1824 = vunpack.c.l.s8.bf16 %v1275
    %v1825 = vunpack.c.l.s8.bf16 %v1276
    %v1826 = vunpack.c.l.s8.bf16 %v1277
    %v1827 = vunpack.c.l.s8.bf16 %v1278
    %v1828 = vunpack.c.l.s8.bf16 %v1279
    %v1829 = vunpack.c.l.s8.bf16 %v1280
    %v1830 = vunpack.c.l.s8.bf16 %v1281
    %v1831 = vunpack.c.h.s8.bf16 %v1273
    %v1832 = vunpack.c.h.s8.bf16 %v1274
    %v1833 = vunpack.c.h.s8.bf16 %v1275
    %v1834 = vunpack.c.h.s8.bf16 %v1276
    %v1835 = vunpack.c.h.s8.bf16 %v1277
    %v1836 = vunpack.c.h.s8.bf16 %v1278
    %v1837 = vunpack.c.h.s8.bf16 %v1279
    %v1838 = vunpack.c.h.s8.bf16 %v1280
    %v1839 = vunpack.c.h.s8.bf16 %v1281
    %v1840 = vunpack.c.l.s8.bf16 %v1282
    %v1841 = vunpack.c.l.s8.bf16 %v1283
    %v1842 = vunpack.c.l.s8.bf16 %v1284
    %v1843 = vunpack.c.l.s8.bf16 %v1285
    %v1844 = vunpack.c.l.s8.bf16 %v1286
    %v1845 = vunpack.c.l.s8.bf16 %v1287
    %v1846 = vunpack.c.l.s8.bf16 %v1288
    %v1847 = vunpack.c.l.s8.bf16 %v1289
    %v1848 = vunpack.c.l.s8.bf16 %v1290
    %v1849 = vunpack.c.h.s8.bf16 %v1282
    %v1850 = vunpack.c.h.s8.bf16 %v1283
    %v1851 = vunpack.c.h.s8.bf16 %v1284
    %v1852 = vunpack.c.h.s8.bf16 %v1285
    %v1853 = vunpack.c.h.s8.bf16 %v1286
    %v1854 = vunpack.c.h.s8.bf16 %v1287
    %v1855 = vunpack.c.h.s8.bf16 %v1288
    %v1856 = vunpack.c.h.s8.bf16 %v1289
    %v1857 = vunpack.c.h.s8.bf16 %v1290
    %v1858 = vunpack.c.l.s8.bf16 %v1291
    %v1859 = vunpack.c.l.s8.bf16 %v1292
    %v1860 = vunpack.c.l.s8.bf16 %v1293
    %v1861 = vunpack.c.l.s8.bf16 %v1294
    %v1862 = vunpack.c.l.s8.bf16 %v1295
    %v1863 = vunpack.c.l.s8.bf16 %v1296
    %v1864 = vunpack.c.l.s8.bf16 %v1297
    %v1865 = vunpack.c.l.s8.bf16 %v1298
    %v1866 = vunpack.c.l.s8.bf16 %v1299
    %v1867 = vunpack.c.h.s8.bf16 %v1291
    %v1868 = vunpack.c.h.s8.bf16 %v1292
    %v1869 = vunpack.c.h.s8.bf16 %v1293
    %v1870 = vunpack.c.h.s8.bf16 %v1294
    %v1871 = vunpack.c.h.s8.bf16 %v1295
    %v1872 = vunpack.c.h.s8.bf16 %v1296
    %v1873 = vunpack.c.h.s8.bf16 %v1297
    %v1874 = vunpack.c.h.s8.bf16 %v1298
    %v1875 = vunpack.c.h.s8.bf16 %v1299
    %v1876 = vunpack.c.l.s8.bf16 %v1300
    %v1877 = vunpack.c.l.s8.bf16 %v1301
    %v1878 = vunpack.c.l.s8.bf16 %v1302
    %v1879 = vunpack.c.l.s8.bf16 %v1303
    %v1880 = vunpack.c.l.s8.bf16 %v1304
    %v1881 = vunpack.c.l.s8.bf16 %v1305
    %v1882 = vunpack.c.l.s8.bf16 %v1306
    %v1883 = vunpack.c.l.s8.bf16 %v1307
    %v1884 = vunpack.c.l.s8.bf16 %v1308
    %v1885 = vunpack.c.h.s8.bf16 %v1300
    %v1886 = vunpack.c.h.s8.bf16 %v1301
    %v1887 = vunpack.c.h.s8.bf16 %v1302
    %v1888 = vunpack.c.h.s8.bf16 %v1303
    %v1889 = vunpack.c.h.s8.bf16 %v1304
    %v1890 = vunpack.c.h.s8.bf16 %v1305
    %v1891 = vunpack.c.h.s8.bf16 %v1306
    %v1892 = vunpack.c.h.s8.bf16 %v1307
    %v1893 = vunpack.c.h.s8.bf16 %v1308
    %v1894 = vunpack.c.l.s8.bf16 %v1309
    %v1895 = vunpack.c.l.s8.bf16 %v1310
    %v1896 = vunpack.c.l.s8.bf16 %v1311
    %v1897 = vunpack.c.l.s8.bf16 %v1312
    %v1898 = vunpack.c.l.s8.bf16 %v1313
    %v1899 = vunpack.c.l.s8.bf16 %v1314
    %v1900 = vunpack.c.l.s8.bf16 %v1315
    %v1901 = vunpack.c.l.s8.bf16 %v1316
    %v1902 = vunpack.c.l.s8.bf16 %v1317
    %v1903 = vunpack.c.h.s8.bf16 %v1309
    %v1904 = vunpack.c.h.s8.bf16 %v1310
    %v1905 = vunpack.c.h.s8.bf16 %v1311
    %v1906 = vunpack.c.h.s8.bf16 %v1312
    %v1907 = vunpack.c.h.s8.bf16 %v1313
    %v1908 = vunpack.c.h.s8.bf16 %v1314
    %v1909 = vunpack.c.h.s8.bf16 %v1315
    %v1910 = vunpack.c.h.s8.bf16 %v1316
    %v1911 = vunpack.c.h.s8.bf16 %v1317
    %v1914 = vlaneseq
    %v1915 = vshrl.u32 %v1914, 7
    %v1916 = vsub.s32 0, %v1915
    %v1917 = vrot.slane %v1019, %v1916
    %v1918 = vlaneseq
    %v1919 = vshrl.u32 %v1918, 7
    %v1920 = vsub.s32 1, %v1919
    %v1921 = vrot.slane %v1019, %v1920
    %v1922 = vlaneseq
    %v1923 = vshrl.u32 %v1922, 7
    %v1924 = vsub.s32 2, %v1923
    %v1925 = vrot.slane %v1019, %v1924
    %v1926 = vlaneseq
    %v1927 = vshrl.u32 %v1926, 7
    %v1928 = vsub.s32 3, %v1927
    %v1929 = vrot.slane %v1019, %v1928
    %v1930 = vlaneseq
    %v1931 = vshrl.u32 %v1930, 7
    %v1932 = vsub.s32 4, %v1931
    %v1933 = vrot.slane %v1019, %v1932
    %v1934 = vlaneseq
    %v1935 = vshrl.u32 %v1934, 7
    %v1936 = vsub.s32 5, %v1935
    %v1937 = vrot.slane %v1019, %v1936
    %v1938 = vlaneseq
    %v1939 = vshrl.u32 %v1938, 7
    %v1940 = vsub.s32 6, %v1939
    %v1941 = vrot.slane %v1019, %v1940
    %v1942 = vlaneseq
    %v1943 = vshrl.u32 %v1942, 7
    %v1944 = vsub.s32 7, %v1943
    %v1945 = vrot.slane %v1019, %v1944
    %v1946 = vlaneseq
    %v1947 = vshrl.u32 %v1946, 7
    %v1948 = vsub.s32 0, %v1947
    %v1949 = vrot.slane %v1020, %v1948
    %v1959 = vpack.c.bf16 %v1917, %v1917
    %v1960 = vpack.c.bf16 %v1921, %v1921
    %v1961 = vpack.c.bf16 %v1925, %v1925
    %v1962 = vpack.c.bf16 %v1929, %v1929
    %v1963 = vpack.c.bf16 %v1933, %v1933
    %v1964 = vpack.c.bf16 %v1937, %v1937
    %v1965 = vpack.c.bf16 %v1941, %v1941
    %v1966 = vpack.c.bf16 %v1945, %v1945
    %v1967 = vpack.c.bf16 %v1949, %v1949
    %vm1968 = vcmask 261120
    %v1970 = vsel %vm1968, %v1967, 0
    %1972 = vmatprep.subr.bf16.mxu0 %v1319
    %1973 = vmatpush1.bf16.msra.mxu0 %v1318
    %1974 = vmatprep.subr.bf16.mxu0 %v1328
    %1975 = vmatpush1.bf16.msra.mxu0 %v1327
    %1976 = vmatprep.subr.bf16.mxu0 %v1337
    %1977 = vmatpush1.bf16.msra.mxu0 %v1336
    %1978 = vmatprep.subr.bf16.mxu0 %v1346
    %1979 = vmatpush1.bf16.msra.mxu0 %v1345
    %1980 = vmatprep.subr.bf16.mxu0 %v1355
    %1981 = vmatpush1.bf16.msra.mxu0 %v1354
    %1982 = vmatprep.subr.bf16.mxu0 %v1364
    %1983 = vmatpush1.bf16.msra.mxu0 %v1363
    %1984 = vmatprep.subr.bf16.mxu0 %v1373
    %1985 = vmatpush1.bf16.msra.mxu0 %v1372
    %1986 = vmatprep.subr.bf16.mxu0 %v1382
    %1987 = vmatpush1.bf16.msra.mxu0 %v1381
    %1988 = vmatprep.subr.bf16.mxu0 %v1391
    %1989 = vmatpush1.bf16.msra.mxu0 %v1390
    %1990 = vmatprep.subr.bf16.mxu0 %v1400
    %1991 = vmatpush1.bf16.msra.mxu0 %v1399
    %1992 = vmatprep.subr.bf16.mxu0 %v1409
    %1993 = vmatpush1.bf16.msra.mxu0 %v1408
    %1994 = vmatprep.subr.bf16.mxu0 %v1418
    %1995 = vmatpush1.bf16.msra.mxu0 %v1417
    %1996 = vmatprep.subr.bf16.mxu0 %v1427
    %1997 = vmatpush1.bf16.msra.mxu0 %v1426
    %1998 = vmatprep.subr.bf16.mxu0 %v1436
    %1999 = vmatpush1.bf16.msra.mxu0 %v1435
    %2000 = vmatprep.subr.bf16.mxu0 %v1445
    %2001 = vmatpush1.bf16.msra.mxu0 %v1444
    %2002 = vmatprep.subr.bf16.mxu0 %v1454
    %2003 = vmatpush1.bf16.msra.mxu0 %v1453
    %2004 = vmatprep.mubr.bf16.mxu0 %v1960
    %2005 = vmatmul.mubr.bf16.gmra.mrb[0].mxu0 %v1959
    %v2006 = vpop.f32.mrb[0].mxu0
    %v2007 = vadd.f32 0.0, %v2006
    %v2008 = vpop.f32.mrb[0].mxu0
    %v2009 = vadd.f32 0.0, %v2008
    %v2010 = vpop.f32.mrb[0].mxu0
    %v2011 = vpop.f32.mrb[0].mxu0
    %2012 = vdwg.mxu0
    %2013 = vmatprep.subr.bf16.mxu0 %v1463
    %2014 = vmatpush1.bf16.msra.mxu0 %v1462
    %2015 = vmatprep.subr.bf16.mxu0 %v1472
    %2016 = vmatpush1.bf16.msra.mxu0 %v1471
    %2017 = vmatprep.subr.bf16.mxu0 %v1481
    %2018 = vmatpush1.bf16.msra.mxu0 %v1480
    %2019 = vmatprep.subr.bf16.mxu0 %v1490
    %2020 = vmatpush1.bf16.msra.mxu0 %v1489
    %2021 = vmatprep.subr.bf16.mxu0 %v1499
    %2022 = vmatpush1.bf16.msra.mxu0 %v1498
    %2023 = vmatprep.subr.bf16.mxu0 %v1508
    %2024 = vmatpush1.bf16.msra.mxu0 %v1507
    %2025 = vmatprep.subr.bf16.mxu0 %v1517
    %2026 = vmatpush1.bf16.msra.mxu0 %v1516
    %2027 = vmatprep.subr.bf16.mxu0 %v1526
    %2028 = vmatpush1.bf16.msra.mxu0 %v1525
    %2029 = vmatprep.subr.bf16.mxu0 %v1535
    %2030 = vmatpush1.bf16.msra.mxu0 %v1534
    %2031 = vmatprep.subr.bf16.mxu0 %v1544
    %2032 = vmatpush1.bf16.msra.mxu0 %v1543
    %2033 = vmatprep.subr.bf16.mxu0 %v1553
    %2034 = vmatpush1.bf16.msra.mxu0 %v1552
    %2035 = vmatprep.subr.bf16.mxu0 %v1562
    %2036 = vmatpush1.bf16.msra.mxu0 %v1561
    %2037 = vmatprep.subr.bf16.mxu0 %v1571
    %2038 = vmatpush1.bf16.msra.mxu0 %v1570
    %2039 = vmatprep.subr.bf16.mxu0 %v1580
    %2040 = vmatpush1.bf16.msra.mxu0 %v1579
    %2041 = vmatprep.subr.bf16.mxu0 %v1589
    %2042 = vmatpush1.bf16.msra.mxu0 %v1588
    %2043 = vmatprep.subr.bf16.mxu0 %v1598
    %2044 = vmatpush1.bf16.msra.mxu0 %v1597
    %2045 = vmatprep.mubr.bf16.mxu0 %v1962
    %2046 = vmatmul.mubr.bf16.gmra.mrb[0].mxu0 %v1961
    %v2047 = vpop.f32.mrb[0].mxu0
    %v2048 = vadd.f32 %v2007, %v2047
    %v2049 = vpop.f32.mrb[0].mxu0
    %v2050 = vadd.f32 %v2009, %v2049
    %v2051 = vpop.f32.mrb[0].mxu0
    %v2052 = vpop.f32.mrb[0].mxu0
    %2053 = vdwg.mxu0
    %2054 = vmatprep.subr.bf16.mxu0 %v1607
    %2055 = vmatpush1.bf16.msra.mxu0 %v1606
    %2056 = vmatprep.subr.bf16.mxu0 %v1616
    %2057 = vmatpush1.bf16.msra.mxu0 %v1615
    %2058 = vmatprep.subr.bf16.mxu0 %v1625
    %2059 = vmatpush1.bf16.msra.mxu0 %v1624
    %2060 = vmatprep.subr.bf16.mxu0 %v1634
    %2061 = vmatpush1.bf16.msra.mxu0 %v1633
    %2062 = vmatprep.subr.bf16.mxu0 %v1643
    %2063 = vmatpush1.bf16.msra.mxu0 %v1642
    %2064 = vmatprep.subr.bf16.mxu0 %v1652
    %2065 = vmatpush1.bf16.msra.mxu0 %v1651
    %2066 = vmatprep.subr.bf16.mxu0 %v1661
    %2067 = vmatpush1.bf16.msra.mxu0 %v1660
    %2068 = vmatprep.subr.bf16.mxu0 %v1670
    %2069 = vmatpush1.bf16.msra.mxu0 %v1669
    %2070 = vmatprep.subr.bf16.mxu0 %v1679
    %2071 = vmatpush1.bf16.msra.mxu0 %v1678
    %2072 = vmatprep.subr.bf16.mxu0 %v1688
    %2073 = vmatpush1.bf16.msra.mxu0 %v1687
    %2074 = vmatprep.subr.bf16.mxu0 %v1697
    %2075 = vmatpush1.bf16.msra.mxu0 %v1696
    %2076 = vmatprep.subr.bf16.mxu0 %v1706
    %2077 = vmatpush1.bf16.msra.mxu0 %v1705
    %2078 = vmatprep.subr.bf16.mxu0 %v1715
    %2079 = vmatpush1.bf16.msra.mxu0 %v1714
    %2080 = vmatprep.subr.bf16.mxu0 %v1724
    %2081 = vmatpush1.bf16.msra.mxu0 %v1723
    %2082 = vmatprep.subr.bf16.mxu0 %v1733
    %2083 = vmatpush1.bf16.msra.mxu0 %v1732
    %2084 = vmatprep.subr.bf16.mxu0 %v1742
    %2085 = vmatpush1.bf16.msra.mxu0 %v1741
    %2086 = vmatprep.mubr.bf16.mxu0 %v1964
    %2087 = vmatmul.mubr.bf16.gmra.mrb[0].mxu0 %v1963
    %v2088 = vpop.f32.mrb[0].mxu0
    %v2089 = vadd.f32 %v2048, %v2088
    %v2090 = vpop.f32.mrb[0].mxu0
    %v2091 = vadd.f32 %v2050, %v2090
    %v2092 = vpop.f32.mrb[0].mxu0
    %v2093 = vpop.f32.mrb[0].mxu0
    %2094 = vdwg.mxu0
    %2095 = vmatprep.subr.bf16.mxu0 %v1751
    %2096 = vmatpush1.bf16.msra.mxu0 %v1750
    %2097 = vmatprep.subr.bf16.mxu0 %v1760
    %2098 = vmatpush1.bf16.msra.mxu0 %v1759
    %2099 = vmatprep.subr.bf16.mxu0 %v1769
    %2100 = vmatpush1.bf16.msra.mxu0 %v1768
    %2101 = vmatprep.subr.bf16.mxu0 %v1778
    %2102 = vmatpush1.bf16.msra.mxu0 %v1777
    %2103 = vmatprep.subr.bf16.mxu0 %v1787
    %2104 = vmatpush1.bf16.msra.mxu0 %v1786
    %2105 = vmatprep.subr.bf16.mxu0 %v1796
    %2106 = vmatpush1.bf16.msra.mxu0 %v1795
    %2107 = vmatprep.subr.bf16.mxu0 %v1805
    %2108 = vmatpush1.bf16.msra.mxu0 %v1804
    %2109 = vmatprep.subr.bf16.mxu0 %v1814
    %2110 = vmatpush1.bf16.msra.mxu0 %v1813
    %2111 = vmatprep.subr.bf16.mxu0 %v1823
    %2112 = vmatpush1.bf16.msra.mxu0 %v1822
    %2113 = vmatprep.subr.bf16.mxu0 %v1832
    %2114 = vmatpush1.bf16.msra.mxu0 %v1831
    %2115 = vmatprep.subr.bf16.mxu0 %v1841
    %2116 = vmatpush1.bf16.msra.mxu0 %v1840
    %2117 = vmatprep.subr.bf16.mxu0 %v1850
    %2118 = vmatpush1.bf16.msra.mxu0 %v1849
    %2119 = vmatprep.subr.bf16.mxu0 %v1859
    %2120 = vmatpush1.bf16.msra.mxu0 %v1858
    %2121 = vmatprep.subr.bf16.mxu0 %v1868
    %2122 = vmatpush1.bf16.msra.mxu0 %v1867
    %2123 = vmatprep.subr.bf16.mxu0 %v1877
    %2124 = vmatpush1.bf16.msra.mxu0 %v1876
    %2125 = vmatprep.subr.bf16.mxu0 %v1886
    %2126 = vmatpush1.bf16.msra.mxu0 %v1885
    %2127 = vmatprep.mubr.bf16.mxu0 %v1966
    %2128 = vmatmul.mubr.bf16.gmra.mrb[0].mxu0 %v1965
    %v2129 = vpop.f32.mrb[0].mxu0
    %v2130 = vadd.f32 %v2089, %v2129
    %v2131 = vpop.f32.mrb[0].mxu0
    %v2132 = vadd.f32 %v2091, %v2131
    %v2133 = vpop.f32.mrb[0].mxu0
    %v2134 = vpop.f32.mrb[0].mxu0
    %2135 = vdwg.mxu0
    %2136 = vmatprep.subr.bf16.mxu0 %v1895
    %2137 = vmatpush1.bf16.msra.mxu0 %v1894
    %2138 = vmatprep.subr.bf16.mxu0 %v1904
    %2139 = vmatpush1.bf16.msra.mxu0 %v1903
    %2140 = vmatprep.subr.bf16.mxu0 0
    %2141 = vmatpush1.bf16.msra.mxu0 0
    %2142 = vmatprep.subr.bf16.mxu0 0
    %2143 = vmatpush1.bf16.msra.mxu0 0
    %2144 = vmatprep.subr.bf16.mxu0 0
    %2145 = vmatpush1.bf16.msra.mxu0 0
    %2146 = vmatprep.subr.bf16.mxu0 0
    %2147 = vmatpush1.bf16.msra.mxu0 0
    %2148 = vmatprep.subr.bf16.mxu0 0
    %2149 = vmatpush1.bf16.msra.mxu0 0
    %2150 = vmatprep.subr.bf16.mxu0 0
    %2151 = vmatpush1.bf16.msra.mxu0 0
    %2152 = vmatprep.subr.bf16.mxu0 0
    %2153 = vmatpush1.bf16.msra.mxu0 0
    %2154 = vmatprep.subr.bf16.mxu0 0
    %2155 = vmatpush1.bf16.msra.mxu0 0
    %2156 = vmatprep.subr.bf16.mxu0 0
    %2157 = vmatpush1.bf16.msra.mxu0 0
    %2158 = vmatprep.subr.bf16.mxu0 0
    %2159 = vmatpush1.bf16.msra.mxu0 0
    %2160 = vmatprep.subr.bf16.mxu0 0
    %2161 = vmatpush1.bf16.msra.mxu0 0
    %2162 = vmatprep.subr.bf16.mxu0 0
    %2163 = vmatpush1.bf16.msra.mxu0 0
    %2164 = vmatprep.subr.bf16.mxu0 0
    %2165 = vmatpush1.bf16.msra.mxu0 0
    %2166 = vmatprep.subr.bf16.mxu0 0
    %2167 = vmatpush1.bf16.msra.mxu0 0
    %2168 = vmatprep.mubr.bf16.mxu0 0
    %2169 = vmatmul.mubr.bf16.gmra.mrb[0].mxu0 %v1970
    %v2170 = vpop.f32.mrb[0].mxu0
    %v2171 = vadd.f32 %v2130, %v2170
    %v2172 = vpop.f32.mrb[0].mxu0
    %v2173 = vadd.f32 %v2132, %v2172
    %v2174 = vpop.f32.mrb[0].mxu0
    %v2175 = vpop.f32.mrb[0].mxu0
    %2176 = vdwg.mxu0
    %2177 = vmatprep.subr.bf16.mxu0 %v1321
    %2178 = vmatpush1.bf16.msra.mxu0 %v1320
    %2179 = vmatprep.subr.bf16.mxu0 %v1330
    %2180 = vmatpush1.bf16.msra.mxu0 %v1329
    %2181 = vmatprep.subr.bf16.mxu0 %v1339
    %2182 = vmatpush1.bf16.msra.mxu0 %v1338
    %2183 = vmatprep.subr.bf16.mxu0 %v1348
    %2184 = vmatpush1.bf16.msra.mxu0 %v1347
    %2185 = vmatprep.subr.bf16.mxu0 %v1357
    %2186 = vmatpush1.bf16.msra.mxu0 %v1356
    %2187 = vmatprep.subr.bf16.mxu0 %v1366
    %2188 = vmatpush1.bf16.msra.mxu0 %v1365
    %2189 = vmatprep.subr.bf16.mxu0 %v1375
    %2190 = vmatpush1.bf16.msra.mxu0 %v1374
    %2191 = vmatprep.subr.bf16.mxu0 %v1384
    %2192 = vmatpush1.bf16.msra.mxu0 %v1383
    %2193 = vmatprep.subr.bf16.mxu0 %v1393
    %2194 = vmatpush1.bf16.msra.mxu0 %v1392
    %2195 = vmatprep.subr.bf16.mxu0 %v1402
    %2196 = vmatpush1.bf16.msra.mxu0 %v1401
    %2197 = vmatprep.subr.bf16.mxu0 %v1411
    %2198 = vmatpush1.bf16.msra.mxu0 %v1410
    %2199 = vmatprep.subr.bf16.mxu0 %v1420
    %2200 = vmatpush1.bf16.msra.mxu0 %v1419
    %2201 = vmatprep.subr.bf16.mxu0 %v1429
    %2202 = vmatpush1.bf16.msra.mxu0 %v1428
    %2203 = vmatprep.subr.bf16.mxu0 %v1438
    %2204 = vmatpush1.bf16.msra.mxu0 %v1437
    %2205 = vmatprep.subr.bf16.mxu0 %v1447
    %2206 = vmatpush1.bf16.msra.mxu0 %v1446
    %2207 = vmatprep.subr.bf16.mxu0 %v1456
    %2208 = vmatpush1.bf16.msra.mxu0 %v1455
    %2209 = vmatprep.mubr.bf16.mxu0 %v1960
    %2210 = vmatmul.mubr.bf16.gmra.mrb[0].mxu0 %v1959
    %v2211 = vpop.f32.mrb[0].mxu0
    %v2212 = vadd.f32 0.0, %v2211
    %v2213 = vpop.f32.mrb[0].mxu0
    %v2214 = vadd.f32 0.0, %v2213
    %v2215 = vpop.f32.mrb[0].mxu0
    %v2216 = vpop.f32.mrb[0].mxu0
    %2217 = vdwg.mxu0
    %2218 = vmatprep.subr.bf16.mxu0 %v1465
    %2219 = vmatpush1.bf16.msra.mxu0 %v1464
    %2220 = vmatprep.subr.bf16.mxu0 %v1474
    %2221 = vmatpush1.bf16.msra.mxu0 %v1473
    %2222 = vmatprep.subr.bf16.mxu0 %v1483
    %2223 = vmatpush1.bf16.msra.mxu0 %v1482
    %2224 = vmatprep.subr.bf16.mxu0 %v1492
    %2225 = vmatpush1.bf16.msra.mxu0 %v1491
    %2226 = vmatprep.subr.bf16.mxu0 %v1501
    %2227 = vmatpush1.bf16.msra.mxu0 %v1500
    %2228 = vmatprep.subr.bf16.mxu0 %v1510
    %2229 = vmatpush1.bf16.msra.mxu0 %v1509
    %2230 = vmatprep.subr.bf16.mxu0 %v1519
    %2231 = vmatpush1.bf16.msra.mxu0 %v1518
    %2232 = vmatprep.subr.bf16.mxu0 %v1528
    %2233 = vmatpush1.bf16.msra.mxu0 %v1527
    %2234 = vmatprep.subr.bf16.mxu0 %v1537
    %2235 = vmatpush1.bf16.msra.mxu0 %v1536
    %2236 = vmatprep.subr.bf16.mxu0 %v1546
    %2237 = vmatpush1.bf16.msra.mxu0 %v1545
    %2238 = vmatprep.subr.bf16.mxu0 %v1555
    %2239 = vmatpush1.bf16.msra.mxu0 %v1554
    %2240 = vmatprep.subr.bf16.mxu0 %v1564
    %2241 = vmatpush1.bf16.msra.mxu0 %v1563
    %2242 = vmatprep.subr.bf16.mxu0 %v1573
    %2243 = vmatpush1.bf16.msra.mxu0 %v1572
    %2244 = vmatprep.subr.bf16.mxu0 %v1582
    %2245 = vmatpush1.bf16.msra.mxu0 %v1581
    %2246 = vmatprep.subr.bf16.mxu0 %v1591
    %2247 = vmatpush1.bf16.msra.mxu0 %v1590
    %2248 = vmatprep.subr.bf16.mxu0 %v1600
    %2249 = vmatpush1.bf16.msra.mxu0 %v1599
    %2250 = vmatprep.mubr.bf16.mxu0 %v1962
    %2251 = vmatmul.mubr.bf16.gmra.mrb[0].mxu0 %v1961
    %v2252 = vpop.f32.mrb[0].mxu0
    %v2253 = vadd.f32 %v2212, %v2252
    %v2254 = vpop.f32.mrb[0].mxu0
    %v2255 = vadd.f32 %v2214, %v2254
    %v2256 = vpop.f32.mrb[0].mxu0
    %v2257 = vpop.f32.mrb[0].mxu0
    %2258 = vdwg.mxu0
    %2259 = vmatprep.subr.bf16.mxu0 %v1609
    %2260 = vmatpush1.bf16.msra.mxu0 %v1608
    %2261 = vmatprep.subr.bf16.mxu0 %v1618
    %2262 = vmatpush1.bf16.msra.mxu0 %v1617
    %2263 = vmatprep.subr.bf16.mxu0 %v1627
    %2264 = vmatpush1.bf16.msra.mxu0 %v1626
    %2265 = vmatprep.subr.bf16.mxu0 %v1636
    %2266 = vmatpush1.bf16.msra.mxu0 %v1635
    %2267 = vmatprep.subr.bf16.mxu0 %v1645
    %2268 = vmatpush1.bf16.msra.mxu0 %v1644
    %2269 = vmatprep.subr.bf16.mxu0 %v1654
    %2270 = vmatpush1.bf16.msra.mxu0 %v1653
    %2271 = vmatprep.subr.bf16.mxu0 %v1663
    %2272 = vmatpush1.bf16.msra.mxu0 %v1662
    %2273 = vmatprep.subr.bf16.mxu0 %v1672
    %2274 = vmatpush1.bf16.msra.mxu0 %v1671
    %2275 = vmatprep.subr.bf16.mxu0 %v1681
    %2276 = vmatpush1.bf16.msra.mxu0 %v1680
    %2277 = vmatprep.subr.bf16.mxu0 %v1690
    %2278 = vmatpush1.bf16.msra.mxu0 %v1689
    %2279 = vmatprep.subr.bf16.mxu0 %v1699
    %2280 = vmatpush1.bf16.msra.mxu0 %v1698
    %2281 = vmatprep.subr.bf16.mxu0 %v1708
    %2282 = vmatpush1.bf16.msra.mxu0 %v1707
    %2283 = vmatprep.subr.bf16.mxu0 %v1717
    %2284 = vmatpush1.bf16.msra.mxu0 %v1716
    %2285 = vmatprep.subr.bf16.mxu0 %v1726
    %2286 = vmatpush1.bf16.msra.mxu0 %v1725
    %2287 = vmatprep.subr.bf16.mxu0 %v1735
    %2288 = vmatpush1.bf16.msra.mxu0 %v1734
    %2289 = vmatprep.subr.bf16.mxu0 %v1744
    %2290 = vmatpush1.bf16.msra.mxu0 %v1743
    %2291 = vmatprep.mubr.bf16.mxu0 %v1964
    %2292 = vmatmul.mubr.bf16.gmra.mrb[0].mxu0 %v1963
    %v2293 = vpop.f32.mrb[0].mxu0
    %v2294 = vadd.f32 %v2253, %v2293
    %v2295 = vpop.f32.mrb[0].mxu0
    %v2296 = vadd.f32 %v2255, %v2295
    %v2297 = vpop.f32.mrb[0].mxu0
    %v2298 = vpop.f32.mrb[0].mxu0
    %2299 = vdwg.mxu0
    %2300 = vmatprep.subr.bf16.mxu0 %v1753
    %2301 = vmatpush1.bf16.msra.mxu0 %v1752
    %2302 = vmatprep.subr.bf16.mxu0 %v1762
    %2303 = vmatpush1.bf16.msra.mxu0 %v1761
    %2304 = vmatprep.subr.bf16.mxu0 %v1771
    %2305 = vmatpush1.bf16.msra.mxu0 %v1770
    %2306 = vmatprep.subr.bf16.mxu0 %v1780
    %2307 = vmatpush1.bf16.msra.mxu0 %v1779
    %2308 = vmatprep.subr.bf16.mxu0 %v1789
    %2309 = vmatpush1.bf16.msra.mxu0 %v1788
    %2310 = vmatprep.subr.bf16.mxu0 %v1798
    %2311 = vmatpush1.bf16.msra.mxu0 %v1797
    %2312 = vmatprep.subr.bf16.mxu0 %v1807
    %2313 = vmatpush1.bf16.msra.mxu0 %v1806
    %2314 = vmatprep.subr.bf16.mxu0 %v1816
    %2315 = vmatpush1.bf16.msra.mxu0 %v1815
    %2316 = vmatprep.subr.bf16.mxu0 %v1825
    %2317 = vmatpush1.bf16.msra.mxu0 %v1824
    %2318 = vmatprep.subr.bf16.mxu0 %v1834
    %2319 = vmatpush1.bf16.msra.mxu0 %v1833
    %2320 = vmatprep.subr.bf16.mxu0 %v1843
    %2321 = vmatpush1.bf16.msra.mxu0 %v1842
    %2322 = vmatprep.subr.bf16.mxu0 %v1852
    %2323 = vmatpush1.bf16.msra.mxu0 %v1851
    %2324 = vmatprep.subr.bf16.mxu0 %v1861
    %2325 = vmatpush1.bf16.msra.mxu0 %v1860
    %2326 = vmatprep.subr.bf16.mxu0 %v1870
    %2327 = vmatpush1.bf16.msra.mxu0 %v1869
    %2328 = vmatprep.subr.bf16.mxu0 %v1879
    %2329 = vmatpush1.bf16.msra.mxu0 %v1878
    %2330 = vmatprep.subr.bf16.mxu0 %v1888
    %2331 = vmatpush1.bf16.msra.mxu0 %v1887
    %2332 = vmatprep.mubr.bf16.mxu0 %v1966
    %2333 = vmatmul.mubr.bf16.gmra.mrb[0].mxu0 %v1965
    %v2334 = vpop.f32.mrb[0].mxu0
    %v2335 = vadd.f32 %v2294, %v2334
    %v2336 = vpop.f32.mrb[0].mxu0
    %v2337 = vadd.f32 %v2296, %v2336
    %v2338 = vpop.f32.mrb[0].mxu0
    %v2339 = vpop.f32.mrb[0].mxu0
    %2340 = vdwg.mxu0
    %2341 = vmatprep.subr.bf16.mxu0 %v1897
    %2342 = vmatpush1.bf16.msra.mxu0 %v1896
    %2343 = vmatprep.subr.bf16.mxu0 %v1906
    %2344 = vmatpush1.bf16.msra.mxu0 %v1905
    %2345 = vmatprep.subr.bf16.mxu0 0
    %2346 = vmatpush1.bf16.msra.mxu0 0
    %2347 = vmatprep.subr.bf16.mxu0 0
    %2348 = vmatpush1.bf16.msra.mxu0 0
    %2349 = vmatprep.subr.bf16.mxu0 0
    %2350 = vmatpush1.bf16.msra.mxu0 0
    %2351 = vmatprep.subr.bf16.mxu0 0
    %2352 = vmatpush1.bf16.msra.mxu0 0
    %2353 = vmatprep.subr.bf16.mxu0 0
    %2354 = vmatpush1.bf16.msra.mxu0 0
    %2355 = vmatprep.subr.bf16.mxu0 0
    %2356 = vmatpush1.bf16.msra.mxu0 0
    %2357 = vmatprep.subr.bf16.mxu0 0
    %2358 = vmatpush1.bf16.msra.mxu0 0
    %2359 = vmatprep.subr.bf16.mxu0 0
    %2360 = vmatpush1.bf16.msra.mxu0 0
    %2361 = vmatprep.subr.bf16.mxu0 0
    %2362 = vmatpush1.bf16.msra.mxu0 0
    %2363 = vmatprep.subr.bf16.mxu0 0
    %2364 = vmatpush1.bf16.msra.mxu0 0
    %2365 = vmatprep.subr.bf16.mxu0 0
    %2366 = vmatpush1.bf16.msra.mxu0 0
    %2367 = vmatprep.subr.bf16.mxu0 0
    %2368 = vmatpush1.bf16.msra.mxu0 0
    %2369 = vmatprep.subr.bf16.mxu0 0
    %2370 = vmatpush1.bf16.msra.mxu0 0
    %2371 = vmatprep.subr.bf16.mxu0 0
    %2372 = vmatpush1.bf16.msra.mxu0 0
    %2373 = vmatprep.mubr.bf16.mxu0 0
    %2374 = vmatmul.mubr.bf16.gmra.mrb[0].mxu0 %v1970
    %v2375 = vpop.f32.mrb[0].mxu0
    %v2376 = vadd.f32 %v2335, %v2375
    %v2377 = vpop.f32.mrb[0].mxu0
    %v2378 = vadd.f32 %v2337, %v2377
    %v2379 = vpop.f32.mrb[0].mxu0
    %v2380 = vpop.f32.mrb[0].mxu0
    %2381 = vdwg.mxu0
    %2382 = vmatprep.subr.bf16.mxu0 %v1323
    %2383 = vmatpush1.bf16.msra.mxu0 %v1322
    %2384 = vmatprep.subr.bf16.mxu0 %v1332
    %2385 = vmatpush1.bf16.msra.mxu0 %v1331
    %2386 = vmatprep.subr.bf16.mxu0 %v1341
    %2387 = vmatpush1.bf16.msra.mxu0 %v1340
    %2388 = vmatprep.subr.bf16.mxu0 %v1350
    %2389 = vmatpush1.bf16.msra.mxu0 %v1349
    %2390 = vmatprep.subr.bf16.mxu0 %v1359
    %2391 = vmatpush1.bf16.msra.mxu0 %v1358
    %2392 = vmatprep.subr.bf16.mxu0 %v1368
    %2393 = vmatpush1.bf16.msra.mxu0 %v1367
    %2394 = vmatprep.subr.bf16.mxu0 %v1377
    %2395 = vmatpush1.bf16.msra.mxu0 %v1376
    %2396 = vmatprep.subr.bf16.mxu0 %v1386
    %2397 = vmatpush1.bf16.msra.mxu0 %v1385
    %2398 = vmatprep.subr.bf16.mxu0 %v1395
    %2399 = vmatpush1.bf16.msra.mxu0 %v1394
    %2400 = vmatprep.subr.bf16.mxu0 %v1404
    %2401 = vmatpush1.bf16.msra.mxu0 %v1403
    %2402 = vmatprep.subr.bf16.mxu0 %v1413
    %2403 = vmatpush1.bf16.msra.mxu0 %v1412
    %2404 = vmatprep.subr.bf16.mxu0 %v1422
    %2405 = vmatpush1.bf16.msra.mxu0 %v1421
    %2406 = vmatprep.subr.bf16.mxu0 %v1431
    %2407 = vmatpush1.bf16.msra.mxu0 %v1430
    %2408 = vmatprep.subr.bf16.mxu0 %v1440
    %2409 = vmatpush1.bf16.msra.mxu0 %v1439
    %2410 = vmatprep.subr.bf16.mxu0 %v1449
    %2411 = vmatpush1.bf16.msra.mxu0 %v1448
    %2412 = vmatprep.subr.bf16.mxu0 %v1458
    %2413 = vmatpush1.bf16.msra.mxu0 %v1457
    %2414 = vmatprep.mubr.bf16.mxu0 %v1960
    %2415 = vmatmul.mubr.bf16.gmra.mrb[0].mxu0 %v1959
    %v2416 = vpop.f32.mrb[0].mxu0
    %v2417 = vadd.f32 0.0, %v2416
    %v2418 = vpop.f32.mrb[0].mxu0
    %v2419 = vadd.f32 0.0, %v2418
    %v2420 = vpop.f32.mrb[0].mxu0
    %v2421 = vpop.f32.mrb[0].mxu0
    %2422 = vdwg.mxu0
    %2423 = vmatprep.subr.bf16.mxu0 %v1467
    %2424 = vmatpush1.bf16.msra.mxu0 %v1466
    %2425 = vmatprep.subr.bf16.mxu0 %v1476
    %2426 = vmatpush1.bf16.msra.mxu0 %v1475
    %2427 = vmatprep.subr.bf16.mxu0 %v1485
    %2428 = vmatpush1.bf16.msra.mxu0 %v1484
    %2429 = vmatprep.subr.bf16.mxu0 %v1494
    %2430 = vmatpush1.bf16.msra.mxu0 %v1493
    %2431 = vmatprep.subr.bf16.mxu0 %v1503
    %2432 = vmatpush1.bf16.msra.mxu0 %v1502
    %2433 = vmatprep.subr.bf16.mxu0 %v1512
    %2434 = vmatpush1.bf16.msra.mxu0 %v1511
    %2435 = vmatprep.subr.bf16.mxu0 %v1521
    %2436 = vmatpush1.bf16.msra.mxu0 %v1520
    %2437 = vmatprep.subr.bf16.mxu0 %v1530
    %2438 = vmatpush1.bf16.msra.mxu0 %v1529
    %2439 = vmatprep.subr.bf16.mxu0 %v1539
    %2440 = vmatpush1.bf16.msra.mxu0 %v1538
    %2441 = vmatprep.subr.bf16.mxu0 %v1548
    %2442 = vmatpush1.bf16.msra.mxu0 %v1547
    %2443 = vmatprep.subr.bf16.mxu0 %v1557
    %2444 = vmatpush1.bf16.msra.mxu0 %v1556
    %2445 = vmatprep.subr.bf16.mxu0 %v1566
    %2446 = vmatpush1.bf16.msra.mxu0 %v1565
    %2447 = vmatprep.subr.bf16.mxu0 %v1575
    %2448 = vmatpush1.bf16.msra.mxu0 %v1574
    %2449 = vmatprep.subr.bf16.mxu0 %v1584
    %2450 = vmatpush1.bf16.msra.mxu0 %v1583
    %2451 = vmatprep.subr.bf16.mxu0 %v1593
    %2452 = vmatpush1.bf16.msra.mxu0 %v1592
    %2453 = vmatprep.subr.bf16.mxu0 %v1602
    %2454 = vmatpush1.bf16.msra.mxu0 %v1601
    %2455 = vmatprep.mubr.bf16.mxu0 %v1962
    %2456 = vmatmul.mubr.bf16.gmra.mrb[0].mxu0 %v1961
    %v2457 = vpop.f32.mrb[0].mxu0
    %v2458 = vadd.f32 %v2417, %v2457
    %v2459 = vpop.f32.mrb[0].mxu0
    %v2460 = vadd.f32 %v2419, %v2459
    %v2461 = vpop.f32.mrb[0].mxu0
    %v2462 = vpop.f32.mrb[0].mxu0
    %2463 = vdwg.mxu0
    %2464 = vmatprep.subr.bf16.mxu0 %v1611
    %2465 = vmatpush1.bf16.msra.mxu0 %v1610
    %2466 = vmatprep.subr.bf16.mxu0 %v1620
    %2467 = vmatpush1.bf16.msra.mxu0 %v1619
    %2468 = vmatprep.subr.bf16.mxu0 %v1629
    %2469 = vmatpush1.bf16.msra.mxu0 %v1628
    %2470 = vmatprep.subr.bf16.mxu0 %v1638
    %2471 = vmatpush1.bf16.msra.mxu0 %v1637
    %2472 = vmatprep.subr.bf16.mxu0 %v1647
    %2473 = vmatpush1.bf16.msra.mxu0 %v1646
    %2474 = vmatprep.subr.bf16.mxu0 %v1656
    %2475 = vmatpush1.bf16.msra.mxu0 %v1655
    %2476 = vmatprep.subr.bf16.mxu0 %v1665
    %2477 = vmatpush1.bf16.msra.mxu0 %v1664
    %2478 = vmatprep.subr.bf16.mxu0 %v1674
    %2479 = vmatpush1.bf16.msra.mxu0 %v1673
    %2480 = vmatprep.subr.bf16.mxu0 %v1683
    %2481 = vmatpush1.bf16.msra.mxu0 %v1682
    %2482 = vmatprep.subr.bf16.mxu0 %v1692
    %2483 = vmatpush1.bf16.msra.mxu0 %v1691
    %2484 = vmatprep.subr.bf16.mxu0 %v1701
    %2485 = vmatpush1.bf16.msra.mxu0 %v1700
    %2486 = vmatprep.subr.bf16.mxu0 %v1710
    %2487 = vmatpush1.bf16.msra.mxu0 %v1709
    %2488 = vmatprep.subr.bf16.mxu0 %v1719
    %2489 = vmatpush1.bf16.msra.mxu0 %v1718
    %2490 = vmatprep.subr.bf16.mxu0 %v1728
    %2491 = vmatpush1.bf16.msra.mxu0 %v1727
    %2492 = vmatprep.subr.bf16.mxu0 %v1737
    %2493 = vmatpush1.bf16.msra.mxu0 %v1736
    %2494 = vmatprep.subr.bf16.mxu0 %v1746
    %2495 = vmatpush1.bf16.msra.mxu0 %v1745
    %2496 = vmatprep.mubr.bf16.mxu0 %v1964
    %2497 = vmatmul.mubr.bf16.gmra.mrb[0].mxu0 %v1963
    %v2498 = vpop.f32.mrb[0].mxu0
    %v2499 = vadd.f32 %v2458, %v2498
    %v2500 = vpop.f32.mrb[0].mxu0
    %v2501 = vadd.f32 %v2460, %v2500
    %v2502 = vpop.f32.mrb[0].mxu0
    %v2503 = vpop.f32.mrb[0].mxu0
    %2504 = vdwg.mxu0
    %2505 = vmatprep.subr.bf16.mxu0 %v1755
    %2506 = vmatpush1.bf16.msra.mxu0 %v1754
    %2507 = vmatprep.subr.bf16.mxu0 %v1764
    %2508 = vmatpush1.bf16.msra.mxu0 %v1763
    %2509 = vmatprep.subr.bf16.mxu0 %v1773
    %2510 = vmatpush1.bf16.msra.mxu0 %v1772
    %2511 = vmatprep.subr.bf16.mxu0 %v1782
    %2512 = vmatpush1.bf16.msra.mxu0 %v1781
    %2513 = vmatprep.subr.bf16.mxu0 %v1791
    %2514 = vmatpush1.bf16.msra.mxu0 %v1790
    %2515 = vmatprep.subr.bf16.mxu0 %v1800
    %2516 = vmatpush1.bf16.msra.mxu0 %v1799
    %2517 = vmatprep.subr.bf16.mxu0 %v1809
    %2518 = vmatpush1.bf16.msra.mxu0 %v1808
    %2519 = vmatprep.subr.bf16.mxu0 %v1818
    %2520 = vmatpush1.bf16.msra.mxu0 %v1817
    %2521 = vmatprep.subr.bf16.mxu0 %v1827
    %2522 = vmatpush1.bf16.msra.mxu0 %v1826
    %2523 = vmatprep.subr.bf16.mxu0 %v1836
    %2524 = vmatpush1.bf16.msra.mxu0 %v1835
    %2525 = vmatprep.subr.bf16.mxu0 %v1845
    %2526 = vmatpush1.bf16.msra.mxu0 %v1844
    %2527 = vmatprep.subr.bf16.mxu0 %v1854
    %2528 = vmatpush1.bf16.msra.mxu0 %v1853
    %2529 = vmatprep.subr.bf16.mxu0 %v1863
    %2530 = vmatpush1.bf16.msra.mxu0 %v1862
    %2531 = vmatprep.subr.bf16.mxu0 %v1872
    %2532 = vmatpush1.bf16.msra.mxu0 %v1871
    %2533 = vmatprep.subr.bf16.mxu0 %v1881
    %2534 = vmatpush1.bf16.msra.mxu0 %v1880
    %2535 = vmatprep.subr.bf16.mxu0 %v1890
    %2536 = vmatpush1.bf16.msra.mxu0 %v1889
    %2537 = vmatprep.mubr.bf16.mxu0 %v1966
    %2538 = vmatmul.mubr.bf16.gmra.mrb[0].mxu0 %v1965
    %v2539 = vpop.f32.mrb[0].mxu0
    %v2540 = vadd.f32 %v2499, %v2539
    %v2541 = vpop.f32.mrb[0].mxu0
    %v2542 = vadd.f32 %v2501, %v2541
    %v2543 = vpop.f32.mrb[0].mxu0
    %v2544 = vpop.f32.mrb[0].mxu0
    %2545 = vdwg.mxu0
    %2546 = vmatprep.subr.bf16.mxu0 %v1899
    %2547 = vmatpush1.bf16.msra.mxu0 %v1898
    %2548 = vmatprep.subr.bf16.mxu0 %v1908
    %2549 = vmatpush1.bf16.msra.mxu0 %v1907
    %2550 = vmatprep.subr.bf16.mxu0 0
    %2551 = vmatpush1.bf16.msra.mxu0 0
    %2552 = vmatprep.subr.bf16.mxu0 0
    %2553 = vmatpush1.bf16.msra.mxu0 0
    %2554 = vmatprep.subr.bf16.mxu0 0
    %2555 = vmatpush1.bf16.msra.mxu0 0
    %2556 = vmatprep.subr.bf16.mxu0 0
    %2557 = vmatpush1.bf16.msra.mxu0 0
    %2558 = vmatprep.subr.bf16.mxu0 0
    %2559 = vmatpush1.bf16.msra.mxu0 0
    %2560 = vmatprep.subr.bf16.mxu0 0
    %2561 = vmatpush1.bf16.msra.mxu0 0
    %2562 = vmatprep.subr.bf16.mxu0 0
    %2563 = vmatpush1.bf16.msra.mxu0 0
    %2564 = vmatprep.subr.bf16.mxu0 0
    %2565 = vmatpush1.bf16.msra.mxu0 0
    %2566 = vmatprep.subr.bf16.mxu0 0
    %2567 = vmatpush1.bf16.msra.mxu0 0
    %2568 = vmatprep.subr.bf16.mxu0 0
    %2569 = vmatpush1.bf16.msra.mxu0 0
    %2570 = vmatprep.subr.bf16.mxu0 0
    %2571 = vmatpush1.bf16.msra.mxu0 0
    %2572 = vmatprep.subr.bf16.mxu0 0
    %2573 = vmatpush1.bf16.msra.mxu0 0
    %2574 = vmatprep.subr.bf16.mxu0 0
    %2575 = vmatpush1.bf16.msra.mxu0 0
    %2576 = vmatprep.subr.bf16.mxu0 0
    %2577 = vmatpush1.bf16.msra.mxu0 0
    %2578 = vmatprep.mubr.bf16.mxu0 0
    %2579 = vmatmul.mubr.bf16.gmra.mrb[0].mxu0 %v1970
    %v2580 = vpop.f32.mrb[0].mxu0
    %v2581 = vadd.f32 %v2540, %v2580
    %v2582 = vpop.f32.mrb[0].mxu0
    %v2583 = vadd.f32 %v2542, %v2582
    %v2584 = vpop.f32.mrb[0].mxu0
    %v2585 = vpop.f32.mrb[0].mxu0
    %2586 = vdwg.mxu0
    %2587 = vmatprep.subr.bf16.mxu0 %v1325
    %2588 = vmatpush1.bf16.msra.mxu0 %v1324
    %2589 = vmatprep.subr.bf16.mxu0 %v1334
    %2590 = vmatpush1.bf16.msra.mxu0 %v1333
    %2591 = vmatprep.subr.bf16.mxu0 %v1343
    %2592 = vmatpush1.bf16.msra.mxu0 %v1342
    %2593 = vmatprep.subr.bf16.mxu0 %v1352
    %2594 = vmatpush1.bf16.msra.mxu0 %v1351
    %2595 = vmatprep.subr.bf16.mxu0 %v1361
    %2596 = vmatpush1.bf16.msra.mxu0 %v1360
    %2597 = vmatprep.subr.bf16.mxu0 %v1370
    %2598 = vmatpush1.bf16.msra.mxu0 %v1369
    %2599 = vmatprep.subr.bf16.mxu0 %v1379
    %2600 = vmatpush1.bf16.msra.mxu0 %v1378
    %2601 = vmatprep.subr.bf16.mxu0 %v1388
    %2602 = vmatpush1.bf16.msra.mxu0 %v1387
    %2603 = vmatprep.subr.bf16.mxu0 %v1397
    %2604 = vmatpush1.bf16.msra.mxu0 %v1396
    %2605 = vmatprep.subr.bf16.mxu0 %v1406
    %2606 = vmatpush1.bf16.msra.mxu0 %v1405
    %2607 = vmatprep.subr.bf16.mxu0 %v1415
    %2608 = vmatpush1.bf16.msra.mxu0 %v1414
    %2609 = vmatprep.subr.bf16.mxu0 %v1424
    %2610 = vmatpush1.bf16.msra.mxu0 %v1423
    %2611 = vmatprep.subr.bf16.mxu0 %v1433
    %2612 = vmatpush1.bf16.msra.mxu0 %v1432
    %2613 = vmatprep.subr.bf16.mxu0 %v1442
    %2614 = vmatpush1.bf16.msra.mxu0 %v1441
    %2615 = vmatprep.subr.bf16.mxu0 %v1451
    %2616 = vmatpush1.bf16.msra.mxu0 %v1450
    %2617 = vmatprep.subr.bf16.mxu0 %v1460
    %2618 = vmatpush1.bf16.msra.mxu0 %v1459
    %2619 = vmatprep.mubr.bf16.mxu0 %v1960
    %2620 = vmatmul.mubr.bf16.gmra.mrb[0].mxu0 %v1959
    %v2621 = vpop.f32.mrb[0].mxu0
    %v2622 = vadd.f32 0.0, %v2621
    %v2623 = vpop.f32.mrb[0].mxu0
    %v2624 = vadd.f32 0.0, %v2623
    %v2625 = vpop.f32.mrb[0].mxu0
    %v2626 = vpop.f32.mrb[0].mxu0
    %2627 = vdwg.mxu0
    %2628 = vmatprep.subr.bf16.mxu0 %v1469
    %2629 = vmatpush1.bf16.msra.mxu0 %v1468
    %2630 = vmatprep.subr.bf16.mxu0 %v1478
    %2631 = vmatpush1.bf16.msra.mxu0 %v1477
    %2632 = vmatprep.subr.bf16.mxu0 %v1487
    %2633 = vmatpush1.bf16.msra.mxu0 %v1486
    %2634 = vmatprep.subr.bf16.mxu0 %v1496
    %2635 = vmatpush1.bf16.msra.mxu0 %v1495
    %2636 = vmatprep.subr.bf16.mxu0 %v1505
    %2637 = vmatpush1.bf16.msra.mxu0 %v1504
    %2638 = vmatprep.subr.bf16.mxu0 %v1514
    %2639 = vmatpush1.bf16.msra.mxu0 %v1513
    %2640 = vmatprep.subr.bf16.mxu0 %v1523
    %2641 = vmatpush1.bf16.msra.mxu0 %v1522
    %2642 = vmatprep.subr.bf16.mxu0 %v1532
    %2643 = vmatpush1.bf16.msra.mxu0 %v1531
    %2644 = vmatprep.subr.bf16.mxu0 %v1541
    %2645 = vmatpush1.bf16.msra.mxu0 %v1540
    %2646 = vmatprep.subr.bf16.mxu0 %v1550
    %2647 = vmatpush1.bf16.msra.mxu0 %v1549
    %2648 = vmatprep.subr.bf16.mxu0 %v1559
    %2649 = vmatpush1.bf16.msra.mxu0 %v1558
    %2650 = vmatprep.subr.bf16.mxu0 %v1568
    %2651 = vmatpush1.bf16.msra.mxu0 %v1567
    %2652 = vmatprep.subr.bf16.mxu0 %v1577
    %2653 = vmatpush1.bf16.msra.mxu0 %v1576
    %2654 = vmatprep.subr.bf16.mxu0 %v1586
    %2655 = vmatpush1.bf16.msra.mxu0 %v1585
    %2656 = vmatprep.subr.bf16.mxu0 %v1595
    %2657 = vmatpush1.bf16.msra.mxu0 %v1594
    %2658 = vmatprep.subr.bf16.mxu0 %v1604
    %2659 = vmatpush1.bf16.msra.mxu0 %v1603
    %2660 = vmatprep.mubr.bf16.mxu0 %v1962
    %2661 = vmatmul.mubr.bf16.gmra.mrb[0].mxu0 %v1961
    %v2662 = vpop.f32.mrb[0].mxu0
    %v2663 = vadd.f32 %v2622, %v2662
    %v2664 = vpop.f32.mrb[0].mxu0
    %v2665 = vadd.f32 %v2624, %v2664
    %v2666 = vpop.f32.mrb[0].mxu0
    %v2667 = vpop.f32.mrb[0].mxu0
    %2668 = vdwg.mxu0
    %2669 = vmatprep.subr.bf16.mxu0 %v1613
    %2670 = vmatpush1.bf16.msra.mxu0 %v1612
    %2671 = vmatprep.subr.bf16.mxu0 %v1622
    %2672 = vmatpush1.bf16.msra.mxu0 %v1621
    %2673 = vmatprep.subr.bf16.mxu0 %v1631
    %2674 = vmatpush1.bf16.msra.mxu0 %v1630
    %2675 = vmatprep.subr.bf16.mxu0 %v1640
    %2676 = vmatpush1.bf16.msra.mxu0 %v1639
    %2677 = vmatprep.subr.bf16.mxu0 %v1649
    %2678 = vmatpush1.bf16.msra.mxu0 %v1648
    %2679 = vmatprep.subr.bf16.mxu0 %v1658
    %2680 = vmatpush1.bf16.msra.mxu0 %v1657
    %2681 = vmatprep.subr.bf16.mxu0 %v1667
    %2682 = vmatpush1.bf16.msra.mxu0 %v1666
    %2683 = vmatprep.subr.bf16.mxu0 %v1676
    %2684 = vmatpush1.bf16.msra.mxu0 %v1675
    %2685 = vmatprep.subr.bf16.mxu0 %v1685
    %2686 = vmatpush1.bf16.msra.mxu0 %v1684
    %2687 = vmatprep.subr.bf16.mxu0 %v1694
    %2688 = vmatpush1.bf16.msra.mxu0 %v1693
    %2689 = vmatprep.subr.bf16.mxu0 %v1703
    %2690 = vmatpush1.bf16.msra.mxu0 %v1702
    %2691 = vmatprep.subr.bf16.mxu0 %v1712
    %2692 = vmatpush1.bf16.msra.mxu0 %v1711
    %2693 = vmatprep.subr.bf16.mxu0 %v1721
    %2694 = vmatpush1.bf16.msra.mxu0 %v1720
    %2695 = vmatprep.subr.bf16.mxu0 %v1730
    %2696 = vmatpush1.bf16.msra.mxu0 %v1729
    %2697 = vmatprep.subr.bf16.mxu0 %v1739
    %2698 = vmatpush1.bf16.msra.mxu0 %v1738
    %2699 = vmatprep.subr.bf16.mxu0 %v1748
    %2700 = vmatpush1.bf16.msra.mxu0 %v1747
    %2701 = vmatprep.mubr.bf16.mxu0 %v1964
    %2702 = vmatmul.mubr.bf16.gmra.mrb[0].mxu0 %v1963
    %v2703 = vpop.f32.mrb[0].mxu0
    %v2704 = vadd.f32 %v2663, %v2703
    %v2705 = vpop.f32.mrb[0].mxu0
    %v2706 = vadd.f32 %v2665, %v2705
    %v2707 = vpop.f32.mrb[0].mxu0
    %v2708 = vpop.f32.mrb[0].mxu0
    %2709 = vdwg.mxu0
    %2710 = vmatprep.subr.bf16.mxu0 %v1757
    %2711 = vmatpush1.bf16.msra.mxu0 %v1756
    %2712 = vmatprep.subr.bf16.mxu0 %v1766
    %2713 = vmatpush1.bf16.msra.mxu0 %v1765
    %2714 = vmatprep.subr.bf16.mxu0 %v1775
    %2715 = vmatpush1.bf16.msra.mxu0 %v1774
    %2716 = vmatprep.subr.bf16.mxu0 %v1784
    %2717 = vmatpush1.bf16.msra.mxu0 %v1783
    %2718 = vmatprep.subr.bf16.mxu0 %v1793
    %2719 = vmatpush1.bf16.msra.mxu0 %v1792
    %2720 = vmatprep.subr.bf16.mxu0 %v1802
    %2721 = vmatpush1.bf16.msra.mxu0 %v1801
    %2722 = vmatprep.subr.bf16.mxu0 %v1811
    %2723 = vmatpush1.bf16.msra.mxu0 %v1810
    %2724 = vmatprep.subr.bf16.mxu0 %v1820
    %2725 = vmatpush1.bf16.msra.mxu0 %v1819
    %2726 = vmatprep.subr.bf16.mxu0 %v1829
    %2727 = vmatpush1.bf16.msra.mxu0 %v1828
    %2728 = vmatprep.subr.bf16.mxu0 %v1838
    %2729 = vmatpush1.bf16.msra.mxu0 %v1837
    %2730 = vmatprep.subr.bf16.mxu0 %v1847
    %2731 = vmatpush1.bf16.msra.mxu0 %v1846
    %2732 = vmatprep.subr.bf16.mxu0 %v1856
    %2733 = vmatpush1.bf16.msra.mxu0 %v1855
    %2734 = vmatprep.subr.bf16.mxu0 %v1865
    %2735 = vmatpush1.bf16.msra.mxu0 %v1864
    %2736 = vmatprep.subr.bf16.mxu0 %v1874
    %2737 = vmatpush1.bf16.msra.mxu0 %v1873
    %2738 = vmatprep.subr.bf16.mxu0 %v1883
    %2739 = vmatpush1.bf16.msra.mxu0 %v1882
    %2740 = vmatprep.subr.bf16.mxu0 %v1892
    %2741 = vmatpush1.bf16.msra.mxu0 %v1891
    %2742 = vmatprep.mubr.bf16.mxu0 %v1966
    %2743 = vmatmul.mubr.bf16.gmra.mrb[0].mxu0 %v1965
    %v2744 = vpop.f32.mrb[0].mxu0
    %v2745 = vadd.f32 %v2704, %v2744
    %v2746 = vpop.f32.mrb[0].mxu0
    %v2747 = vadd.f32 %v2706, %v2746
    %v2748 = vpop.f32.mrb[0].mxu0
    %v2749 = vpop.f32.mrb[0].mxu0
    %2750 = vdwg.mxu0
    %2751 = vmatprep.subr.bf16.mxu0 %v1901
    %2752 = vmatpush1.bf16.msra.mxu0 %v1900
    %2753 = vmatprep.subr.bf16.mxu0 %v1910
    %2754 = vmatpush1.bf16.msra.mxu0 %v1909
    %2755 = vmatprep.subr.bf16.mxu0 0
    %2756 = vmatpush1.bf16.msra.mxu0 0
    %2757 = vmatprep.subr.bf16.mxu0 0
    %2758 = vmatpush1.bf16.msra.mxu0 0
    %2759 = vmatprep.subr.bf16.mxu0 0
    %2760 = vmatpush1.bf16.msra.mxu0 0
    %2761 = vmatprep.subr.bf16.mxu0 0
    %2762 = vmatpush1.bf16.msra.mxu0 0
    %2763 = vmatprep.subr.bf16.mxu0 0
    %2764 = vmatpush1.bf16.msra.mxu0 0
    %2765 = vmatprep.subr.bf16.mxu0 0
    %2766 = vmatpush1.bf16.msra.mxu0 0
    %2767 = vmatprep.subr.bf16.mxu0 0
    %2768 = vmatpush1.bf16.msra.mxu0 0
    %2769 = vmatprep.subr.bf16.mxu0 0
    %2770 = vmatpush1.bf16.msra.mxu0 0
    %2771 = vmatprep.subr.bf16.mxu0 0
    %2772 = vmatpush1.bf16.msra.mxu0 0
    %2773 = vmatprep.subr.bf16.mxu0 0
    %2774 = vmatpush1.bf16.msra.mxu0 0
    %2775 = vmatprep.subr.bf16.mxu0 0
    %2776 = vmatpush1.bf16.msra.mxu0 0
    %2777 = vmatprep.subr.bf16.mxu0 0
    %2778 = vmatpush1.bf16.msra.mxu0 0
    %2779 = vmatprep.subr.bf16.mxu0 0
    %2780 = vmatpush1.bf16.msra.mxu0 0
    %2781 = vmatprep.subr.bf16.mxu0 0
    %2782 = vmatpush1.bf16.msra.mxu0 0
    %2783 = vmatprep.mubr.bf16.mxu0 0
    %2784 = vmatmul.mubr.bf16.gmra.mrb[0].mxu0 %v1970
    %v2785 = vpop.f32.mrb[0].mxu0
    %v2786 = vadd.f32 %v2745, %v2785
    %v2787 = vpop.f32.mrb[0].mxu0
    %v2788 = vadd.f32 %v2747, %v2787
    %v2789 = vpop.f32.mrb[0].mxu0
    %v2790 = vpop.f32.mrb[0].mxu0
    %2791 = vdwg.mxu0
    %2792 = vmatprep.subr.bf16.mxu0 0
    %2793 = vmatpush1.bf16.msra.mxu0 %v1326
    %2794 = vmatprep.subr.bf16.mxu0 0
    %2795 = vmatpush1.bf16.msra.mxu0 %v1335
    %2796 = vmatprep.subr.bf16.mxu0 0
    %2797 = vmatpush1.bf16.msra.mxu0 %v1344
    %2798 = vmatprep.subr.bf16.mxu0 0
    %2799 = vmatpush1.bf16.msra.mxu0 %v1353
    %2800 = vmatprep.subr.bf16.mxu0 0
    %2801 = vmatpush1.bf16.msra.mxu0 %v1362
    %2802 = vmatprep.subr.bf16.mxu0 0
    %2803 = vmatpush1.bf16.msra.mxu0 %v1371
    %2804 = vmatprep.subr.bf16.mxu0 0
    %2805 = vmatpush1.bf16.msra.mxu0 %v1380
    %2806 = vmatprep.subr.bf16.mxu0 0
    %2807 = vmatpush1.bf16.msra.mxu0 %v1389
    %2808 = vmatprep.subr.bf16.mxu0 0
    %2809 = vmatpush1.bf16.msra.mxu0 %v1398
    %2810 = vmatprep.subr.bf16.mxu0 0
    %2811 = vmatpush1.bf16.msra.mxu0 %v1407
    %2812 = vmatprep.subr.bf16.mxu0 0
    %2813 = vmatpush1.bf16.msra.mxu0 %v1416
    %2814 = vmatprep.subr.bf16.mxu0 0
    %2815 = vmatpush1.bf16.msra.mxu0 %v1425
    %2816 = vmatprep.subr.bf16.mxu0 0
    %2817 = vmatpush1.bf16.msra.mxu0 %v1434
    %2818 = vmatprep.subr.bf16.mxu0 0
    %2819 = vmatpush1.bf16.msra.mxu0 %v1443
    %2820 = vmatprep.subr.bf16.mxu0 0
    %2821 = vmatpush1.bf16.msra.mxu0 %v1452
    %2822 = vmatprep.subr.bf16.mxu0 0
    %2823 = vmatpush1.bf16.msra.mxu0 %v1461
    %2824 = vmatprep.mubr.bf16.mxu0 %v1960
    %2825 = vmatmul.mubr.bf16.gmra.mrb[0].mxu0 %v1959
    %v2826 = vpop.f32.mrb[0].mxu0
    %v2827 = vadd.f32 0.0, %v2826
    %v2828 = vpop.f32.mrb[0].mxu0
    %v2829 = vpop.f32.mrb[0].mxu0
    %v2830 = vpop.f32.mrb[0].mxu0
    %2831 = vdwg.mxu0
    %2832 = vmatprep.subr.bf16.mxu0 0
    %2833 = vmatpush1.bf16.msra.mxu0 %v1470
    %2834 = vmatprep.subr.bf16.mxu0 0
    %2835 = vmatpush1.bf16.msra.mxu0 %v1479
    %2836 = vmatprep.subr.bf16.mxu0 0
    %2837 = vmatpush1.bf16.msra.mxu0 %v1488
    %2838 = vmatprep.subr.bf16.mxu0 0
    %2839 = vmatpush1.bf16.msra.mxu0 %v1497
    %2840 = vmatprep.subr.bf16.mxu0 0
    %2841 = vmatpush1.bf16.msra.mxu0 %v1506
    %2842 = vmatprep.subr.bf16.mxu0 0
    %2843 = vmatpush1.bf16.msra.mxu0 %v1515
    %2844 = vmatprep.subr.bf16.mxu0 0
    %2845 = vmatpush1.bf16.msra.mxu0 %v1524
    %2846 = vmatprep.subr.bf16.mxu0 0
    %2847 = vmatpush1.bf16.msra.mxu0 %v1533
    %2848 = vmatprep.subr.bf16.mxu0 0
    %2849 = vmatpush1.bf16.msra.mxu0 %v1542
    %2850 = vmatprep.subr.bf16.mxu0 0
    %2851 = vmatpush1.bf16.msra.mxu0 %v1551
    %2852 = vmatprep.subr.bf16.mxu0 0
    %2853 = vmatpush1.bf16.msra.mxu0 %v1560
    %2854 = vmatprep.subr.bf16.mxu0 0
    %2855 = vmatpush1.bf16.msra.mxu0 %v1569
    %2856 = vmatprep.subr.bf16.mxu0 0
    %2857 = vmatpush1.bf16.msra.mxu0 %v1578
    %2858 = vmatprep.subr.bf16.mxu0 0
    %2859 = vmatpush1.bf16.msra.mxu0 %v1587
    %2860 = vmatprep.subr.bf16.mxu0 0
    %2861 = vmatpush1.bf16.msra.mxu0 %v1596
    %2862 = vmatprep.subr.bf16.mxu0 0
    %2863 = vmatpush1.bf16.msra.mxu0 %v1605
    %2864 = vmatprep.mubr.bf16.mxu0 %v1962
    %2865 = vmatmul.mubr.bf16.gmra.mrb[0].mxu0 %v1961
    %v2866 = vpop.f32.mrb[0].mxu0
    %v2867 = vadd.f32 %v2827, %v2866
    %v2868 = vpop.f32.mrb[0].mxu0
    %v2869 = vpop.f32.mrb[0].mxu0
    %v2870 = vpop.f32.mrb[0].mxu0
    %2871 = vdwg.mxu0
    %2872 = vmatprep.subr.bf16.mxu0 0
    %2873 = vmatpush1.bf16.msra.mxu0 %v1614
    %2874 = vmatprep.subr.bf16.mxu0 0
    %2875 = vmatpush1.bf16.msra.mxu0 %v1623
    %2876 = vmatprep.subr.bf16.mxu0 0
    %2877 = vmatpush1.bf16.msra.mxu0 %v1632
    %2878 = vmatprep.subr.bf16.mxu0 0
    %2879 = vmatpush1.bf16.msra.mxu0 %v1641
    %2880 = vmatprep.subr.bf16.mxu0 0
    %2881 = vmatpush1.bf16.msra.mxu0 %v1650
    %2882 = vmatprep.subr.bf16.mxu0 0
    %2883 = vmatpush1.bf16.msra.mxu0 %v1659
    %2884 = vmatprep.subr.bf16.mxu0 0
    %2885 = vmatpush1.bf16.msra.mxu0 %v1668
    %2886 = vmatprep.subr.bf16.mxu0 0
    %2887 = vmatpush1.bf16.msra.mxu0 %v1677
    %2888 = vmatprep.subr.bf16.mxu0 0
    %2889 = vmatpush1.bf16.msra.mxu0 %v1686
    %2890 = vmatprep.subr.bf16.mxu0 0
    %2891 = vmatpush1.bf16.msra.mxu0 %v1695
    %2892 = vmatprep.subr.bf16.mxu0 0
    %2893 = vmatpush1.bf16.msra.mxu0 %v1704
    %2894 = vmatprep.subr.bf16.mxu0 0
    %2895 = vmatpush1.bf16.msra.mxu0 %v1713
    %2896 = vmatprep.subr.bf16.mxu0 0
    %2897 = vmatpush1.bf16.msra.mxu0 %v1722
    %2898 = vmatprep.subr.bf16.mxu0 0
    %2899 = vmatpush1.bf16.msra.mxu0 %v1731
    %2900 = vmatprep.subr.bf16.mxu0 0
    %2901 = vmatpush1.bf16.msra.mxu0 %v1740
    %2902 = vmatprep.subr.bf16.mxu0 0
    %2903 = vmatpush1.bf16.msra.mxu0 %v1749
    %2904 = vmatprep.mubr.bf16.mxu0 %v1964
    %2905 = vmatmul.mubr.bf16.gmra.mrb[0].mxu0 %v1963
    %v2906 = vpop.f32.mrb[0].mxu0
    %v2907 = vadd.f32 %v2867, %v2906
    %v2908 = vpop.f32.mrb[0].mxu0
    %v2909 = vpop.f32.mrb[0].mxu0
    %v2910 = vpop.f32.mrb[0].mxu0
    %2911 = vdwg.mxu0
    %2912 = vmatprep.subr.bf16.mxu0 0
    %2913 = vmatpush1.bf16.msra.mxu0 %v1758
    %2914 = vmatprep.subr.bf16.mxu0 0
    %2915 = vmatpush1.bf16.msra.mxu0 %v1767
    %2916 = vmatprep.subr.bf16.mxu0 0
    %2917 = vmatpush1.bf16.msra.mxu0 %v1776
    %2918 = vmatprep.subr.bf16.mxu0 0
    %2919 = vmatpush1.bf16.msra.mxu0 %v1785
    %2920 = vmatprep.subr.bf16.mxu0 0
    %2921 = vmatpush1.bf16.msra.mxu0 %v1794
    %2922 = vmatprep.subr.bf16.mxu0 0
    %2923 = vmatpush1.bf16.msra.mxu0 %v1803
    %2924 = vmatprep.subr.bf16.mxu0 0
    %2925 = vmatpush1.bf16.msra.mxu0 %v1812
    %2926 = vmatprep.subr.bf16.mxu0 0
    %2927 = vmatpush1.bf16.msra.mxu0 %v1821
    %2928 = vmatprep.subr.bf16.mxu0 0
    %2929 = vmatpush1.bf16.msra.mxu0 %v1830
    %2930 = vmatprep.subr.bf16.mxu0 0
    %2931 = vmatpush1.bf16.msra.mxu0 %v1839
    %2932 = vmatprep.subr.bf16.mxu0 0
    %2933 = vmatpush1.bf16.msra.mxu0 %v1848
    %2934 = vmatprep.subr.bf16.mxu0 0
    %2935 = vmatpush1.bf16.msra.mxu0 %v1857
    %2936 = vmatprep.subr.bf16.mxu0 0
    %2937 = vmatpush1.bf16.msra.mxu0 %v1866
    %2938 = vmatprep.subr.bf16.mxu0 0
    %2939 = vmatpush1.bf16.msra.mxu0 %v1875
    %2940 = vmatprep.subr.bf16.mxu0 0
    %2941 = vmatpush1.bf16.msra.mxu0 %v1884
    %2942 = vmatprep.subr.bf16.mxu0 0
    %2943 = vmatpush1.bf16.msra.mxu0 %v1893
    %2944 = vmatprep.mubr.bf16.mxu0 %v1966
    %2945 = vmatmul.mubr.bf16.gmra.mrb[0].mxu0 %v1965
    %v2946 = vpop.f32.mrb[0].mxu0
    %v2947 = vadd.f32 %v2907, %v2946
    %v2948 = vpop.f32.mrb[0].mxu0
    %v2949 = vpop.f32.mrb[0].mxu0
    %v2950 = vpop.f32.mrb[0].mxu0
    %2951 = vdwg.mxu0
    %2952 = vmatprep.subr.bf16.mxu0 0
    %2953 = vmatpush1.bf16.msra.mxu0 %v1902
    %2954 = vmatprep.subr.bf16.mxu0 0
    %2955 = vmatpush1.bf16.msra.mxu0 %v1911
    %2956 = vmatprep.subr.bf16.mxu0 0
    %2957 = vmatpush1.bf16.msra.mxu0 0
    %2958 = vmatprep.subr.bf16.mxu0 0
    %2959 = vmatpush1.bf16.msra.mxu0 0
    %2960 = vmatprep.subr.bf16.mxu0 0
    %2961 = vmatpush1.bf16.msra.mxu0 0
    %2962 = vmatprep.subr.bf16.mxu0 0
    %2963 = vmatpush1.bf16.msra.mxu0 0
    %2964 = vmatprep.subr.bf16.mxu0 0
    %2965 = vmatpush1.bf16.msra.mxu0 0
    %2966 = vmatprep.subr.bf16.mxu0 0
    %2967 = vmatpush1.bf16.msra.mxu0 0
    %2968 = vmatprep.subr.bf16.mxu0 0
    %2969 = vmatpush1.bf16.msra.mxu0 0
    %2970 = vmatprep.subr.bf16.mxu0 0
    %2971 = vmatpush1.bf16.msra.mxu0 0
    %2972 = vmatprep.subr.bf16.mxu0 0
    %2973 = vmatpush1.bf16.msra.mxu0 0
    %2974 = vmatprep.subr.bf16.mxu0 0
    %2975 = vmatpush1.bf16.msra.mxu0 0
    %2976 = vmatprep.subr.bf16.mxu0 0
    %2977 = vmatpush1.bf16.msra.mxu0 0
    %2978 = vmatprep.subr.bf16.mxu0 0
    %2979 = vmatpush1.bf16.msra.mxu0 0
    %2980 = vmatprep.subr.bf16.mxu0 0
    %2981 = vmatpush1.bf16.msra.mxu0 0
    %2982 = vmatprep.subr.bf16.mxu0 0
    %2983 = vmatpush1.bf16.msra.mxu0 0
    %2984 = vmatprep.mubr.bf16.mxu0 0
    %2985 = vmatmul.mubr.bf16.gmra.mrb[0].mxu0 %v1970
    %v2986 = vpop.f32.mrb[0].mxu0
    %v2987 = vadd.f32 %v2947, %v2986
    %v2988 = vpop.f32.mrb[0].mxu0
    %v2989 = vpop.f32.mrb[0].mxu0
    %v2990 = vpop.f32.mrb[0].mxu0
    %2991 = vdwg.mxu0
    %v2993 = vsel %vm1968, %v1018, 0
    %2995 = vmatprep.subr.bf16.mxu0 %v370
    %2996 = vmatpush1.bf16.msra.mxu0 %v369
    %2997 = vmatprep.subr.bf16.mxu0 %v379
    %2998 = vmatpush1.bf16.msra.mxu0 %v378
    %2999 = vmatprep.subr.bf16.mxu0 %v388
    %3000 = vmatpush1.bf16.msra.mxu0 %v387
    %3001 = vmatprep.subr.bf16.mxu0 %v397
    %3002 = vmatpush1.bf16.msra.mxu0 %v396
    %3003 = vmatprep.subr.bf16.mxu0 %v406
    %3004 = vmatpush1.bf16.msra.mxu0 %v405
    %3005 = vmatprep.subr.bf16.mxu0 %v415
    %3006 = vmatpush1.bf16.msra.mxu0 %v414
    %3007 = vmatprep.subr.bf16.mxu0 %v424
    %3008 = vmatpush1.bf16.msra.mxu0 %v423
    %3009 = vmatprep.subr.bf16.mxu0 %v433
    %3010 = vmatpush1.bf16.msra.mxu0 %v432
    %3011 = vmatprep.subr.bf16.mxu0 %v442
    %3012 = vmatpush1.bf16.msra.mxu0 %v441
    %3013 = vmatprep.subr.bf16.mxu0 %v451
    %3014 = vmatpush1.bf16.msra.mxu0 %v450
    %3015 = vmatprep.subr.bf16.mxu0 %v460
    %3016 = vmatpush1.bf16.msra.mxu0 %v459
    %3017 = vmatprep.subr.bf16.mxu0 %v469
    %3018 = vmatpush1.bf16.msra.mxu0 %v468
    %3019 = vmatprep.subr.bf16.mxu0 %v478
    %3020 = vmatpush1.bf16.msra.mxu0 %v477
    %3021 = vmatprep.subr.bf16.mxu0 %v487
    %3022 = vmatpush1.bf16.msra.mxu0 %v486
    %3023 = vmatprep.subr.bf16.mxu0 %v496
    %3024 = vmatpush1.bf16.msra.mxu0 %v495
    %3025 = vmatprep.subr.bf16.mxu0 %v505
    %3026 = vmatpush1.bf16.msra.mxu0 %v504
    %3027 = vmatprep.mubr.bf16.mxu0 %v1011
    %3028 = vmatmul.mubr.bf16.gmra.mrb[0].mxu0 %v1010
    %v3029 = vpop.f32.mrb[0].mxu0
    %v3030 = vadd.f32 %v2171, %v3029
    %v3031 = vpop.f32.mrb[0].mxu0
    %v3032 = vadd.f32 %v2173, %v3031
    %v3033 = vpop.f32.mrb[0].mxu0
    %v3034 = vpop.f32.mrb[0].mxu0
    %3035 = vdwg.mxu0
    %3036 = vmatprep.subr.bf16.mxu0 %v514
    %3037 = vmatpush1.bf16.msra.mxu0 %v513
    %3038 = vmatprep.subr.bf16.mxu0 %v523
    %3039 = vmatpush1.bf16.msra.mxu0 %v522
    %3040 = vmatprep.subr.bf16.mxu0 %v532
    %3041 = vmatpush1.bf16.msra.mxu0 %v531
    %3042 = vmatprep.subr.bf16.mxu0 %v541
    %3043 = vmatpush1.bf16.msra.mxu0 %v540
    %3044 = vmatprep.subr.bf16.mxu0 %v550
    %3045 = vmatpush1.bf16.msra.mxu0 %v549
    %3046 = vmatprep.subr.bf16.mxu0 %v559
    %3047 = vmatpush1.bf16.msra.mxu0 %v558
    %3048 = vmatprep.subr.bf16.mxu0 %v568
    %3049 = vmatpush1.bf16.msra.mxu0 %v567
    %3050 = vmatprep.subr.bf16.mxu0 %v577
    %3051 = vmatpush1.bf16.msra.mxu0 %v576
    %3052 = vmatprep.subr.bf16.mxu0 %v586
    %3053 = vmatpush1.bf16.msra.mxu0 %v585
    %3054 = vmatprep.subr.bf16.mxu0 %v595
    %3055 = vmatpush1.bf16.msra.mxu0 %v594
    %3056 = vmatprep.subr.bf16.mxu0 %v604
    %3057 = vmatpush1.bf16.msra.mxu0 %v603
    %3058 = vmatprep.subr.bf16.mxu0 %v613
    %3059 = vmatpush1.bf16.msra.mxu0 %v612
    %3060 = vmatprep.subr.bf16.mxu0 %v622
    %3061 = vmatpush1.bf16.msra.mxu0 %v621
    %3062 = vmatprep.subr.bf16.mxu0 %v631
    %3063 = vmatpush1.bf16.msra.mxu0 %v630
    %3064 = vmatprep.subr.bf16.mxu0 %v640
    %3065 = vmatpush1.bf16.msra.mxu0 %v639
    %3066 = vmatprep.subr.bf16.mxu0 %v649
    %3067 = vmatpush1.bf16.msra.mxu0 %v648
    %3068 = vmatprep.mubr.bf16.mxu0 %v1013
    %3069 = vmatmul.mubr.bf16.gmra.mrb[0].mxu0 %v1012
    %v3070 = vpop.f32.mrb[0].mxu0
    %v3071 = vadd.f32 %v3030, %v3070
    %v3072 = vpop.f32.mrb[0].mxu0
    %v3073 = vadd.f32 %v3032, %v3072
    %v3074 = vpop.f32.mrb[0].mxu0
    %v3075 = vpop.f32.mrb[0].mxu0
    %3076 = vdwg.mxu0
    %3077 = vmatprep.subr.bf16.mxu0 %v658
    %3078 = vmatpush1.bf16.msra.mxu0 %v657
    %3079 = vmatprep.subr.bf16.mxu0 %v667
    %3080 = vmatpush1.bf16.msra.mxu0 %v666
    %3081 = vmatprep.subr.bf16.mxu0 %v676
    %3082 = vmatpush1.bf16.msra.mxu0 %v675
    %3083 = vmatprep.subr.bf16.mxu0 %v685
    %3084 = vmatpush1.bf16.msra.mxu0 %v684
    %3085 = vmatprep.subr.bf16.mxu0 %v694
    %3086 = vmatpush1.bf16.msra.mxu0 %v693
    %3087 = vmatprep.subr.bf16.mxu0 %v703
    %3088 = vmatpush1.bf16.msra.mxu0 %v702
    %3089 = vmatprep.subr.bf16.mxu0 %v712
    %3090 = vmatpush1.bf16.msra.mxu0 %v711
    %3091 = vmatprep.subr.bf16.mxu0 %v721
    %3092 = vmatpush1.bf16.msra.mxu0 %v720
    %3093 = vmatprep.subr.bf16.mxu0 %v730
    %3094 = vmatpush1.bf16.msra.mxu0 %v729
    %3095 = vmatprep.subr.bf16.mxu0 %v739
    %3096 = vmatpush1.bf16.msra.mxu0 %v738
    %3097 = vmatprep.subr.bf16.mxu0 %v748
    %3098 = vmatpush1.bf16.msra.mxu0 %v747
    %3099 = vmatprep.subr.bf16.mxu0 %v757
    %3100 = vmatpush1.bf16.msra.mxu0 %v756
    %3101 = vmatprep.subr.bf16.mxu0 %v766
    %3102 = vmatpush1.bf16.msra.mxu0 %v765
    %3103 = vmatprep.subr.bf16.mxu0 %v775
    %3104 = vmatpush1.bf16.msra.mxu0 %v774
    %3105 = vmatprep.subr.bf16.mxu0 %v784
    %3106 = vmatpush1.bf16.msra.mxu0 %v783
    %3107 = vmatprep.subr.bf16.mxu0 %v793
    %3108 = vmatpush1.bf16.msra.mxu0 %v792
    %3109 = vmatprep.mubr.bf16.mxu0 %v1015
    %3110 = vmatmul.mubr.bf16.gmra.mrb[0].mxu0 %v1014
    %v3111 = vpop.f32.mrb[0].mxu0
    %v3112 = vadd.f32 %v3071, %v3111
    %v3113 = vpop.f32.mrb[0].mxu0
    %v3114 = vadd.f32 %v3073, %v3113
    %v3115 = vpop.f32.mrb[0].mxu0
    %v3116 = vpop.f32.mrb[0].mxu0
    %3117 = vdwg.mxu0
    %3118 = vmatprep.subr.bf16.mxu0 %v802
    %3119 = vmatpush1.bf16.msra.mxu0 %v801
    %3120 = vmatprep.subr.bf16.mxu0 %v811
    %3121 = vmatpush1.bf16.msra.mxu0 %v810
    %3122 = vmatprep.subr.bf16.mxu0 %v820
    %3123 = vmatpush1.bf16.msra.mxu0 %v819
    %3124 = vmatprep.subr.bf16.mxu0 %v829
    %3125 = vmatpush1.bf16.msra.mxu0 %v828
    %3126 = vmatprep.subr.bf16.mxu0 %v838
    %3127 = vmatpush1.bf16.msra.mxu0 %v837
    %3128 = vmatprep.subr.bf16.mxu0 %v847
    %3129 = vmatpush1.bf16.msra.mxu0 %v846
    %3130 = vmatprep.subr.bf16.mxu0 %v856
    %3131 = vmatpush1.bf16.msra.mxu0 %v855
    %3132 = vmatprep.subr.bf16.mxu0 %v865
    %3133 = vmatpush1.bf16.msra.mxu0 %v864
    %3134 = vmatprep.subr.bf16.mxu0 %v874
    %3135 = vmatpush1.bf16.msra.mxu0 %v873
    %3136 = vmatprep.subr.bf16.mxu0 %v883
    %3137 = vmatpush1.bf16.msra.mxu0 %v882
    %3138 = vmatprep.subr.bf16.mxu0 %v892
    %3139 = vmatpush1.bf16.msra.mxu0 %v891
    %3140 = vmatprep.subr.bf16.mxu0 %v901
    %3141 = vmatpush1.bf16.msra.mxu0 %v900
    %3142 = vmatprep.subr.bf16.mxu0 %v910
    %3143 = vmatpush1.bf16.msra.mxu0 %v909
    %3144 = vmatprep.subr.bf16.mxu0 %v919
    %3145 = vmatpush1.bf16.msra.mxu0 %v918
    %3146 = vmatprep.subr.bf16.mxu0 %v928
    %3147 = vmatpush1.bf16.msra.mxu0 %v927
    %3148 = vmatprep.subr.bf16.mxu0 %v937
    %3149 = vmatpush1.bf16.msra.mxu0 %v936
    %3150 = vmatprep.mubr.bf16.mxu0 %v1017
    %3151 = vmatmul.mubr.bf16.gmra.mrb[0].mxu0 %v1016
    %v3152 = vpop.f32.mrb[0].mxu0
    %v3153 = vadd.f32 %v3112, %v3152
    %v3154 = vpop.f32.mrb[0].mxu0
    %v3155 = vadd.f32 %v3114, %v3154
    %v3156 = vpop.f32.mrb[0].mxu0
    %v3157 = vpop.f32.mrb[0].mxu0
    %3158 = vdwg.mxu0
    %3159 = vmatprep.subr.bf16.mxu0 %v946
    %3160 = vmatpush1.bf16.msra.mxu0 %v945
    %3161 = vmatprep.subr.bf16.mxu0 %v955
    %3162 = vmatpush1.bf16.msra.mxu0 %v954
    %3163 = vmatprep.subr.bf16.mxu0 0
    %3164 = vmatpush1.bf16.msra.mxu0 0
    %3165 = vmatprep.subr.bf16.mxu0 0
    %3166 = vmatpush1.bf16.msra.mxu0 0
    %3167 = vmatprep.subr.bf16.mxu0 0
    %3168 = vmatpush1.bf16.msra.mxu0 0
    %3169 = vmatprep.subr.bf16.mxu0 0
    %3170 = vmatpush1.bf16.msra.mxu0 0
    %3171 = vmatprep.subr.bf16.mxu0 0
    %3172 = vmatpush1.bf16.msra.mxu0 0
    %3173 = vmatprep.subr.bf16.mxu0 0
    %3174 = vmatpush1.bf16.msra.mxu0 0
    %3175 = vmatprep.subr.bf16.mxu0 0
    %3176 = vmatpush1.bf16.msra.mxu0 0
    %3177 = vmatprep.subr.bf16.mxu0 0
    %3178 = vmatpush1.bf16.msra.mxu0 0
    %3179 = vmatprep.subr.bf16.mxu0 0
    %3180 = vmatpush1.bf16.msra.mxu0 0
    %3181 = vmatprep.subr.bf16.mxu0 0
    %3182 = vmatpush1.bf16.msra.mxu0 0
    %3183 = vmatprep.subr.bf16.mxu0 0
    %3184 = vmatpush1.bf16.msra.mxu0 0
    %3185 = vmatprep.subr.bf16.mxu0 0
    %3186 = vmatpush1.bf16.msra.mxu0 0
    %3187 = vmatprep.subr.bf16.mxu0 0
    %3188 = vmatpush1.bf16.msra.mxu0 0
    %3189 = vmatprep.subr.bf16.mxu0 0
    %3190 = vmatpush1.bf16.msra.mxu0 0
    %3191 = vmatprep.mubr.bf16.mxu0 0
    %3192 = vmatmul.mubr.bf16.gmra.mrb[0].mxu0 %v2993
    %v3193 = vpop.f32.mrb[0].mxu0
    %v3194 = vadd.f32 %v3153, %v3193
    %v3195 = vpop.f32.mrb[0].mxu0
    %v3196 = vadd.f32 %v3155, %v3195
    %v3197 = vpop.f32.mrb[0].mxu0
    %v3198 = vpop.f32.mrb[0].mxu0
    %3199 = vdwg.mxu0
    %3200 = vmatprep.subr.bf16.mxu0 %v372
    %3201 = vmatpush1.bf16.msra.mxu0 %v371
    %3202 = vmatprep.subr.bf16.mxu0 %v381
    %3203 = vmatpush1.bf16.msra.mxu0 %v380
    %3204 = vmatprep.subr.bf16.mxu0 %v390
    %3205 = vmatpush1.bf16.msra.mxu0 %v389
    %3206 = vmatprep.subr.bf16.mxu0 %v399
    %3207 = vmatpush1.bf16.msra.mxu0 %v398
    %3208 = vmatprep.subr.bf16.mxu0 %v408
    %3209 = vmatpush1.bf16.msra.mxu0 %v407
    %3210 = vmatprep.subr.bf16.mxu0 %v417
    %3211 = vmatpush1.bf16.msra.mxu0 %v416
    %3212 = vmatprep.subr.bf16.mxu0 %v426
    %3213 = vmatpush1.bf16.msra.mxu0 %v425
    %3214 = vmatprep.subr.bf16.mxu0 %v435
    %3215 = vmatpush1.bf16.msra.mxu0 %v434
    %3216 = vmatprep.subr.bf16.mxu0 %v444
    %3217 = vmatpush1.bf16.msra.mxu0 %v443
    %3218 = vmatprep.subr.bf16.mxu0 %v453
    %3219 = vmatpush1.bf16.msra.mxu0 %v452
    %3220 = vmatprep.subr.bf16.mxu0 %v462
    %3221 = vmatpush1.bf16.msra.mxu0 %v461
    %3222 = vmatprep.subr.bf16.mxu0 %v471
    %3223 = vmatpush1.bf16.msra.mxu0 %v470
    %3224 = vmatprep.subr.bf16.mxu0 %v480
    %3225 = vmatpush1.bf16.msra.mxu0 %v479
    %3226 = vmatprep.subr.bf16.mxu0 %v489
    %3227 = vmatpush1.bf16.msra.mxu0 %v488
    %3228 = vmatprep.subr.bf16.mxu0 %v498
    %3229 = vmatpush1.bf16.msra.mxu0 %v497
    %3230 = vmatprep.subr.bf16.mxu0 %v507
    %3231 = vmatpush1.bf16.msra.mxu0 %v506
    %3232 = vmatprep.mubr.bf16.mxu0 %v1011
    %3233 = vmatmul.mubr.bf16.gmra.mrb[0].mxu0 %v1010
    %v3234 = vpop.f32.mrb[0].mxu0
    %v3235 = vadd.f32 %v2376, %v3234
    %v3236 = vpop.f32.mrb[0].mxu0
    %v3237 = vadd.f32 %v2378, %v3236
    %v3238 = vpop.f32.mrb[0].mxu0
    %v3239 = vpop.f32.mrb[0].mxu0
    %3240 = vdwg.mxu0
    %3241 = vmatprep.subr.bf16.mxu0 %v516
    %3242 = vmatpush1.bf16.msra.mxu0 %v515
    %3243 = vmatprep.subr.bf16.mxu0 %v525
    %3244 = vmatpush1.bf16.msra.mxu0 %v524
    %3245 = vmatprep.subr.bf16.mxu0 %v534
    %3246 = vmatpush1.bf16.msra.mxu0 %v533
    %3247 = vmatprep.subr.bf16.mxu0 %v543
    %3248 = vmatpush1.bf16.msra.mxu0 %v542
    %3249 = vmatprep.subr.bf16.mxu0 %v552
    %3250 = vmatpush1.bf16.msra.mxu0 %v551
    %3251 = vmatprep.subr.bf16.mxu0 %v561
    %3252 = vmatpush1.bf16.msra.mxu0 %v560
    %3253 = vmatprep.subr.bf16.mxu0 %v570
    %3254 = vmatpush1.bf16.msra.mxu0 %v569
    %3255 = vmatprep.subr.bf16.mxu0 %v579
    %3256 = vmatpush1.bf16.msra.mxu0 %v578
    %3257 = vmatprep.subr.bf16.mxu0 %v588
    %3258 = vmatpush1.bf16.msra.mxu0 %v587
    %3259 = vmatprep.subr.bf16.mxu0 %v597
    %3260 = vmatpush1.bf16.msra.mxu0 %v596
    %3261 = vmatprep.subr.bf16.mxu0 %v606
    %3262 = vmatpush1.bf16.msra.mxu0 %v605
    %3263 = vmatprep.subr.bf16.mxu0 %v615
    %3264 = vmatpush1.bf16.msra.mxu0 %v614
    %3265 = vmatprep.subr.bf16.mxu0 %v624
    %3266 = vmatpush1.bf16.msra.mxu0 %v623
    %3267 = vmatprep.subr.bf16.mxu0 %v633
    %3268 = vmatpush1.bf16.msra.mxu0 %v632
    %3269 = vmatprep.subr.bf16.mxu0 %v642
    %3270 = vmatpush1.bf16.msra.mxu0 %v641
    %3271 = vmatprep.subr.bf16.mxu0 %v651
    %3272 = vmatpush1.bf16.msra.mxu0 %v650
    %3273 = vmatprep.mubr.bf16.mxu0 %v1013
    %3274 = vmatmul.mubr.bf16.gmra.mrb[0].mxu0 %v1012
    %v3275 = vpop.f32.mrb[0].mxu0
    %v3276 = vadd.f32 %v3235, %v3275
    %v3277 = vpop.f32.mrb[0].mxu0
    %v3278 = vadd.f32 %v3237, %v3277
    %v3279 = vpop.f32.mrb[0].mxu0
    %v3280 = vpop.f32.mrb[0].mxu0
    %3281 = vdwg.mxu0
    %3282 = vmatprep.subr.bf16.mxu0 %v660
    %3283 = vmatpush1.bf16.msra.mxu0 %v659
    %3284 = vmatprep.subr.bf16.mxu0 %v669
    %3285 = vmatpush1.bf16.msra.mxu0 %v668
    %3286 = vmatprep.subr.bf16.mxu0 %v678
    %3287 = vmatpush1.bf16.msra.mxu0 %v677
    %3288 = vmatprep.subr.bf16.mxu0 %v687
    %3289 = vmatpush1.bf16.msra.mxu0 %v686
    %3290 = vmatprep.subr.bf16.mxu0 %v696
    %3291 = vmatpush1.bf16.msra.mxu0 %v695
    %3292 = vmatprep.subr.bf16.mxu0 %v705
    %3293 = vmatpush1.bf16.msra.mxu0 %v704
    %3294 = vmatprep.subr.bf16.mxu0 %v714
    %3295 = vmatpush1.bf16.msra.mxu0 %v713
    %3296 = vmatprep.subr.bf16.mxu0 %v723
    %3297 = vmatpush1.bf16.msra.mxu0 %v722
    %3298 = vmatprep.subr.bf16.mxu0 %v732
    %3299 = vmatpush1.bf16.msra.mxu0 %v731
    %3300 = vmatprep.subr.bf16.mxu0 %v741
    %3301 = vmatpush1.bf16.msra.mxu0 %v740
    %3302 = vmatprep.subr.bf16.mxu0 %v750
    %3303 = vmatpush1.bf16.msra.mxu0 %v749
    %3304 = vmatprep.subr.bf16.mxu0 %v759
    %3305 = vmatpush1.bf16.msra.mxu0 %v758
    %3306 = vmatprep.subr.bf16.mxu0 %v768
    %3307 = vmatpush1.bf16.msra.mxu0 %v767
    %3308 = vmatprep.subr.bf16.mxu0 %v777
    %3309 = vmatpush1.bf16.msra.mxu0 %v776
    %3310 = vmatprep.subr.bf16.mxu0 %v786
    %3311 = vmatpush1.bf16.msra.mxu0 %v785
    %3312 = vmatprep.subr.bf16.mxu0 %v795
    %3313 = vmatpush1.bf16.msra.mxu0 %v794
    %3314 = vmatprep.mubr.bf16.mxu0 %v1015
    %3315 = vmatmul.mubr.bf16.gmra.mrb[0].mxu0 %v1014
    %v3316 = vpop.f32.mrb[0].mxu0
    %v3317 = vadd.f32 %v3276, %v3316
    %v3318 = vpop.f32.mrb[0].mxu0
    %v3319 = vadd.f32 %v3278, %v3318
    %v3320 = vpop.f32.mrb[0].mxu0
    %v3321 = vpop.f32.mrb[0].mxu0
    %3322 = vdwg.mxu0
    %3323 = vmatprep.subr.bf16.mxu0 %v804
    %3324 = vmatpush1.bf16.msra.mxu0 %v803
    %3325 = vmatprep.subr.bf16.mxu0 %v813
    %3326 = vmatpush1.bf16.msra.mxu0 %v812
    %3327 = vmatprep.subr.bf16.mxu0 %v822
    %3328 = vmatpush1.bf16.msra.mxu0 %v821
    %3329 = vmatprep.subr.bf16.mxu0 %v831
    %3330 = vmatpush1.bf16.msra.mxu0 %v830
    %3331 = vmatprep.subr.bf16.mxu0 %v840
    %3332 = vmatpush1.bf16.msra.mxu0 %v839
    %3333 = vmatprep.subr.bf16.mxu0 %v849
    %3334 = vmatpush1.bf16.msra.mxu0 %v848
    %3335 = vmatprep.subr.bf16.mxu0 %v858
    %3336 = vmatpush1.bf16.msra.mxu0 %v857
    %3337 = vmatprep.subr.bf16.mxu0 %v867
    %3338 = vmatpush1.bf16.msra.mxu0 %v866
    %3339 = vmatprep.subr.bf16.mxu0 %v876
    %3340 = vmatpush1.bf16.msra.mxu0 %v875
    %3341 = vmatprep.subr.bf16.mxu0 %v885
    %3342 = vmatpush1.bf16.msra.mxu0 %v884
    %3343 = vmatprep.subr.bf16.mxu0 %v894
    %3344 = vmatpush1.bf16.msra.mxu0 %v893
    %3345 = vmatprep.subr.bf16.mxu0 %v903
    %3346 = vmatpush1.bf16.msra.mxu0 %v902
    %3347 = vmatprep.subr.bf16.mxu0 %v912
    %3348 = vmatpush1.bf16.msra.mxu0 %v911
    %3349 = vmatprep.subr.bf16.mxu0 %v921
    %3350 = vmatpush1.bf16.msra.mxu0 %v920
    %3351 = vmatprep.subr.bf16.mxu0 %v930
    %3352 = vmatpush1.bf16.msra.mxu0 %v929
    %3353 = vmatprep.subr.bf16.mxu0 %v939
    %3354 = vmatpush1.bf16.msra.mxu0 %v938
    %3355 = vmatprep.mubr.bf16.mxu0 %v1017
    %3356 = vmatmul.mubr.bf16.gmra.mrb[0].mxu0 %v1016
    %v3357 = vpop.f32.mrb[0].mxu0
    %v3358 = vadd.f32 %v3317, %v3357
    %v3359 = vpop.f32.mrb[0].mxu0
    %v3360 = vadd.f32 %v3319, %v3359
    %v3361 = vpop.f32.mrb[0].mxu0
    %v3362 = vpop.f32.mrb[0].mxu0
    %3363 = vdwg.mxu0
    %3364 = vmatprep.subr.bf16.mxu0 %v948
    %3365 = vmatpush1.bf16.msra.mxu0 %v947
    %3366 = vmatprep.subr.bf16.mxu0 %v957
    %3367 = vmatpush1.bf16.msra.mxu0 %v956
    %3368 = vmatprep.subr.bf16.mxu0 0
    %3369 = vmatpush1.bf16.msra.mxu0 0
    %3370 = vmatprep.subr.bf16.mxu0 0
    %3371 = vmatpush1.bf16.msra.mxu0 0
    %3372 = vmatprep.subr.bf16.mxu0 0
    %3373 = vmatpush1.bf16.msra.mxu0 0
    %3374 = vmatprep.subr.bf16.mxu0 0
    %3375 = vmatpush1.bf16.msra.mxu0 0
    %3376 = vmatprep.subr.bf16.mxu0 0
    %3377 = vmatpush1.bf16.msra.mxu0 0
    %3378 = vmatprep.subr.bf16.mxu0 0
    %3379 = vmatpush1.bf16.msra.mxu0 0
    %3380 = vmatprep.subr.bf16.mxu0 0
    %3381 = vmatpush1.bf16.msra.mxu0 0
    %3382 = vmatprep.subr.bf16.mxu0 0
    %3383 = vmatpush1.bf16.msra.mxu0 0
    %3384 = vmatprep.subr.bf16.mxu0 0
    %3385 = vmatpush1.bf16.msra.mxu0 0
    %3386 = vmatprep.subr.bf16.mxu0 0
    %3387 = vmatpush1.bf16.msra.mxu0 0
    %3388 = vmatprep.subr.bf16.mxu0 0
    %3389 = vmatpush1.bf16.msra.mxu0 0
    %3390 = vmatprep.subr.bf16.mxu0 0
    %3391 = vmatpush1.bf16.msra.mxu0 0
    %3392 = vmatprep.subr.bf16.mxu0 0
    %3393 = vmatpush1.bf16.msra.mxu0 0
    %3394 = vmatprep.subr.bf16.mxu0 0
    %3395 = vmatpush1.bf16.msra.mxu0 0
    %3396 = vmatprep.mubr.bf16.mxu0 0
    %3397 = vmatmul.mubr.bf16.gmra.mrb[0].mxu0 %v2993
    %v3398 = vpop.f32.mrb[0].mxu0
    %v3399 = vadd.f32 %v3358, %v3398
    %v3400 = vpop.f32.mrb[0].mxu0
    %v3401 = vadd.f32 %v3360, %v3400
    %v3402 = vpop.f32.mrb[0].mxu0
    %v3403 = vpop.f32.mrb[0].mxu0
    %3404 = vdwg.mxu0
    %3405 = vmatprep.subr.bf16.mxu0 %v374
    %3406 = vmatpush1.bf16.msra.mxu0 %v373
    %3407 = vmatprep.subr.bf16.mxu0 %v383
    %3408 = vmatpush1.bf16.msra.mxu0 %v382
    %3409 = vmatprep.subr.bf16.mxu0 %v392
    %3410 = vmatpush1.bf16.msra.mxu0 %v391
    %3411 = vmatprep.subr.bf16.mxu0 %v401
    %3412 = vmatpush1.bf16.msra.mxu0 %v400
    %3413 = vmatprep.subr.bf16.mxu0 %v410
    %3414 = vmatpush1.bf16.msra.mxu0 %v409
    %3415 = vmatprep.subr.bf16.mxu0 %v419
    %3416 = vmatpush1.bf16.msra.mxu0 %v418
    %3417 = vmatprep.subr.bf16.mxu0 %v428
    %3418 = vmatpush1.bf16.msra.mxu0 %v427
    %3419 = vmatprep.subr.bf16.mxu0 %v437
    %3420 = vmatpush1.bf16.msra.mxu0 %v436
    %3421 = vmatprep.subr.bf16.mxu0 %v446
    %3422 = vmatpush1.bf16.msra.mxu0 %v445
    %3423 = vmatprep.subr.bf16.mxu0 %v455
    %3424 = vmatpush1.bf16.msra.mxu0 %v454
    %3425 = vmatprep.subr.bf16.mxu0 %v464
    %3426 = vmatpush1.bf16.msra.mxu0 %v463
    %3427 = vmatprep.subr.bf16.mxu0 %v473
    %3428 = vmatpush1.bf16.msra.mxu0 %v472
    %3429 = vmatprep.subr.bf16.mxu0 %v482
    %3430 = vmatpush1.bf16.msra.mxu0 %v481
    %3431 = vmatprep.subr.bf16.mxu0 %v491
    %3432 = vmatpush1.bf16.msra.mxu0 %v490
    %3433 = vmatprep.subr.bf16.mxu0 %v500
    %3434 = vmatpush1.bf16.msra.mxu0 %v499
    %3435 = vmatprep.subr.bf16.mxu0 %v509
    %3436 = vmatpush1.bf16.msra.mxu0 %v508
    %3437 = vmatprep.mubr.bf16.mxu0 %v1011
    %3438 = vmatmul.mubr.bf16.gmra.mrb[0].mxu0 %v1010
    %v3439 = vpop.f32.mrb[0].mxu0
    %v3440 = vadd.f32 %v2581, %v3439
    %v3441 = vpop.f32.mrb[0].mxu0
    %v3442 = vadd.f32 %v2583, %v3441
    %v3443 = vpop.f32.mrb[0].mxu0
    %v3444 = vpop.f32.mrb[0].mxu0
    %3445 = vdwg.mxu0
    %3446 = vmatprep.subr.bf16.mxu0 %v518
    %3447 = vmatpush1.bf16.msra.mxu0 %v517
    %3448 = vmatprep.subr.bf16.mxu0 %v527
    %3449 = vmatpush1.bf16.msra.mxu0 %v526
    %3450 = vmatprep.subr.bf16.mxu0 %v536
    %3451 = vmatpush1.bf16.msra.mxu0 %v535
    %3452 = vmatprep.subr.bf16.mxu0 %v545
    %3453 = vmatpush1.bf16.msra.mxu0 %v544
    %3454 = vmatprep.subr.bf16.mxu0 %v554
    %3455 = vmatpush1.bf16.msra.mxu0 %v553
    %3456 = vmatprep.subr.bf16.mxu0 %v563
    %3457 = vmatpush1.bf16.msra.mxu0 %v562
    %3458 = vmatprep.subr.bf16.mxu0 %v572
    %3459 = vmatpush1.bf16.msra.mxu0 %v571
    %3460 = vmatprep.subr.bf16.mxu0 %v581
    %3461 = vmatpush1.bf16.msra.mxu0 %v580
    %3462 = vmatprep.subr.bf16.mxu0 %v590
    %3463 = vmatpush1.bf16.msra.mxu0 %v589
    %3464 = vmatprep.subr.bf16.mxu0 %v599
    %3465 = vmatpush1.bf16.msra.mxu0 %v598
    %3466 = vmatprep.subr.bf16.mxu0 %v608
    %3467 = vmatpush1.bf16.msra.mxu0 %v607
    %3468 = vmatprep.subr.bf16.mxu0 %v617
    %3469 = vmatpush1.bf16.msra.mxu0 %v616
    %3470 = vmatprep.subr.bf16.mxu0 %v626
    %3471 = vmatpush1.bf16.msra.mxu0 %v625
    %3472 = vmatprep.subr.bf16.mxu0 %v635
    %3473 = vmatpush1.bf16.msra.mxu0 %v634
    %3474 = vmatprep.subr.bf16.mxu0 %v644
    %3475 = vmatpush1.bf16.msra.mxu0 %v643
    %3476 = vmatprep.subr.bf16.mxu0 %v653
    %3477 = vmatpush1.bf16.msra.mxu0 %v652
    %3478 = vmatprep.mubr.bf16.mxu0 %v1013
    %3479 = vmatmul.mubr.bf16.gmra.mrb[0].mxu0 %v1012
    %v3480 = vpop.f32.mrb[0].mxu0
    %v3481 = vadd.f32 %v3440, %v3480
    %v3482 = vpop.f32.mrb[0].mxu0
    %v3483 = vadd.f32 %v3442, %v3482
    %v3484 = vpop.f32.mrb[0].mxu0
    %v3485 = vpop.f32.mrb[0].mxu0
    %3486 = vdwg.mxu0
    %3487 = vmatprep.subr.bf16.mxu0 %v662
    %3488 = vmatpush1.bf16.msra.mxu0 %v661
    %3489 = vmatprep.subr.bf16.mxu0 %v671
    %3490 = vmatpush1.bf16.msra.mxu0 %v670
    %3491 = vmatprep.subr.bf16.mxu0 %v680
    %3492 = vmatpush1.bf16.msra.mxu0 %v679
    %3493 = vmatprep.subr.bf16.mxu0 %v689
    %3494 = vmatpush1.bf16.msra.mxu0 %v688
    %3495 = vmatprep.subr.bf16.mxu0 %v698
    %3496 = vmatpush1.bf16.msra.mxu0 %v697
    %3497 = vmatprep.subr.bf16.mxu0 %v707
    %3498 = vmatpush1.bf16.msra.mxu0 %v706
    %3499 = vmatprep.subr.bf16.mxu0 %v716
    %3500 = vmatpush1.bf16.msra.mxu0 %v715
    %3501 = vmatprep.subr.bf16.mxu0 %v725
    %3502 = vmatpush1.bf16.msra.mxu0 %v724
    %3503 = vmatprep.subr.bf16.mxu0 %v734
    %3504 = vmatpush1.bf16.msra.mxu0 %v733
    %3505 = vmatprep.subr.bf16.mxu0 %v743
    %3506 = vmatpush1.bf16.msra.mxu0 %v742
    %3507 = vmatprep.subr.bf16.mxu0 %v752
    %3508 = vmatpush1.bf16.msra.mxu0 %v751
    %3509 = vmatprep.subr.bf16.mxu0 %v761
    %3510 = vmatpush1.bf16.msra.mxu0 %v760
    %3511 = vmatprep.subr.bf16.mxu0 %v770
    %3512 = vmatpush1.bf16.msra.mxu0 %v769
    %3513 = vmatprep.subr.bf16.mxu0 %v779
    %3514 = vmatpush1.bf16.msra.mxu0 %v778
    %3515 = vmatprep.subr.bf16.mxu0 %v788
    %3516 = vmatpush1.bf16.msra.mxu0 %v787
    %3517 = vmatprep.subr.bf16.mxu0 %v797
    %3518 = vmatpush1.bf16.msra.mxu0 %v796
    %3519 = vmatprep.mubr.bf16.mxu0 %v1015
    %3520 = vmatmul.mubr.bf16.gmra.mrb[0].mxu0 %v1014
    %v3521 = vpop.f32.mrb[0].mxu0
    %v3522 = vadd.f32 %v3481, %v3521
    %v3523 = vpop.f32.mrb[0].mxu0
    %v3524 = vadd.f32 %v3483, %v3523
    %v3525 = vpop.f32.mrb[0].mxu0
    %v3526 = vpop.f32.mrb[0].mxu0
    %3527 = vdwg.mxu0
    %3528 = vmatprep.subr.bf16.mxu0 %v806
    %3529 = vmatpush1.bf16.msra.mxu0 %v805
    %3530 = vmatprep.subr.bf16.mxu0 %v815
    %3531 = vmatpush1.bf16.msra.mxu0 %v814
    %3532 = vmatprep.subr.bf16.mxu0 %v824
    %3533 = vmatpush1.bf16.msra.mxu0 %v823
    %3534 = vmatprep.subr.bf16.mxu0 %v833
    %3535 = vmatpush1.bf16.msra.mxu0 %v832
    %3536 = vmatprep.subr.bf16.mxu0 %v842
    %3537 = vmatpush1.bf16.msra.mxu0 %v841
    %3538 = vmatprep.subr.bf16.mxu0 %v851
    %3539 = vmatpush1.bf16.msra.mxu0 %v850
    %3540 = vmatprep.subr.bf16.mxu0 %v860
    %3541 = vmatpush1.bf16.msra.mxu0 %v859
    %3542 = vmatprep.subr.bf16.mxu0 %v869
    %3543 = vmatpush1.bf16.msra.mxu0 %v868
    %3544 = vmatprep.subr.bf16.mxu0 %v878
    %3545 = vmatpush1.bf16.msra.mxu0 %v877
    %3546 = vmatprep.subr.bf16.mxu0 %v887
    %3547 = vmatpush1.bf16.msra.mxu0 %v886
    %3548 = vmatprep.subr.bf16.mxu0 %v896
    %3549 = vmatpush1.bf16.msra.mxu0 %v895
    %3550 = vmatprep.subr.bf16.mxu0 %v905
    %3551 = vmatpush1.bf16.msra.mxu0 %v904
    %3552 = vmatprep.subr.bf16.mxu0 %v914
    %3553 = vmatpush1.bf16.msra.mxu0 %v913
    %3554 = vmatprep.subr.bf16.mxu0 %v923
    %3555 = vmatpush1.bf16.msra.mxu0 %v922
    %3556 = vmatprep.subr.bf16.mxu0 %v932
    %3557 = vmatpush1.bf16.msra.mxu0 %v931
    %3558 = vmatprep.subr.bf16.mxu0 %v941
    %3559 = vmatpush1.bf16.msra.mxu0 %v940
    %3560 = vmatprep.mubr.bf16.mxu0 %v1017
    %3561 = vmatmul.mubr.bf16.gmra.mrb[0].mxu0 %v1016
    %v3562 = vpop.f32.mrb[0].mxu0
    %v3563 = vadd.f32 %v3522, %v3562
    %v3564 = vpop.f32.mrb[0].mxu0
    %v3565 = vadd.f32 %v3524, %v3564
    %v3566 = vpop.f32.mrb[0].mxu0
    %v3567 = vpop.f32.mrb[0].mxu0
    %3568 = vdwg.mxu0
    %3569 = vmatprep.subr.bf16.mxu0 %v950
    %3570 = vmatpush1.bf16.msra.mxu0 %v949
    %3571 = vmatprep.subr.bf16.mxu0 %v959
    %3572 = vmatpush1.bf16.msra.mxu0 %v958
    %3573 = vmatprep.subr.bf16.mxu0 0
    %3574 = vmatpush1.bf16.msra.mxu0 0
    %3575 = vmatprep.subr.bf16.mxu0 0
    %3576 = vmatpush1.bf16.msra.mxu0 0
    %3577 = vmatprep.subr.bf16.mxu0 0
    %3578 = vmatpush1.bf16.msra.mxu0 0
    %3579 = vmatprep.subr.bf16.mxu0 0
    %3580 = vmatpush1.bf16.msra.mxu0 0
    %3581 = vmatprep.subr.bf16.mxu0 0
    %3582 = vmatpush1.bf16.msra.mxu0 0
    %3583 = vmatprep.subr.bf16.mxu0 0
    %3584 = vmatpush1.bf16.msra.mxu0 0
    %3585 = vmatprep.subr.bf16.mxu0 0
    %3586 = vmatpush1.bf16.msra.mxu0 0
    %3587 = vmatprep.subr.bf16.mxu0 0
    %3588 = vmatpush1.bf16.msra.mxu0 0
    %3589 = vmatprep.subr.bf16.mxu0 0
    %3590 = vmatpush1.bf16.msra.mxu0 0
    %3591 = vmatprep.subr.bf16.mxu0 0
    %3592 = vmatpush1.bf16.msra.mxu0 0
    %3593 = vmatprep.subr.bf16.mxu0 0
    %3594 = vmatpush1.bf16.msra.mxu0 0
    %3595 = vmatprep.subr.bf16.mxu0 0
    %3596 = vmatpush1.bf16.msra.mxu0 0
    %3597 = vmatprep.subr.bf16.mxu0 0
    %3598 = vmatpush1.bf16.msra.mxu0 0
    %3599 = vmatprep.subr.bf16.mxu0 0
    %3600 = vmatpush1.bf16.msra.mxu0 0
    %3601 = vmatprep.mubr.bf16.mxu0 0
    %3602 = vmatmul.mubr.bf16.gmra.mrb[0].mxu0 %v2993
    %v3603 = vpop.f32.mrb[0].mxu0
    %v3604 = vadd.f32 %v3563, %v3603
    %v3605 = vpop.f32.mrb[0].mxu0
    %v3606 = vadd.f32 %v3565, %v3605
    %v3607 = vpop.f32.mrb[0].mxu0
    %v3608 = vpop.f32.mrb[0].mxu0
    %3609 = vdwg.mxu0
    %3610 = vmatprep.subr.bf16.mxu0 %v376
    %3611 = vmatpush1.bf16.msra.mxu0 %v375
    %3612 = vmatprep.subr.bf16.mxu0 %v385
    %3613 = vmatpush1.bf16.msra.mxu0 %v384
    %3614 = vmatprep.subr.bf16.mxu0 %v394
    %3615 = vmatpush1.bf16.msra.mxu0 %v393
    %3616 = vmatprep.subr.bf16.mxu0 %v403
    %3617 = vmatpush1.bf16.msra.mxu0 %v402
    %3618 = vmatprep.subr.bf16.mxu0 %v412
    %3619 = vmatpush1.bf16.msra.mxu0 %v411
    %3620 = vmatprep.subr.bf16.mxu0 %v421
    %3621 = vmatpush1.bf16.msra.mxu0 %v420
    %3622 = vmatprep.subr.bf16.mxu0 %v430
    %3623 = vmatpush1.bf16.msra.mxu0 %v429
    %3624 = vmatprep.subr.bf16.mxu0 %v439
    %3625 = vmatpush1.bf16.msra.mxu0 %v438
    %3626 = vmatprep.subr.bf16.mxu0 %v448
    %3627 = vmatpush1.bf16.msra.mxu0 %v447
    %3628 = vmatprep.subr.bf16.mxu0 %v457
    %3629 = vmatpush1.bf16.msra.mxu0 %v456
    %3630 = vmatprep.subr.bf16.mxu0 %v466
    %3631 = vmatpush1.bf16.msra.mxu0 %v465
    %3632 = vmatprep.subr.bf16.mxu0 %v475
    %3633 = vmatpush1.bf16.msra.mxu0 %v474
    %3634 = vmatprep.subr.bf16.mxu0 %v484
    %3635 = vmatpush1.bf16.msra.mxu0 %v483
    %3636 = vmatprep.subr.bf16.mxu0 %v493
    %3637 = vmatpush1.bf16.msra.mxu0 %v492
    %3638 = vmatprep.subr.bf16.mxu0 %v502
    %3639 = vmatpush1.bf16.msra.mxu0 %v501
    %3640 = vmatprep.subr.bf16.mxu0 %v511
    %3641 = vmatpush1.bf16.msra.mxu0 %v510
    %3642 = vmatprep.mubr.bf16.mxu0 %v1011
    %3643 = vmatmul.mubr.bf16.gmra.mrb[0].mxu0 %v1010
    %v3644 = vpop.f32.mrb[0].mxu0
    %v3645 = vadd.f32 %v2786, %v3644
    %v3646 = vpop.f32.mrb[0].mxu0
    %v3647 = vadd.f32 %v2788, %v3646
    %v3648 = vpop.f32.mrb[0].mxu0
    %v3649 = vpop.f32.mrb[0].mxu0
    %3650 = vdwg.mxu0
    %3651 = vmatprep.subr.bf16.mxu0 %v520
    %3652 = vmatpush1.bf16.msra.mxu0 %v519
    %3653 = vmatprep.subr.bf16.mxu0 %v529
    %3654 = vmatpush1.bf16.msra.mxu0 %v528
    %3655 = vmatprep.subr.bf16.mxu0 %v538
    %3656 = vmatpush1.bf16.msra.mxu0 %v537
    %3657 = vmatprep.subr.bf16.mxu0 %v547
    %3658 = vmatpush1.bf16.msra.mxu0 %v546
    %3659 = vmatprep.subr.bf16.mxu0 %v556
    %3660 = vmatpush1.bf16.msra.mxu0 %v555
    %3661 = vmatprep.subr.bf16.mxu0 %v565
    %3662 = vmatpush1.bf16.msra.mxu0 %v564
    %3663 = vmatprep.subr.bf16.mxu0 %v574
    %3664 = vmatpush1.bf16.msra.mxu0 %v573
    %3665 = vmatprep.subr.bf16.mxu0 %v583
    %3666 = vmatpush1.bf16.msra.mxu0 %v582
    %3667 = vmatprep.subr.bf16.mxu0 %v592
    %3668 = vmatpush1.bf16.msra.mxu0 %v591
    %3669 = vmatprep.subr.bf16.mxu0 %v601
    %3670 = vmatpush1.bf16.msra.mxu0 %v600
    %3671 = vmatprep.subr.bf16.mxu0 %v610
    %3672 = vmatpush1.bf16.msra.mxu0 %v609
    %3673 = vmatprep.subr.bf16.mxu0 %v619
    %3674 = vmatpush1.bf16.msra.mxu0 %v618
    %3675 = vmatprep.subr.bf16.mxu0 %v628
    %3676 = vmatpush1.bf16.msra.mxu0 %v627
    %3677 = vmatprep.subr.bf16.mxu0 %v637
    %3678 = vmatpush1.bf16.msra.mxu0 %v636
    %3679 = vmatprep.subr.bf16.mxu0 %v646
    %3680 = vmatpush1.bf16.msra.mxu0 %v645
    %3681 = vmatprep.subr.bf16.mxu0 %v655
    %3682 = vmatpush1.bf16.msra.mxu0 %v654
    %3683 = vmatprep.mubr.bf16.mxu0 %v1013
    %3684 = vmatmul.mubr.bf16.gmra.mrb[0].mxu0 %v1012
    %v3685 = vpop.f32.mrb[0].mxu0
    %v3686 = vadd.f32 %v3645, %v3685
    %v3687 = vpop.f32.mrb[0].mxu0
    %v3688 = vadd.f32 %v3647, %v3687
    %v3689 = vpop.f32.mrb[0].mxu0
    %v3690 = vpop.f32.mrb[0].mxu0
    %3691 = vdwg.mxu0
    %3692 = vmatprep.subr.bf16.mxu0 %v664
    %3693 = vmatpush1.bf16.msra.mxu0 %v663
    %3694 = vmatprep.subr.bf16.mxu0 %v673
    %3695 = vmatpush1.bf16.msra.mxu0 %v672
    %3696 = vmatprep.subr.bf16.mxu0 %v682
    %3697 = vmatpush1.bf16.msra.mxu0 %v681
    %3698 = vmatprep.subr.bf16.mxu0 %v691
    %3699 = vmatpush1.bf16.msra.mxu0 %v690
    %3700 = vmatprep.subr.bf16.mxu0 %v700
    %3701 = vmatpush1.bf16.msra.mxu0 %v699
    %3702 = vmatprep.subr.bf16.mxu0 %v709
    %3703 = vmatpush1.bf16.msra.mxu0 %v708
    %3704 = vmatprep.subr.bf16.mxu0 %v718
    %3705 = vmatpush1.bf16.msra.mxu0 %v717
    %3706 = vmatprep.subr.bf16.mxu0 %v727
    %3707 = vmatpush1.bf16.msra.mxu0 %v726
    %3708 = vmatprep.subr.bf16.mxu0 %v736
    %3709 = vmatpush1.bf16.msra.mxu0 %v735
    %3710 = vmatprep.subr.bf16.mxu0 %v745
    %3711 = vmatpush1.bf16.msra.mxu0 %v744
    %3712 = vmatprep.subr.bf16.mxu0 %v754
    %3713 = vmatpush1.bf16.msra.mxu0 %v753
    %3714 = vmatprep.subr.bf16.mxu0 %v763
    %3715 = vmatpush1.bf16.msra.mxu0 %v762
    %3716 = vmatprep.subr.bf16.mxu0 %v772
    %3717 = vmatpush1.bf16.msra.mxu0 %v771
    %3718 = vmatprep.subr.bf16.mxu0 %v781
    %3719 = vmatpush1.bf16.msra.mxu0 %v780
    %3720 = vmatprep.subr.bf16.mxu0 %v790
    %3721 = vmatpush1.bf16.msra.mxu0 %v789
    %3722 = vmatprep.subr.bf16.mxu0 %v799
    %3723 = vmatpush1.bf16.msra.mxu0 %v798
    %3724 = vmatprep.mubr.bf16.mxu0 %v1015
    %3725 = vmatmul.mubr.bf16.gmra.mrb[0].mxu0 %v1014
    %v3726 = vpop.f32.mrb[0].mxu0
    %v3727 = vadd.f32 %v3686, %v3726
    %v3728 = vpop.f32.mrb[0].mxu0
    %v3729 = vadd.f32 %v3688, %v3728
    %v3730 = vpop.f32.mrb[0].mxu0
    %v3731 = vpop.f32.mrb[0].mxu0
    %3732 = vdwg.mxu0
    %3733 = vmatprep.subr.bf16.mxu0 %v808
    %3734 = vmatpush1.bf16.msra.mxu0 %v807
    %3735 = vmatprep.subr.bf16.mxu0 %v817
    %3736 = vmatpush1.bf16.msra.mxu0 %v816
    %3737 = vmatprep.subr.bf16.mxu0 %v826
    %3738 = vmatpush1.bf16.msra.mxu0 %v825
    %3739 = vmatprep.subr.bf16.mxu0 %v835
    %3740 = vmatpush1.bf16.msra.mxu0 %v834
    %3741 = vmatprep.subr.bf16.mxu0 %v844
    %3742 = vmatpush1.bf16.msra.mxu0 %v843
    %3743 = vmatprep.subr.bf16.mxu0 %v853
    %3744 = vmatpush1.bf16.msra.mxu0 %v852
    %3745 = vmatprep.subr.bf16.mxu0 %v862
    %3746 = vmatpush1.bf16.msra.mxu0 %v861
    %3747 = vmatprep.subr.bf16.mxu0 %v871
    %3748 = vmatpush1.bf16.msra.mxu0 %v870
    %3749 = vmatprep.subr.bf16.mxu0 %v880
    %3750 = vmatpush1.bf16.msra.mxu0 %v879
    %3751 = vmatprep.subr.bf16.mxu0 %v889
    %3752 = vmatpush1.bf16.msra.mxu0 %v888
    %3753 = vmatprep.subr.bf16.mxu0 %v898
    %3754 = vmatpush1.bf16.msra.mxu0 %v897
    %3755 = vmatprep.subr.bf16.mxu0 %v907
    %3756 = vmatpush1.bf16.msra.mxu0 %v906
    %3757 = vmatprep.subr.bf16.mxu0 %v916
    %3758 = vmatpush1.bf16.msra.mxu0 %v915
    %3759 = vmatprep.subr.bf16.mxu0 %v925
    %3760 = vmatpush1.bf16.msra.mxu0 %v924
    %3761 = vmatprep.subr.bf16.mxu0 %v934
    %3762 = vmatpush1.bf16.msra.mxu0 %v933
    %3763 = vmatprep.subr.bf16.mxu0 %v943
    %3764 = vmatpush1.bf16.msra.mxu0 %v942
    %3765 = vmatprep.mubr.bf16.mxu0 %v1017
    %3766 = vmatmul.mubr.bf16.gmra.mrb[0].mxu0 %v1016
    %v3767 = vpop.f32.mrb[0].mxu0
    %v3768 = vadd.f32 %v3727, %v3767
    %v3769 = vpop.f32.mrb[0].mxu0
    %v3770 = vadd.f32 %v3729, %v3769
    %v3771 = vpop.f32.mrb[0].mxu0
    %v3772 = vpop.f32.mrb[0].mxu0
    %3773 = vdwg.mxu0
    %3774 = vmatprep.subr.bf16.mxu0 %v952
    %3775 = vmatpush1.bf16.msra.mxu0 %v951
    %3776 = vmatprep.subr.bf16.mxu0 %v961
    %3777 = vmatpush1.bf16.msra.mxu0 %v960
    %3778 = vmatprep.subr.bf16.mxu0 0
    %3779 = vmatpush1.bf16.msra.mxu0 0
    %3780 = vmatprep.subr.bf16.mxu0 0
    %3781 = vmatpush1.bf16.msra.mxu0 0
    %3782 = vmatprep.subr.bf16.mxu0 0
    %3783 = vmatpush1.bf16.msra.mxu0 0
    %3784 = vmatprep.subr.bf16.mxu0 0
    %3785 = vmatpush1.bf16.msra.mxu0 0
    %3786 = vmatprep.subr.bf16.mxu0 0
    %3787 = vmatpush1.bf16.msra.mxu0 0
    %3788 = vmatprep.subr.bf16.mxu0 0
    %3789 = vmatpush1.bf16.msra.mxu0 0
    %3790 = vmatprep.subr.bf16.mxu0 0
    %3791 = vmatpush1.bf16.msra.mxu0 0
    %3792 = vmatprep.subr.bf16.mxu0 0
    %3793 = vmatpush1.bf16.msra.mxu0 0
    %3794 = vmatprep.subr.bf16.mxu0 0
    %3795 = vmatpush1.bf16.msra.mxu0 0
    %3796 = vmatprep.subr.bf16.mxu0 0
    %3797 = vmatpush1.bf16.msra.mxu0 0
    %3798 = vmatprep.subr.bf16.mxu0 0
    %3799 = vmatpush1.bf16.msra.mxu0 0
    %3800 = vmatprep.subr.bf16.mxu0 0
    %3801 = vmatpush1.bf16.msra.mxu0 0
    %3802 = vmatprep.subr.bf16.mxu0 0
    %3803 = vmatpush1.bf16.msra.mxu0 0
    %3804 = vmatprep.subr.bf16.mxu0 0
    %3805 = vmatpush1.bf16.msra.mxu0 0
    %3806 = vmatprep.mubr.bf16.mxu0 0
    %3807 = vmatmul.mubr.bf16.gmra.mrb[0].mxu0 %v2993
    %v3808 = vpop.f32.mrb[0].mxu0
    %v3809 = vadd.f32 %v3768, %v3808
    %v3810 = vpop.f32.mrb[0].mxu0
    %v3811 = vadd.f32 %v3770, %v3810
    %v3812 = vpop.f32.mrb[0].mxu0
    %v3813 = vpop.f32.mrb[0].mxu0
    %3814 = vdwg.mxu0
    %3815 = vmatprep.subr.bf16.mxu0 0
    %3816 = vmatpush1.bf16.msra.mxu0 %v377
    %3817 = vmatprep.subr.bf16.mxu0 0
    %3818 = vmatpush1.bf16.msra.mxu0 %v386
    %3819 = vmatprep.subr.bf16.mxu0 0
    %3820 = vmatpush1.bf16.msra.mxu0 %v395
    %3821 = vmatprep.subr.bf16.mxu0 0
    %3822 = vmatpush1.bf16.msra.mxu0 %v404
    %3823 = vmatprep.subr.bf16.mxu0 0
    %3824 = vmatpush1.bf16.msra.mxu0 %v413
    %3825 = vmatprep.subr.bf16.mxu0 0
    %3826 = vmatpush1.bf16.msra.mxu0 %v422
    %3827 = vmatprep.subr.bf16.mxu0 0
    %3828 = vmatpush1.bf16.msra.mxu0 %v431
    %3829 = vmatprep.subr.bf16.mxu0 0
    %3830 = vmatpush1.bf16.msra.mxu0 %v440
    %3831 = vmatprep.subr.bf16.mxu0 0
    %3832 = vmatpush1.bf16.msra.mxu0 %v449
    %3833 = vmatprep.subr.bf16.mxu0 0
    %3834 = vmatpush1.bf16.msra.mxu0 %v458
    %3835 = vmatprep.subr.bf16.mxu0 0
    %3836 = vmatpush1.bf16.msra.mxu0 %v467
    %3837 = vmatprep.subr.bf16.mxu0 0
    %3838 = vmatpush1.bf16.msra.mxu0 %v476
    %3839 = vmatprep.subr.bf16.mxu0 0
    %3840 = vmatpush1.bf16.msra.mxu0 %v485
    %3841 = vmatprep.subr.bf16.mxu0 0
    %3842 = vmatpush1.bf16.msra.mxu0 %v494
    %3843 = vmatprep.subr.bf16.mxu0 0
    %3844 = vmatpush1.bf16.msra.mxu0 %v503
    %3845 = vmatprep.subr.bf16.mxu0 0
    %3846 = vmatpush1.bf16.msra.mxu0 %v512
    %3847 = vmatprep.mubr.bf16.mxu0 %v1011
    %3848 = vmatmul.mubr.bf16.gmra.mrb[0].mxu0 %v1010
    %v3849 = vpop.f32.mrb[0].mxu0
    %v3850 = vadd.f32 %v2987, %v3849
    %v3851 = vpop.f32.mrb[0].mxu0
    %v3852 = vpop.f32.mrb[0].mxu0
    %v3853 = vpop.f32.mrb[0].mxu0
    %3854 = vdwg.mxu0
    %3855 = vmatprep.subr.bf16.mxu0 0
    %3856 = vmatpush1.bf16.msra.mxu0 %v521
    %3857 = vmatprep.subr.bf16.mxu0 0
    %3858 = vmatpush1.bf16.msra.mxu0 %v530
    %3859 = vmatprep.subr.bf16.mxu0 0
    %3860 = vmatpush1.bf16.msra.mxu0 %v539
    %3861 = vmatprep.subr.bf16.mxu0 0
    %3862 = vmatpush1.bf16.msra.mxu0 %v548
    %3863 = vmatprep.subr.bf16.mxu0 0
    %3864 = vmatpush1.bf16.msra.mxu0 %v557
    %3865 = vmatprep.subr.bf16.mxu0 0
    %3866 = vmatpush1.bf16.msra.mxu0 %v566
    %3867 = vmatprep.subr.bf16.mxu0 0
    %3868 = vmatpush1.bf16.msra.mxu0 %v575
    %3869 = vmatprep.subr.bf16.mxu0 0
    %3870 = vmatpush1.bf16.msra.mxu0 %v584
    %3871 = vmatprep.subr.bf16.mxu0 0
    %3872 = vmatpush1.bf16.msra.mxu0 %v593
    %3873 = vmatprep.subr.bf16.mxu0 0
    %3874 = vmatpush1.bf16.msra.mxu0 %v602
    %3875 = vmatprep.subr.bf16.mxu0 0
    %3876 = vmatpush1.bf16.msra.mxu0 %v611
    %3877 = vmatprep.subr.bf16.mxu0 0
    %3878 = vmatpush1.bf16.msra.mxu0 %v620
    %3879 = vmatprep.subr.bf16.mxu0 0
    %3880 = vmatpush1.bf16.msra.mxu0 %v629
    %3881 = vmatprep.subr.bf16.mxu0 0
    %3882 = vmatpush1.bf16.msra.mxu0 %v638
    %3883 = vmatprep.subr.bf16.mxu0 0
    %3884 = vmatpush1.bf16.msra.mxu0 %v647
    %3885 = vmatprep.subr.bf16.mxu0 0
    %3886 = vmatpush1.bf16.msra.mxu0 %v656
    %3887 = vmatprep.mubr.bf16.mxu0 %v1013
    %3888 = vmatmul.mubr.bf16.gmra.mrb[0].mxu0 %v1012
    %v3889 = vpop.f32.mrb[0].mxu0
    %v3890 = vadd.f32 %v3850, %v3889
    %v3891 = vpop.f32.mrb[0].mxu0
    %v3892 = vpop.f32.mrb[0].mxu0
    %v3893 = vpop.f32.mrb[0].mxu0
    %3894 = vdwg.mxu0
    %3895 = vmatprep.subr.bf16.mxu0 0
    %3896 = vmatpush1.bf16.msra.mxu0 %v665
    %3897 = vmatprep.subr.bf16.mxu0 0
    %3898 = vmatpush1.bf16.msra.mxu0 %v674
    %3899 = vmatprep.subr.bf16.mxu0 0
    %3900 = vmatpush1.bf16.msra.mxu0 %v683
    %3901 = vmatprep.subr.bf16.mxu0 0
    %3902 = vmatpush1.bf16.msra.mxu0 %v692
    %3903 = vmatprep.subr.bf16.mxu0 0
    %3904 = vmatpush1.bf16.msra.mxu0 %v701
    %3905 = vmatprep.subr.bf16.mxu0 0
    %3906 = vmatpush1.bf16.msra.mxu0 %v710
    %3907 = vmatprep.subr.bf16.mxu0 0
    %3908 = vmatpush1.bf16.msra.mxu0 %v719
    %3909 = vmatprep.subr.bf16.mxu0 0
    %3910 = vmatpush1.bf16.msra.mxu0 %v728
    %3911 = vmatprep.subr.bf16.mxu0 0
    %3912 = vmatpush1.bf16.msra.mxu0 %v737
    %3913 = vmatprep.subr.bf16.mxu0 0
    %3914 = vmatpush1.bf16.msra.mxu0 %v746
    %3915 = vmatprep.subr.bf16.mxu0 0
    %3916 = vmatpush1.bf16.msra.mxu0 %v755
    %3917 = vmatprep.subr.bf16.mxu0 0
    %3918 = vmatpush1.bf16.msra.mxu0 %v764
    %3919 = vmatprep.subr.bf16.mxu0 0
    %3920 = vmatpush1.bf16.msra.mxu0 %v773
    %3921 = vmatprep.subr.bf16.mxu0 0
    %3922 = vmatpush1.bf16.msra.mxu0 %v782
    %3923 = vmatprep.subr.bf16.mxu0 0
    %3924 = vmatpush1.bf16.msra.mxu0 %v791
    %3925 = vmatprep.subr.bf16.mxu0 0
    %3926 = vmatpush1.bf16.msra.mxu0 %v800
    %3927 = vmatprep.mubr.bf16.mxu0 %v1015
    %3928 = vmatmul.mubr.bf16.gmra.mrb[0].mxu0 %v1014
    %v3929 = vpop.f32.mrb[0].mxu0
    %v3930 = vadd.f32 %v3890, %v3929
    %v3931 = vpop.f32.mrb[0].mxu0
    %v3932 = vpop.f32.mrb[0].mxu0
    %v3933 = vpop.f32.mrb[0].mxu0
    %3934 = vdwg.mxu0
    %3935 = vmatprep.subr.bf16.mxu0 0
    %3936 = vmatpush1.bf16.msra.mxu0 %v809
    %3937 = vmatprep.subr.bf16.mxu0 0
    %3938 = vmatpush1.bf16.msra.mxu0 %v818
    %3939 = vmatprep.subr.bf16.mxu0 0
    %3940 = vmatpush1.bf16.msra.mxu0 %v827
    %3941 = vmatprep.subr.bf16.mxu0 0
    %3942 = vmatpush1.bf16.msra.mxu0 %v836
    %3943 = vmatprep.subr.bf16.mxu0 0
    %3944 = vmatpush1.bf16.msra.mxu0 %v845
    %3945 = vmatprep.subr.bf16.mxu0 0
    %3946 = vmatpush1.bf16.msra.mxu0 %v854
    %3947 = vmatprep.subr.bf16.mxu0 0
    %3948 = vmatpush1.bf16.msra.mxu0 %v863
    %3949 = vmatprep.subr.bf16.mxu0 0
    %3950 = vmatpush1.bf16.msra.mxu0 %v872
    %3951 = vmatprep.subr.bf16.mxu0 0
    %3952 = vmatpush1.bf16.msra.mxu0 %v881
    %3953 = vmatprep.subr.bf16.mxu0 0
    %3954 = vmatpush1.bf16.msra.mxu0 %v890
    %3955 = vmatprep.subr.bf16.mxu0 0
    %3956 = vmatpush1.bf16.msra.mxu0 %v899
    %3957 = vmatprep.subr.bf16.mxu0 0
    %3958 = vmatpush1.bf16.msra.mxu0 %v908
    %3959 = vmatprep.subr.bf16.mxu0 0
    %3960 = vmatpush1.bf16.msra.mxu0 %v917
    %3961 = vmatprep.subr.bf16.mxu0 0
    %3962 = vmatpush1.bf16.msra.mxu0 %v926
    %3963 = vmatprep.subr.bf16.mxu0 0
    %3964 = vmatpush1.bf16.msra.mxu0 %v935
    %3965 = vmatprep.subr.bf16.mxu0 0
    %3966 = vmatpush1.bf16.msra.mxu0 %v944
    %3967 = vmatprep.mubr.bf16.mxu0 %v1017
    %3968 = vmatmul.mubr.bf16.gmra.mrb[0].mxu0 %v1016
    %v3969 = vpop.f32.mrb[0].mxu0
    %v3970 = vadd.f32 %v3930, %v3969
    %v3971 = vpop.f32.mrb[0].mxu0
    %v3972 = vpop.f32.mrb[0].mxu0
    %v3973 = vpop.f32.mrb[0].mxu0
    %3974 = vdwg.mxu0
    %3975 = vmatprep.subr.bf16.mxu0 0
    %3976 = vmatpush1.bf16.msra.mxu0 %v953
    %3977 = vmatprep.subr.bf16.mxu0 0
    %3978 = vmatpush1.bf16.msra.mxu0 %v962
    %3979 = vmatprep.subr.bf16.mxu0 0
    %3980 = vmatpush1.bf16.msra.mxu0 0
    %3981 = vmatprep.subr.bf16.mxu0 0
    %3982 = vmatpush1.bf16.msra.mxu0 0
    %3983 = vmatprep.subr.bf16.mxu0 0
    %3984 = vmatpush1.bf16.msra.mxu0 0
    %3985 = vmatprep.subr.bf16.mxu0 0
    %3986 = vmatpush1.bf16.msra.mxu0 0
    %3987 = vmatprep.subr.bf16.mxu0 0
    %3988 = vmatpush1.bf16.msra.mxu0 0
    %3989 = vmatprep.subr.bf16.mxu0 0
    %3990 = vmatpush1.bf16.msra.mxu0 0
    %3991 = vmatprep.subr.bf16.mxu0 0
    %3992 = vmatpush1.bf16.msra.mxu0 0
    %3993 = vmatprep.subr.bf16.mxu0 0
    %3994 = vmatpush1.bf16.msra.mxu0 0
    %3995 = vmatprep.subr.bf16.mxu0 0
    %3996 = vmatpush1.bf16.msra.mxu0 0
    %3997 = vmatprep.subr.bf16.mxu0 0
    %3998 = vmatpush1.bf16.msra.mxu0 0
    %3999 = vmatprep.subr.bf16.mxu0 0
    %4000 = vmatpush1.bf16.msra.mxu0 0
    %4001 = vmatprep.subr.bf16.mxu0 0
    %4002 = vmatpush1.bf16.msra.mxu0 0
    %4003 = vmatprep.subr.bf16.mxu0 0
    %4004 = vmatpush1.bf16.msra.mxu0 0
    %4005 = vmatprep.subr.bf16.mxu0 0
    %4006 = vmatpush1.bf16.msra.mxu0 0
    %4007 = vmatprep.mubr.bf16.mxu0 0
    %4008 = vmatmul.mubr.bf16.gmra.mrb[0].mxu0 %v2993
    %v4009 = vpop.f32.mrb[0].mxu0
    %v4010 = vadd.f32 %v3970, %v4009
    %v4011 = vpop.f32.mrb[0].mxu0
    %v4012 = vpop.f32.mrb[0].mxu0
    %v4013 = vpop.f32.mrb[0].mxu0
    %4014 = vdwg.mxu0
    %v4024 = vrot.slane %v49, 3
    %v4025 = vrot.slane %v50, 3
    %v4026 = vrot.slane %v51, 3
    %v4027 = vrot.slane %v52, 3
    %v4028 = vrot.slane %v53, 3
    %v4029 = vrot.slane %v54, 3
    %v4030 = vrot.slane %v55, 3
    %v4031 = vrot.slane %v56, 3
    %v4032 = vrot.slane %v57, 3
    %v4042 = vmul.f32 %v3194, %v4024
    %v4043 = vmul.f32 %v3196, %v4025
    %v4044 = vmul.f32 %v3399, %v4026
    %v4045 = vmul.f32 %v3401, %v4027
    %v4046 = vmul.f32 %v3604, %v4028
    %v4047 = vmul.f32 %v3606, %v4029
    %v4048 = vmul.f32 %v3809, %v4030
    %v4049 = vmul.f32 %v3811, %v4031
    %v4050 = vmul.f32 %v4010, %v4032
    %v4051 = vadd.f32 %v4042, %v49
    %v4052 = vadd.f32 %v4043, %v50
    %v4053 = vadd.f32 %v4044, %v51
    %v4054 = vadd.f32 %v4045, %v52
    %v4055 = vadd.f32 %v4046, %v53
    %v4056 = vadd.f32 %v4047, %v54
    %v4057 = vadd.f32 %v4048, %v55
    %v4058 = vadd.f32 %v4049, %v56
    %v4059 = vadd.f32 %v4050, %v57
    %vm4060 = vcmask 1040384
    %v4061 = vsel %vm4060, %v4051, 0.0
    %v4062 = vsel %vm4060, %v4052, 0.0
    %v4063 = vadd.f32 %v4061, %v4062
    %v4064 = vsel %vm4060, %v4053, 0.0
    %v4065 = vadd.f32 %v4063, %v4064
    %v4066 = vsel %vm4060, %v4054, 0.0
    %v4067 = vadd.f32 %v4065, %v4066
    %v4068 = vsel %vm4060, %v4055, 0.0
    %v4069 = vadd.f32 %v4067, %v4068
    %v4070 = vsel %vm4060, %v4056, 0.0
    %v4071 = vadd.f32 %v4069, %v4070
    %v4072 = vsel %vm4060, %v4057, 0.0
    %v4073 = vadd.f32 %v4071, %v4072
    %v4074 = vsel %vm4060, %v4058, 0.0
    %v4075 = vadd.f32 %v4073, %v4074
    %vm4076 = vcmask 188416
    %v4077 = vsel %vm4076, %v4059, 0.0
    %v4078 = vadd.f32 %v4075, %v4077
    %4079 = vadd.xlane.f32.xlu0 %v4078
    %v4080 = vpop.xlane.xlu0 %4079
    %v4081 = vrcp.pop 1048.0
    %v4082 = vmul.f32 %v4080, %v4081
    %v4083 = vsub.f32 %v4051, %v4082
    %v4084 = vsub.f32 %v4052, %v4082
    %v4085 = vsub.f32 %v4053, %v4082
    %v4086 = vsub.f32 %v4054, %v4082
    %v4087 = vsub.f32 %v4055, %v4082
    %v4088 = vsub.f32 %v4056, %v4082
    %v4089 = vsub.f32 %v4057, %v4082
    %v4090 = vsub.f32 %v4058, %v4082
    %v4091 = vsub.f32 %v4059, %v4082
    %v4092 = vmul.f32 %v4083, %v4083
    %v4093 = vmul.f32 %v4084, %v4084
    %v4094 = vmul.f32 %v4085, %v4085
    %v4095 = vmul.f32 %v4086, %v4086
    %v4096 = vmul.f32 %v4087, %v4087
    %v4097 = vmul.f32 %v4088, %v4088
    %v4098 = vmul.f32 %v4089, %v4089
    %v4099 = vmul.f32 %v4090, %v4090
    %v4100 = vmul.f32 %v4091, %v4091
    %v4101 = vsel %vm4060, %v4092, 0.0
    %v4102 = vsel %vm4060, %v4093, 0.0
    %v4103 = vadd.f32 %v4101, %v4102
    %v4104 = vsel %vm4060, %v4094, 0.0
    %v4105 = vadd.f32 %v4103, %v4104
    %v4106 = vsel %vm4060, %v4095, 0.0
    %v4107 = vadd.f32 %v4105, %v4106
    %v4108 = vsel %vm4060, %v4096, 0.0
    %v4109 = vadd.f32 %v4107, %v4108
    %v4110 = vsel %vm4060, %v4097, 0.0
    %v4111 = vadd.f32 %v4109, %v4110
    %v4112 = vsel %vm4060, %v4098, 0.0
    %v4113 = vadd.f32 %v4111, %v4112
    %v4114 = vsel %vm4060, %v4099, 0.0
    %v4115 = vadd.f32 %v4113, %v4114
    %v4116 = vsel %vm4076, %v4100, 0.0
    %v4117 = vadd.f32 %v4115, %v4116
    %4118 = vadd.xlane.f32.xlu0 %v4117
    %v4119 = vpop.xlane.xlu0 %4118
    %v4120 = vmul.f32 %v4119, %v4081
    %v4121 = vadd.f32 %v4120, 1e-05
    %v4122 = vrsqrt.pop %v4121
    %v4123 = vmul.f32 %v4083, %v4122
    %v4124 = vmul.f32 %v4084, %v4122
    %v4125 = vmul.f32 %v4085, %v4122
    %v4126 = vmul.f32 %v4086, %v4122
    %v4127 = vmul.f32 %v4087, %v4122
    %v4128 = vmul.f32 %v4088, %v4122
    %v4129 = vmul.f32 %v4089, %v4122
    %v4130 = vmul.f32 %v4090, %v4122
    %v4131 = vmul.f32 %v4091, %v4122
    %v4132 = vrot.slane %v49, 1
    %v4133 = vrot.slane %v50, 1
    %v4134 = vrot.slane %v51, 1
    %v4135 = vrot.slane %v52, 1
    %v4136 = vrot.slane %v53, 1
    %v4137 = vrot.slane %v54, 1
    %v4138 = vrot.slane %v55, 1
    %v4139 = vrot.slane %v56, 1
    %v4140 = vrot.slane %v57, 1
    %v4150 = vmul.f32 %v4123, %v4132
    %v4151 = vmul.f32 %v4124, %v4133
    %v4152 = vmul.f32 %v4125, %v4134
    %v4153 = vmul.f32 %v4126, %v4135
    %v4154 = vmul.f32 %v4127, %v4136
    %v4155 = vmul.f32 %v4128, %v4137
    %v4156 = vmul.f32 %v4129, %v4138
    %v4157 = vmul.f32 %v4130, %v4139
    %v4158 = vmul.f32 %v4131, %v4140
    %v4159 = vrot.slane %v49, 2
    %v4160 = vrot.slane %v50, 2
    %v4161 = vrot.slane %v51, 2
    %v4162 = vrot.slane %v52, 2
    %v4163 = vrot.slane %v53, 2
    %v4164 = vrot.slane %v54, 2
    %v4165 = vrot.slane %v55, 2
    %v4166 = vrot.slane %v56, 2
    %v4167 = vrot.slane %v57, 2
    %v4177 = vadd.f32 %v4150, %v4159
    %v4178 = vadd.f32 %v4151, %v4160
    %v4179 = vadd.f32 %v4152, %v4161
    %v4180 = vadd.f32 %v4153, %v4162
    %v4181 = vadd.f32 %v4154, %v4163
    %v4182 = vadd.f32 %v4155, %v4164
    %v4183 = vadd.f32 %v4156, %v4165
    %v4184 = vadd.f32 %v4157, %v4166
    %v4185 = vadd.f32 %v4158, %v4167
    %v4186 = vmul.f32 %v4177, 0.5
    %v4187 = vmul.f32 %v4178, 0.5
    %v4188 = vmul.f32 %v4179, 0.5
    %v4189 = vmul.f32 %v4180, 0.5
    %v4190 = vmul.f32 %v4181, 0.5
    %v4191 = vmul.f32 %v4182, 0.5
    %v4192 = vmul.f32 %v4183, 0.5
    %v4193 = vmul.f32 %v4184, 0.5
    %v4194 = vmul.f32 %v4185, 0.5
    %v4195 = vmul.f32 %v4177, 0.044715
    %v4196 = vmul.f32 %v4178, 0.044715
    %v4197 = vmul.f32 %v4179, 0.044715
    %v4198 = vmul.f32 %v4180, 0.044715
    %v4199 = vmul.f32 %v4181, 0.044715
    %v4200 = vmul.f32 %v4182, 0.044715
    %v4201 = vmul.f32 %v4183, 0.044715
    %v4202 = vmul.f32 %v4184, 0.044715
    %v4203 = vmul.f32 %v4185, 0.044715
    %v4204 = vmul.f32 %v4195, %v4177
    %v4205 = vmul.f32 %v4196, %v4178
    %v4206 = vmul.f32 %v4197, %v4179
    %v4207 = vmul.f32 %v4198, %v4180
    %v4208 = vmul.f32 %v4199, %v4181
    %v4209 = vmul.f32 %v4200, %v4182
    %v4210 = vmul.f32 %v4201, %v4183
    %v4211 = vmul.f32 %v4202, %v4184
    %v4212 = vmul.f32 %v4203, %v4185
    %v4213 = vmul.f32 %v4204, %v4177
    %v4214 = vmul.f32 %v4205, %v4178
    %v4215 = vmul.f32 %v4206, %v4179
    %v4216 = vmul.f32 %v4207, %v4180
    %v4217 = vmul.f32 %v4208, %v4181
    %v4218 = vmul.f32 %v4209, %v4182
    %v4219 = vmul.f32 %v4210, %v4183
    %v4220 = vmul.f32 %v4211, %v4184
    %v4221 = vmul.f32 %v4212, %v4185
    %v4222 = vadd.f32 %v4177, %v4213
    %v4223 = vadd.f32 %v4178, %v4214
    %v4224 = vadd.f32 %v4179, %v4215
    %v4225 = vadd.f32 %v4180, %v4216
    %v4226 = vadd.f32 %v4181, %v4217
    %v4227 = vadd.f32 %v4182, %v4218
    %v4228 = vadd.f32 %v4183, %v4219
    %v4229 = vadd.f32 %v4184, %v4220
    %v4230 = vadd.f32 %v4185, %v4221
    %v4231 = vmul.f32 %v4222, 0.7978846
    %v4232 = vmul.f32 %v4223, 0.7978846
    %v4233 = vmul.f32 %v4224, 0.7978846
    %v4234 = vmul.f32 %v4225, 0.7978846
    %v4235 = vmul.f32 %v4226, 0.7978846
    %v4236 = vmul.f32 %v4227, 0.7978846
    %v4237 = vmul.f32 %v4228, 0.7978846
    %v4238 = vmul.f32 %v4229, 0.7978846
    %v4239 = vmul.f32 %v4230, 0.7978846
    %v4240 = vtanh.pop %v4231
    %v4241 = vtanh.pop %v4232
    %v4242 = vtanh.pop %v4233
    %v4243 = vtanh.pop %v4234
    %v4244 = vtanh.pop %v4235
    %v4245 = vtanh.pop %v4236
    %v4246 = vtanh.pop %v4237
    %v4247 = vtanh.pop %v4238
    %v4248 = vtanh.pop %v4239
    %v4249 = vadd.f32 %v4240, 1.0
    %v4250 = vadd.f32 %v4241, 1.0
    %v4251 = vadd.f32 %v4242, 1.0
    %v4252 = vadd.f32 %v4243, 1.0
    %v4253 = vadd.f32 %v4244, 1.0
    %v4254 = vadd.f32 %v4245, 1.0
    %v4255 = vadd.f32 %v4246, 1.0
    %v4256 = vadd.f32 %v4247, 1.0
    %v4257 = vadd.f32 %v4248, 1.0
    %v4258 = vmul.f32 %v4186, %v4249
    %v4259 = vmul.f32 %v4187, %v4250
    %v4260 = vmul.f32 %v4188, %v4251
    %v4261 = vmul.f32 %v4189, %v4252
    %v4262 = vmul.f32 %v4190, %v4253
    %v4263 = vmul.f32 %v4191, %v4254
    %v4264 = vmul.f32 %v4192, %v4255
    %v4265 = vmul.f32 %v4193, %v4256
    %v4266 = vmul.f32 %v4194, %v4257
    %v4267 = vld [vmem:[%s6] sm:$0xff]
    %v4268 = vld [vmem:[%s6 + $0x8] sm:$0xff]
    %v4269 = vld [vmem:[%s6 + $0x10] sm:$0xff]
    %v4270 = vld [vmem:[%s6 + $0x18] sm:$0xff]
    %v4271 = vld [vmem:[%s6 + $0x20] sm:$0xff]
    %v4272 = vld [vmem:[%s6 + $0x28] sm:$0xff]
    %v4273 = vld [vmem:[%s6 + $0x30] sm:$0xff]
    %v4274 = vld [vmem:[%s6 + $0x38] sm:$0xff]
    %v4275 = vld [vmem:[%s6 + $0x40] sm:$0xff]
    %v4276 = vld [vmem:[%s6 + $0x48] sm:$0xff]
    %v4277 = vld [vmem:[%s6 + $0x50] sm:$0xff]
    %v4278 = vld [vmem:[%s6 + $0x58] sm:$0xff]
    %v4279 = vld [vmem:[%s6 + $0x60] sm:$0xff]
    %v4280 = vld [vmem:[%s6 + $0x68] sm:$0xff]
    %v4281 = vld [vmem:[%s6 + $0x70] sm:$0xff]
    %v4282 = vld [vmem:[%s6 + $0x78] sm:$0xff]
    %v4283 = vld [vmem:[%s6 + $0x80] sm:$0xff]
    %v4284 = vld [vmem:[%s6 + $0x88] sm:$0xff]
    %v4285 = vld [vmem:[%s6 + $0x90] sm:$0xff]
    %v4286 = vld [vmem:[%s6 + $0x98] sm:$0xff]
    %v4287 = vld [vmem:[%s6 + $0xa0] sm:$0xff]
    %v4288 = vld [vmem:[%s6 + $0xa8] sm:$0xff]
    %v4289 = vld [vmem:[%s6 + $0xb0] sm:$0xff]
    %v4290 = vld [vmem:[%s6 + $0xb8] sm:$0xff]
    %v4291 = vld [vmem:[%s6 + $0xc0] sm:$0xff]
    %v4292 = vld [vmem:[%s6 + $0xc8] sm:$0xff]
    %v4293 = vld [vmem:[%s6 + $0xd0] sm:$0xff]
    %v4294 = vld [vmem:[%s6 + $0xd8] sm:$0xff]
    %v4295 = vld [vmem:[%s6 + $0xe0] sm:$0xff]
    %v4296 = vld [vmem:[%s6 + $0xe8] sm:$0xff]
    %v4297 = vld [vmem:[%s6 + $0xf0] sm:$0xff]
    %v4298 = vld [vmem:[%s6 + $0xf8] sm:$0xff]
    %v4299 = vld [vmem:[%s6 + $0x100] sm:$0xff]
    %v4300 = vld [vmem:[%s6 + $0x108] sm:$0xff]
    %v4301 = vld [vmem:[%s6 + $0x110] sm:$0xff]
    %v4302 = vld [vmem:[%s6 + $0x118] sm:$0xff]
    %v4303 = vld [vmem:[%s6 + $0x120] sm:$0xff]
    %v4304 = vld [vmem:[%s6 + $0x128] sm:$0xff]
    %v4305 = vld [vmem:[%s6 + $0x130] sm:$0xff]
    %v4306 = vld [vmem:[%s6 + $0x138] sm:$0xff]
    %v4307 = vld [vmem:[%s6 + $0x140] sm:$0xff]
    %v4308 = vld [vmem:[%s6 + $0x148] sm:$0xff]
    %v4309 = vld [vmem:[%s6 + $0x150] sm:$0xff]
    %v4310 = vld [vmem:[%s6 + $0x158] sm:$0xff]
    %v4311 = vld [vmem:[%s6 + $0x160] sm:$0xff]
    %v4312 = vld [vmem:[%s6 + $0x168] sm:$0xff]
    %v4313 = vld [vmem:[%s6 + $0x170] sm:$0xff]
    %v4314 = vld [vmem:[%s6 + $0x178] sm:$0xff]
    %v4315 = vld [vmem:[%s6 + $0x180] sm:$0xff]
    %v4316 = vld [vmem:[%s6 + $0x188] sm:$0xff]
    %v4317 = vld [vmem:[%s6 + $0x190] sm:$0xff]
    %v4318 = vld [vmem:[%s6 + $0x198] sm:$0xff]
    %v4319 = vld [vmem:[%s6 + $0x1a0] sm:$0xff]
    %v4320 = vld [vmem:[%s6 + $0x1a8] sm:$0xff]
    %v4321 = vld [vmem:[%s6 + $0x1b0] sm:$0xff]
    %v4322 = vld [vmem:[%s6 + $0x1b8] sm:$0xff]
    %v4323 = vld [vmem:[%s6 + $0x1c0] sm:$0xff]
    %v4324 = vld [vmem:[%s6 + $0x1c8] sm:$0xff]
    %v4325 = vld [vmem:[%s6 + $0x1d0] sm:$0xff]
    %v4326 = vld [vmem:[%s6 + $0x1d8] sm:$0xff]
    %v4327 = vld [vmem:[%s6 + $0x1e0] sm:$0xff]
    %v4328 = vld [vmem:[%s6 + $0x1e8] sm:$0xff]
    %v4329 = vld [vmem:[%s6 + $0x1f0] sm:$0xff]
    %v4330 = vld [vmem:[%s6 + $0x1f8] sm:$0xff]
    %v4331 = vld [vmem:[%s6 + $0x200] sm:$0xff]
    %v4332 = vld [vmem:[%s6 + $0x208] sm:$0xff]
    %v4333 = vld [vmem:[%s6 + $0x210] sm:$0xff]
    %v4334 = vld [vmem:[%s6 + $0x218] sm:$0xff]
    %v4335 = vld [vmem:[%s6 + $0x220] sm:$0xff]
    %v4336 = vld [vmem:[%s6 + $0x228] sm:$0xff]
    %v4337 = vld [vmem:[%s6 + $0x230] sm:$0xff]
    %v4338 = vld [vmem:[%s6 + $0x238] sm:$0xff]
    %v4339 = vld [vmem:[%s6 + $0x240] sm:$0xff]
    %v4340 = vld [vmem:[%s6 + $0x248] sm:$0xff]
    %v4341 = vld [vmem:[%s6 + $0x250] sm:$0xff]
    %v4342 = vld [vmem:[%s6 + $0x258] sm:$0xff]
    %v4343 = vld [vmem:[%s6 + $0x260] sm:$0xff]
    %v4344 = vld [vmem:[%s6 + $0x268] sm:$0xff]
    %v4345 = vld [vmem:[%s6 + $0x270] sm:$0xff]
    %v4346 = vld [vmem:[%s6 + $0x278] sm:$0xff]
    %v4347 = vld [vmem:[%s6 + $0x280] sm:$0xff]
    %v4348 = vld [vmem:[%s6 + $0x288] sm:$0xff]
    %v4349 = vld [vmem:[%s6 + $0x290] sm:$0xff]
    %v4350 = vld [vmem:[%s6 + $0x298] sm:$0xff]
    %v4351 = vld [vmem:[%s6 + $0x2a0] sm:$0xff]
    %v4352 = vld [vmem:[%s6 + $0x2a8] sm:$0xff]
    %v4353 = vld [vmem:[%s6 + $0x2b0] sm:$0xff]
    %v4354 = vld [vmem:[%s6 + $0x2b8] sm:$0xff]
    %v4355 = vld [vmem:[%s6 + $0x2c0] sm:$0xff]
    %v4356 = vld [vmem:[%s6 + $0x2c8] sm:$0xff]
    %v4357 = vld [vmem:[%s6 + $0x2d0] sm:$0xff]
    %v4358 = vld [vmem:[%s6 + $0x2d8] sm:$0xff]
    %v4359 = vld [vmem:[%s6 + $0x2e0] sm:$0xff]
    %v4360 = vld [vmem:[%s6 + $0x2e8] sm:$0xff]
    %v4361 = vld [vmem:[%s6 + $0x2f0] sm:$0xff]
    %v4362 = vld [vmem:[%s6 + $0x2f8] sm:$0xff]
    %v4363 = vld [vmem:[%s6 + $0x300] sm:$0xff]
    %v4364 = vld [vmem:[%s6 + $0x308] sm:$0xff]
    %v4365 = vld [vmem:[%s6 + $0x310] sm:$0xff]
    %v4366 = vld [vmem:[%s6 + $0x318] sm:$0xff]
    %v4367 = vld [vmem:[%s6 + $0x320] sm:$0xff]
    %v4368 = vld [vmem:[%s6 + $0x328] sm:$0xff]
    %v4369 = vld [vmem:[%s6 + $0x330] sm:$0xff]
    %v4370 = vld [vmem:[%s6 + $0x338] sm:$0xff]
    %v4371 = vld [vmem:[%s6 + $0x340] sm:$0xff]
    %v4372 = vld [vmem:[%s6 + $0x348] sm:$0xff]
    %v4373 = vld [vmem:[%s6 + $0x350] sm:$0xff]
    %v4374 = vld [vmem:[%s6 + $0x358] sm:$0xff]
    %v4375 = vld [vmem:[%s6 + $0x360] sm:$0xff]
    %v4376 = vld [vmem:[%s6 + $0x368] sm:$0xff]
    %v4377 = vld [vmem:[%s6 + $0x370] sm:$0xff]
    %v4378 = vld [vmem:[%s6 + $0x378] sm:$0xff]
    %v4379 = vld [vmem:[%s6 + $0x380] sm:$0xff]
    %v4380 = vld [vmem:[%s6 + $0x388] sm:$0xff]
    %v4381 = vld [vmem:[%s6 + $0x390] sm:$0xff]
    %v4382 = vld [vmem:[%s6 + $0x398] sm:$0xff]
    %v4383 = vld [vmem:[%s6 + $0x3a0] sm:$0xff]
    %v4384 = vld [vmem:[%s6 + $0x3a8] sm:$0xff]
    %v4385 = vld [vmem:[%s6 + $0x3b0] sm:$0xff]
    %v4386 = vld [vmem:[%s6 + $0x3b8] sm:$0xff]
    %v4387 = vld [vmem:[%s6 + $0x3c0] sm:$0xff]
    %v4388 = vld [vmem:[%s6 + $0x3c8] sm:$0xff]
    %v4389 = vld [vmem:[%s6 + $0x3d0] sm:$0xff]
    %v4390 = vld [vmem:[%s6 + $0x3d8] sm:$0xff]
    %v4391 = vld [vmem:[%s6 + $0x3e0] sm:$0xff]
    %v4392 = vld [vmem:[%s6 + $0x3e8] sm:$0xff]
    %v4393 = vld [vmem:[%s6 + $0x3f0] sm:$0xff]
    %v4394 = vld [vmem:[%s6 + $0x3f8] sm:$0xff]
    %v4395 = vld [vmem:[%s6 + $0x400] sm:$0xff]
    %v4396 = vld [vmem:[%s6 + $0x408] sm:$0xff]
    %v4397 = vld [vmem:[%s6 + $0x410] sm:$0xff]
    %v4398 = vunpack.c.l.s8.bf16 %v4267
    %v4399 = vunpack.c.h.s8.bf16 %v4267
    %v4400 = vunpack.c.l.s8.bf16 %v4268
    %v4401 = vunpack.c.h.s8.bf16 %v4268
    %v4402 = vunpack.c.l.s8.bf16 %v4269
    %v4403 = vunpack.c.h.s8.bf16 %v4269
    %v4404 = vunpack.c.l.s8.bf16 %v4270
    %v4405 = vunpack.c.h.s8.bf16 %v4270
    %v4406 = vunpack.c.l.s8.bf16 %v4271
    %v4407 = vunpack.c.h.s8.bf16 %v4271
    %v4408 = vunpack.c.l.s8.bf16 %v4272
    %v4409 = vunpack.c.h.s8.bf16 %v4272
    %v4410 = vunpack.c.l.s8.bf16 %v4273
    %v4411 = vunpack.c.h.s8.bf16 %v4273
    %v4412 = vunpack.c.l.s8.bf16 %v4274
    %v4413 = vunpack.c.h.s8.bf16 %v4274
    %v4414 = vunpack.c.l.s8.bf16 %v4275
    %v4415 = vunpack.c.h.s8.bf16 %v4275
    %v4416 = vunpack.c.l.s8.bf16 %v4276
    %v4417 = vunpack.c.h.s8.bf16 %v4276
    %v4418 = vunpack.c.l.s8.bf16 %v4277
    %v4419 = vunpack.c.h.s8.bf16 %v4277
    %v4420 = vunpack.c.l.s8.bf16 %v4278
    %v4421 = vunpack.c.h.s8.bf16 %v4278
    %v4422 = vunpack.c.l.s8.bf16 %v4279
    %v4423 = vunpack.c.h.s8.bf16 %v4279
    %v4424 = vunpack.c.l.s8.bf16 %v4280
    %v4425 = vunpack.c.h.s8.bf16 %v4280
    %v4426 = vunpack.c.l.s8.bf16 %v4281
    %v4427 = vunpack.c.h.s8.bf16 %v4281
    %v4428 = vunpack.c.l.s8.bf16 %v4282
    %v4429 = vunpack.c.h.s8.bf16 %v4282
    %v4430 = vunpack.c.l.s8.bf16 %v4283
    %v4431 = vunpack.c.h.s8.bf16 %v4283
    %v4432 = vunpack.c.l.s8.bf16 %v4284
    %v4433 = vunpack.c.h.s8.bf16 %v4284
    %v4434 = vunpack.c.l.s8.bf16 %v4285
    %v4435 = vunpack.c.h.s8.bf16 %v4285
    %v4436 = vunpack.c.l.s8.bf16 %v4286
    %v4437 = vunpack.c.h.s8.bf16 %v4286
    %v4438 = vunpack.c.l.s8.bf16 %v4287
    %v4439 = vunpack.c.h.s8.bf16 %v4287
    %v4440 = vunpack.c.l.s8.bf16 %v4288
    %v4441 = vunpack.c.h.s8.bf16 %v4288
    %v4442 = vunpack.c.l.s8.bf16 %v4289
    %v4443 = vunpack.c.h.s8.bf16 %v4289
    %v4444 = vunpack.c.l.s8.bf16 %v4290
    %v4445 = vunpack.c.h.s8.bf16 %v4290
    %v4446 = vunpack.c.l.s8.bf16 %v4291
    %v4447 = vunpack.c.h.s8.bf16 %v4291
    %v4448 = vunpack.c.l.s8.bf16 %v4292
    %v4449 = vunpack.c.h.s8.bf16 %v4292
    %v4450 = vunpack.c.l.s8.bf16 %v4293
    %v4451 = vunpack.c.h.s8.bf16 %v4293
    %v4452 = vunpack.c.l.s8.bf16 %v4294
    %v4453 = vunpack.c.h.s8.bf16 %v4294
    %v4454 = vunpack.c.l.s8.bf16 %v4295
    %v4455 = vunpack.c.h.s8.bf16 %v4295
    %v4456 = vunpack.c.l.s8.bf16 %v4296
    %v4457 = vunpack.c.h.s8.bf16 %v4296
    %v4458 = vunpack.c.l.s8.bf16 %v4297
    %v4459 = vunpack.c.h.s8.bf16 %v4297
    %v4460 = vunpack.c.l.s8.bf16 %v4298
    %v4461 = vunpack.c.h.s8.bf16 %v4298
    %v4462 = vunpack.c.l.s8.bf16 %v4299
    %v4463 = vunpack.c.h.s8.bf16 %v4299
    %v4464 = vunpack.c.l.s8.bf16 %v4300
    %v4465 = vunpack.c.h.s8.bf16 %v4300
    %v4466 = vunpack.c.l.s8.bf16 %v4301
    %v4467 = vunpack.c.h.s8.bf16 %v4301
    %v4468 = vunpack.c.l.s8.bf16 %v4302
    %v4469 = vunpack.c.h.s8.bf16 %v4302
    %v4470 = vunpack.c.l.s8.bf16 %v4303
    %v4471 = vunpack.c.h.s8.bf16 %v4303
    %v4472 = vunpack.c.l.s8.bf16 %v4304
    %v4473 = vunpack.c.h.s8.bf16 %v4304
    %v4474 = vunpack.c.l.s8.bf16 %v4305
    %v4475 = vunpack.c.h.s8.bf16 %v4305
    %v4476 = vunpack.c.l.s8.bf16 %v4306
    %v4477 = vunpack.c.h.s8.bf16 %v4306
    %v4478 = vunpack.c.l.s8.bf16 %v4307
    %v4479 = vunpack.c.h.s8.bf16 %v4307
    %v4480 = vunpack.c.l.s8.bf16 %v4308
    %v4481 = vunpack.c.h.s8.bf16 %v4308
    %v4482 = vunpack.c.l.s8.bf16 %v4309
    %v4483 = vunpack.c.h.s8.bf16 %v4309
    %v4484 = vunpack.c.l.s8.bf16 %v4310
    %v4485 = vunpack.c.h.s8.bf16 %v4310
    %v4486 = vunpack.c.l.s8.bf16 %v4311
    %v4487 = vunpack.c.h.s8.bf16 %v4311
    %v4488 = vunpack.c.l.s8.bf16 %v4312
    %v4489 = vunpack.c.h.s8.bf16 %v4312
    %v4490 = vunpack.c.l.s8.bf16 %v4313
    %v4491 = vunpack.c.h.s8.bf16 %v4313
    %v4492 = vunpack.c.l.s8.bf16 %v4314
    %v4493 = vunpack.c.h.s8.bf16 %v4314
    %v4494 = vunpack.c.l.s8.bf16 %v4315
    %v4495 = vunpack.c.h.s8.bf16 %v4315
    %v4496 = vunpack.c.l.s8.bf16 %v4316
    %v4497 = vunpack.c.h.s8.bf16 %v4316
    %v4498 = vunpack.c.l.s8.bf16 %v4317
    %v4499 = vunpack.c.h.s8.bf16 %v4317
    %v4500 = vunpack.c.l.s8.bf16 %v4318
    %v4501 = vunpack.c.h.s8.bf16 %v4318
    %v4502 = vunpack.c.l.s8.bf16 %v4319
    %v4503 = vunpack.c.h.s8.bf16 %v4319
    %v4504 = vunpack.c.l.s8.bf16 %v4320
    %v4505 = vunpack.c.h.s8.bf16 %v4320
    %v4506 = vunpack.c.l.s8.bf16 %v4321
    %v4507 = vunpack.c.h.s8.bf16 %v4321
    %v4508 = vunpack.c.l.s8.bf16 %v4322
    %v4509 = vunpack.c.h.s8.bf16 %v4322
    %v4510 = vunpack.c.l.s8.bf16 %v4323
    %v4511 = vunpack.c.h.s8.bf16 %v4323
    %v4512 = vunpack.c.l.s8.bf16 %v4324
    %v4513 = vunpack.c.h.s8.bf16 %v4324
    %v4514 = vunpack.c.l.s8.bf16 %v4325
    %v4515 = vunpack.c.h.s8.bf16 %v4325
    %v4516 = vunpack.c.l.s8.bf16 %v4326
    %v4517 = vunpack.c.h.s8.bf16 %v4326
    %v4518 = vunpack.c.l.s8.bf16 %v4327
    %v4519 = vunpack.c.h.s8.bf16 %v4327
    %v4520 = vunpack.c.l.s8.bf16 %v4328
    %v4521 = vunpack.c.h.s8.bf16 %v4328
    %v4522 = vunpack.c.l.s8.bf16 %v4329
    %v4523 = vunpack.c.h.s8.bf16 %v4329
    %v4524 = vunpack.c.l.s8.bf16 %v4330
    %v4525 = vunpack.c.h.s8.bf16 %v4330
    %v4526 = vunpack.c.l.s8.bf16 %v4331
    %v4527 = vunpack.c.h.s8.bf16 %v4331
    %v4528 = vunpack.c.l.s8.bf16 %v4332
    %v4529 = vunpack.c.h.s8.bf16 %v4332
    %v4530 = vunpack.c.l.s8.bf16 %v4333
    %v4531 = vunpack.c.h.s8.bf16 %v4333
    %v4532 = vunpack.c.l.s8.bf16 %v4334
    %v4533 = vunpack.c.h.s8.bf16 %v4334
    %v4534 = vunpack.c.l.s8.bf16 %v4335
    %v4535 = vunpack.c.h.s8.bf16 %v4335
    %v4536 = vunpack.c.l.s8.bf16 %v4336
    %v4537 = vunpack.c.h.s8.bf16 %v4336
    %v4538 = vunpack.c.l.s8.bf16 %v4337
    %v4539 = vunpack.c.h.s8.bf16 %v4337
    %v4540 = vunpack.c.l.s8.bf16 %v4338
    %v4541 = vunpack.c.h.s8.bf16 %v4338
    %v4542 = vunpack.c.l.s8.bf16 %v4339
    %v4543 = vunpack.c.h.s8.bf16 %v4339
    %v4544 = vunpack.c.l.s8.bf16 %v4340
    %v4545 = vunpack.c.h.s8.bf16 %v4340
    %v4546 = vunpack.c.l.s8.bf16 %v4341
    %v4547 = vunpack.c.h.s8.bf16 %v4341
    %v4548 = vunpack.c.l.s8.bf16 %v4342
    %v4549 = vunpack.c.h.s8.bf16 %v4342
    %v4550 = vunpack.c.l.s8.bf16 %v4343
    %v4551 = vunpack.c.h.s8.bf16 %v4343
    %v4552 = vunpack.c.l.s8.bf16 %v4344
    %v4553 = vunpack.c.h.s8.bf16 %v4344
    %v4554 = vunpack.c.l.s8.bf16 %v4345
    %v4555 = vunpack.c.h.s8.bf16 %v4345
    %v4556 = vunpack.c.l.s8.bf16 %v4346
    %v4557 = vunpack.c.h.s8.bf16 %v4346
    %v4558 = vunpack.c.l.s8.bf16 %v4347
    %v4559 = vunpack.c.h.s8.bf16 %v4347
    %v4560 = vunpack.c.l.s8.bf16 %v4348
    %v4561 = vunpack.c.h.s8.bf16 %v4348
    %v4562 = vunpack.c.l.s8.bf16 %v4349
    %v4563 = vunpack.c.h.s8.bf16 %v4349
    %v4564 = vunpack.c.l.s8.bf16 %v4350
    %v4565 = vunpack.c.h.s8.bf16 %v4350
    %v4566 = vunpack.c.l.s8.bf16 %v4351
    %v4567 = vunpack.c.h.s8.bf16 %v4351
    %v4568 = vunpack.c.l.s8.bf16 %v4352
    %v4569 = vunpack.c.h.s8.bf16 %v4352
    %v4570 = vunpack.c.l.s8.bf16 %v4353
    %v4571 = vunpack.c.h.s8.bf16 %v4353
    %v4572 = vunpack.c.l.s8.bf16 %v4354
    %v4573 = vunpack.c.h.s8.bf16 %v4354
    %v4574 = vunpack.c.l.s8.bf16 %v4355
    %v4575 = vunpack.c.h.s8.bf16 %v4355
    %v4576 = vunpack.c.l.s8.bf16 %v4356
    %v4577 = vunpack.c.h.s8.bf16 %v4356
    %v4578 = vunpack.c.l.s8.bf16 %v4357
    %v4579 = vunpack.c.h.s8.bf16 %v4357
    %v4580 = vunpack.c.l.s8.bf16 %v4358
    %v4581 = vunpack.c.h.s8.bf16 %v4358
    %v4582 = vunpack.c.l.s8.bf16 %v4359
    %v4583 = vunpack.c.h.s8.bf16 %v4359
    %v4584 = vunpack.c.l.s8.bf16 %v4360
    %v4585 = vunpack.c.h.s8.bf16 %v4360
    %v4586 = vunpack.c.l.s8.bf16 %v4361
    %v4587 = vunpack.c.h.s8.bf16 %v4361
    %v4588 = vunpack.c.l.s8.bf16 %v4362
    %v4589 = vunpack.c.h.s8.bf16 %v4362
    %v4590 = vunpack.c.l.s8.bf16 %v4363
    %v4591 = vunpack.c.h.s8.bf16 %v4363
    %v4592 = vunpack.c.l.s8.bf16 %v4364
    %v4593 = vunpack.c.h.s8.bf16 %v4364
    %v4594 = vunpack.c.l.s8.bf16 %v4365
    %v4595 = vunpack.c.h.s8.bf16 %v4365
    %v4596 = vunpack.c.l.s8.bf16 %v4366
    %v4597 = vunpack.c.h.s8.bf16 %v4366
    %v4598 = vunpack.c.l.s8.bf16 %v4367
    %v4599 = vunpack.c.h.s8.bf16 %v4367
    %v4600 = vunpack.c.l.s8.bf16 %v4368
    %v4601 = vunpack.c.h.s8.bf16 %v4368
    %v4602 = vunpack.c.l.s8.bf16 %v4369
    %v4603 = vunpack.c.h.s8.bf16 %v4369
    %v4604 = vunpack.c.l.s8.bf16 %v4370
    %v4605 = vunpack.c.h.s8.bf16 %v4370
    %v4606 = vunpack.c.l.s8.bf16 %v4371
    %v4607 = vunpack.c.h.s8.bf16 %v4371
    %v4608 = vunpack.c.l.s8.bf16 %v4372
    %v4609 = vunpack.c.h.s8.bf16 %v4372
    %v4610 = vunpack.c.l.s8.bf16 %v4373
    %v4611 = vunpack.c.h.s8.bf16 %v4373
    %v4612 = vunpack.c.l.s8.bf16 %v4374
    %v4613 = vunpack.c.h.s8.bf16 %v4374
    %v4614 = vunpack.c.l.s8.bf16 %v4375
    %v4615 = vunpack.c.h.s8.bf16 %v4375
    %v4616 = vunpack.c.l.s8.bf16 %v4376
    %v4617 = vunpack.c.h.s8.bf16 %v4376
    %v4618 = vunpack.c.l.s8.bf16 %v4377
    %v4619 = vunpack.c.h.s8.bf16 %v4377
    %v4620 = vunpack.c.l.s8.bf16 %v4378
    %v4621 = vunpack.c.h.s8.bf16 %v4378
    %v4622 = vunpack.c.l.s8.bf16 %v4379
    %v4623 = vunpack.c.h.s8.bf16 %v4379
    %v4624 = vunpack.c.l.s8.bf16 %v4380
    %v4625 = vunpack.c.h.s8.bf16 %v4380
    %v4626 = vunpack.c.l.s8.bf16 %v4381
    %v4627 = vunpack.c.h.s8.bf16 %v4381
    %v4628 = vunpack.c.l.s8.bf16 %v4382
    %v4629 = vunpack.c.h.s8.bf16 %v4382
    %v4630 = vunpack.c.l.s8.bf16 %v4383
    %v4631 = vunpack.c.h.s8.bf16 %v4383
    %v4632 = vunpack.c.l.s8.bf16 %v4384
    %v4633 = vunpack.c.h.s8.bf16 %v4384
    %v4634 = vunpack.c.l.s8.bf16 %v4385
    %v4635 = vunpack.c.h.s8.bf16 %v4385
    %v4636 = vunpack.c.l.s8.bf16 %v4386
    %v4637 = vunpack.c.h.s8.bf16 %v4386
    %v4638 = vunpack.c.l.s8.bf16 %v4387
    %v4639 = vunpack.c.h.s8.bf16 %v4387
    %v4640 = vunpack.c.l.s8.bf16 %v4388
    %v4641 = vunpack.c.h.s8.bf16 %v4388
    %v4642 = vunpack.c.l.s8.bf16 %v4389
    %v4643 = vunpack.c.h.s8.bf16 %v4389
    %v4644 = vunpack.c.l.s8.bf16 %v4390
    %v4645 = vunpack.c.h.s8.bf16 %v4390
    %v4646 = vunpack.c.l.s8.bf16 %v4391
    %v4647 = vunpack.c.h.s8.bf16 %v4391
    %v4648 = vunpack.c.l.s8.bf16 %v4392
    %v4649 = vunpack.c.h.s8.bf16 %v4392
    %v4650 = vunpack.c.l.s8.bf16 %v4393
    %v4651 = vunpack.c.h.s8.bf16 %v4393
    %v4652 = vunpack.c.l.s8.bf16 %v4394
    %v4653 = vunpack.c.h.s8.bf16 %v4394
    %v4654 = vunpack.c.l.s8.bf16 %v4395
    %v4655 = vunpack.c.h.s8.bf16 %v4395
    %v4656 = vunpack.c.l.s8.bf16 %v4396
    %v4657 = vunpack.c.h.s8.bf16 %v4396
    %v4658 = vunpack.c.l.s8.bf16 %v4397
    %v4659 = vunpack.c.h.s8.bf16 %v4397
    %v4660 = vpack.c.bf16 %v4258, %v4258
    %v4661 = vpack.c.bf16 %v4259, %v4259
    %v4662 = vpack.c.bf16 %v4260, %v4260
    %v4663 = vpack.c.bf16 %v4261, %v4261
    %v4664 = vpack.c.bf16 %v4262, %v4262
    %v4665 = vpack.c.bf16 %v4263, %v4263
    %v4666 = vpack.c.bf16 %v4264, %v4264
    %v4667 = vpack.c.bf16 %v4265, %v4265
    %v4668 = vpack.c.bf16 %v4266, %v4266
    %v4931 = vunpack.c.l.b16 %v4398
    %v4932 = vunpack.c.h.b16 %v4398
    %v4933 = vunpack.c.l.b16 %v4399
    %v4934 = vunpack.c.h.b16 %v4399
    %v4935 = vunpack.c.l.b16 %v4400
    %v4936 = vunpack.c.h.b16 %v4400
    %v4937 = vunpack.c.l.b16 %v4401
    %v4938 = vunpack.c.h.b16 %v4401
    %v4939 = vunpack.c.l.b16 %v4402
    %v4940 = vunpack.c.h.b16 %v4402
    %v4941 = vunpack.c.l.b16 %v4403
    %v4942 = vunpack.c.h.b16 %v4403
    %v4943 = vunpack.c.l.b16 %v4404
    %v4944 = vunpack.c.h.b16 %v4404
    %v4945 = vunpack.c.l.b16 %v4405
    %v4946 = vunpack.c.h.b16 %v4405
    %v4947 = vunpack.c.l.b16 %v4406
    %v4948 = vunpack.c.h.b16 %v4406
    %v4949 = vunpack.c.l.b16 %v4407
    %v4950 = vunpack.c.h.b16 %v4407
    %v4951 = vunpack.c.l.b16 %v4408
    %v4952 = vunpack.c.h.b16 %v4408
    %v4953 = vunpack.c.l.b16 %v4409
    %v4954 = vunpack.c.h.b16 %v4409
    %v4955 = vunpack.c.l.b16 %v4410
    %v4956 = vunpack.c.h.b16 %v4410
    %v4957 = vunpack.c.l.b16 %v4411
    %v4958 = vunpack.c.h.b16 %v4411
    %v4959 = vunpack.c.l.b16 %v4412
    %v4960 = vunpack.c.h.b16 %v4412
    %v4961 = vunpack.c.l.b16 %v4413
    %v4962 = vunpack.c.h.b16 %v4413
    %v4963 = vunpack.c.l.b16 %v4414
    %v4964 = vunpack.c.h.b16 %v4414
    %v4965 = vunpack.c.l.b16 %v4415
    %v4966 = vunpack.c.h.b16 %v4415
    %v4967 = vunpack.c.l.b16 %v4416
    %v4968 = vunpack.c.h.b16 %v4416
    %v4969 = vunpack.c.l.b16 %v4417
    %v4970 = vunpack.c.h.b16 %v4417
    %v4971 = vunpack.c.l.b16 %v4418
    %v4972 = vunpack.c.h.b16 %v4418
    %v4973 = vunpack.c.l.b16 %v4419
    %v4974 = vunpack.c.h.b16 %v4419
    %v4975 = vunpack.c.l.b16 %v4420
    %v4976 = vunpack.c.h.b16 %v4420
    %v4977 = vunpack.c.l.b16 %v4421
    %v4978 = vunpack.c.h.b16 %v4421
    %v4979 = vunpack.c.l.b16 %v4422
    %v4980 = vunpack.c.h.b16 %v4422
    %v4981 = vunpack.c.l.b16 %v4423
    %v4982 = vunpack.c.h.b16 %v4423
    %v4983 = vunpack.c.l.b16 %v4424
    %v4984 = vunpack.c.h.b16 %v4424
    %v4985 = vunpack.c.l.b16 %v4425
    %v4986 = vunpack.c.h.b16 %v4425
    %v4987 = vunpack.c.l.b16 %v4426
    %v4988 = vunpack.c.h.b16 %v4426
    %v4989 = vunpack.c.l.b16 %v4427
    %v4990 = vunpack.c.h.b16 %v4427
    %v4991 = vunpack.c.l.b16 %v4428
    %v4992 = vunpack.c.h.b16 %v4428
    %v4993 = vunpack.c.l.b16 %v4429
    %v4994 = vunpack.c.h.b16 %v4429
    %v4995 = vunpack.c.l.b16 %v4430
    %v4996 = vunpack.c.h.b16 %v4430
    %v4997 = vunpack.c.l.b16 %v4431
    %v4998 = vunpack.c.h.b16 %v4431
    %v4999 = vunpack.c.l.b16 %v4432
    %v5000 = vunpack.c.h.b16 %v4432
    %v5001 = vunpack.c.l.b16 %v4433
    %v5002 = vunpack.c.h.b16 %v4433
    %v5003 = vunpack.c.l.b16 %v4434
    %v5004 = vunpack.c.h.b16 %v4434
    %v5005 = vunpack.c.l.b16 %v4435
    %v5006 = vunpack.c.h.b16 %v4435
    %v5007 = vunpack.c.l.b16 %v4436
    %v5008 = vunpack.c.h.b16 %v4436
    %v5009 = vunpack.c.l.b16 %v4437
    %v5010 = vunpack.c.h.b16 %v4437
    %v5011 = vunpack.c.l.b16 %v4438
    %v5012 = vunpack.c.h.b16 %v4438
    %v5013 = vunpack.c.l.b16 %v4439
    %v5014 = vunpack.c.h.b16 %v4439
    %v5015 = vunpack.c.l.b16 %v4440
    %v5016 = vunpack.c.h.b16 %v4440
    %v5017 = vunpack.c.l.b16 %v4441
    %v5018 = vunpack.c.h.b16 %v4441
    %v5019 = vunpack.c.l.b16 %v4442
    %v5020 = vunpack.c.h.b16 %v4442
    %v5021 = vunpack.c.l.b16 %v4443
    %v5022 = vunpack.c.h.b16 %v4443
    %v5023 = vunpack.c.l.b16 %v4444
    %v5024 = vunpack.c.h.b16 %v4444
    %v5025 = vunpack.c.l.b16 %v4445
    %v5026 = vunpack.c.h.b16 %v4445
    %v5027 = vunpack.c.l.b16 %v4446
    %v5028 = vunpack.c.h.b16 %v4446
    %v5029 = vunpack.c.l.b16 %v4447
    %v5030 = vunpack.c.h.b16 %v4447
    %v5031 = vunpack.c.l.b16 %v4448
    %v5032 = vunpack.c.h.b16 %v4448
    %v5033 = vunpack.c.l.b16 %v4449
    %v5034 = vunpack.c.h.b16 %v4449
    %v5035 = vunpack.c.l.b16 %v4450
    %v5036 = vunpack.c.h.b16 %v4450
    %v5037 = vunpack.c.l.b16 %v4451
    %v5038 = vunpack.c.h.b16 %v4451
    %v5039 = vunpack.c.l.b16 %v4452
    %v5040 = vunpack.c.h.b16 %v4452
    %v5041 = vunpack.c.l.b16 %v4453
    %v5042 = vunpack.c.h.b16 %v4453
    %v5043 = vunpack.c.l.b16 %v4454
    %v5044 = vunpack.c.h.b16 %v4454
    %v5045 = vunpack.c.l.b16 %v4455
    %v5046 = vunpack.c.h.b16 %v4455
    %v5047 = vunpack.c.l.b16 %v4456
    %v5048 = vunpack.c.h.b16 %v4456
    %v5049 = vunpack.c.l.b16 %v4457
    %v5050 = vunpack.c.h.b16 %v4457
    %v5051 = vunpack.c.l.b16 %v4458
    %v5052 = vunpack.c.h.b16 %v4458
    %v5053 = vunpack.c.l.b16 %v4459
    %v5054 = vunpack.c.h.b16 %v4459
    %v5055 = vunpack.c.l.b16 %v4460
    %v5056 = vunpack.c.h.b16 %v4460
    %v5057 = vunpack.c.l.b16 %v4461
    %v5058 = vunpack.c.h.b16 %v4461
    %v5059 = vunpack.c.l.b16 %v4462
    %v5060 = vunpack.c.h.b16 %v4462
    %v5061 = vunpack.c.l.b16 %v4463
    %v5062 = vunpack.c.h.b16 %v4463
    %v5063 = vunpack.c.l.b16 %v4464
    %v5064 = vunpack.c.h.b16 %v4464
    %v5065 = vunpack.c.l.b16 %v4465
    %v5066 = vunpack.c.h.b16 %v4465
    %v5067 = vunpack.c.l.b16 %v4466
    %v5068 = vunpack.c.h.b16 %v4466
    %v5069 = vunpack.c.l.b16 %v4467
    %v5070 = vunpack.c.h.b16 %v4467
    %v5071 = vunpack.c.l.b16 %v4468
    %v5072 = vunpack.c.h.b16 %v4468
    %v5073 = vunpack.c.l.b16 %v4469
    %v5074 = vunpack.c.h.b16 %v4469
    %v5075 = vunpack.c.l.b16 %v4470
    %v5076 = vunpack.c.h.b16 %v4470
    %v5077 = vunpack.c.l.b16 %v4471
    %v5078 = vunpack.c.h.b16 %v4471
    %v5079 = vunpack.c.l.b16 %v4472
    %v5080 = vunpack.c.h.b16 %v4472
    %v5081 = vunpack.c.l.b16 %v4473
    %v5082 = vunpack.c.h.b16 %v4473
    %v5083 = vunpack.c.l.b16 %v4474
    %v5084 = vunpack.c.h.b16 %v4474
    %v5085 = vunpack.c.l.b16 %v4475
    %v5086 = vunpack.c.h.b16 %v4475
    %v5087 = vunpack.c.l.b16 %v4476
    %v5088 = vunpack.c.h.b16 %v4476
    %v5089 = vunpack.c.l.b16 %v4477
    %v5090 = vunpack.c.h.b16 %v4477
    %v5091 = vunpack.c.l.b16 %v4478
    %v5092 = vunpack.c.h.b16 %v4478
    %v5093 = vunpack.c.l.b16 %v4479
    %v5094 = vunpack.c.h.b16 %v4479
    %v5095 = vunpack.c.l.b16 %v4480
    %v5096 = vunpack.c.h.b16 %v4480
    %v5097 = vunpack.c.l.b16 %v4481
    %v5098 = vunpack.c.h.b16 %v4481
    %v5099 = vunpack.c.l.b16 %v4482
    %v5100 = vunpack.c.h.b16 %v4482
    %v5101 = vunpack.c.l.b16 %v4483
    %v5102 = vunpack.c.h.b16 %v4483
    %v5103 = vunpack.c.l.b16 %v4484
    %v5104 = vunpack.c.h.b16 %v4484
    %v5105 = vunpack.c.l.b16 %v4485
    %v5106 = vunpack.c.h.b16 %v4485
    %v5107 = vunpack.c.l.b16 %v4486
    %v5108 = vunpack.c.h.b16 %v4486
    %v5109 = vunpack.c.l.b16 %v4487
    %v5110 = vunpack.c.h.b16 %v4487
    %v5111 = vunpack.c.l.b16 %v4488
    %v5112 = vunpack.c.h.b16 %v4488
    %v5113 = vunpack.c.l.b16 %v4489
    %v5114 = vunpack.c.h.b16 %v4489
    %v5115 = vunpack.c.l.b16 %v4490
    %v5116 = vunpack.c.h.b16 %v4490
    %v5117 = vunpack.c.l.b16 %v4491
    %v5118 = vunpack.c.h.b16 %v4491
    %v5119 = vunpack.c.l.b16 %v4492
    %v5120 = vunpack.c.h.b16 %v4492
    %v5121 = vunpack.c.l.b16 %v4493
    %v5122 = vunpack.c.h.b16 %v4493
    %v5123 = vunpack.c.l.b16 %v4494
    %v5124 = vunpack.c.h.b16 %v4494
    %v5125 = vunpack.c.l.b16 %v4495
    %v5126 = vunpack.c.h.b16 %v4495
    %v5127 = vunpack.c.l.b16 %v4496
    %v5128 = vunpack.c.h.b16 %v4496
    %v5129 = vunpack.c.l.b16 %v4497
    %v5130 = vunpack.c.h.b16 %v4497
    %v5131 = vunpack.c.l.b16 %v4498
    %v5132 = vunpack.c.h.b16 %v4498
    %v5133 = vunpack.c.l.b16 %v4499
    %v5134 = vunpack.c.h.b16 %v4499
    %v5135 = vunpack.c.l.b16 %v4500
    %v5136 = vunpack.c.h.b16 %v4500
    %v5137 = vunpack.c.l.b16 %v4501
    %v5138 = vunpack.c.h.b16 %v4501
    %v5139 = vunpack.c.l.b16 %v4502
    %v5140 = vunpack.c.h.b16 %v4502
    %v5141 = vunpack.c.l.b16 %v4503
    %v5142 = vunpack.c.h.b16 %v4503
    %v5143 = vunpack.c.l.b16 %v4504
    %v5144 = vunpack.c.h.b16 %v4504
    %v5145 = vunpack.c.l.b16 %v4505
    %v5146 = vunpack.c.h.b16 %v4505
    %v5147 = vunpack.c.l.b16 %v4506
    %v5148 = vunpack.c.h.b16 %v4506
    %v5149 = vunpack.c.l.b16 %v4507
    %v5150 = vunpack.c.h.b16 %v4507
    %v5151 = vunpack.c.l.b16 %v4508
    %v5152 = vunpack.c.h.b16 %v4508
    %v5153 = vunpack.c.l.b16 %v4509
    %v5154 = vunpack.c.h.b16 %v4509
    %v5155 = vunpack.c.l.b16 %v4510
    %v5156 = vunpack.c.h.b16 %v4510
    %v5157 = vunpack.c.l.b16 %v4511
    %v5158 = vunpack.c.h.b16 %v4511
    %v5159 = vunpack.c.l.b16 %v4512
    %v5160 = vunpack.c.h.b16 %v4512
    %v5161 = vunpack.c.l.b16 %v4513
    %v5162 = vunpack.c.h.b16 %v4513
    %v5163 = vunpack.c.l.b16 %v4514
    %v5164 = vunpack.c.h.b16 %v4514
    %v5165 = vunpack.c.l.b16 %v4515
    %v5166 = vunpack.c.h.b16 %v4515
    %v5167 = vunpack.c.l.b16 %v4516
    %v5168 = vunpack.c.h.b16 %v4516
    %v5169 = vunpack.c.l.b16 %v4517
    %v5170 = vunpack.c.h.b16 %v4517
    %v5171 = vunpack.c.l.b16 %v4518
    %v5172 = vunpack.c.h.b16 %v4518
    %v5173 = vunpack.c.l.b16 %v4519
    %v5174 = vunpack.c.h.b16 %v4519
    %v5175 = vunpack.c.l.b16 %v4520
    %v5176 = vunpack.c.h.b16 %v4520
    %v5177 = vunpack.c.l.b16 %v4521
    %v5178 = vunpack.c.h.b16 %v4521
    %v5179 = vunpack.c.l.b16 %v4522
    %v5180 = vunpack.c.h.b16 %v4522
    %v5181 = vunpack.c.l.b16 %v4523
    %v5182 = vunpack.c.h.b16 %v4523
    %v5183 = vunpack.c.l.b16 %v4524
    %v5184 = vunpack.c.h.b16 %v4524
    %v5185 = vunpack.c.l.b16 %v4525
    %v5186 = vunpack.c.h.b16 %v4525
    %v5187 = vunpack.c.l.b16 %v4526
    %v5188 = vunpack.c.h.b16 %v4526
    %v5189 = vunpack.c.l.b16 %v4527
    %v5190 = vunpack.c.h.b16 %v4527
    %v5191 = vunpack.c.l.b16 %v4528
    %v5192 = vunpack.c.h.b16 %v4528
    %v5193 = vunpack.c.l.b16 %v4529
    %v5194 = vunpack.c.h.b16 %v4529
    %v5195 = vunpack.c.l.b16 %v4530
    %v5196 = vunpack.c.h.b16 %v4530
    %v5197 = vunpack.c.l.b16 %v4531
    %v5198 = vunpack.c.h.b16 %v4531
    %v5199 = vunpack.c.l.b16 %v4532
    %v5200 = vunpack.c.h.b16 %v4532
    %v5201 = vunpack.c.l.b16 %v4533
    %v5202 = vunpack.c.h.b16 %v4533
    %v5203 = vunpack.c.l.b16 %v4534
    %v5204 = vunpack.c.h.b16 %v4534
    %v5205 = vunpack.c.l.b16 %v4535
    %v5206 = vunpack.c.h.b16 %v4535
    %v5207 = vunpack.c.l.b16 %v4536
    %v5208 = vunpack.c.h.b16 %v4536
    %v5209 = vunpack.c.l.b16 %v4537
    %v5210 = vunpack.c.h.b16 %v4537
    %v5211 = vunpack.c.l.b16 %v4538
    %v5212 = vunpack.c.h.b16 %v4538
    %v5213 = vunpack.c.l.b16 %v4539
    %v5214 = vunpack.c.h.b16 %v4539
    %v5215 = vunpack.c.l.b16 %v4540
    %v5216 = vunpack.c.h.b16 %v4540
    %v5217 = vunpack.c.l.b16 %v4541
    %v5218 = vunpack.c.h.b16 %v4541
    %v5219 = vunpack.c.l.b16 %v4542
    %v5220 = vunpack.c.h.b16 %v4542
    %v5221 = vunpack.c.l.b16 %v4543
    %v5222 = vunpack.c.h.b16 %v4543
    %v5223 = vunpack.c.l.b16 %v4544
    %v5224 = vunpack.c.h.b16 %v4544
    %v5225 = vunpack.c.l.b16 %v4545
    %v5226 = vunpack.c.h.b16 %v4545
    %v5227 = vunpack.c.l.b16 %v4546
    %v5228 = vunpack.c.h.b16 %v4546
    %v5229 = vunpack.c.l.b16 %v4547
    %v5230 = vunpack.c.h.b16 %v4547
    %v5231 = vunpack.c.l.b16 %v4548
    %v5232 = vunpack.c.h.b16 %v4548
    %v5233 = vunpack.c.l.b16 %v4549
    %v5234 = vunpack.c.h.b16 %v4549
    %v5235 = vunpack.c.l.b16 %v4550
    %v5236 = vunpack.c.h.b16 %v4550
    %v5237 = vunpack.c.l.b16 %v4551
    %v5238 = vunpack.c.h.b16 %v4551
    %v5239 = vunpack.c.l.b16 %v4552
    %v5240 = vunpack.c.h.b16 %v4552
    %v5241 = vunpack.c.l.b16 %v4553
    %v5242 = vunpack.c.h.b16 %v4553
    %v5243 = vunpack.c.l.b16 %v4554
    %v5244 = vunpack.c.h.b16 %v4554
    %v5245 = vunpack.c.l.b16 %v4555
    %v5246 = vunpack.c.h.b16 %v4555
    %v5247 = vunpack.c.l.b16 %v4556
    %v5248 = vunpack.c.h.b16 %v4556
    %v5249 = vunpack.c.l.b16 %v4557
    %v5250 = vunpack.c.h.b16 %v4557
    %v5251 = vunpack.c.l.b16 %v4558
    %v5252 = vunpack.c.h.b16 %v4558
    %v5253 = vunpack.c.l.b16 %v4559
    %v5254 = vunpack.c.h.b16 %v4559
    %v5255 = vunpack.c.l.b16 %v4560
    %v5256 = vunpack.c.h.b16 %v4560
    %v5257 = vunpack.c.l.b16 %v4561
    %v5258 = vunpack.c.h.b16 %v4561
    %v5259 = vunpack.c.l.b16 %v4562
    %v5260 = vunpack.c.h.b16 %v4562
    %v5261 = vunpack.c.l.b16 %v4563
    %v5262 = vunpack.c.h.b16 %v4563
    %v5263 = vunpack.c.l.b16 %v4564
    %v5264 = vunpack.c.h.b16 %v4564
    %v5265 = vunpack.c.l.b16 %v4565
    %v5266 = vunpack.c.h.b16 %v4565
    %v5267 = vunpack.c.l.b16 %v4566
    %v5268 = vunpack.c.h.b16 %v4566
    %v5269 = vunpack.c.l.b16 %v4567
    %v5270 = vunpack.c.h.b16 %v4567
    %v5271 = vunpack.c.l.b16 %v4568
    %v5272 = vunpack.c.h.b16 %v4568
    %v5273 = vunpack.c.l.b16 %v4569
    %v5274 = vunpack.c.h.b16 %v4569
    %v5275 = vunpack.c.l.b16 %v4570
    %v5276 = vunpack.c.h.b16 %v4570
    %v5277 = vunpack.c.l.b16 %v4571
    %v5278 = vunpack.c.h.b16 %v4571
    %v5279 = vunpack.c.l.b16 %v4572
    %v5280 = vunpack.c.h.b16 %v4572
    %v5281 = vunpack.c.l.b16 %v4573
    %v5282 = vunpack.c.h.b16 %v4573
    %v5283 = vunpack.c.l.b16 %v4574
    %v5284 = vunpack.c.h.b16 %v4574
    %v5285 = vunpack.c.l.b16 %v4575
    %v5286 = vunpack.c.h.b16 %v4575
    %v5287 = vunpack.c.l.b16 %v4576
    %v5288 = vunpack.c.h.b16 %v4576
    %v5289 = vunpack.c.l.b16 %v4577
    %v5290 = vunpack.c.h.b16 %v4577
    %v5291 = vunpack.c.l.b16 %v4578
    %v5292 = vunpack.c.h.b16 %v4578
    %v5293 = vunpack.c.l.b16 %v4579
    %v5294 = vunpack.c.h.b16 %v4579
    %v5295 = vunpack.c.l.b16 %v4580
    %v5296 = vunpack.c.h.b16 %v4580
    %v5297 = vunpack.c.l.b16 %v4581
    %v5298 = vunpack.c.h.b16 %v4581
    %v5299 = vunpack.c.l.b16 %v4582
    %v5300 = vunpack.c.h.b16 %v4582
    %v5301 = vunpack.c.l.b16 %v4583
    %v5302 = vunpack.c.h.b16 %v4583
    %v5303 = vunpack.c.l.b16 %v4584
    %v5304 = vunpack.c.h.b16 %v4584
    %v5305 = vunpack.c.l.b16 %v4585
    %v5306 = vunpack.c.h.b16 %v4585
    %v5307 = vunpack.c.l.b16 %v4586
    %v5308 = vunpack.c.h.b16 %v4586
    %v5309 = vunpack.c.l.b16 %v4587
    %v5310 = vunpack.c.h.b16 %v4587
    %v5311 = vunpack.c.l.b16 %v4588
    %v5312 = vunpack.c.h.b16 %v4588
    %v5313 = vunpack.c.l.b16 %v4589
    %v5314 = vunpack.c.h.b16 %v4589
    %v5315 = vunpack.c.l.b16 %v4590
    %v5316 = vunpack.c.h.b16 %v4590
    %v5317 = vunpack.c.l.b16 %v4591
    %v5318 = vunpack.c.h.b16 %v4591
    %v5319 = vunpack.c.l.b16 %v4592
    %v5320 = vunpack.c.h.b16 %v4592
    %v5321 = vunpack.c.l.b16 %v4593
    %v5322 = vunpack.c.h.b16 %v4593
    %v5323 = vunpack.c.l.b16 %v4594
    %v5324 = vunpack.c.h.b16 %v4594
    %v5325 = vunpack.c.l.b16 %v4595
    %v5326 = vunpack.c.h.b16 %v4595
    %v5327 = vunpack.c.l.b16 %v4596
    %v5328 = vunpack.c.h.b16 %v4596
    %v5329 = vunpack.c.l.b16 %v4597
    %v5330 = vunpack.c.h.b16 %v4597
    %v5331 = vunpack.c.l.b16 %v4598
    %v5332 = vunpack.c.h.b16 %v4598
    %v5333 = vunpack.c.l.b16 %v4599
    %v5334 = vunpack.c.h.b16 %v4599
    %v5335 = vunpack.c.l.b16 %v4600
    %v5336 = vunpack.c.h.b16 %v4600
    %v5337 = vunpack.c.l.b16 %v4601
    %v5338 = vunpack.c.h.b16 %v4601
    %v5339 = vunpack.c.l.b16 %v4602
    %v5340 = vunpack.c.h.b16 %v4602
    %v5341 = vunpack.c.l.b16 %v4603
    %v5342 = vunpack.c.h.b16 %v4603
    %v5343 = vunpack.c.l.b16 %v4604
    %v5344 = vunpack.c.h.b16 %v4604
    %v5345 = vunpack.c.l.b16 %v4605
    %v5346 = vunpack.c.h.b16 %v4605
    %v5347 = vunpack.c.l.b16 %v4606
    %v5348 = vunpack.c.h.b16 %v4606
    %v5349 = vunpack.c.l.b16 %v4607
    %v5350 = vunpack.c.h.b16 %v4607
    %v5351 = vunpack.c.l.b16 %v4608
    %v5352 = vunpack.c.h.b16 %v4608
    %v5353 = vunpack.c.l.b16 %v4609
    %v5354 = vunpack.c.h.b16 %v4609
    %v5355 = vunpack.c.l.b16 %v4610
    %v5356 = vunpack.c.h.b16 %v4610
    %v5357 = vunpack.c.l.b16 %v4611
    %v5358 = vunpack.c.h.b16 %v4611
    %v5359 = vunpack.c.l.b16 %v4612
    %v5360 = vunpack.c.h.b16 %v4612
    %v5361 = vunpack.c.l.b16 %v4613
    %v5362 = vunpack.c.h.b16 %v4613
    %v5363 = vunpack.c.l.b16 %v4614
    %v5364 = vunpack.c.h.b16 %v4614
    %v5365 = vunpack.c.l.b16 %v4615
    %v5366 = vunpack.c.h.b16 %v4615
    %v5367 = vunpack.c.l.b16 %v4616
    %v5368 = vunpack.c.h.b16 %v4616
    %v5369 = vunpack.c.l.b16 %v4617
    %v5370 = vunpack.c.h.b16 %v4617
    %v5371 = vunpack.c.l.b16 %v4618
    %v5372 = vunpack.c.h.b16 %v4618
    %v5373 = vunpack.c.l.b16 %v4619
    %v5374 = vunpack.c.h.b16 %v4619
    %v5375 = vunpack.c.l.b16 %v4620
    %v5376 = vunpack.c.h.b16 %v4620
    %v5377 = vunpack.c.l.b16 %v4621
    %v5378 = vunpack.c.h.b16 %v4621
    %v5379 = vunpack.c.l.b16 %v4622
    %v5380 = vunpack.c.h.b16 %v4622
    %v5381 = vunpack.c.l.b16 %v4623
    %v5382 = vunpack.c.h.b16 %v4623
    %v5383 = vunpack.c.l.b16 %v4624
    %v5384 = vunpack.c.h.b16 %v4624
    %v5385 = vunpack.c.l.b16 %v4625
    %v5386 = vunpack.c.h.b16 %v4625
    %v5387 = vunpack.c.l.b16 %v4626
    %v5388 = vunpack.c.h.b16 %v4626
    %v5389 = vunpack.c.l.b16 %v4627
    %v5390 = vunpack.c.h.b16 %v4627
    %v5391 = vunpack.c.l.b16 %v4628
    %v5392 = vunpack.c.h.b16 %v4628
    %v5393 = vunpack.c.l.b16 %v4629
    %v5394 = vunpack.c.h.b16 %v4629
    %v5395 = vunpack.c.l.b16 %v4630
    %v5396 = vunpack.c.h.b16 %v4630
    %v5397 = vunpack.c.l.b16 %v4631
    %v5398 = vunpack.c.h.b16 %v4631
    %v5399 = vunpack.c.l.b16 %v4632
    %v5400 = vunpack.c.h.b16 %v4632
    %v5401 = vunpack.c.l.b16 %v4633
    %v5402 = vunpack.c.h.b16 %v4633
    %v5403 = vunpack.c.l.b16 %v4634
    %v5404 = vunpack.c.h.b16 %v4634
    %v5405 = vunpack.c.l.b16 %v4635
    %v5406 = vunpack.c.h.b16 %v4635
    %v5407 = vunpack.c.l.b16 %v4636
    %v5408 = vunpack.c.h.b16 %v4636
    %v5409 = vunpack.c.l.b16 %v4637
    %v5410 = vunpack.c.h.b16 %v4637
    %v5411 = vunpack.c.l.b16 %v4638
    %v5412 = vunpack.c.h.b16 %v4638
    %v5413 = vunpack.c.l.b16 %v4639
    %v5414 = vunpack.c.h.b16 %v4639
    %v5415 = vunpack.c.l.b16 %v4640
    %v5416 = vunpack.c.h.b16 %v4640
    %v5417 = vunpack.c.l.b16 %v4641
    %v5418 = vunpack.c.h.b16 %v4641
    %v5419 = vunpack.c.l.b16 %v4642
    %v5420 = vunpack.c.h.b16 %v4642
    %v5421 = vunpack.c.l.b16 %v4643
    %v5422 = vunpack.c.h.b16 %v4643
    %v5423 = vunpack.c.l.b16 %v4644
    %v5424 = vunpack.c.h.b16 %v4644
    %v5425 = vunpack.c.l.b16 %v4645
    %v5426 = vunpack.c.h.b16 %v4645
    %v5427 = vunpack.c.l.b16 %v4646
    %v5428 = vunpack.c.h.b16 %v4646
    %v5429 = vunpack.c.l.b16 %v4647
    %v5430 = vunpack.c.h.b16 %v4647
    %v5431 = vunpack.c.l.b16 %v4648
    %v5432 = vunpack.c.h.b16 %v4648
    %v5433 = vunpack.c.l.b16 %v4649
    %v5434 = vunpack.c.h.b16 %v4649
    %v5435 = vunpack.c.l.b16 %v4650
    %v5436 = vunpack.c.h.b16 %v4650
    %v5437 = vunpack.c.l.b16 %v4651
    %v5438 = vunpack.c.h.b16 %v4651
    %v5439 = vunpack.c.l.b16 %v4652
    %v5440 = vunpack.c.h.b16 %v4652
    %v5441 = vunpack.c.l.b16 %v4653
    %v5442 = vunpack.c.h.b16 %v4653
    %v5443 = vunpack.c.l.b16 %v4654
    %v5444 = vunpack.c.h.b16 %v4654
    %v5445 = vunpack.c.l.b16 %v4655
    %v5446 = vunpack.c.h.b16 %v4655
    %v5447 = vunpack.c.l.b16 %v4656
    %v5448 = vunpack.c.h.b16 %v4656
    %v5449 = vunpack.c.l.b16 %v4657
    %v5450 = vunpack.c.h.b16 %v4657
    %v5451 = vunpack.c.l.b16 %v4658
    %v5452 = vunpack.c.h.b16 %v4658
    %v5453 = vunpack.c.l.b16 %v4659
    %v5454 = vunpack.c.h.b16 %v4659
    %v5455 = vpack.c.b16 %v4935, %v4931
    %v5456 = vpack.c.b16 %v4936, %v4932
    %v5457 = vpack.c.b16 %v4937, %v4933
    %v5458 = vpack.c.b16 %v4938, %v4934
    %v5459 = vpack.c.b16 %v4943, %v4939
    %v5460 = vpack.c.b16 %v4944, %v4940
    %v5461 = vpack.c.b16 %v4945, %v4941
    %v5462 = vpack.c.b16 %v4946, %v4942
    %v5463 = vpack.c.b16 %v4951, %v4947
    %v5464 = vpack.c.b16 %v4952, %v4948
    %v5465 = vpack.c.b16 %v4953, %v4949
    %v5466 = vpack.c.b16 %v4954, %v4950
    %v5467 = vpack.c.b16 %v4959, %v4955
    %v5468 = vpack.c.b16 %v4960, %v4956
    %v5469 = vpack.c.b16 %v4961, %v4957
    %v5470 = vpack.c.b16 %v4962, %v4958
    %v5471 = vpack.c.b16 %v4967, %v4963
    %v5472 = vpack.c.b16 %v4968, %v4964
    %v5473 = vpack.c.b16 %v4969, %v4965
    %v5474 = vpack.c.b16 %v4970, %v4966
    %v5475 = vpack.c.b16 %v4975, %v4971
    %v5476 = vpack.c.b16 %v4976, %v4972
    %v5477 = vpack.c.b16 %v4977, %v4973
    %v5478 = vpack.c.b16 %v4978, %v4974
    %v5479 = vpack.c.b16 %v4983, %v4979
    %v5480 = vpack.c.b16 %v4984, %v4980
    %v5481 = vpack.c.b16 %v4985, %v4981
    %v5482 = vpack.c.b16 %v4986, %v4982
    %v5483 = vpack.c.b16 %v4991, %v4987
    %v5484 = vpack.c.b16 %v4992, %v4988
    %v5485 = vpack.c.b16 %v4993, %v4989
    %v5486 = vpack.c.b16 %v4994, %v4990
    %v5487 = vpack.c.b16 %v4999, %v4995
    %v5488 = vpack.c.b16 %v5000, %v4996
    %v5489 = vpack.c.b16 %v5001, %v4997
    %v5490 = vpack.c.b16 %v5002, %v4998
    %v5491 = vpack.c.b16 %v5007, %v5003
    %v5492 = vpack.c.b16 %v5008, %v5004
    %v5493 = vpack.c.b16 %v5009, %v5005
    %v5494 = vpack.c.b16 %v5010, %v5006
    %v5495 = vpack.c.b16 %v5015, %v5011
    %v5496 = vpack.c.b16 %v5016, %v5012
    %v5497 = vpack.c.b16 %v5017, %v5013
    %v5498 = vpack.c.b16 %v5018, %v5014
    %v5499 = vpack.c.b16 %v5023, %v5019
    %v5500 = vpack.c.b16 %v5024, %v5020
    %v5501 = vpack.c.b16 %v5025, %v5021
    %v5502 = vpack.c.b16 %v5026, %v5022
    %v5503 = vpack.c.b16 %v5031, %v5027
    %v5504 = vpack.c.b16 %v5032, %v5028
    %v5505 = vpack.c.b16 %v5033, %v5029
    %v5506 = vpack.c.b16 %v5034, %v5030
    %v5507 = vpack.c.b16 %v5039, %v5035
    %v5508 = vpack.c.b16 %v5040, %v5036
    %v5509 = vpack.c.b16 %v5041, %v5037
    %v5510 = vpack.c.b16 %v5042, %v5038
    %v5511 = vpack.c.b16 %v5047, %v5043
    %v5512 = vpack.c.b16 %v5048, %v5044
    %v5513 = vpack.c.b16 %v5049, %v5045
    %v5514 = vpack.c.b16 %v5050, %v5046
    %v5515 = vpack.c.b16 %v5055, %v5051
    %v5516 = vpack.c.b16 %v5056, %v5052
    %v5517 = vpack.c.b16 %v5057, %v5053
    %v5518 = vpack.c.b16 %v5058, %v5054
    %v5519 = vpack.c.b16 %v5063, %v5059
    %v5520 = vpack.c.b16 %v5064, %v5060
    %v5521 = vpack.c.b16 %v5065, %v5061
    %v5522 = vpack.c.b16 %v5066, %v5062
    %v5523 = vpack.c.b16 %v5071, %v5067
    %v5524 = vpack.c.b16 %v5072, %v5068
    %v5525 = vpack.c.b16 %v5073, %v5069
    %v5526 = vpack.c.b16 %v5074, %v5070
    %v5527 = vpack.c.b16 %v5079, %v5075
    %v5528 = vpack.c.b16 %v5080, %v5076
    %v5529 = vpack.c.b16 %v5081, %v5077
    %v5530 = vpack.c.b16 %v5082, %v5078
    %v5531 = vpack.c.b16 %v5087, %v5083
    %v5532 = vpack.c.b16 %v5088, %v5084
    %v5533 = vpack.c.b16 %v5089, %v5085
    %v5534 = vpack.c.b16 %v5090, %v5086
    %v5535 = vpack.c.b16 %v5095, %v5091
    %v5536 = vpack.c.b16 %v5096, %v5092
    %v5537 = vpack.c.b16 %v5097, %v5093
    %v5538 = vpack.c.b16 %v5098, %v5094
    %v5539 = vpack.c.b16 %v5103, %v5099
    %v5540 = vpack.c.b16 %v5104, %v5100
    %v5541 = vpack.c.b16 %v5105, %v5101
    %v5542 = vpack.c.b16 %v5106, %v5102
    %v5543 = vpack.c.b16 %v5111, %v5107
    %v5544 = vpack.c.b16 %v5112, %v5108
    %v5545 = vpack.c.b16 %v5113, %v5109
    %v5546 = vpack.c.b16 %v5114, %v5110
    %v5547 = vpack.c.b16 %v5119, %v5115
    %v5548 = vpack.c.b16 %v5120, %v5116
    %v5549 = vpack.c.b16 %v5121, %v5117
    %v5550 = vpack.c.b16 %v5122, %v5118
    %v5551 = vpack.c.b16 %v5127, %v5123
    %v5552 = vpack.c.b16 %v5128, %v5124
    %v5553 = vpack.c.b16 %v5129, %v5125
    %v5554 = vpack.c.b16 %v5130, %v5126
    %v5555 = vpack.c.b16 %v5135, %v5131
    %v5556 = vpack.c.b16 %v5136, %v5132
    %v5557 = vpack.c.b16 %v5137, %v5133
    %v5558 = vpack.c.b16 %v5138, %v5134
    %v5559 = vpack.c.b16 %v5143, %v5139
    %v5560 = vpack.c.b16 %v5144, %v5140
    %v5561 = vpack.c.b16 %v5145, %v5141
    %v5562 = vpack.c.b16 %v5146, %v5142
    %v5563 = vpack.c.b16 %v5151, %v5147
    %v5564 = vpack.c.b16 %v5152, %v5148
    %v5565 = vpack.c.b16 %v5153, %v5149
    %v5566 = vpack.c.b16 %v5154, %v5150
    %v5567 = vpack.c.b16 %v5159, %v5155
    %v5568 = vpack.c.b16 %v5160, %v5156
    %v5569 = vpack.c.b16 %v5161, %v5157
    %v5570 = vpack.c.b16 %v5162, %v5158
    %v5571 = vpack.c.b16 %v5167, %v5163
    %v5572 = vpack.c.b16 %v5168, %v5164
    %v5573 = vpack.c.b16 %v5169, %v5165
    %v5574 = vpack.c.b16 %v5170, %v5166
    %v5575 = vpack.c.b16 %v5175, %v5171
    %v5576 = vpack.c.b16 %v5176, %v5172
    %v5577 = vpack.c.b16 %v5177, %v5173
    %v5578 = vpack.c.b16 %v5178, %v5174
    %v5579 = vpack.c.b16 %v5183, %v5179
    %v5580 = vpack.c.b16 %v5184, %v5180
    %v5581 = vpack.c.b16 %v5185, %v5181
    %v5582 = vpack.c.b16 %v5186, %v5182
    %v5583 = vpack.c.b16 %v5191, %v5187
    %v5584 = vpack.c.b16 %v5192, %v5188
    %v5585 = vpack.c.b16 %v5193, %v5189
    %v5586 = vpack.c.b16 %v5194, %v5190
    %v5587 = vpack.c.b16 %v5199, %v5195
    %v5588 = vpack.c.b16 %v5200, %v5196
    %v5589 = vpack.c.b16 %v5201, %v5197
    %v5590 = vpack.c.b16 %v5202, %v5198
    %v5591 = vpack.c.b16 %v5207, %v5203
    %v5592 = vpack.c.b16 %v5208, %v5204
    %v5593 = vpack.c.b16 %v5209, %v5205
    %v5594 = vpack.c.b16 %v5210, %v5206
    %v5595 = vpack.c.b16 %v5215, %v5211
    %v5596 = vpack.c.b16 %v5216, %v5212
    %v5597 = vpack.c.b16 %v5217, %v5213
    %v5598 = vpack.c.b16 %v5218, %v5214
    %v5599 = vpack.c.b16 %v5223, %v5219
    %v5600 = vpack.c.b16 %v5224, %v5220
    %v5601 = vpack.c.b16 %v5225, %v5221
    %v5602 = vpack.c.b16 %v5226, %v5222
    %v5603 = vpack.c.b16 %v5231, %v5227
    %v5604 = vpack.c.b16 %v5232, %v5228
    %v5605 = vpack.c.b16 %v5233, %v5229
    %v5606 = vpack.c.b16 %v5234, %v5230
    %v5607 = vpack.c.b16 %v5239, %v5235
    %v5608 = vpack.c.b16 %v5240, %v5236
    %v5609 = vpack.c.b16 %v5241, %v5237
    %v5610 = vpack.c.b16 %v5242, %v5238
    %v5611 = vpack.c.b16 %v5247, %v5243
    %v5612 = vpack.c.b16 %v5248, %v5244
    %v5613 = vpack.c.b16 %v5249, %v5245
    %v5614 = vpack.c.b16 %v5250, %v5246
    %v5615 = vpack.c.b16 %v5255, %v5251
    %v5616 = vpack.c.b16 %v5256, %v5252
    %v5617 = vpack.c.b16 %v5257, %v5253
    %v5618 = vpack.c.b16 %v5258, %v5254
    %v5619 = vpack.c.b16 %v5263, %v5259
    %v5620 = vpack.c.b16 %v5264, %v5260
    %v5621 = vpack.c.b16 %v5265, %v5261
    %v5622 = vpack.c.b16 %v5266, %v5262
    %v5623 = vpack.c.b16 %v5271, %v5267
    %v5624 = vpack.c.b16 %v5272, %v5268
    %v5625 = vpack.c.b16 %v5273, %v5269
    %v5626 = vpack.c.b16 %v5274, %v5270
    %v5627 = vpack.c.b16 %v5279, %v5275
    %v5628 = vpack.c.b16 %v5280, %v5276
    %v5629 = vpack.c.b16 %v5281, %v5277
    %v5630 = vpack.c.b16 %v5282, %v5278
    %v5631 = vpack.c.b16 %v5287, %v5283
    %v5632 = vpack.c.b16 %v5288, %v5284
    %v5633 = vpack.c.b16 %v5289, %v5285
    %v5634 = vpack.c.b16 %v5290, %v5286
    %v5635 = vpack.c.b16 %v5295, %v5291
    %v5636 = vpack.c.b16 %v5296, %v5292
    %v5637 = vpack.c.b16 %v5297, %v5293
    %v5638 = vpack.c.b16 %v5298, %v5294
    %v5639 = vpack.c.b16 %v5303, %v5299
    %v5640 = vpack.c.b16 %v5304, %v5300
    %v5641 = vpack.c.b16 %v5305, %v5301
    %v5642 = vpack.c.b16 %v5306, %v5302
    %v5643 = vpack.c.b16 %v5311, %v5307
    %v5644 = vpack.c.b16 %v5312, %v5308
    %v5645 = vpack.c.b16 %v5313, %v5309
    %v5646 = vpack.c.b16 %v5314, %v5310
    %v5647 = vpack.c.b16 %v5319, %v5315
    %v5648 = vpack.c.b16 %v5320, %v5316
    %v5649 = vpack.c.b16 %v5321, %v5317
    %v5650 = vpack.c.b16 %v5322, %v5318
    %v5651 = vpack.c.b16 %v5327, %v5323
    %v5652 = vpack.c.b16 %v5328, %v5324
    %v5653 = vpack.c.b16 %v5329, %v5325
    %v5654 = vpack.c.b16 %v5330, %v5326
    %v5655 = vpack.c.b16 %v5335, %v5331
    %v5656 = vpack.c.b16 %v5336, %v5332
    %v5657 = vpack.c.b16 %v5337, %v5333
    %v5658 = vpack.c.b16 %v5338, %v5334
    %v5659 = vpack.c.b16 %v5343, %v5339
    %v5660 = vpack.c.b16 %v5344, %v5340
    %v5661 = vpack.c.b16 %v5345, %v5341
    %v5662 = vpack.c.b16 %v5346, %v5342
    %v5663 = vpack.c.b16 %v5351, %v5347
    %v5664 = vpack.c.b16 %v5352, %v5348
    %v5665 = vpack.c.b16 %v5353, %v5349
    %v5666 = vpack.c.b16 %v5354, %v5350
    %v5667 = vpack.c.b16 %v5359, %v5355
    %v5668 = vpack.c.b16 %v5360, %v5356
    %v5669 = vpack.c.b16 %v5361, %v5357
    %v5670 = vpack.c.b16 %v5362, %v5358
    %v5671 = vpack.c.b16 %v5367, %v5363
    %v5672 = vpack.c.b16 %v5368, %v5364
    %v5673 = vpack.c.b16 %v5369, %v5365
    %v5674 = vpack.c.b16 %v5370, %v5366
    %v5675 = vpack.c.b16 %v5375, %v5371
    %v5676 = vpack.c.b16 %v5376, %v5372
    %v5677 = vpack.c.b16 %v5377, %v5373
    %v5678 = vpack.c.b16 %v5378, %v5374
    %v5679 = vpack.c.b16 %v5383, %v5379
    %v5680 = vpack.c.b16 %v5384, %v5380
    %v5681 = vpack.c.b16 %v5385, %v5381
    %v5682 = vpack.c.b16 %v5386, %v5382
    %v5683 = vpack.c.b16 %v5391, %v5387
    %v5684 = vpack.c.b16 %v5392, %v5388
    %v5685 = vpack.c.b16 %v5393, %v5389
    %v5686 = vpack.c.b16 %v5394, %v5390
    %v5687 = vpack.c.b16 %v5399, %v5395
    %v5688 = vpack.c.b16 %v5400, %v5396
    %v5689 = vpack.c.b16 %v5401, %v5397
    %v5690 = vpack.c.b16 %v5402, %v5398
    %v5691 = vpack.c.b16 %v5407, %v5403
    %v5692 = vpack.c.b16 %v5408, %v5404
    %v5693 = vpack.c.b16 %v5409, %v5405
    %v5694 = vpack.c.b16 %v5410, %v5406
    %v5695 = vpack.c.b16 %v5415, %v5411
    %v5696 = vpack.c.b16 %v5416, %v5412
    %v5697 = vpack.c.b16 %v5417, %v5413
    %v5698 = vpack.c.b16 %v5418, %v5414
    %v5699 = vpack.c.b16 %v5423, %v5419
    %v5700 = vpack.c.b16 %v5424, %v5420
    %v5701 = vpack.c.b16 %v5425, %v5421
    %v5702 = vpack.c.b16 %v5426, %v5422
    %v5703 = vpack.c.b16 %v5431, %v5427
    %v5704 = vpack.c.b16 %v5432, %v5428
    %v5705 = vpack.c.b16 %v5433, %v5429
    %v5706 = vpack.c.b16 %v5434, %v5430
    %v5707 = vpack.c.b16 %v5439, %v5435
    %v5708 = vpack.c.b16 %v5440, %v5436
    %v5709 = vpack.c.b16 %v5441, %v5437
    %v5710 = vpack.c.b16 %v5442, %v5438
    %v5711 = vpack.c.b16 %v5447, %v5443
    %v5712 = vpack.c.b16 %v5448, %v5444
    %v5713 = vpack.c.b16 %v5449, %v5445
    %v5714 = vpack.c.b16 %v5450, %v5446
    %v5715 = vpack.c.b16 %v5451, %v5451
    %v5716 = vpack.c.b16 %v5452, %v5452
    %v5717 = vpack.c.b16 %v5453, %v5453
    %v5718 = vpack.c.b16 %v5454, %v5454
    %vm5979 = vcmask 195584
    %v5981 = vsel %vm5979, %v4668, 0
    %vm5983 = vcmask 1043456
    %v5985 = vsel %vm5983, %v5715, 0
    %v5988 = vsel %vm5983, %v5716, 0
    %v5991 = vsel %vm5983, %v5717, 0
    %v5994 = vsel %vm5983, %v5718, 0
    %5996 = vmatprep.subr.bf16.mxu0 %v5456
    %5997 = vmatpush1.bf16.msra.mxu0 %v5455
    %5998 = vmatprep.subr.bf16.mxu0 %v5460
    %5999 = vmatpush1.bf16.msra.mxu0 %v5459
    %6000 = vmatprep.subr.bf16.mxu0 %v5464
    %6001 = vmatpush1.bf16.msra.mxu0 %v5463
    %6002 = vmatprep.subr.bf16.mxu0 %v5468
    %6003 = vmatpush1.bf16.msra.mxu0 %v5467
    %6004 = vmatprep.subr.bf16.mxu0 %v5472
    %6005 = vmatpush1.bf16.msra.mxu0 %v5471
    %6006 = vmatprep.subr.bf16.mxu0 %v5476
    %6007 = vmatpush1.bf16.msra.mxu0 %v5475
    %6008 = vmatprep.subr.bf16.mxu0 %v5480
    %6009 = vmatpush1.bf16.msra.mxu0 %v5479
    %6010 = vmatprep.subr.bf16.mxu0 %v5484
    %6011 = vmatpush1.bf16.msra.mxu0 %v5483
    %6012 = vmatprep.subr.bf16.mxu0 %v5488
    %6013 = vmatpush1.bf16.msra.mxu0 %v5487
    %6014 = vmatprep.subr.bf16.mxu0 %v5492
    %6015 = vmatpush1.bf16.msra.mxu0 %v5491
    %6016 = vmatprep.subr.bf16.mxu0 %v5496
    %6017 = vmatpush1.bf16.msra.mxu0 %v5495
    %6018 = vmatprep.subr.bf16.mxu0 %v5500
    %6019 = vmatpush1.bf16.msra.mxu0 %v5499
    %6020 = vmatprep.subr.bf16.mxu0 %v5504
    %6021 = vmatpush1.bf16.msra.mxu0 %v5503
    %6022 = vmatprep.subr.bf16.mxu0 %v5508
    %6023 = vmatpush1.bf16.msra.mxu0 %v5507
    %6024 = vmatprep.subr.bf16.mxu0 %v5512
    %6025 = vmatpush1.bf16.msra.mxu0 %v5511
    %6026 = vmatprep.subr.bf16.mxu0 %v5516
    %6027 = vmatpush1.bf16.msra.mxu0 %v5515
    %6028 = vmatprep.mubr.bf16.mxu0 %v4661
    %6029 = vmatmul.mubr.bf16.gmra.mrb[0].mxu0 %v4660
    %v6030 = vpop.f32.mrb[0].mxu0
    %v6031 = vadd.f32 0.0, %v6030
    %v6032 = vpop.f32.mrb[0].mxu0
    %v6033 = vadd.f32 0.0, %v6032
    %v6034 = vpop.f32.mrb[0].mxu0
    %v6035 = vpop.f32.mrb[0].mxu0
    %6036 = vdwg.mxu0
    %6037 = vmatprep.subr.bf16.mxu0 %v5520
    %6038 = vmatpush1.bf16.msra.mxu0 %v5519
    %6039 = vmatprep.subr.bf16.mxu0 %v5524
    %6040 = vmatpush1.bf16.msra.mxu0 %v5523
    %6041 = vmatprep.subr.bf16.mxu0 %v5528
    %6042 = vmatpush1.bf16.msra.mxu0 %v5527
    %6043 = vmatprep.subr.bf16.mxu0 %v5532
    %6044 = vmatpush1.bf16.msra.mxu0 %v5531
    %6045 = vmatprep.subr.bf16.mxu0 %v5536
    %6046 = vmatpush1.bf16.msra.mxu0 %v5535
    %6047 = vmatprep.subr.bf16.mxu0 %v5540
    %6048 = vmatpush1.bf16.msra.mxu0 %v5539
    %6049 = vmatprep.subr.bf16.mxu0 %v5544
    %6050 = vmatpush1.bf16.msra.mxu0 %v5543
    %6051 = vmatprep.subr.bf16.mxu0 %v5548
    %6052 = vmatpush1.bf16.msra.mxu0 %v5547
    %6053 = vmatprep.subr.bf16.mxu0 %v5552
    %6054 = vmatpush1.bf16.msra.mxu0 %v5551
    %6055 = vmatprep.subr.bf16.mxu0 %v5556
    %6056 = vmatpush1.bf16.msra.mxu0 %v5555
    %6057 = vmatprep.subr.bf16.mxu0 %v5560
    %6058 = vmatpush1.bf16.msra.mxu0 %v5559
    %6059 = vmatprep.subr.bf16.mxu0 %v5564
    %6060 = vmatpush1.bf16.msra.mxu0 %v5563
    %6061 = vmatprep.subr.bf16.mxu0 %v5568
    %6062 = vmatpush1.bf16.msra.mxu0 %v5567
    %6063 = vmatprep.subr.bf16.mxu0 %v5572
    %6064 = vmatpush1.bf16.msra.mxu0 %v5571
    %6065 = vmatprep.subr.bf16.mxu0 %v5576
    %6066 = vmatpush1.bf16.msra.mxu0 %v5575
    %6067 = vmatprep.subr.bf16.mxu0 %v5580
    %6068 = vmatpush1.bf16.msra.mxu0 %v5579
    %6069 = vmatprep.mubr.bf16.mxu0 %v4663
    %6070 = vmatmul.mubr.bf16.gmra.mrb[0].mxu0 %v4662
    %v6071 = vpop.f32.mrb[0].mxu0
    %v6072 = vadd.f32 %v6031, %v6071
    %v6073 = vpop.f32.mrb[0].mxu0
    %v6074 = vadd.f32 %v6033, %v6073
    %v6075 = vpop.f32.mrb[0].mxu0
    %v6076 = vpop.f32.mrb[0].mxu0
    %6077 = vdwg.mxu0
    %6078 = vmatprep.subr.bf16.mxu0 %v5584
    %6079 = vmatpush1.bf16.msra.mxu0 %v5583
    %6080 = vmatprep.subr.bf16.mxu0 %v5588
    %6081 = vmatpush1.bf16.msra.mxu0 %v5587
    %6082 = vmatprep.subr.bf16.mxu0 %v5592
    %6083 = vmatpush1.bf16.msra.mxu0 %v5591
    %6084 = vmatprep.subr.bf16.mxu0 %v5596
    %6085 = vmatpush1.bf16.msra.mxu0 %v5595
    %6086 = vmatprep.subr.bf16.mxu0 %v5600
    %6087 = vmatpush1.bf16.msra.mxu0 %v5599
    %6088 = vmatprep.subr.bf16.mxu0 %v5604
    %6089 = vmatpush1.bf16.msra.mxu0 %v5603
    %6090 = vmatprep.subr.bf16.mxu0 %v5608
    %6091 = vmatpush1.bf16.msra.mxu0 %v5607
    %6092 = vmatprep.subr.bf16.mxu0 %v5612
    %6093 = vmatpush1.bf16.msra.mxu0 %v5611
    %6094 = vmatprep.subr.bf16.mxu0 %v5616
    %6095 = vmatpush1.bf16.msra.mxu0 %v5615
    %6096 = vmatprep.subr.bf16.mxu0 %v5620
    %6097 = vmatpush1.bf16.msra.mxu0 %v5619
    %6098 = vmatprep.subr.bf16.mxu0 %v5624
    %6099 = vmatpush1.bf16.msra.mxu0 %v5623
    %6100 = vmatprep.subr.bf16.mxu0 %v5628
    %6101 = vmatpush1.bf16.msra.mxu0 %v5627
    %6102 = vmatprep.subr.bf16.mxu0 %v5632
    %6103 = vmatpush1.bf16.msra.mxu0 %v5631
    %6104 = vmatprep.subr.bf16.mxu0 %v5636
    %6105 = vmatpush1.bf16.msra.mxu0 %v5635
    %6106 = vmatprep.subr.bf16.mxu0 %v5640
    %6107 = vmatpush1.bf16.msra.mxu0 %v5639
    %6108 = vmatprep.subr.bf16.mxu0 %v5644
    %6109 = vmatpush1.bf16.msra.mxu0 %v5643
    %6110 = vmatprep.mubr.bf16.mxu0 %v4665
    %6111 = vmatmul.mubr.bf16.gmra.mrb[0].mxu0 %v4664
    %v6112 = vpop.f32.mrb[0].mxu0
    %v6113 = vadd.f32 %v6072, %v6112
    %v6114 = vpop.f32.mrb[0].mxu0
    %v6115 = vadd.f32 %v6074, %v6114
    %v6116 = vpop.f32.mrb[0].mxu0
    %v6117 = vpop.f32.mrb[0].mxu0
    %6118 = vdwg.mxu0
    %6119 = vmatprep.subr.bf16.mxu0 %v5648
    %6120 = vmatpush1.bf16.msra.mxu0 %v5647
    %6121 = vmatprep.subr.bf16.mxu0 %v5652
    %6122 = vmatpush1.bf16.msra.mxu0 %v5651
    %6123 = vmatprep.subr.bf16.mxu0 %v5656
    %6124 = vmatpush1.bf16.msra.mxu0 %v5655
    %6125 = vmatprep.subr.bf16.mxu0 %v5660
    %6126 = vmatpush1.bf16.msra.mxu0 %v5659
    %6127 = vmatprep.subr.bf16.mxu0 %v5664
    %6128 = vmatpush1.bf16.msra.mxu0 %v5663
    %6129 = vmatprep.subr.bf16.mxu0 %v5668
    %6130 = vmatpush1.bf16.msra.mxu0 %v5667
    %6131 = vmatprep.subr.bf16.mxu0 %v5672
    %6132 = vmatpush1.bf16.msra.mxu0 %v5671
    %6133 = vmatprep.subr.bf16.mxu0 %v5676
    %6134 = vmatpush1.bf16.msra.mxu0 %v5675
    %6135 = vmatprep.subr.bf16.mxu0 %v5680
    %6136 = vmatpush1.bf16.msra.mxu0 %v5679
    %6137 = vmatprep.subr.bf16.mxu0 %v5684
    %6138 = vmatpush1.bf16.msra.mxu0 %v5683
    %6139 = vmatprep.subr.bf16.mxu0 %v5688
    %6140 = vmatpush1.bf16.msra.mxu0 %v5687
    %6141 = vmatprep.subr.bf16.mxu0 %v5692
    %6142 = vmatpush1.bf16.msra.mxu0 %v5691
    %6143 = vmatprep.subr.bf16.mxu0 %v5696
    %6144 = vmatpush1.bf16.msra.mxu0 %v5695
    %6145 = vmatprep.subr.bf16.mxu0 %v5700
    %6146 = vmatpush1.bf16.msra.mxu0 %v5699
    %6147 = vmatprep.subr.bf16.mxu0 %v5704
    %6148 = vmatpush1.bf16.msra.mxu0 %v5703
    %6149 = vmatprep.subr.bf16.mxu0 %v5708
    %6150 = vmatpush1.bf16.msra.mxu0 %v5707
    %6151 = vmatprep.mubr.bf16.mxu0 %v4667
    %6152 = vmatmul.mubr.bf16.gmra.mrb[0].mxu0 %v4666
    %v6153 = vpop.f32.mrb[0].mxu0
    %v6154 = vadd.f32 %v6113, %v6153
    %v6155 = vpop.f32.mrb[0].mxu0
    %v6156 = vadd.f32 %v6115, %v6155
    %v6157 = vpop.f32.mrb[0].mxu0
    %v6158 = vpop.f32.mrb[0].mxu0
    %6159 = vdwg.mxu0
    %6160 = vmatprep.subr.bf16.mxu0 %v5712
    %6161 = vmatpush1.bf16.msra.mxu0 %v5711
    %6162 = vmatprep.subr.bf16.mxu0 %v5988
    %6163 = vmatpush1.bf16.msra.mxu0 %v5985
    %6164 = vmatprep.subr.bf16.mxu0 0
    %6165 = vmatpush1.bf16.msra.mxu0 0
    %6166 = vmatprep.subr.bf16.mxu0 0
    %6167 = vmatpush1.bf16.msra.mxu0 0
    %6168 = vmatprep.subr.bf16.mxu0 0
    %6169 = vmatpush1.bf16.msra.mxu0 0
    %6170 = vmatprep.subr.bf16.mxu0 0
    %6171 = vmatpush1.bf16.msra.mxu0 0
    %6172 = vmatprep.subr.bf16.mxu0 0
    %6173 = vmatpush1.bf16.msra.mxu0 0
    %6174 = vmatprep.subr.bf16.mxu0 0
    %6175 = vmatpush1.bf16.msra.mxu0 0
    %6176 = vmatprep.subr.bf16.mxu0 0
    %6177 = vmatpush1.bf16.msra.mxu0 0
    %6178 = vmatprep.subr.bf16.mxu0 0
    %6179 = vmatpush1.bf16.msra.mxu0 0
    %6180 = vmatprep.subr.bf16.mxu0 0
    %6181 = vmatpush1.bf16.msra.mxu0 0
    %6182 = vmatprep.subr.bf16.mxu0 0
    %6183 = vmatpush1.bf16.msra.mxu0 0
    %6184 = vmatprep.subr.bf16.mxu0 0
    %6185 = vmatpush1.bf16.msra.mxu0 0
    %6186 = vmatprep.subr.bf16.mxu0 0
    %6187 = vmatpush1.bf16.msra.mxu0 0
    %6188 = vmatprep.subr.bf16.mxu0 0
    %6189 = vmatpush1.bf16.msra.mxu0 0
    %6190 = vmatprep.subr.bf16.mxu0 0
    %6191 = vmatpush1.bf16.msra.mxu0 0
    %6192 = vmatprep.mubr.bf16.mxu0 0
    %6193 = vmatmul.mubr.bf16.gmra.mrb[0].mxu0 %v5981
    %v6194 = vpop.f32.mrb[0].mxu0
    %v6195 = vadd.f32 %v6154, %v6194
    %v6196 = vpop.f32.mrb[0].mxu0
    %v6197 = vadd.f32 %v6156, %v6196
    %v6198 = vpop.f32.mrb[0].mxu0
    %v6199 = vpop.f32.mrb[0].mxu0
    %6200 = vdwg.mxu0
    %6201 = vmatprep.subr.bf16.mxu0 %v5458
    %6202 = vmatpush1.bf16.msra.mxu0 %v5457
    %6203 = vmatprep.subr.bf16.mxu0 %v5462
    %6204 = vmatpush1.bf16.msra.mxu0 %v5461
    %6205 = vmatprep.subr.bf16.mxu0 %v5466
    %6206 = vmatpush1.bf16.msra.mxu0 %v5465
    %6207 = vmatprep.subr.bf16.mxu0 %v5470
    %6208 = vmatpush1.bf16.msra.mxu0 %v5469
    %6209 = vmatprep.subr.bf16.mxu0 %v5474
    %6210 = vmatpush1.bf16.msra.mxu0 %v5473
    %6211 = vmatprep.subr.bf16.mxu0 %v5478
    %6212 = vmatpush1.bf16.msra.mxu0 %v5477
    %6213 = vmatprep.subr.bf16.mxu0 %v5482
    %6214 = vmatpush1.bf16.msra.mxu0 %v5481
    %6215 = vmatprep.subr.bf16.mxu0 %v5486
    %6216 = vmatpush1.bf16.msra.mxu0 %v5485
    %6217 = vmatprep.subr.bf16.mxu0 %v5490
    %6218 = vmatpush1.bf16.msra.mxu0 %v5489
    %6219 = vmatprep.subr.bf16.mxu0 %v5494
    %6220 = vmatpush1.bf16.msra.mxu0 %v5493
    %6221 = vmatprep.subr.bf16.mxu0 %v5498
    %6222 = vmatpush1.bf16.msra.mxu0 %v5497
    %6223 = vmatprep.subr.bf16.mxu0 %v5502
    %6224 = vmatpush1.bf16.msra.mxu0 %v5501
    %6225 = vmatprep.subr.bf16.mxu0 %v5506
    %6226 = vmatpush1.bf16.msra.mxu0 %v5505
    %6227 = vmatprep.subr.bf16.mxu0 %v5510
    %6228 = vmatpush1.bf16.msra.mxu0 %v5509
    %6229 = vmatprep.subr.bf16.mxu0 %v5514
    %6230 = vmatpush1.bf16.msra.mxu0 %v5513
    %6231 = vmatprep.subr.bf16.mxu0 %v5518
    %6232 = vmatpush1.bf16.msra.mxu0 %v5517
    %6233 = vmatprep.mubr.bf16.mxu0 %v4661
    %6234 = vmatmul.mubr.bf16.gmra.mrb[0].mxu0 %v4660
    %v6235 = vpop.f32.mrb[0].mxu0
    %v6236 = vadd.f32 0.0, %v6235
    %v6237 = vpop.f32.mrb[0].mxu0
    %v6238 = vadd.f32 0.0, %v6237
    %v6239 = vpop.f32.mrb[0].mxu0
    %v6240 = vpop.f32.mrb[0].mxu0
    %6241 = vdwg.mxu0
    %6242 = vmatprep.subr.bf16.mxu0 %v5522
    %6243 = vmatpush1.bf16.msra.mxu0 %v5521
    %6244 = vmatprep.subr.bf16.mxu0 %v5526
    %6245 = vmatpush1.bf16.msra.mxu0 %v5525
    %6246 = vmatprep.subr.bf16.mxu0 %v5530
    %6247 = vmatpush1.bf16.msra.mxu0 %v5529
    %6248 = vmatprep.subr.bf16.mxu0 %v5534
    %6249 = vmatpush1.bf16.msra.mxu0 %v5533
    %6250 = vmatprep.subr.bf16.mxu0 %v5538
    %6251 = vmatpush1.bf16.msra.mxu0 %v5537
    %6252 = vmatprep.subr.bf16.mxu0 %v5542
    %6253 = vmatpush1.bf16.msra.mxu0 %v5541
    %6254 = vmatprep.subr.bf16.mxu0 %v5546
    %6255 = vmatpush1.bf16.msra.mxu0 %v5545
    %6256 = vmatprep.subr.bf16.mxu0 %v5550
    %6257 = vmatpush1.bf16.msra.mxu0 %v5549
    %6258 = vmatprep.subr.bf16.mxu0 %v5554
    %6259 = vmatpush1.bf16.msra.mxu0 %v5553
    %6260 = vmatprep.subr.bf16.mxu0 %v5558
    %6261 = vmatpush1.bf16.msra.mxu0 %v5557
    %6262 = vmatprep.subr.bf16.mxu0 %v5562
    %6263 = vmatpush1.bf16.msra.mxu0 %v5561
    %6264 = vmatprep.subr.bf16.mxu0 %v5566
    %6265 = vmatpush1.bf16.msra.mxu0 %v5565
    %6266 = vmatprep.subr.bf16.mxu0 %v5570
    %6267 = vmatpush1.bf16.msra.mxu0 %v5569
    %6268 = vmatprep.subr.bf16.mxu0 %v5574
    %6269 = vmatpush1.bf16.msra.mxu0 %v5573
    %6270 = vmatprep.subr.bf16.mxu0 %v5578
    %6271 = vmatpush1.bf16.msra.mxu0 %v5577
    %6272 = vmatprep.subr.bf16.mxu0 %v5582
    %6273 = vmatpush1.bf16.msra.mxu0 %v5581
    %6274 = vmatprep.mubr.bf16.mxu0 %v4663
    %6275 = vmatmul.mubr.bf16.gmra.mrb[0].mxu0 %v4662
    %v6276 = vpop.f32.mrb[0].mxu0
    %v6277 = vadd.f32 %v6236, %v6276
    %v6278 = vpop.f32.mrb[0].mxu0
    %v6279 = vadd.f32 %v6238, %v6278
    %v6280 = vpop.f32.mrb[0].mxu0
    %v6281 = vpop.f32.mrb[0].mxu0
    %6282 = vdwg.mxu0
    %6283 = vmatprep.subr.bf16.mxu0 %v5586
    %6284 = vmatpush1.bf16.msra.mxu0 %v5585
    %6285 = vmatprep.subr.bf16.mxu0 %v5590
    %6286 = vmatpush1.bf16.msra.mxu0 %v5589
    %6287 = vmatprep.subr.bf16.mxu0 %v5594
    %6288 = vmatpush1.bf16.msra.mxu0 %v5593
    %6289 = vmatprep.subr.bf16.mxu0 %v5598
    %6290 = vmatpush1.bf16.msra.mxu0 %v5597
    %6291 = vmatprep.subr.bf16.mxu0 %v5602
    %6292 = vmatpush1.bf16.msra.mxu0 %v5601
    %6293 = vmatprep.subr.bf16.mxu0 %v5606
    %6294 = vmatpush1.bf16.msra.mxu0 %v5605
    %6295 = vmatprep.subr.bf16.mxu0 %v5610
    %6296 = vmatpush1.bf16.msra.mxu0 %v5609
    %6297 = vmatprep.subr.bf16.mxu0 %v5614
    %6298 = vmatpush1.bf16.msra.mxu0 %v5613
    %6299 = vmatprep.subr.bf16.mxu0 %v5618
    %6300 = vmatpush1.bf16.msra.mxu0 %v5617
    %6301 = vmatprep.subr.bf16.mxu0 %v5622
    %6302 = vmatpush1.bf16.msra.mxu0 %v5621
    %6303 = vmatprep.subr.bf16.mxu0 %v5626
    %6304 = vmatpush1.bf16.msra.mxu0 %v5625
    %6305 = vmatprep.subr.bf16.mxu0 %v5630
    %6306 = vmatpush1.bf16.msra.mxu0 %v5629
    %6307 = vmatprep.subr.bf16.mxu0 %v5634
    %6308 = vmatpush1.bf16.msra.mxu0 %v5633
    %6309 = vmatprep.subr.bf16.mxu0 %v5638
    %6310 = vmatpush1.bf16.msra.mxu0 %v5637
    %6311 = vmatprep.subr.bf16.mxu0 %v5642
    %6312 = vmatpush1.bf16.msra.mxu0 %v5641
    %6313 = vmatprep.subr.bf16.mxu0 %v5646
    %6314 = vmatpush1.bf16.msra.mxu0 %v5645
    %6315 = vmatprep.mubr.bf16.mxu0 %v4665
    %6316 = vmatmul.mubr.bf16.gmra.mrb[0].mxu0 %v4664
    %v6317 = vpop.f32.mrb[0].mxu0
    %v6318 = vadd.f32 %v6277, %v6317
    %v6319 = vpop.f32.mrb[0].mxu0
    %v6320 = vadd.f32 %v6279, %v6319
    %v6321 = vpop.f32.mrb[0].mxu0
    %v6322 = vpop.f32.mrb[0].mxu0
    %6323 = vdwg.mxu0
    %6324 = vmatprep.subr.bf16.mxu0 %v5650
    %6325 = vmatpush1.bf16.msra.mxu0 %v5649
    %6326 = vmatprep.subr.bf16.mxu0 %v5654
    %6327 = vmatpush1.bf16.msra.mxu0 %v5653
    %6328 = vmatprep.subr.bf16.mxu0 %v5658
    %6329 = vmatpush1.bf16.msra.mxu0 %v5657
    %6330 = vmatprep.subr.bf16.mxu0 %v5662
    %6331 = vmatpush1.bf16.msra.mxu0 %v5661
    %6332 = vmatprep.subr.bf16.mxu0 %v5666
    %6333 = vmatpush1.bf16.msra.mxu0 %v5665
    %6334 = vmatprep.subr.bf16.mxu0 %v5670
    %6335 = vmatpush1.bf16.msra.mxu0 %v5669
    %6336 = vmatprep.subr.bf16.mxu0 %v5674
    %6337 = vmatpush1.bf16.msra.mxu0 %v5673
    %6338 = vmatprep.subr.bf16.mxu0 %v5678
    %6339 = vmatpush1.bf16.msra.mxu0 %v5677
    %6340 = vmatprep.subr.bf16.mxu0 %v5682
    %6341 = vmatpush1.bf16.msra.mxu0 %v5681
    %6342 = vmatprep.subr.bf16.mxu0 %v5686
    %6343 = vmatpush1.bf16.msra.mxu0 %v5685
    %6344 = vmatprep.subr.bf16.mxu0 %v5690
    %6345 = vmatpush1.bf16.msra.mxu0 %v5689
    %6346 = vmatprep.subr.bf16.mxu0 %v5694
    %6347 = vmatpush1.bf16.msra.mxu0 %v5693
    %6348 = vmatprep.subr.bf16.mxu0 %v5698
    %6349 = vmatpush1.bf16.msra.mxu0 %v5697
    %6350 = vmatprep.subr.bf16.mxu0 %v5702
    %6351 = vmatpush1.bf16.msra.mxu0 %v5701
    %6352 = vmatprep.subr.bf16.mxu0 %v5706
    %6353 = vmatpush1.bf16.msra.mxu0 %v5705
    %6354 = vmatprep.subr.bf16.mxu0 %v5710
    %6355 = vmatpush1.bf16.msra.mxu0 %v5709
    %6356 = vmatprep.mubr.bf16.mxu0 %v4667
    %6357 = vmatmul.mubr.bf16.gmra.mrb[0].mxu0 %v4666
    %v6358 = vpop.f32.mrb[0].mxu0
    %v6359 = vadd.f32 %v6318, %v6358
    %v6360 = vpop.f32.mrb[0].mxu0
    %v6361 = vadd.f32 %v6320, %v6360
    %v6362 = vpop.f32.mrb[0].mxu0
    %v6363 = vpop.f32.mrb[0].mxu0
    %6364 = vdwg.mxu0
    %6365 = vmatprep.subr.bf16.mxu0 %v5714
    %6366 = vmatpush1.bf16.msra.mxu0 %v5713
    %6367 = vmatprep.subr.bf16.mxu0 %v5994
    %6368 = vmatpush1.bf16.msra.mxu0 %v5991
    %6369 = vmatprep.subr.bf16.mxu0 0
    %6370 = vmatpush1.bf16.msra.mxu0 0
    %6371 = vmatprep.subr.bf16.mxu0 0
    %6372 = vmatpush1.bf16.msra.mxu0 0
    %6373 = vmatprep.subr.bf16.mxu0 0
    %6374 = vmatpush1.bf16.msra.mxu0 0
    %6375 = vmatprep.subr.bf16.mxu0 0
    %6376 = vmatpush1.bf16.msra.mxu0 0
    %6377 = vmatprep.subr.bf16.mxu0 0
    %6378 = vmatpush1.bf16.msra.mxu0 0
    %6379 = vmatprep.subr.bf16.mxu0 0
    %6380 = vmatpush1.bf16.msra.mxu0 0
    %6381 = vmatprep.subr.bf16.mxu0 0
    %6382 = vmatpush1.bf16.msra.mxu0 0
    %6383 = vmatprep.subr.bf16.mxu0 0
    %6384 = vmatpush1.bf16.msra.mxu0 0
    %6385 = vmatprep.subr.bf16.mxu0 0
    %6386 = vmatpush1.bf16.msra.mxu0 0
    %6387 = vmatprep.subr.bf16.mxu0 0
    %6388 = vmatpush1.bf16.msra.mxu0 0
    %6389 = vmatprep.subr.bf16.mxu0 0
    %6390 = vmatpush1.bf16.msra.mxu0 0
    %6391 = vmatprep.subr.bf16.mxu0 0
    %6392 = vmatpush1.bf16.msra.mxu0 0
    %6393 = vmatprep.subr.bf16.mxu0 0
    %6394 = vmatpush1.bf16.msra.mxu0 0
    %6395 = vmatprep.subr.bf16.mxu0 0
    %6396 = vmatpush1.bf16.msra.mxu0 0
    %6397 = vmatprep.mubr.bf16.mxu0 0
    %6398 = vmatmul.mubr.bf16.gmra.mrb[0].mxu0 %v5981
    %v6399 = vpop.f32.mrb[0].mxu0
    %v6400 = vadd.f32 %v6359, %v6399
    %v6401 = vpop.f32.mrb[0].mxu0
    %v6402 = vadd.f32 %v6361, %v6401
    %v6403 = vpop.f32.mrb[0].mxu0
    %v6404 = vpop.f32.mrb[0].mxu0
    %6405 = vdwg.mxu0
    %v6410 = vrot.slane %v58, 3
    %v6411 = vrot.slane %v59, 3
    %v6412 = vrot.slane %v60, 3
    %v6413 = vrot.slane %v61, 3
    %v6418 = vmul.f32 %v6195, %v6410
    %v6419 = vmul.f32 %v6197, %v6411
    %v6420 = vmul.f32 %v6400, %v6412
    %v6421 = vmul.f32 %v6402, %v6413
    %v6422 = vadd.f32 %v6418, %v58
    %v6423 = vadd.f32 %v6419, %v59
    %v6424 = vadd.f32 %v6420, %v60
    %v6425 = vadd.f32 %v6421, %v61
    %v6426 = vsel %vm4060, %v6422, 0.0
    %v6427 = vsel %vm4060, %v6423, 0.0
    %v6428 = vadd.f32 %v6426, %v6427
    %v6429 = vsel %vm4060, %v6424, 0.0
    %v6430 = vadd.f32 %v6428, %v6429
    %v6431 = vsel %vm4060, %v6425, 0.0
    %v6432 = vadd.f32 %v6430, %v6431
    %6433 = vadd.xlane.f32.xlu0 %v6432
    %v6434 = vpop.xlane.xlu0 %6433
    %v6435 = vrcp.pop 512.0
    %v6436 = vmul.f32 %v6434, %v6435
    %v6437 = vsub.f32 %v6422, %v6436
    %v6438 = vsub.f32 %v6423, %v6436
    %v6439 = vsub.f32 %v6424, %v6436
    %v6440 = vsub.f32 %v6425, %v6436
    %v6441 = vmul.f32 %v6437, %v6437
    %v6442 = vmul.f32 %v6438, %v6438
    %v6443 = vmul.f32 %v6439, %v6439
    %v6444 = vmul.f32 %v6440, %v6440
    %v6445 = vsel %vm4060, %v6441, 0.0
    %v6446 = vsel %vm4060, %v6442, 0.0
    %v6447 = vadd.f32 %v6445, %v6446
    %v6448 = vsel %vm4060, %v6443, 0.0
    %v6449 = vadd.f32 %v6447, %v6448
    %v6450 = vsel %vm4060, %v6444, 0.0
    %v6451 = vadd.f32 %v6449, %v6450
    %6452 = vadd.xlane.f32.xlu0 %v6451
    %v6453 = vpop.xlane.xlu0 %6452
    %v6454 = vmul.f32 %v6453, %v6435
    %v6455 = vadd.f32 %v6454, 1e-05
    %v6456 = vrsqrt.pop %v6455
    %v6457 = vmul.f32 %v6437, %v6456
    %v6458 = vmul.f32 %v6438, %v6456
    %v6459 = vmul.f32 %v6439, %v6456
    %v6460 = vmul.f32 %v6440, %v6456
    %v6461 = vrot.slane %v58, 1
    %v6462 = vrot.slane %v59, 1
    %v6463 = vrot.slane %v60, 1
    %v6464 = vrot.slane %v61, 1
    %v6469 = vmul.f32 %v6457, %v6461
    %v6470 = vmul.f32 %v6458, %v6462
    %v6471 = vmul.f32 %v6459, %v6463
    %v6472 = vmul.f32 %v6460, %v6464
    %v6473 = vrot.slane %v58, 2
    %v6474 = vrot.slane %v59, 2
    %v6475 = vrot.slane %v60, 2
    %v6476 = vrot.slane %v61, 2
    %v6481 = vadd.f32 %v6469, %v6473
    %v6482 = vadd.f32 %v6470, %v6474
    %v6483 = vadd.f32 %v6471, %v6475
    %v6484 = vadd.f32 %v6472, %v6476
    %v6485 = vmul.f32 %v6481, 0.5
    %v6486 = vmul.f32 %v6482, 0.5
    %v6487 = vmul.f32 %v6483, 0.5
    %v6488 = vmul.f32 %v6484, 0.5
    %v6489 = vmul.f32 %v6481, 0.044715
    %v6490 = vmul.f32 %v6482, 0.044715
    %v6491 = vmul.f32 %v6483, 0.044715
    %v6492 = vmul.f32 %v6484, 0.044715
    %v6493 = vmul.f32 %v6489, %v6481
    %v6494 = vmul.f32 %v6490, %v6482
    %v6495 = vmul.f32 %v6491, %v6483
    %v6496 = vmul.f32 %v6492, %v6484
    %v6497 = vmul.f32 %v6493, %v6481
    %v6498 = vmul.f32 %v6494, %v6482
    %v6499 = vmul.f32 %v6495, %v6483
    %v6500 = vmul.f32 %v6496, %v6484
    %v6501 = vadd.f32 %v6481, %v6497
    %v6502 = vadd.f32 %v6482, %v6498
    %v6503 = vadd.f32 %v6483, %v6499
    %v6504 = vadd.f32 %v6484, %v6500
    %v6505 = vmul.f32 %v6501, 0.7978846
    %v6506 = vmul.f32 %v6502, 0.7978846
    %v6507 = vmul.f32 %v6503, 0.7978846
    %v6508 = vmul.f32 %v6504, 0.7978846
    %v6509 = vtanh.pop %v6505
    %v6510 = vtanh.pop %v6506
    %v6511 = vtanh.pop %v6507
    %v6512 = vtanh.pop %v6508
    %v6513 = vadd.f32 %v6509, 1.0
    %v6514 = vadd.f32 %v6510, 1.0
    %v6515 = vadd.f32 %v6511, 1.0
    %v6516 = vadd.f32 %v6512, 1.0
    %v6517 = vmul.f32 %v6485, %v6513
    %v6518 = vmul.f32 %v6486, %v6514
    %v6519 = vmul.f32 %v6487, %v6515
    %v6520 = vmul.f32 %v6488, %v6516
    %v6521 = vld [vmem:[%s3] sm:$0xff]
    %v6522 = vld [vmem:[%s7] sm:$0xff]
    %v6523 = vld [vmem:[%s7 + $0x8] sm:$0xff]
    %v6524 = vld [vmem:[%s7 + $0x10] sm:$0xff]
    %v6525 = vld [vmem:[%s7 + $0x18] sm:$0xff]
    %v6526 = vld [vmem:[%s7 + $0x20] sm:$0xff]
    %v6527 = vld [vmem:[%s7 + $0x28] sm:$0xff]
    %v6528 = vld [vmem:[%s7 + $0x30] sm:$0xff]
    %v6529 = vld [vmem:[%s7 + $0x38] sm:$0xff]
    %v6530 = vld [vmem:[%s7 + $0x40] sm:$0xff]
    %v6531 = vld [vmem:[%s7 + $0x48] sm:$0xff]
    %v6532 = vld [vmem:[%s7 + $0x50] sm:$0xff]
    %v6533 = vld [vmem:[%s7 + $0x58] sm:$0xff]
    %v6534 = vld [vmem:[%s7 + $0x60] sm:$0xff]
    %v6535 = vld [vmem:[%s7 + $0x68] sm:$0xff]
    %v6536 = vld [vmem:[%s7 + $0x70] sm:$0xff]
    %v6537 = vld [vmem:[%s7 + $0x78] sm:$0xff]
    %v6538 = vld [vmem:[%s7 + $0x80] sm:$0xff]
    %v6539 = vld [vmem:[%s7 + $0x88] sm:$0xff]
    %v6540 = vld [vmem:[%s7 + $0x90] sm:$0xff]
    %v6541 = vld [vmem:[%s7 + $0x98] sm:$0xff]
    %v6542 = vld [vmem:[%s7 + $0xa0] sm:$0xff]
    %v6543 = vld [vmem:[%s7 + $0xa8] sm:$0xff]
    %v6544 = vld [vmem:[%s7 + $0xb0] sm:$0xff]
    %v6545 = vld [vmem:[%s7 + $0xb8] sm:$0xff]
    %v6546 = vld [vmem:[%s7 + $0xc0] sm:$0xff]
    %v6547 = vld [vmem:[%s7 + $0xc8] sm:$0xff]
    %v6548 = vld [vmem:[%s7 + $0xd0] sm:$0xff]
    %v6549 = vld [vmem:[%s7 + $0xd8] sm:$0xff]
    %v6550 = vld [vmem:[%s7 + $0xe0] sm:$0xff]
    %v6551 = vld [vmem:[%s7 + $0xe8] sm:$0xff]
    %v6552 = vld [vmem:[%s7 + $0xf0] sm:$0xff]
    %v6553 = vld [vmem:[%s7 + $0xf8] sm:$0xff]
    %v6554 = vld [vmem:[%s7 + $0x100] sm:$0xff]
    %v6555 = vld [vmem:[%s7 + $0x108] sm:$0xff]
    %v6556 = vld [vmem:[%s7 + $0x110] sm:$0xff]
    %v6557 = vld [vmem:[%s7 + $0x118] sm:$0xff]
    %v6558 = vld [vmem:[%s7 + $0x120] sm:$0xff]
    %v6559 = vld [vmem:[%s7 + $0x128] sm:$0xff]
    %v6560 = vld [vmem:[%s7 + $0x130] sm:$0xff]
    %v6561 = vld [vmem:[%s7 + $0x138] sm:$0xff]
    %v6562 = vld [vmem:[%s7 + $0x140] sm:$0xff]
    %v6563 = vld [vmem:[%s7 + $0x148] sm:$0xff]
    %v6564 = vld [vmem:[%s7 + $0x150] sm:$0xff]
    %v6565 = vld [vmem:[%s7 + $0x158] sm:$0xff]
    %v6566 = vld [vmem:[%s7 + $0x160] sm:$0xff]
    %v6567 = vld [vmem:[%s7 + $0x168] sm:$0xff]
    %v6568 = vld [vmem:[%s7 + $0x170] sm:$0xff]
    %v6569 = vld [vmem:[%s7 + $0x178] sm:$0xff]
    %v6570 = vld [vmem:[%s7 + $0x180] sm:$0xff]
    %v6571 = vld [vmem:[%s7 + $0x188] sm:$0xff]
    %v6572 = vld [vmem:[%s7 + $0x190] sm:$0xff]
    %v6573 = vld [vmem:[%s7 + $0x198] sm:$0xff]
    %v6574 = vld [vmem:[%s7 + $0x1a0] sm:$0xff]
    %v6575 = vld [vmem:[%s7 + $0x1a8] sm:$0xff]
    %v6576 = vld [vmem:[%s7 + $0x1b0] sm:$0xff]
    %v6577 = vld [vmem:[%s7 + $0x1b8] sm:$0xff]
    %v6578 = vld [vmem:[%s7 + $0x1c0] sm:$0xff]
    %v6579 = vld [vmem:[%s7 + $0x1c8] sm:$0xff]
    %v6580 = vld [vmem:[%s7 + $0x1d0] sm:$0xff]
    %v6581 = vld [vmem:[%s7 + $0x1d8] sm:$0xff]
    %v6582 = vld [vmem:[%s7 + $0x1e0] sm:$0xff]
    %v6583 = vld [vmem:[%s7 + $0x1e8] sm:$0xff]
    %v6584 = vld [vmem:[%s7 + $0x1f0] sm:$0xff]
    %v6585 = vld [vmem:[%s7 + $0x1f8] sm:$0xff]
    %v6586 = vld [vmem:[%s7 + $0x200] sm:$0xff]
    %v6587 = vld [vmem:[%s7 + $0x208] sm:$0xff]
    %v6588 = vld [vmem:[%s7 + $0x210] sm:$0xff]
    %v6589 = vld [vmem:[%s7 + $0x218] sm:$0xff]
    %v6590 = vld [vmem:[%s7 + $0x220] sm:$0xff]
    %v6591 = vld [vmem:[%s7 + $0x228] sm:$0xff]
    %v6592 = vld [vmem:[%s7 + $0x230] sm:$0xff]
    %v6593 = vld [vmem:[%s7 + $0x238] sm:$0xff]
    %v6594 = vld [vmem:[%s7 + $0x240] sm:$0xff]
    %v6595 = vld [vmem:[%s7 + $0x248] sm:$0xff]
    %v6596 = vld [vmem:[%s7 + $0x250] sm:$0xff]
    %v6597 = vld [vmem:[%s7 + $0x258] sm:$0xff]
    %v6598 = vld [vmem:[%s7 + $0x260] sm:$0xff]
    %v6599 = vld [vmem:[%s7 + $0x268] sm:$0xff]
    %v6600 = vld [vmem:[%s7 + $0x270] sm:$0xff]
    %v6601 = vld [vmem:[%s7 + $0x278] sm:$0xff]
    %v6602 = vld [vmem:[%s7 + $0x280] sm:$0xff]
    %v6603 = vld [vmem:[%s7 + $0x288] sm:$0xff]
    %v6604 = vld [vmem:[%s7 + $0x290] sm:$0xff]
    %v6605 = vld [vmem:[%s7 + $0x298] sm:$0xff]
    %v6606 = vld [vmem:[%s7 + $0x2a0] sm:$0xff]
    %v6607 = vld [vmem:[%s7 + $0x2a8] sm:$0xff]
    %v6608 = vld [vmem:[%s7 + $0x2b0] sm:$0xff]
    %v6609 = vld [vmem:[%s7 + $0x2b8] sm:$0xff]
    %v6610 = vld [vmem:[%s7 + $0x2c0] sm:$0xff]
    %v6611 = vld [vmem:[%s7 + $0x2c8] sm:$0xff]
    %v6612 = vld [vmem:[%s7 + $0x2d0] sm:$0xff]
    %v6613 = vld [vmem:[%s7 + $0x2d8] sm:$0xff]
    %v6614 = vld [vmem:[%s7 + $0x2e0] sm:$0xff]
    %v6615 = vld [vmem:[%s7 + $0x2e8] sm:$0xff]
    %v6616 = vld [vmem:[%s7 + $0x2f0] sm:$0xff]
    %v6617 = vld [vmem:[%s7 + $0x2f8] sm:$0xff]
    %v6618 = vld [vmem:[%s7 + $0x300] sm:$0xff]
    %v6619 = vld [vmem:[%s7 + $0x308] sm:$0xff]
    %v6620 = vld [vmem:[%s7 + $0x310] sm:$0xff]
    %v6621 = vld [vmem:[%s7 + $0x318] sm:$0xff]
    %v6622 = vld [vmem:[%s7 + $0x320] sm:$0xff]
    %v6623 = vld [vmem:[%s7 + $0x328] sm:$0xff]
    %v6624 = vld [vmem:[%s7 + $0x330] sm:$0xff]
    %v6625 = vld [vmem:[%s7 + $0x338] sm:$0xff]
    %v6626 = vld [vmem:[%s7 + $0x340] sm:$0xff]
    %v6627 = vld [vmem:[%s7 + $0x348] sm:$0xff]
    %v6628 = vld [vmem:[%s7 + $0x350] sm:$0xff]
    %v6629 = vld [vmem:[%s7 + $0x358] sm:$0xff]
    %v6630 = vld [vmem:[%s7 + $0x360] sm:$0xff]
    %v6631 = vld [vmem:[%s7 + $0x368] sm:$0xff]
    %v6632 = vld [vmem:[%s7 + $0x370] sm:$0xff]
    %v6633 = vld [vmem:[%s7 + $0x378] sm:$0xff]
    %v6634 = vld [vmem:[%s7 + $0x380] sm:$0xff]
    %v6635 = vld [vmem:[%s7 + $0x388] sm:$0xff]
    %v6636 = vld [vmem:[%s7 + $0x390] sm:$0xff]
    %v6637 = vld [vmem:[%s7 + $0x398] sm:$0xff]
    %v6638 = vld [vmem:[%s7 + $0x3a0] sm:$0xff]
    %v6639 = vld [vmem:[%s7 + $0x3a8] sm:$0xff]
    %v6640 = vld [vmem:[%s7 + $0x3b0] sm:$0xff]
    %v6641 = vld [vmem:[%s7 + $0x3b8] sm:$0xff]
    %v6642 = vld [vmem:[%s7 + $0x3c0] sm:$0xff]
    %v6643 = vld [vmem:[%s7 + $0x3c8] sm:$0xff]
    %v6644 = vld [vmem:[%s7 + $0x3d0] sm:$0xff]
    %v6645 = vld [vmem:[%s7 + $0x3d8] sm:$0xff]
    %v6646 = vld [vmem:[%s7 + $0x3e0] sm:$0xff]
    %v6647 = vld [vmem:[%s7 + $0x3e8] sm:$0xff]
    %v6648 = vld [vmem:[%s7 + $0x3f0] sm:$0xff]
    %v6649 = vld [vmem:[%s7 + $0x3f8] sm:$0xff]
    %v6650 = vunpack.c.l.s8.bf16 %v6522
    %v6651 = vunpack.c.l.s8.bf16 %v6523
    %v6652 = vunpack.c.l.s8.bf16 %v6524
    %v6653 = vunpack.c.l.s8.bf16 %v6525
    %v6654 = vunpack.c.h.s8.bf16 %v6522
    %v6655 = vunpack.c.h.s8.bf16 %v6523
    %v6656 = vunpack.c.h.s8.bf16 %v6524
    %v6657 = vunpack.c.h.s8.bf16 %v6525
    %v6658 = vunpack.c.l.s8.bf16 %v6526
    %v6659 = vunpack.c.l.s8.bf16 %v6527
    %v6660 = vunpack.c.l.s8.bf16 %v6528
    %v6661 = vunpack.c.l.s8.bf16 %v6529
    %v6662 = vunpack.c.h.s8.bf16 %v6526
    %v6663 = vunpack.c.h.s8.bf16 %v6527
    %v6664 = vunpack.c.h.s8.bf16 %v6528
    %v6665 = vunpack.c.h.s8.bf16 %v6529
    %v6666 = vunpack.c.l.s8.bf16 %v6530
    %v6667 = vunpack.c.l.s8.bf16 %v6531
    %v6668 = vunpack.c.l.s8.bf16 %v6532
    %v6669 = vunpack.c.l.s8.bf16 %v6533
    %v6670 = vunpack.c.h.s8.bf16 %v6530
    %v6671 = vunpack.c.h.s8.bf16 %v6531
    %v6672 = vunpack.c.h.s8.bf16 %v6532
    %v6673 = vunpack.c.h.s8.bf16 %v6533
    %v6674 = vunpack.c.l.s8.bf16 %v6534
    %v6675 = vunpack.c.l.s8.bf16 %v6535
    %v6676 = vunpack.c.l.s8.bf16 %v6536
    %v6677 = vunpack.c.l.s8.bf16 %v6537
    %v6678 = vunpack.c.h.s8.bf16 %v6534
    %v6679 = vunpack.c.h.s8.bf16 %v6535
    %v6680 = vunpack.c.h.s8.bf16 %v6536
    %v6681 = vunpack.c.h.s8.bf16 %v6537
    %v6682 = vunpack.c.l.s8.bf16 %v6538
    %v6683 = vunpack.c.l.s8.bf16 %v6539
    %v6684 = vunpack.c.l.s8.bf16 %v6540
    %v6685 = vunpack.c.l.s8.bf16 %v6541
    %v6686 = vunpack.c.h.s8.bf16 %v6538
    %v6687 = vunpack.c.h.s8.bf16 %v6539
    %v6688 = vunpack.c.h.s8.bf16 %v6540
    %v6689 = vunpack.c.h.s8.bf16 %v6541
    %v6690 = vunpack.c.l.s8.bf16 %v6542
    %v6691 = vunpack.c.l.s8.bf16 %v6543
    %v6692 = vunpack.c.l.s8.bf16 %v6544
    %v6693 = vunpack.c.l.s8.bf16 %v6545
    %v6694 = vunpack.c.h.s8.bf16 %v6542
    %v6695 = vunpack.c.h.s8.bf16 %v6543
    %v6696 = vunpack.c.h.s8.bf16 %v6544
    %v6697 = vunpack.c.h.s8.bf16 %v6545
    %v6698 = vunpack.c.l.s8.bf16 %v6546
    %v6699 = vunpack.c.l.s8.bf16 %v6547
    %v6700 = vunpack.c.l.s8.bf16 %v6548
    %v6701 = vunpack.c.l.s8.bf16 %v6549
    %v6702 = vunpack.c.h.s8.bf16 %v6546
    %v6703 = vunpack.c.h.s8.bf16 %v6547
    %v6704 = vunpack.c.h.s8.bf16 %v6548
    %v6705 = vunpack.c.h.s8.bf16 %v6549
    %v6706 = vunpack.c.l.s8.bf16 %v6550
    %v6707 = vunpack.c.l.s8.bf16 %v6551
    %v6708 = vunpack.c.l.s8.bf16 %v6552
    %v6709 = vunpack.c.l.s8.bf16 %v6553
    %v6710 = vunpack.c.h.s8.bf16 %v6550
    %v6711 = vunpack.c.h.s8.bf16 %v6551
    %v6712 = vunpack.c.h.s8.bf16 %v6552
    %v6713 = vunpack.c.h.s8.bf16 %v6553
    %v6714 = vunpack.c.l.s8.bf16 %v6554
    %v6715 = vunpack.c.l.s8.bf16 %v6555
    %v6716 = vunpack.c.l.s8.bf16 %v6556
    %v6717 = vunpack.c.l.s8.bf16 %v6557
    %v6718 = vunpack.c.h.s8.bf16 %v6554
    %v6719 = vunpack.c.h.s8.bf16 %v6555
    %v6720 = vunpack.c.h.s8.bf16 %v6556
    %v6721 = vunpack.c.h.s8.bf16 %v6557
    %v6722 = vunpack.c.l.s8.bf16 %v6558
    %v6723 = vunpack.c.l.s8.bf16 %v6559
    %v6724 = vunpack.c.l.s8.bf16 %v6560
    %v6725 = vunpack.c.l.s8.bf16 %v6561
    %v6726 = vunpack.c.h.s8.bf16 %v6558
    %v6727 = vunpack.c.h.s8.bf16 %v6559
    %v6728 = vunpack.c.h.s8.bf16 %v6560
    %v6729 = vunpack.c.h.s8.bf16 %v6561
    %v6730 = vunpack.c.l.s8.bf16 %v6562
    %v6731 = vunpack.c.l.s8.bf16 %v6563
    %v6732 = vunpack.c.l.s8.bf16 %v6564
    %v6733 = vunpack.c.l.s8.bf16 %v6565
    %v6734 = vunpack.c.h.s8.bf16 %v6562
    %v6735 = vunpack.c.h.s8.bf16 %v6563
    %v6736 = vunpack.c.h.s8.bf16 %v6564
    %v6737 = vunpack.c.h.s8.bf16 %v6565
    %v6738 = vunpack.c.l.s8.bf16 %v6566
    %v6739 = vunpack.c.l.s8.bf16 %v6567
    %v6740 = vunpack.c.l.s8.bf16 %v6568
    %v6741 = vunpack.c.l.s8.bf16 %v6569
    %v6742 = vunpack.c.h.s8.bf16 %v6566
    %v6743 = vunpack.c.h.s8.bf16 %v6567
    %v6744 = vunpack.c.h.s8.bf16 %v6568
    %v6745 = vunpack.c.h.s8.bf16 %v6569
    %v6746 = vunpack.c.l.s8.bf16 %v6570
    %v6747 = vunpack.c.l.s8.bf16 %v6571
    %v6748 = vunpack.c.l.s8.bf16 %v6572
    %v6749 = vunpack.c.l.s8.bf16 %v6573
    %v6750 = vunpack.c.h.s8.bf16 %v6570
    %v6751 = vunpack.c.h.s8.bf16 %v6571
    %v6752 = vunpack.c.h.s8.bf16 %v6572
    %v6753 = vunpack.c.h.s8.bf16 %v6573
    %v6754 = vunpack.c.l.s8.bf16 %v6574
    %v6755 = vunpack.c.l.s8.bf16 %v6575
    %v6756 = vunpack.c.l.s8.bf16 %v6576
    %v6757 = vunpack.c.l.s8.bf16 %v6577
    %v6758 = vunpack.c.h.s8.bf16 %v6574
    %v6759 = vunpack.c.h.s8.bf16 %v6575
    %v6760 = vunpack.c.h.s8.bf16 %v6576
    %v6761 = vunpack.c.h.s8.bf16 %v6577
    %v6762 = vunpack.c.l.s8.bf16 %v6578
    %v6763 = vunpack.c.l.s8.bf16 %v6579
    %v6764 = vunpack.c.l.s8.bf16 %v6580
    %v6765 = vunpack.c.l.s8.bf16 %v6581
    %v6766 = vunpack.c.h.s8.bf16 %v6578
    %v6767 = vunpack.c.h.s8.bf16 %v6579
    %v6768 = vunpack.c.h.s8.bf16 %v6580
    %v6769 = vunpack.c.h.s8.bf16 %v6581
    %v6770 = vunpack.c.l.s8.bf16 %v6582
    %v6771 = vunpack.c.l.s8.bf16 %v6583
    %v6772 = vunpack.c.l.s8.bf16 %v6584
    %v6773 = vunpack.c.l.s8.bf16 %v6585
    %v6774 = vunpack.c.h.s8.bf16 %v6582
    %v6775 = vunpack.c.h.s8.bf16 %v6583
    %v6776 = vunpack.c.h.s8.bf16 %v6584
    %v6777 = vunpack.c.h.s8.bf16 %v6585
    %v6778 = vunpack.c.l.s8.bf16 %v6586
    %v6779 = vunpack.c.l.s8.bf16 %v6587
    %v6780 = vunpack.c.l.s8.bf16 %v6588
    %v6781 = vunpack.c.l.s8.bf16 %v6589
    %v6782 = vunpack.c.h.s8.bf16 %v6586
    %v6783 = vunpack.c.h.s8.bf16 %v6587
    %v6784 = vunpack.c.h.s8.bf16 %v6588
    %v6785 = vunpack.c.h.s8.bf16 %v6589
    %v6786 = vunpack.c.l.s8.bf16 %v6590
    %v6787 = vunpack.c.l.s8.bf16 %v6591
    %v6788 = vunpack.c.l.s8.bf16 %v6592
    %v6789 = vunpack.c.l.s8.bf16 %v6593
    %v6790 = vunpack.c.h.s8.bf16 %v6590
    %v6791 = vunpack.c.h.s8.bf16 %v6591
    %v6792 = vunpack.c.h.s8.bf16 %v6592
    %v6793 = vunpack.c.h.s8.bf16 %v6593
    %v6794 = vunpack.c.l.s8.bf16 %v6594
    %v6795 = vunpack.c.l.s8.bf16 %v6595
    %v6796 = vunpack.c.l.s8.bf16 %v6596
    %v6797 = vunpack.c.l.s8.bf16 %v6597
    %v6798 = vunpack.c.h.s8.bf16 %v6594
    %v6799 = vunpack.c.h.s8.bf16 %v6595
    %v6800 = vunpack.c.h.s8.bf16 %v6596
    %v6801 = vunpack.c.h.s8.bf16 %v6597
    %v6802 = vunpack.c.l.s8.bf16 %v6598
    %v6803 = vunpack.c.l.s8.bf16 %v6599
    %v6804 = vunpack.c.l.s8.bf16 %v6600
    %v6805 = vunpack.c.l.s8.bf16 %v6601
    %v6806 = vunpack.c.h.s8.bf16 %v6598
    %v6807 = vunpack.c.h.s8.bf16 %v6599
    %v6808 = vunpack.c.h.s8.bf16 %v6600
    %v6809 = vunpack.c.h.s8.bf16 %v6601
    %v6810 = vunpack.c.l.s8.bf16 %v6602
    %v6811 = vunpack.c.l.s8.bf16 %v6603
    %v6812 = vunpack.c.l.s8.bf16 %v6604
    %v6813 = vunpack.c.l.s8.bf16 %v6605
    %v6814 = vunpack.c.h.s8.bf16 %v6602
    %v6815 = vunpack.c.h.s8.bf16 %v6603
    %v6816 = vunpack.c.h.s8.bf16 %v6604
    %v6817 = vunpack.c.h.s8.bf16 %v6605
    %v6818 = vunpack.c.l.s8.bf16 %v6606
    %v6819 = vunpack.c.l.s8.bf16 %v6607
    %v6820 = vunpack.c.l.s8.bf16 %v6608
    %v6821 = vunpack.c.l.s8.bf16 %v6609
    %v6822 = vunpack.c.h.s8.bf16 %v6606
    %v6823 = vunpack.c.h.s8.bf16 %v6607
    %v6824 = vunpack.c.h.s8.bf16 %v6608
    %v6825 = vunpack.c.h.s8.bf16 %v6609
    %v6826 = vunpack.c.l.s8.bf16 %v6610
    %v6827 = vunpack.c.l.s8.bf16 %v6611
    %v6828 = vunpack.c.l.s8.bf16 %v6612
    %v6829 = vunpack.c.l.s8.bf16 %v6613
    %v6830 = vunpack.c.h.s8.bf16 %v6610
    %v6831 = vunpack.c.h.s8.bf16 %v6611
    %v6832 = vunpack.c.h.s8.bf16 %v6612
    %v6833 = vunpack.c.h.s8.bf16 %v6613
    %v6834 = vunpack.c.l.s8.bf16 %v6614
    %v6835 = vunpack.c.l.s8.bf16 %v6615
    %v6836 = vunpack.c.l.s8.bf16 %v6616
    %v6837 = vunpack.c.l.s8.bf16 %v6617
    %v6838 = vunpack.c.h.s8.bf16 %v6614
    %v6839 = vunpack.c.h.s8.bf16 %v6615
    %v6840 = vunpack.c.h.s8.bf16 %v6616
    %v6841 = vunpack.c.h.s8.bf16 %v6617
    %v6842 = vunpack.c.l.s8.bf16 %v6618
    %v6843 = vunpack.c.l.s8.bf16 %v6619
    %v6844 = vunpack.c.l.s8.bf16 %v6620
    %v6845 = vunpack.c.l.s8.bf16 %v6621
    %v6846 = vunpack.c.h.s8.bf16 %v6618
    %v6847 = vunpack.c.h.s8.bf16 %v6619
    %v6848 = vunpack.c.h.s8.bf16 %v6620
    %v6849 = vunpack.c.h.s8.bf16 %v6621
    %v6850 = vunpack.c.l.s8.bf16 %v6622
    %v6851 = vunpack.c.l.s8.bf16 %v6623
    %v6852 = vunpack.c.l.s8.bf16 %v6624
    %v6853 = vunpack.c.l.s8.bf16 %v6625
    %v6854 = vunpack.c.h.s8.bf16 %v6622
    %v6855 = vunpack.c.h.s8.bf16 %v6623
    %v6856 = vunpack.c.h.s8.bf16 %v6624
    %v6857 = vunpack.c.h.s8.bf16 %v6625
    %v6858 = vunpack.c.l.s8.bf16 %v6626
    %v6859 = vunpack.c.l.s8.bf16 %v6627
    %v6860 = vunpack.c.l.s8.bf16 %v6628
    %v6861 = vunpack.c.l.s8.bf16 %v6629
    %v6862 = vunpack.c.h.s8.bf16 %v6626
    %v6863 = vunpack.c.h.s8.bf16 %v6627
    %v6864 = vunpack.c.h.s8.bf16 %v6628
    %v6865 = vunpack.c.h.s8.bf16 %v6629
    %v6866 = vunpack.c.l.s8.bf16 %v6630
    %v6867 = vunpack.c.l.s8.bf16 %v6631
    %v6868 = vunpack.c.l.s8.bf16 %v6632
    %v6869 = vunpack.c.l.s8.bf16 %v6633
    %v6870 = vunpack.c.h.s8.bf16 %v6630
    %v6871 = vunpack.c.h.s8.bf16 %v6631
    %v6872 = vunpack.c.h.s8.bf16 %v6632
    %v6873 = vunpack.c.h.s8.bf16 %v6633
    %v6874 = vunpack.c.l.s8.bf16 %v6634
    %v6875 = vunpack.c.l.s8.bf16 %v6635
    %v6876 = vunpack.c.l.s8.bf16 %v6636
    %v6877 = vunpack.c.l.s8.bf16 %v6637
    %v6878 = vunpack.c.h.s8.bf16 %v6634
    %v6879 = vunpack.c.h.s8.bf16 %v6635
    %v6880 = vunpack.c.h.s8.bf16 %v6636
    %v6881 = vunpack.c.h.s8.bf16 %v6637
    %v6882 = vunpack.c.l.s8.bf16 %v6638
    %v6883 = vunpack.c.l.s8.bf16 %v6639
    %v6884 = vunpack.c.l.s8.bf16 %v6640
    %v6885 = vunpack.c.l.s8.bf16 %v6641
    %v6886 = vunpack.c.h.s8.bf16 %v6638
    %v6887 = vunpack.c.h.s8.bf16 %v6639
    %v6888 = vunpack.c.h.s8.bf16 %v6640
    %v6889 = vunpack.c.h.s8.bf16 %v6641
    %v6890 = vunpack.c.l.s8.bf16 %v6642
    %v6891 = vunpack.c.l.s8.bf16 %v6643
    %v6892 = vunpack.c.l.s8.bf16 %v6644
    %v6893 = vunpack.c.l.s8.bf16 %v6645
    %v6894 = vunpack.c.h.s8.bf16 %v6642
    %v6895 = vunpack.c.h.s8.bf16 %v6643
    %v6896 = vunpack.c.h.s8.bf16 %v6644
    %v6897 = vunpack.c.h.s8.bf16 %v6645
    %v6898 = vunpack.c.l.s8.bf16 %v6646
    %v6899 = vunpack.c.l.s8.bf16 %v6647
    %v6900 = vunpack.c.l.s8.bf16 %v6648
    %v6901 = vunpack.c.l.s8.bf16 %v6649
    %v6902 = vunpack.c.h.s8.bf16 %v6646
    %v6903 = vunpack.c.h.s8.bf16 %v6647
    %v6904 = vunpack.c.h.s8.bf16 %v6648
    %v6905 = vunpack.c.h.s8.bf16 %v6649
    %v6907 = vlaneseq
    %v6908 = vshrl.u32 %v6907, 7
    %v6909 = vsub.s32 0, %v6908
    %v6910 = vrot.slane %v6521, %v6909
    %v6911 = vlaneseq
    %v6912 = vshrl.u32 %v6911, 7
    %v6913 = vsub.s32 1, %v6912
    %v6914 = vrot.slane %v6521, %v6913
    %v6915 = vlaneseq
    %v6916 = vshrl.u32 %v6915, 7
    %v6917 = vsub.s32 2, %v6916
    %v6918 = vrot.slane %v6521, %v6917
    %v6919 = vlaneseq
    %v6920 = vshrl.u32 %v6919, 7
    %v6921 = vsub.s32 3, %v6920
    %v6922 = vrot.slane %v6521, %v6921
    %v6923 = vlaneseq
    %v6924 = vshrl.u32 %v6923, 7
    %v6925 = vsub.s32 4, %v6924
    %v6926 = vrot.slane %v6521, %v6925
    %v6927 = vlaneseq
    %v6928 = vshrl.u32 %v6927, 7
    %v6929 = vsub.s32 5, %v6928
    %v6930 = vrot.slane %v6521, %v6929
    %v6931 = vlaneseq
    %v6932 = vshrl.u32 %v6931, 7
    %v6933 = vsub.s32 6, %v6932
    %v6934 = vrot.slane %v6521, %v6933
    %v6935 = vlaneseq
    %v6936 = vshrl.u32 %v6935, 7
    %v6937 = vsub.s32 7, %v6936
    %v6938 = vrot.slane %v6521, %v6937
    %v6947 = vpack.c.bf16 %v6910, %v6910
    %v6948 = vpack.c.bf16 %v6914, %v6914
    %v6949 = vpack.c.bf16 %v6918, %v6918
    %v6950 = vpack.c.bf16 %v6922, %v6922
    %v6951 = vpack.c.bf16 %v6926, %v6926
    %v6952 = vpack.c.bf16 %v6930, %v6930
    %v6953 = vpack.c.bf16 %v6934, %v6934
    %v6954 = vpack.c.bf16 %v6938, %v6938
    %6955 = vmatprep.subr.bf16.mxu0 %v6651
    %6956 = vmatpush1.bf16.msra.mxu0 %v6650
    %6957 = vmatprep.subr.bf16.mxu0 %v6655
    %6958 = vmatpush1.bf16.msra.mxu0 %v6654
    %6959 = vmatprep.subr.bf16.mxu0 %v6659
    %6960 = vmatpush1.bf16.msra.mxu0 %v6658
    %6961 = vmatprep.subr.bf16.mxu0 %v6663
    %6962 = vmatpush1.bf16.msra.mxu0 %v6662
    %6963 = vmatprep.subr.bf16.mxu0 %v6667
    %6964 = vmatpush1.bf16.msra.mxu0 %v6666
    %6965 = vmatprep.subr.bf16.mxu0 %v6671
    %6966 = vmatpush1.bf16.msra.mxu0 %v6670
    %6967 = vmatprep.subr.bf16.mxu0 %v6675
    %6968 = vmatpush1.bf16.msra.mxu0 %v6674
    %6969 = vmatprep.subr.bf16.mxu0 %v6679
    %6970 = vmatpush1.bf16.msra.mxu0 %v6678
    %6971 = vmatprep.subr.bf16.mxu0 %v6683
    %6972 = vmatpush1.bf16.msra.mxu0 %v6682
    %6973 = vmatprep.subr.bf16.mxu0 %v6687
    %6974 = vmatpush1.bf16.msra.mxu0 %v6686
    %6975 = vmatprep.subr.bf16.mxu0 %v6691
    %6976 = vmatpush1.bf16.msra.mxu0 %v6690
    %6977 = vmatprep.subr.bf16.mxu0 %v6695
    %6978 = vmatpush1.bf16.msra.mxu0 %v6694
    %6979 = vmatprep.subr.bf16.mxu0 %v6699
    %6980 = vmatpush1.bf16.msra.mxu0 %v6698
    %6981 = vmatprep.subr.bf16.mxu0 %v6703
    %6982 = vmatpush1.bf16.msra.mxu0 %v6702
    %6983 = vmatprep.subr.bf16.mxu0 %v6707
    %6984 = vmatpush1.bf16.msra.mxu0 %v6706
    %6985 = vmatprep.subr.bf16.mxu0 %v6711
    %6986 = vmatpush1.bf16.msra.mxu0 %v6710
    %6987 = vmatprep.mubr.bf16.mxu0 %v6948
    %6988 = vmatmul.mubr.bf16.gmra.mrb[0].mxu0 %v6947
    %v6989 = vpop.f32.mrb[0].mxu0
    %v6990 = vadd.f32 0.0, %v6989
    %v6991 = vpop.f32.mrb[0].mxu0
    %v6992 = vadd.f32 0.0, %v6991
    %v6993 = vpop.f32.mrb[0].mxu0
    %v6994 = vpop.f32.mrb[0].mxu0
    %6995 = vdwg.mxu0
    %6996 = vmatprep.subr.bf16.mxu0 %v6715
    %6997 = vmatpush1.bf16.msra.mxu0 %v6714
    %6998 = vmatprep.subr.bf16.mxu0 %v6719
    %6999 = vmatpush1.bf16.msra.mxu0 %v6718
    %7000 = vmatprep.subr.bf16.mxu0 %v6723
    %7001 = vmatpush1.bf16.msra.mxu0 %v6722
    %7002 = vmatprep.subr.bf16.mxu0 %v6727
    %7003 = vmatpush1.bf16.msra.mxu0 %v6726
    %7004 = vmatprep.subr.bf16.mxu0 %v6731
    %7005 = vmatpush1.bf16.msra.mxu0 %v6730
    %7006 = vmatprep.subr.bf16.mxu0 %v6735
    %7007 = vmatpush1.bf16.msra.mxu0 %v6734
    %7008 = vmatprep.subr.bf16.mxu0 %v6739
    %7009 = vmatpush1.bf16.msra.mxu0 %v6738
    %7010 = vmatprep.subr.bf16.mxu0 %v6743
    %7011 = vmatpush1.bf16.msra.mxu0 %v6742
    %7012 = vmatprep.subr.bf16.mxu0 %v6747
    %7013 = vmatpush1.bf16.msra.mxu0 %v6746
    %7014 = vmatprep.subr.bf16.mxu0 %v6751
    %7015 = vmatpush1.bf16.msra.mxu0 %v6750
    %7016 = vmatprep.subr.bf16.mxu0 %v6755
    %7017 = vmatpush1.bf16.msra.mxu0 %v6754
    %7018 = vmatprep.subr.bf16.mxu0 %v6759
    %7019 = vmatpush1.bf16.msra.mxu0 %v6758
    %7020 = vmatprep.subr.bf16.mxu0 %v6763
    %7021 = vmatpush1.bf16.msra.mxu0 %v6762
    %7022 = vmatprep.subr.bf16.mxu0 %v6767
    %7023 = vmatpush1.bf16.msra.mxu0 %v6766
    %7024 = vmatprep.subr.bf16.mxu0 %v6771
    %7025 = vmatpush1.bf16.msra.mxu0 %v6770
    %7026 = vmatprep.subr.bf16.mxu0 %v6775
    %7027 = vmatpush1.bf16.msra.mxu0 %v6774
    %7028 = vmatprep.mubr.bf16.mxu0 %v6950
    %7029 = vmatmul.mubr.bf16.gmra.mrb[0].mxu0 %v6949
    %v7030 = vpop.f32.mrb[0].mxu0
    %v7031 = vadd.f32 %v6990, %v7030
    %v7032 = vpop.f32.mrb[0].mxu0
    %v7033 = vadd.f32 %v6992, %v7032
    %v7034 = vpop.f32.mrb[0].mxu0
    %v7035 = vpop.f32.mrb[0].mxu0
    %7036 = vdwg.mxu0
    %7037 = vmatprep.subr.bf16.mxu0 %v6779
    %7038 = vmatpush1.bf16.msra.mxu0 %v6778
    %7039 = vmatprep.subr.bf16.mxu0 %v6783
    %7040 = vmatpush1.bf16.msra.mxu0 %v6782
    %7041 = vmatprep.subr.bf16.mxu0 %v6787
    %7042 = vmatpush1.bf16.msra.mxu0 %v6786
    %7043 = vmatprep.subr.bf16.mxu0 %v6791
    %7044 = vmatpush1.bf16.msra.mxu0 %v6790
    %7045 = vmatprep.subr.bf16.mxu0 %v6795
    %7046 = vmatpush1.bf16.msra.mxu0 %v6794
    %7047 = vmatprep.subr.bf16.mxu0 %v6799
    %7048 = vmatpush1.bf16.msra.mxu0 %v6798
    %7049 = vmatprep.subr.bf16.mxu0 %v6803
    %7050 = vmatpush1.bf16.msra.mxu0 %v6802
    %7051 = vmatprep.subr.bf16.mxu0 %v6807
    %7052 = vmatpush1.bf16.msra.mxu0 %v6806
    %7053 = vmatprep.subr.bf16.mxu0 %v6811
    %7054 = vmatpush1.bf16.msra.mxu0 %v6810
    %7055 = vmatprep.subr.bf16.mxu0 %v6815
    %7056 = vmatpush1.bf16.msra.mxu0 %v6814
    %7057 = vmatprep.subr.bf16.mxu0 %v6819
    %7058 = vmatpush1.bf16.msra.mxu0 %v6818
    %7059 = vmatprep.subr.bf16.mxu0 %v6823
    %7060 = vmatpush1.bf16.msra.mxu0 %v6822
    %7061 = vmatprep.subr.bf16.mxu0 %v6827
    %7062 = vmatpush1.bf16.msra.mxu0 %v6826
    %7063 = vmatprep.subr.bf16.mxu0 %v6831
    %7064 = vmatpush1.bf16.msra.mxu0 %v6830
    %7065 = vmatprep.subr.bf16.mxu0 %v6835
    %7066 = vmatpush1.bf16.msra.mxu0 %v6834
    %7067 = vmatprep.subr.bf16.mxu0 %v6839
    %7068 = vmatpush1.bf16.msra.mxu0 %v6838
    %7069 = vmatprep.mubr.bf16.mxu0 %v6952
    %7070 = vmatmul.mubr.bf16.gmra.mrb[0].mxu0 %v6951
    %v7071 = vpop.f32.mrb[0].mxu0
    %v7072 = vadd.f32 %v7031, %v7071
    %v7073 = vpop.f32.mrb[0].mxu0
    %v7074 = vadd.f32 %v7033, %v7073
    %v7075 = vpop.f32.mrb[0].mxu0
    %v7076 = vpop.f32.mrb[0].mxu0
    %7077 = vdwg.mxu0
    %7078 = vmatprep.subr.bf16.mxu0 %v6843
    %7079 = vmatpush1.bf16.msra.mxu0 %v6842
    %7080 = vmatprep.subr.bf16.mxu0 %v6847
    %7081 = vmatpush1.bf16.msra.mxu0 %v6846
    %7082 = vmatprep.subr.bf16.mxu0 %v6851
    %7083 = vmatpush1.bf16.msra.mxu0 %v6850
    %7084 = vmatprep.subr.bf16.mxu0 %v6855
    %7085 = vmatpush1.bf16.msra.mxu0 %v6854
    %7086 = vmatprep.subr.bf16.mxu0 %v6859
    %7087 = vmatpush1.bf16.msra.mxu0 %v6858
    %7088 = vmatprep.subr.bf16.mxu0 %v6863
    %7089 = vmatpush1.bf16.msra.mxu0 %v6862
    %7090 = vmatprep.subr.bf16.mxu0 %v6867
    %7091 = vmatpush1.bf16.msra.mxu0 %v6866
    %7092 = vmatprep.subr.bf16.mxu0 %v6871
    %7093 = vmatpush1.bf16.msra.mxu0 %v6870
    %7094 = vmatprep.subr.bf16.mxu0 %v6875
    %7095 = vmatpush1.bf16.msra.mxu0 %v6874
    %7096 = vmatprep.subr.bf16.mxu0 %v6879
    %7097 = vmatpush1.bf16.msra.mxu0 %v6878
    %7098 = vmatprep.subr.bf16.mxu0 %v6883
    %7099 = vmatpush1.bf16.msra.mxu0 %v6882
    %7100 = vmatprep.subr.bf16.mxu0 %v6887
    %7101 = vmatpush1.bf16.msra.mxu0 %v6886
    %7102 = vmatprep.subr.bf16.mxu0 %v6891
    %7103 = vmatpush1.bf16.msra.mxu0 %v6890
    %7104 = vmatprep.subr.bf16.mxu0 %v6895
    %7105 = vmatpush1.bf16.msra.mxu0 %v6894
    %7106 = vmatprep.subr.bf16.mxu0 %v6899
    %7107 = vmatpush1.bf16.msra.mxu0 %v6898
    %7108 = vmatprep.subr.bf16.mxu0 %v6903
    %7109 = vmatpush1.bf16.msra.mxu0 %v6902
    %7110 = vmatprep.mubr.bf16.mxu0 %v6954
    %7111 = vmatmul.mubr.bf16.gmra.mrb[0].mxu0 %v6953
    %v7112 = vpop.f32.mrb[0].mxu0
    %v7113 = vadd.f32 %v7072, %v7112
    %v7114 = vpop.f32.mrb[0].mxu0
    %v7115 = vadd.f32 %v7074, %v7114
    %v7116 = vpop.f32.mrb[0].mxu0
    %v7117 = vpop.f32.mrb[0].mxu0
    %7118 = vdwg.mxu0
    %7119 = vmatprep.subr.bf16.mxu0 %v6653
    %7120 = vmatpush1.bf16.msra.mxu0 %v6652
    %7121 = vmatprep.subr.bf16.mxu0 %v6657
    %7122 = vmatpush1.bf16.msra.mxu0 %v6656
    %7123 = vmatprep.subr.bf16.mxu0 %v6661
    %7124 = vmatpush1.bf16.msra.mxu0 %v6660
    %7125 = vmatprep.subr.bf16.mxu0 %v6665
    %7126 = vmatpush1.bf16.msra.mxu0 %v6664
    %7127 = vmatprep.subr.bf16.mxu0 %v6669
    %7128 = vmatpush1.bf16.msra.mxu0 %v6668
    %7129 = vmatprep.subr.bf16.mxu0 %v6673
    %7130 = vmatpush1.bf16.msra.mxu0 %v6672
    %7131 = vmatprep.subr.bf16.mxu0 %v6677
    %7132 = vmatpush1.bf16.msra.mxu0 %v6676
    %7133 = vmatprep.subr.bf16.mxu0 %v6681
    %7134 = vmatpush1.bf16.msra.mxu0 %v6680
    %7135 = vmatprep.subr.bf16.mxu0 %v6685
    %7136 = vmatpush1.bf16.msra.mxu0 %v6684
    %7137 = vmatprep.subr.bf16.mxu0 %v6689
    %7138 = vmatpush1.bf16.msra.mxu0 %v6688
    %7139 = vmatprep.subr.bf16.mxu0 %v6693
    %7140 = vmatpush1.bf16.msra.mxu0 %v6692
    %7141 = vmatprep.subr.bf16.mxu0 %v6697
    %7142 = vmatpush1.bf16.msra.mxu0 %v6696
    %7143 = vmatprep.subr.bf16.mxu0 %v6701
    %7144 = vmatpush1.bf16.msra.mxu0 %v6700
    %7145 = vmatprep.subr.bf16.mxu0 %v6705
    %7146 = vmatpush1.bf16.msra.mxu0 %v6704
    %7147 = vmatprep.subr.bf16.mxu0 %v6709
    %7148 = vmatpush1.bf16.msra.mxu0 %v6708
    %7149 = vmatprep.subr.bf16.mxu0 %v6713
    %7150 = vmatpush1.bf16.msra.mxu0 %v6712
    %7151 = vmatprep.mubr.bf16.mxu0 %v6948
    %7152 = vmatmul.mubr.bf16.gmra.mrb[0].mxu0 %v6947
    %v7153 = vpop.f32.mrb[0].mxu0
    %v7154 = vadd.f32 0.0, %v7153
    %v7155 = vpop.f32.mrb[0].mxu0
    %v7156 = vadd.f32 0.0, %v7155
    %v7157 = vpop.f32.mrb[0].mxu0
    %v7158 = vpop.f32.mrb[0].mxu0
    %7159 = vdwg.mxu0
    %7160 = vmatprep.subr.bf16.mxu0 %v6717
    %7161 = vmatpush1.bf16.msra.mxu0 %v6716
    %7162 = vmatprep.subr.bf16.mxu0 %v6721
    %7163 = vmatpush1.bf16.msra.mxu0 %v6720
    %7164 = vmatprep.subr.bf16.mxu0 %v6725
    %7165 = vmatpush1.bf16.msra.mxu0 %v6724
    %7166 = vmatprep.subr.bf16.mxu0 %v6729
    %7167 = vmatpush1.bf16.msra.mxu0 %v6728
    %7168 = vmatprep.subr.bf16.mxu0 %v6733
    %7169 = vmatpush1.bf16.msra.mxu0 %v6732
    %7170 = vmatprep.subr.bf16.mxu0 %v6737
    %7171 = vmatpush1.bf16.msra.mxu0 %v6736
    %7172 = vmatprep.subr.bf16.mxu0 %v6741
    %7173 = vmatpush1.bf16.msra.mxu0 %v6740
    %7174 = vmatprep.subr.bf16.mxu0 %v6745
    %7175 = vmatpush1.bf16.msra.mxu0 %v6744
    %7176 = vmatprep.subr.bf16.mxu0 %v6749
    %7177 = vmatpush1.bf16.msra.mxu0 %v6748
    %7178 = vmatprep.subr.bf16.mxu0 %v6753
    %7179 = vmatpush1.bf16.msra.mxu0 %v6752
    %7180 = vmatprep.subr.bf16.mxu0 %v6757
    %7181 = vmatpush1.bf16.msra.mxu0 %v6756
    %7182 = vmatprep.subr.bf16.mxu0 %v6761
    %7183 = vmatpush1.bf16.msra.mxu0 %v6760
    %7184 = vmatprep.subr.bf16.mxu0 %v6765
    %7185 = vmatpush1.bf16.msra.mxu0 %v6764
    %7186 = vmatprep.subr.bf16.mxu0 %v6769
    %7187 = vmatpush1.bf16.msra.mxu0 %v6768
    %7188 = vmatprep.subr.bf16.mxu0 %v6773
    %7189 = vmatpush1.bf16.msra.mxu0 %v6772
    %7190 = vmatprep.subr.bf16.mxu0 %v6777
    %7191 = vmatpush1.bf16.msra.mxu0 %v6776
    %7192 = vmatprep.mubr.bf16.mxu0 %v6950
    %7193 = vmatmul.mubr.bf16.gmra.mrb[0].mxu0 %v6949
    %v7194 = vpop.f32.mrb[0].mxu0
    %v7195 = vadd.f32 %v7154, %v7194
    %v7196 = vpop.f32.mrb[0].mxu0
    %v7197 = vadd.f32 %v7156, %v7196
    %v7198 = vpop.f32.mrb[0].mxu0
    %v7199 = vpop.f32.mrb[0].mxu0
    %7200 = vdwg.mxu0
    %7201 = vmatprep.subr.bf16.mxu0 %v6781
    %7202 = vmatpush1.bf16.msra.mxu0 %v6780
    %7203 = vmatprep.subr.bf16.mxu0 %v6785
    %7204 = vmatpush1.bf16.msra.mxu0 %v6784
    %7205 = vmatprep.subr.bf16.mxu0 %v6789
    %7206 = vmatpush1.bf16.msra.mxu0 %v6788
    %7207 = vmatprep.subr.bf16.mxu0 %v6793
    %7208 = vmatpush1.bf16.msra.mxu0 %v6792
    %7209 = vmatprep.subr.bf16.mxu0 %v6797
    %7210 = vmatpush1.bf16.msra.mxu0 %v6796
    %7211 = vmatprep.subr.bf16.mxu0 %v6801
    %7212 = vmatpush1.bf16.msra.mxu0 %v6800
    %7213 = vmatprep.subr.bf16.mxu0 %v6805
    %7214 = vmatpush1.bf16.msra.mxu0 %v6804
    %7215 = vmatprep.subr.bf16.mxu0 %v6809
    %7216 = vmatpush1.bf16.msra.mxu0 %v6808
    %7217 = vmatprep.subr.bf16.mxu0 %v6813
    %7218 = vmatpush1.bf16.msra.mxu0 %v6812
    %7219 = vmatprep.subr.bf16.mxu0 %v6817
    %7220 = vmatpush1.bf16.msra.mxu0 %v6816
    %7221 = vmatprep.subr.bf16.mxu0 %v6821
    %7222 = vmatpush1.bf16.msra.mxu0 %v6820
    %7223 = vmatprep.subr.bf16.mxu0 %v6825
    %7224 = vmatpush1.bf16.msra.mxu0 %v6824
    %7225 = vmatprep.subr.bf16.mxu0 %v6829
    %7226 = vmatpush1.bf16.msra.mxu0 %v6828
    %7227 = vmatprep.subr.bf16.mxu0 %v6833
    %7228 = vmatpush1.bf16.msra.mxu0 %v6832
    %7229 = vmatprep.subr.bf16.mxu0 %v6837
    %7230 = vmatpush1.bf16.msra.mxu0 %v6836
    %7231 = vmatprep.subr.bf16.mxu0 %v6841
    %7232 = vmatpush1.bf16.msra.mxu0 %v6840
    %7233 = vmatprep.mubr.bf16.mxu0 %v6952
    %7234 = vmatmul.mubr.bf16.gmra.mrb[0].mxu0 %v6951
    %v7235 = vpop.f32.mrb[0].mxu0
    %v7236 = vadd.f32 %v7195, %v7235
    %v7237 = vpop.f32.mrb[0].mxu0
    %v7238 = vadd.f32 %v7197, %v7237
    %v7239 = vpop.f32.mrb[0].mxu0
    %v7240 = vpop.f32.mrb[0].mxu0
    %7241 = vdwg.mxu0
    %7242 = vmatprep.subr.bf16.mxu0 %v6845
    %7243 = vmatpush1.bf16.msra.mxu0 %v6844
    %7244 = vmatprep.subr.bf16.mxu0 %v6849
    %7245 = vmatpush1.bf16.msra.mxu0 %v6848
    %7246 = vmatprep.subr.bf16.mxu0 %v6853
    %7247 = vmatpush1.bf16.msra.mxu0 %v6852
    %7248 = vmatprep.subr.bf16.mxu0 %v6857
    %7249 = vmatpush1.bf16.msra.mxu0 %v6856
    %7250 = vmatprep.subr.bf16.mxu0 %v6861
    %7251 = vmatpush1.bf16.msra.mxu0 %v6860
    %7252 = vmatprep.subr.bf16.mxu0 %v6865
    %7253 = vmatpush1.bf16.msra.mxu0 %v6864
    %7254 = vmatprep.subr.bf16.mxu0 %v6869
    %7255 = vmatpush1.bf16.msra.mxu0 %v6868
    %7256 = vmatprep.subr.bf16.mxu0 %v6873
    %7257 = vmatpush1.bf16.msra.mxu0 %v6872
    %7258 = vmatprep.subr.bf16.mxu0 %v6877
    %7259 = vmatpush1.bf16.msra.mxu0 %v6876
    %7260 = vmatprep.subr.bf16.mxu0 %v6881
    %7261 = vmatpush1.bf16.msra.mxu0 %v6880
    %7262 = vmatprep.subr.bf16.mxu0 %v6885
    %7263 = vmatpush1.bf16.msra.mxu0 %v6884
    %7264 = vmatprep.subr.bf16.mxu0 %v6889
    %7265 = vmatpush1.bf16.msra.mxu0 %v6888
    %7266 = vmatprep.subr.bf16.mxu0 %v6893
    %7267 = vmatpush1.bf16.msra.mxu0 %v6892
    %7268 = vmatprep.subr.bf16.mxu0 %v6897
    %7269 = vmatpush1.bf16.msra.mxu0 %v6896
    %7270 = vmatprep.subr.bf16.mxu0 %v6901
    %7271 = vmatpush1.bf16.msra.mxu0 %v6900
    %7272 = vmatprep.subr.bf16.mxu0 %v6905
    %7273 = vmatpush1.bf16.msra.mxu0 %v6904
    %7274 = vmatprep.mubr.bf16.mxu0 %v6954
    %7275 = vmatmul.mubr.bf16.gmra.mrb[0].mxu0 %v6953
    %v7276 = vpop.f32.mrb[0].mxu0
    %v7277 = vadd.f32 %v7236, %v7276
    %v7278 = vpop.f32.mrb[0].mxu0
    %v7279 = vadd.f32 %v7238, %v7278
    %v7280 = vpop.f32.mrb[0].mxu0
    %v7281 = vpop.f32.mrb[0].mxu0
    %7282 = vdwg.mxu0
    %v7283 = vrot.slane %v58, 5
    %v7284 = vrot.slane %v59, 5
    %v7285 = vrot.slane %v60, 5
    %v7286 = vrot.slane %v61, 5
    %v7291 = vmul.f32 %v7113, %v7283
    %v7292 = vmul.f32 %v7115, %v7284
    %v7293 = vmul.f32 %v7277, %v7285
    %v7294 = vmul.f32 %v7279, %v7286
    %v7295 = vrot.slane %v58, 4
    %v7296 = vrot.slane %v59, 4
    %v7297 = vrot.slane %v60, 4
    %v7298 = vrot.slane %v61, 4
    %v7303 = vadd.f32 %v7291, %v7295
    %v7304 = vadd.f32 %v7292, %v7296
    %v7305 = vadd.f32 %v7293, %v7297
    %v7306 = vadd.f32 %v7294, %v7298
    %v7307 = vld [vmem:[%s8] sm:$0xff]
    %v7308 = vld [vmem:[%s8 + $0x8] sm:$0xff]
    %v7309 = vld [vmem:[%s8 + $0x10] sm:$0xff]
    %v7310 = vld [vmem:[%s8 + $0x18] sm:$0xff]
    %v7311 = vld [vmem:[%s8 + $0x20] sm:$0xff]
    %v7312 = vld [vmem:[%s8 + $0x28] sm:$0xff]
    %v7313 = vld [vmem:[%s8 + $0x30] sm:$0xff]
    %v7314 = vld [vmem:[%s8 + $0x38] sm:$0xff]
    %v7315 = vld [vmem:[%s8 + $0x40] sm:$0xff]
    %v7316 = vld [vmem:[%s8 + $0x48] sm:$0xff]
    %v7317 = vld [vmem:[%s8 + $0x50] sm:$0xff]
    %v7318 = vld [vmem:[%s8 + $0x58] sm:$0xff]
    %v7319 = vld [vmem:[%s8 + $0x60] sm:$0xff]
    %v7320 = vld [vmem:[%s8 + $0x68] sm:$0xff]
    %v7321 = vld [vmem:[%s8 + $0x70] sm:$0xff]
    %v7322 = vld [vmem:[%s8 + $0x78] sm:$0xff]
    %v7323 = vld [vmem:[%s8 + $0x80] sm:$0xff]
    %v7324 = vld [vmem:[%s8 + $0x88] sm:$0xff]
    %v7325 = vld [vmem:[%s8 + $0x90] sm:$0xff]
    %v7326 = vld [vmem:[%s8 + $0x98] sm:$0xff]
    %v7327 = vld [vmem:[%s8 + $0xa0] sm:$0xff]
    %v7328 = vld [vmem:[%s8 + $0xa8] sm:$0xff]
    %v7329 = vld [vmem:[%s8 + $0xb0] sm:$0xff]
    %v7330 = vld [vmem:[%s8 + $0xb8] sm:$0xff]
    %v7331 = vld [vmem:[%s8 + $0xc0] sm:$0xff]
    %v7332 = vld [vmem:[%s8 + $0xc8] sm:$0xff]
    %v7333 = vld [vmem:[%s8 + $0xd0] sm:$0xff]
    %v7334 = vld [vmem:[%s8 + $0xd8] sm:$0xff]
    %v7335 = vld [vmem:[%s8 + $0xe0] sm:$0xff]
    %v7336 = vld [vmem:[%s8 + $0xe8] sm:$0xff]
    %v7337 = vld [vmem:[%s8 + $0xf0] sm:$0xff]
    %v7338 = vld [vmem:[%s8 + $0xf8] sm:$0xff]
    %v7339 = vld [vmem:[%s8 + $0x100] sm:$0xff]
    %v7340 = vld [vmem:[%s8 + $0x108] sm:$0xff]
    %v7341 = vld [vmem:[%s8 + $0x110] sm:$0xff]
    %v7342 = vld [vmem:[%s8 + $0x118] sm:$0xff]
    %v7343 = vld [vmem:[%s8 + $0x120] sm:$0xff]
    %v7344 = vld [vmem:[%s8 + $0x128] sm:$0xff]
    %v7345 = vld [vmem:[%s8 + $0x130] sm:$0xff]
    %v7346 = vld [vmem:[%s8 + $0x138] sm:$0xff]
    %v7347 = vld [vmem:[%s8 + $0x140] sm:$0xff]
    %v7348 = vld [vmem:[%s8 + $0x148] sm:$0xff]
    %v7349 = vld [vmem:[%s8 + $0x150] sm:$0xff]
    %v7350 = vld [vmem:[%s8 + $0x158] sm:$0xff]
    %v7351 = vld [vmem:[%s8 + $0x160] sm:$0xff]
    %v7352 = vld [vmem:[%s8 + $0x168] sm:$0xff]
    %v7353 = vld [vmem:[%s8 + $0x170] sm:$0xff]
    %v7354 = vld [vmem:[%s8 + $0x178] sm:$0xff]
    %v7355 = vld [vmem:[%s8 + $0x180] sm:$0xff]
    %v7356 = vld [vmem:[%s8 + $0x188] sm:$0xff]
    %v7357 = vld [vmem:[%s8 + $0x190] sm:$0xff]
    %v7358 = vld [vmem:[%s8 + $0x198] sm:$0xff]
    %v7359 = vld [vmem:[%s8 + $0x1a0] sm:$0xff]
    %v7360 = vld [vmem:[%s8 + $0x1a8] sm:$0xff]
    %v7361 = vld [vmem:[%s8 + $0x1b0] sm:$0xff]
    %v7362 = vld [vmem:[%s8 + $0x1b8] sm:$0xff]
    %v7363 = vld [vmem:[%s8 + $0x1c0] sm:$0xff]
    %v7364 = vld [vmem:[%s8 + $0x1c8] sm:$0xff]
    %v7365 = vld [vmem:[%s8 + $0x1d0] sm:$0xff]
    %v7366 = vld [vmem:[%s8 + $0x1d8] sm:$0xff]
    %v7367 = vld [vmem:[%s8 + $0x1e0] sm:$0xff]
    %v7368 = vld [vmem:[%s8 + $0x1e8] sm:$0xff]
    %v7369 = vld [vmem:[%s8 + $0x1f0] sm:$0xff]
    %v7370 = vld [vmem:[%s8 + $0x1f8] sm:$0xff]
    %v7371 = vunpack.c.l.s8.bf16 %v7307
    %v7372 = vunpack.c.l.s8.bf16 %v7308
    %v7373 = vunpack.c.l.s8.bf16 %v7309
    %v7374 = vunpack.c.l.s8.bf16 %v7310
    %v7375 = vunpack.c.h.s8.bf16 %v7307
    %v7376 = vunpack.c.h.s8.bf16 %v7308
    %v7377 = vunpack.c.h.s8.bf16 %v7309
    %v7378 = vunpack.c.h.s8.bf16 %v7310
    %v7379 = vunpack.c.l.s8.bf16 %v7311
    %v7380 = vunpack.c.l.s8.bf16 %v7312
    %v7381 = vunpack.c.l.s8.bf16 %v7313
    %v7382 = vunpack.c.l.s8.bf16 %v7314
    %v7383 = vunpack.c.h.s8.bf16 %v7311
    %v7384 = vunpack.c.h.s8.bf16 %v7312
    %v7385 = vunpack.c.h.s8.bf16 %v7313
    %v7386 = vunpack.c.h.s8.bf16 %v7314
    %v7387 = vunpack.c.l.s8.bf16 %v7315
    %v7388 = vunpack.c.l.s8.bf16 %v7316
    %v7389 = vunpack.c.l.s8.bf16 %v7317
    %v7390 = vunpack.c.l.s8.bf16 %v7318
    %v7391 = vunpack.c.h.s8.bf16 %v7315
    %v7392 = vunpack.c.h.s8.bf16 %v7316
    %v7393 = vunpack.c.h.s8.bf16 %v7317
    %v7394 = vunpack.c.h.s8.bf16 %v7318
    %v7395 = vunpack.c.l.s8.bf16 %v7319
    %v7396 = vunpack.c.l.s8.bf16 %v7320
    %v7397 = vunpack.c.l.s8.bf16 %v7321
    %v7398 = vunpack.c.l.s8.bf16 %v7322
    %v7399 = vunpack.c.h.s8.bf16 %v7319
    %v7400 = vunpack.c.h.s8.bf16 %v7320
    %v7401 = vunpack.c.h.s8.bf16 %v7321
    %v7402 = vunpack.c.h.s8.bf16 %v7322
    %v7403 = vunpack.c.l.s8.bf16 %v7323
    %v7404 = vunpack.c.l.s8.bf16 %v7324
    %v7405 = vunpack.c.l.s8.bf16 %v7325
    %v7406 = vunpack.c.l.s8.bf16 %v7326
    %v7407 = vunpack.c.h.s8.bf16 %v7323
    %v7408 = vunpack.c.h.s8.bf16 %v7324
    %v7409 = vunpack.c.h.s8.bf16 %v7325
    %v7410 = vunpack.c.h.s8.bf16 %v7326
    %v7411 = vunpack.c.l.s8.bf16 %v7327
    %v7412 = vunpack.c.l.s8.bf16 %v7328
    %v7413 = vunpack.c.l.s8.bf16 %v7329
    %v7414 = vunpack.c.l.s8.bf16 %v7330
    %v7415 = vunpack.c.h.s8.bf16 %v7327
    %v7416 = vunpack.c.h.s8.bf16 %v7328
    %v7417 = vunpack.c.h.s8.bf16 %v7329
    %v7418 = vunpack.c.h.s8.bf16 %v7330
    %v7419 = vunpack.c.l.s8.bf16 %v7331
    %v7420 = vunpack.c.l.s8.bf16 %v7332
    %v7421 = vunpack.c.l.s8.bf16 %v7333
    %v7422 = vunpack.c.l.s8.bf16 %v7334
    %v7423 = vunpack.c.h.s8.bf16 %v7331
    %v7424 = vunpack.c.h.s8.bf16 %v7332
    %v7425 = vunpack.c.h.s8.bf16 %v7333
    %v7426 = vunpack.c.h.s8.bf16 %v7334
    %v7427 = vunpack.c.l.s8.bf16 %v7335
    %v7428 = vunpack.c.l.s8.bf16 %v7336
    %v7429 = vunpack.c.l.s8.bf16 %v7337
    %v7430 = vunpack.c.l.s8.bf16 %v7338
    %v7431 = vunpack.c.h.s8.bf16 %v7335
    %v7432 = vunpack.c.h.s8.bf16 %v7336
    %v7433 = vunpack.c.h.s8.bf16 %v7337
    %v7434 = vunpack.c.h.s8.bf16 %v7338
    %v7435 = vunpack.c.l.s8.bf16 %v7339
    %v7436 = vunpack.c.l.s8.bf16 %v7340
    %v7437 = vunpack.c.l.s8.bf16 %v7341
    %v7438 = vunpack.c.l.s8.bf16 %v7342
    %v7439 = vunpack.c.h.s8.bf16 %v7339
    %v7440 = vunpack.c.h.s8.bf16 %v7340
    %v7441 = vunpack.c.h.s8.bf16 %v7341
    %v7442 = vunpack.c.h.s8.bf16 %v7342
    %v7443 = vunpack.c.l.s8.bf16 %v7343
    %v7444 = vunpack.c.l.s8.bf16 %v7344
    %v7445 = vunpack.c.l.s8.bf16 %v7345
    %v7446 = vunpack.c.l.s8.bf16 %v7346
    %v7447 = vunpack.c.h.s8.bf16 %v7343
    %v7448 = vunpack.c.h.s8.bf16 %v7344
    %v7449 = vunpack.c.h.s8.bf16 %v7345
    %v7450 = vunpack.c.h.s8.bf16 %v7346
    %v7451 = vunpack.c.l.s8.bf16 %v7347
    %v7452 = vunpack.c.l.s8.bf16 %v7348
    %v7453 = vunpack.c.l.s8.bf16 %v7349
    %v7454 = vunpack.c.l.s8.bf16 %v7350
    %v7455 = vunpack.c.h.s8.bf16 %v7347
    %v7456 = vunpack.c.h.s8.bf16 %v7348
    %v7457 = vunpack.c.h.s8.bf16 %v7349
    %v7458 = vunpack.c.h.s8.bf16 %v7350
    %v7459 = vunpack.c.l.s8.bf16 %v7351
    %v7460 = vunpack.c.l.s8.bf16 %v7352
    %v7461 = vunpack.c.l.s8.bf16 %v7353
    %v7462 = vunpack.c.l.s8.bf16 %v7354
    %v7463 = vunpack.c.h.s8.bf16 %v7351
    %v7464 = vunpack.c.h.s8.bf16 %v7352
    %v7465 = vunpack.c.h.s8.bf16 %v7353
    %v7466 = vunpack.c.h.s8.bf16 %v7354
    %v7467 = vunpack.c.l.s8.bf16 %v7355
    %v7468 = vunpack.c.l.s8.bf16 %v7356
    %v7469 = vunpack.c.l.s8.bf16 %v7357
    %v7470 = vunpack.c.l.s8.bf16 %v7358
    %v7471 = vunpack.c.h.s8.bf16 %v7355
    %v7472 = vunpack.c.h.s8.bf16 %v7356
    %v7473 = vunpack.c.h.s8.bf16 %v7357
    %v7474 = vunpack.c.h.s8.bf16 %v7358
    %v7475 = vunpack.c.l.s8.bf16 %v7359
    %v7476 = vunpack.c.l.s8.bf16 %v7360
    %v7477 = vunpack.c.l.s8.bf16 %v7361
    %v7478 = vunpack.c.l.s8.bf16 %v7362
    %v7479 = vunpack.c.h.s8.bf16 %v7359
    %v7480 = vunpack.c.h.s8.bf16 %v7360
    %v7481 = vunpack.c.h.s8.bf16 %v7361
    %v7482 = vunpack.c.h.s8.bf16 %v7362
    %v7483 = vunpack.c.l.s8.bf16 %v7363
    %v7484 = vunpack.c.l.s8.bf16 %v7364
    %v7485 = vunpack.c.l.s8.bf16 %v7365
    %v7486 = vunpack.c.l.s8.bf16 %v7366
    %v7487 = vunpack.c.h.s8.bf16 %v7363
    %v7488 = vunpack.c.h.s8.bf16 %v7364
    %v7489 = vunpack.c.h.s8.bf16 %v7365
    %v7490 = vunpack.c.h.s8.bf16 %v7366
    %v7491 = vunpack.c.l.s8.bf16 %v7367
    %v7492 = vunpack.c.l.s8.bf16 %v7368
    %v7493 = vunpack.c.l.s8.bf16 %v7369
    %v7494 = vunpack.c.l.s8.bf16 %v7370
    %v7495 = vunpack.c.h.s8.bf16 %v7367
    %v7496 = vunpack.c.h.s8.bf16 %v7368
    %v7497 = vunpack.c.h.s8.bf16 %v7369
    %v7498 = vunpack.c.h.s8.bf16 %v7370
    %v7499 = vpack.c.bf16 %v6517, %v6517
    %v7500 = vpack.c.bf16 %v6518, %v6518
    %v7501 = vpack.c.bf16 %v6519, %v6519
    %v7502 = vpack.c.bf16 %v6520, %v6520
    %7503 = vmatprep.subr.bf16.mxu0 %v7372
    %7504 = vmatpush1.bf16.msra.mxu0 %v7371
    %7505 = vmatprep.subr.bf16.mxu0 %v7376
    %7506 = vmatpush1.bf16.msra.mxu0 %v7375
    %7507 = vmatprep.subr.bf16.mxu0 %v7380
    %7508 = vmatpush1.bf16.msra.mxu0 %v7379
    %7509 = vmatprep.subr.bf16.mxu0 %v7384
    %7510 = vmatpush1.bf16.msra.mxu0 %v7383
    %7511 = vmatprep.subr.bf16.mxu0 %v7388
    %7512 = vmatpush1.bf16.msra.mxu0 %v7387
    %7513 = vmatprep.subr.bf16.mxu0 %v7392
    %7514 = vmatpush1.bf16.msra.mxu0 %v7391
    %7515 = vmatprep.subr.bf16.mxu0 %v7396
    %7516 = vmatpush1.bf16.msra.mxu0 %v7395
    %7517 = vmatprep.subr.bf16.mxu0 %v7400
    %7518 = vmatpush1.bf16.msra.mxu0 %v7399
    %7519 = vmatprep.subr.bf16.mxu0 %v7404
    %7520 = vmatpush1.bf16.msra.mxu0 %v7403
    %7521 = vmatprep.subr.bf16.mxu0 %v7408
    %7522 = vmatpush1.bf16.msra.mxu0 %v7407
    %7523 = vmatprep.subr.bf16.mxu0 %v7412
    %7524 = vmatpush1.bf16.msra.mxu0 %v7411
    %7525 = vmatprep.subr.bf16.mxu0 %v7416
    %7526 = vmatpush1.bf16.msra.mxu0 %v7415
    %7527 = vmatprep.subr.bf16.mxu0 %v7420
    %7528 = vmatpush1.bf16.msra.mxu0 %v7419
    %7529 = vmatprep.subr.bf16.mxu0 %v7424
    %7530 = vmatpush1.bf16.msra.mxu0 %v7423
    %7531 = vmatprep.subr.bf16.mxu0 %v7428
    %7532 = vmatpush1.bf16.msra.mxu0 %v7427
    %7533 = vmatprep.subr.bf16.mxu0 %v7432
    %7534 = vmatpush1.bf16.msra.mxu0 %v7431
    %7535 = vmatprep.mubr.bf16.mxu0 %v7500
    %7536 = vmatmul.mubr.bf16.gmra.mrb[0].mxu0 %v7499
    %v7537 = vpop.f32.mrb[0].mxu0
    %v7538 = vadd.f32 0.0, %v7537
    %v7539 = vpop.f32.mrb[0].mxu0
    %v7540 = vadd.f32 0.0, %v7539
    %v7541 = vpop.f32.mrb[0].mxu0
    %v7542 = vpop.f32.mrb[0].mxu0
    %7543 = vdwg.mxu0
    %7544 = vmatprep.subr.bf16.mxu0 %v7436
    %7545 = vmatpush1.bf16.msra.mxu0 %v7435
    %7546 = vmatprep.subr.bf16.mxu0 %v7440
    %7547 = vmatpush1.bf16.msra.mxu0 %v7439
    %7548 = vmatprep.subr.bf16.mxu0 %v7444
    %7549 = vmatpush1.bf16.msra.mxu0 %v7443
    %7550 = vmatprep.subr.bf16.mxu0 %v7448
    %7551 = vmatpush1.bf16.msra.mxu0 %v7447
    %7552 = vmatprep.subr.bf16.mxu0 %v7452
    %7553 = vmatpush1.bf16.msra.mxu0 %v7451
    %7554 = vmatprep.subr.bf16.mxu0 %v7456
    %7555 = vmatpush1.bf16.msra.mxu0 %v7455
    %7556 = vmatprep.subr.bf16.mxu0 %v7460
    %7557 = vmatpush1.bf16.msra.mxu0 %v7459
    %7558 = vmatprep.subr.bf16.mxu0 %v7464
    %7559 = vmatpush1.bf16.msra.mxu0 %v7463
    %7560 = vmatprep.subr.bf16.mxu0 %v7468
    %7561 = vmatpush1.bf16.msra.mxu0 %v7467
    %7562 = vmatprep.subr.bf16.mxu0 %v7472
    %7563 = vmatpush1.bf16.msra.mxu0 %v7471
    %7564 = vmatprep.subr.bf16.mxu0 %v7476
    %7565 = vmatpush1.bf16.msra.mxu0 %v7475
    %7566 = vmatprep.subr.bf16.mxu0 %v7480
    %7567 = vmatpush1.bf16.msra.mxu0 %v7479
    %7568 = vmatprep.subr.bf16.mxu0 %v7484
    %7569 = vmatpush1.bf16.msra.mxu0 %v7483
    %7570 = vmatprep.subr.bf16.mxu0 %v7488
    %7571 = vmatpush1.bf16.msra.mxu0 %v7487
    %7572 = vmatprep.subr.bf16.mxu0 %v7492
    %7573 = vmatpush1.bf16.msra.mxu0 %v7491
    %7574 = vmatprep.subr.bf16.mxu0 %v7496
    %7575 = vmatpush1.bf16.msra.mxu0 %v7495
    %7576 = vmatprep.mubr.bf16.mxu0 %v7502
    %7577 = vmatmul.mubr.bf16.gmra.mrb[0].mxu0 %v7501
    %v7578 = vpop.f32.mrb[0].mxu0
    %v7579 = vadd.f32 %v7538, %v7578
    %v7580 = vpop.f32.mrb[0].mxu0
    %v7581 = vadd.f32 %v7540, %v7580
    %v7582 = vpop.f32.mrb[0].mxu0
    %v7583 = vpop.f32.mrb[0].mxu0
    %7584 = vdwg.mxu0
    %7585 = vmatprep.subr.bf16.mxu0 %v7374
    %7586 = vmatpush1.bf16.msra.mxu0 %v7373
    %7587 = vmatprep.subr.bf16.mxu0 %v7378
    %7588 = vmatpush1.bf16.msra.mxu0 %v7377
    %7589 = vmatprep.subr.bf16.mxu0 %v7382
    %7590 = vmatpush1.bf16.msra.mxu0 %v7381
    %7591 = vmatprep.subr.bf16.mxu0 %v7386
    %7592 = vmatpush1.bf16.msra.mxu0 %v7385
    %7593 = vmatprep.subr.bf16.mxu0 %v7390
    %7594 = vmatpush1.bf16.msra.mxu0 %v7389
    %7595 = vmatprep.subr.bf16.mxu0 %v7394
    %7596 = vmatpush1.bf16.msra.mxu0 %v7393
    %7597 = vmatprep.subr.bf16.mxu0 %v7398
    %7598 = vmatpush1.bf16.msra.mxu0 %v7397
    %7599 = vmatprep.subr.bf16.mxu0 %v7402
    %7600 = vmatpush1.bf16.msra.mxu0 %v7401
    %7601 = vmatprep.subr.bf16.mxu0 %v7406
    %7602 = vmatpush1.bf16.msra.mxu0 %v7405
    %7603 = vmatprep.subr.bf16.mxu0 %v7410
    %7604 = vmatpush1.bf16.msra.mxu0 %v7409
    %7605 = vmatprep.subr.bf16.mxu0 %v7414
    %7606 = vmatpush1.bf16.msra.mxu0 %v7413
    %7607 = vmatprep.subr.bf16.mxu0 %v7418
    %7608 = vmatpush1.bf16.msra.mxu0 %v7417
    %7609 = vmatprep.subr.bf16.mxu0 %v7422
    %7610 = vmatpush1.bf16.msra.mxu0 %v7421
    %7611 = vmatprep.subr.bf16.mxu0 %v7426
    %7612 = vmatpush1.bf16.msra.mxu0 %v7425
    %7613 = vmatprep.subr.bf16.mxu0 %v7430
    %7614 = vmatpush1.bf16.msra.mxu0 %v7429
    %7615 = vmatprep.subr.bf16.mxu0 %v7434
    %7616 = vmatpush1.bf16.msra.mxu0 %v7433
    %7617 = vmatprep.mubr.bf16.mxu0 %v7500
    %7618 = vmatmul.mubr.bf16.gmra.mrb[0].mxu0 %v7499
    %v7619 = vpop.f32.mrb[0].mxu0
    %v7620 = vadd.f32 0.0, %v7619
    %v7621 = vpop.f32.mrb[0].mxu0
    %v7622 = vadd.f32 0.0, %v7621
    %v7623 = vpop.f32.mrb[0].mxu0
    %v7624 = vpop.f32.mrb[0].mxu0
    %7625 = vdwg.mxu0
    %7626 = vmatprep.subr.bf16.mxu0 %v7438
    %7627 = vmatpush1.bf16.msra.mxu0 %v7437
    %7628 = vmatprep.subr.bf16.mxu0 %v7442
    %7629 = vmatpush1.bf16.msra.mxu0 %v7441
    %7630 = vmatprep.subr.bf16.mxu0 %v7446
    %7631 = vmatpush1.bf16.msra.mxu0 %v7445
    %7632 = vmatprep.subr.bf16.mxu0 %v7450
    %7633 = vmatpush1.bf16.msra.mxu0 %v7449
    %7634 = vmatprep.subr.bf16.mxu0 %v7454
    %7635 = vmatpush1.bf16.msra.mxu0 %v7453
    %7636 = vmatprep.subr.bf16.mxu0 %v7458
    %7637 = vmatpush1.bf16.msra.mxu0 %v7457
    %7638 = vmatprep.subr.bf16.mxu0 %v7462
    %7639 = vmatpush1.bf16.msra.mxu0 %v7461
    %7640 = vmatprep.subr.bf16.mxu0 %v7466
    %7641 = vmatpush1.bf16.msra.mxu0 %v7465
    %7642 = vmatprep.subr.bf16.mxu0 %v7470
    %7643 = vmatpush1.bf16.msra.mxu0 %v7469
    %7644 = vmatprep.subr.bf16.mxu0 %v7474
    %7645 = vmatpush1.bf16.msra.mxu0 %v7473
    %7646 = vmatprep.subr.bf16.mxu0 %v7478
    %7647 = vmatpush1.bf16.msra.mxu0 %v7477
    %7648 = vmatprep.subr.bf16.mxu0 %v7482
    %7649 = vmatpush1.bf16.msra.mxu0 %v7481
    %7650 = vmatprep.subr.bf16.mxu0 %v7486
    %7651 = vmatpush1.bf16.msra.mxu0 %v7485
    %7652 = vmatprep.subr.bf16.mxu0 %v7490
    %7653 = vmatpush1.bf16.msra.mxu0 %v7489
    %7654 = vmatprep.subr.bf16.mxu0 %v7494
    %7655 = vmatpush1.bf16.msra.mxu0 %v7493
    %7656 = vmatprep.subr.bf16.mxu0 %v7498
    %7657 = vmatpush1.bf16.msra.mxu0 %v7497
    %7658 = vmatprep.mubr.bf16.mxu0 %v7502
    %7659 = vmatmul.mubr.bf16.gmra.mrb[0].mxu0 %v7501
    %v7660 = vpop.f32.mrb[0].mxu0
    %v7661 = vadd.f32 %v7620, %v7660
    %v7662 = vpop.f32.mrb[0].mxu0
    %v7663 = vadd.f32 %v7622, %v7662
    %v7664 = vpop.f32.mrb[0].mxu0
    %v7665 = vpop.f32.mrb[0].mxu0
    %7666 = vdwg.mxu0
    %v7667 = vrot.slane %v58, 7
    %v7668 = vrot.slane %v59, 7
    %v7669 = vrot.slane %v60, 7
    %v7670 = vrot.slane %v61, 7
    %v7675 = vmul.f32 %v7579, %v7667
    %v7676 = vmul.f32 %v7581, %v7668
    %v7677 = vmul.f32 %v7661, %v7669
    %v7678 = vmul.f32 %v7663, %v7670
    %v7679 = vld [vmem:[%s2] sm:$0x1]
    %v7680 = vld [vmem:[%s11] sm:$0xff]
    %v7681 = vld [vmem:[%s11 + $0x8] sm:$0xff]
    %v7682 = vld [vmem:[%s11 + $0x10] sm:$0xff]
    %v7683 = vld [vmem:[%s11 + $0x18] sm:$0xff]
    %v7684 = vld [vmem:[%s11 + $0x20] sm:$0xff]
    %v7685 = vld [vmem:[%s11 + $0x28] sm:$0xff]
    %v7686 = vld [vmem:[%s11 + $0x30] sm:$0xff]
    %v7687 = vld [vmem:[%s11 + $0x38] sm:$0xff]
    %v7688 = vld [vmem:[%s11 + $0x40] sm:$0xff]
    %v7689 = vld [vmem:[%s11 + $0x48] sm:$0xff]
    %v7690 = vld [vmem:[%s11 + $0x50] sm:$0xff]
    %v7691 = vld [vmem:[%s11 + $0x58] sm:$0xff]
    %v7692 = vld [vmem:[%s11 + $0x60] sm:$0xff]
    %v7693 = vld [vmem:[%s11 + $0x68] sm:$0xff]
    %v7694 = vld [vmem:[%s11 + $0x70] sm:$0xff]
    %v7695 = vld [vmem:[%s11 + $0x78] sm:$0xff]
    %v7696 = vpack.c.bf16 %v7679, %v7679
    %v7713 = vunpack.c.l.b16 %v7680
    %v7714 = vunpack.c.h.b16 %v7680
    %v7715 = vunpack.c.l.b16 %v7681
    %v7716 = vunpack.c.h.b16 %v7681
    %v7717 = vunpack.c.l.b16 %v7682
    %v7718 = vunpack.c.h.b16 %v7682
    %v7719 = vunpack.c.l.b16 %v7683
    %v7720 = vunpack.c.h.b16 %v7683
    %v7721 = vunpack.c.l.b16 %v7684
    %v7722 = vunpack.c.h.b16 %v7684
    %v7723 = vunpack.c.l.b16 %v7685
    %v7724 = vunpack.c.h.b16 %v7685
    %v7725 = vunpack.c.l.b16 %v7686
    %v7726 = vunpack.c.h.b16 %v7686
    %v7727 = vunpack.c.l.b16 %v7687
    %v7728 = vunpack.c.h.b16 %v7687
    %v7729 = vunpack.c.l.b16 %v7688
    %v7730 = vunpack.c.h.b16 %v7688
    %v7731 = vunpack.c.l.b16 %v7689
    %v7732 = vunpack.c.h.b16 %v7689
    %v7733 = vunpack.c.l.b16 %v7690
    %v7734 = vunpack.c.h.b16 %v7690
    %v7735 = vunpack.c.l.b16 %v7691
    %v7736 = vunpack.c.h.b16 %v7691
    %v7737 = vunpack.c.l.b16 %v7692
    %v7738 = vunpack.c.h.b16 %v7692
    %v7739 = vunpack.c.l.b16 %v7693
    %v7740 = vunpack.c.h.b16 %v7693
    %v7741 = vunpack.c.l.b16 %v7694
    %v7742 = vunpack.c.h.b16 %v7694
    %v7743 = vunpack.c.l.b16 %v7695
    %v7744 = vunpack.c.h.b16 %v7695
    %v7745 = vpack.c.b16 %v7717, %v7713
    %v7746 = vpack.c.b16 %v7718, %v7714
    %v7747 = vpack.c.b16 %v7719, %v7715
    %v7748 = vpack.c.b16 %v7720, %v7716
    %v7749 = vpack.c.b16 %v7725, %v7721
    %v7750 = vpack.c.b16 %v7726, %v7722
    %v7751 = vpack.c.b16 %v7727, %v7723
    %v7752 = vpack.c.b16 %v7728, %v7724
    %v7753 = vpack.c.b16 %v7733, %v7729
    %v7754 = vpack.c.b16 %v7734, %v7730
    %v7755 = vpack.c.b16 %v7735, %v7731
    %v7756 = vpack.c.b16 %v7736, %v7732
    %v7757 = vpack.c.b16 %v7741, %v7737
    %v7758 = vpack.c.b16 %v7742, %v7738
    %v7759 = vpack.c.b16 %v7743, %v7739
    %v7760 = vpack.c.b16 %v7744, %v7740
    %vm7777 = vcmask 523264
    %v7779 = vsel %vm7777, %v7696, 0
    %7781 = vmatprep.subr.bf16.mxu0 %v7746
    %7782 = vmatpush1.bf16.msra.mxu0 %v7745
    %7783 = vmatprep.subr.bf16.mxu0 %v7750
    %7784 = vmatpush1.bf16.msra.mxu0 %v7749
    %7785 = vmatprep.subr.bf16.mxu0 %v7754
    %7786 = vmatpush1.bf16.msra.mxu0 %v7753
    %7787 = vmatprep.subr.bf16.mxu0 %v7758
    %7788 = vmatpush1.bf16.msra.mxu0 %v7757
    %7789 = vmatprep.subr.bf16.mxu0 0
    %7790 = vmatpush1.bf16.msra.mxu0 0
    %7791 = vmatprep.subr.bf16.mxu0 0
    %7792 = vmatpush1.bf16.msra.mxu0 0
    %7793 = vmatprep.subr.bf16.mxu0 0
    %7794 = vmatpush1.bf16.msra.mxu0 0
    %7795 = vmatprep.subr.bf16.mxu0 0
    %7796 = vmatpush1.bf16.msra.mxu0 0
    %7797 = vmatprep.subr.bf16.mxu0 0
    %7798 = vmatpush1.bf16.msra.mxu0 0
    %7799 = vmatprep.subr.bf16.mxu0 0
    %7800 = vmatpush1.bf16.msra.mxu0 0
    %7801 = vmatprep.subr.bf16.mxu0 0
    %7802 = vmatpush1.bf16.msra.mxu0 0
    %7803 = vmatprep.subr.bf16.mxu0 0
    %7804 = vmatpush1.bf16.msra.mxu0 0
    %7805 = vmatprep.subr.bf16.mxu0 0
    %7806 = vmatpush1.bf16.msra.mxu0 0
    %7807 = vmatprep.subr.bf16.mxu0 0
    %7808 = vmatpush1.bf16.msra.mxu0 0
    %7809 = vmatprep.subr.bf16.mxu0 0
    %7810 = vmatpush1.bf16.msra.mxu0 0
    %7811 = vmatprep.subr.bf16.mxu0 0
    %7812 = vmatpush1.bf16.msra.mxu0 0
    %7813 = vmatprep.mubr.bf16.mxu0 0
    %7814 = vmatmul.mubr.bf16.gmra.mrb[0].mxu0 %v7779
    %v7815 = vpop.f32.mrb[0].mxu0
    %v7816 = vadd.f32 0.0, %v7815
    %v7817 = vpop.f32.mrb[0].mxu0
    %v7818 = vadd.f32 0.0, %v7817
    %v7819 = vpop.f32.mrb[0].mxu0
    %v7820 = vpop.f32.mrb[0].mxu0
    %7821 = vdwg.mxu0
    %7822 = vmatprep.subr.bf16.mxu0 %v7748
    %7823 = vmatpush1.bf16.msra.mxu0 %v7747
    %7824 = vmatprep.subr.bf16.mxu0 %v7752
    %7825 = vmatpush1.bf16.msra.mxu0 %v7751
    %7826 = vmatprep.subr.bf16.mxu0 %v7756
    %7827 = vmatpush1.bf16.msra.mxu0 %v7755
    %7828 = vmatprep.subr.bf16.mxu0 %v7760
    %7829 = vmatpush1.bf16.msra.mxu0 %v7759
    %7830 = vmatprep.subr.bf16.mxu0 0
    %7831 = vmatpush1.bf16.msra.mxu0 0
    %7832 = vmatprep.subr.bf16.mxu0 0
    %7833 = vmatpush1.bf16.msra.mxu0 0
    %7834 = vmatprep.subr.bf16.mxu0 0
    %7835 = vmatpush1.bf16.msra.mxu0 0
    %7836 = vmatprep.subr.bf16.mxu0 0
    %7837 = vmatpush1.bf16.msra.mxu0 0
    %7838 = vmatprep.subr.bf16.mxu0 0
    %7839 = vmatpush1.bf16.msra.mxu0 0
    %7840 = vmatprep.subr.bf16.mxu0 0
    %7841 = vmatpush1.bf16.msra.mxu0 0
    %7842 = vmatprep.subr.bf16.mxu0 0
    %7843 = vmatpush1.bf16.msra.mxu0 0
    %7844 = vmatprep.subr.bf16.mxu0 0
    %7845 = vmatpush1.bf16.msra.mxu0 0
    %7846 = vmatprep.subr.bf16.mxu0 0
    %7847 = vmatpush1.bf16.msra.mxu0 0
    %7848 = vmatprep.subr.bf16.mxu0 0
    %7849 = vmatpush1.bf16.msra.mxu0 0
    %7850 = vmatprep.subr.bf16.mxu0 0
    %7851 = vmatpush1.bf16.msra.mxu0 0
    %7852 = vmatprep.subr.bf16.mxu0 0
    %7853 = vmatpush1.bf16.msra.mxu0 0
    %7854 = vmatprep.mubr.bf16.mxu0 0
    %7855 = vmatmul.mubr.bf16.gmra.mrb[0].mxu0 %v7779
    %v7856 = vpop.f32.mrb[0].mxu0
    %v7857 = vadd.f32 0.0, %v7856
    %v7858 = vpop.f32.mrb[0].mxu0
    %v7859 = vadd.f32 0.0, %v7858
    %v7860 = vpop.f32.mrb[0].mxu0
    %v7861 = vpop.f32.mrb[0].mxu0
    %7862 = vdwg.mxu0
    %v7863 = vadd.f32 %v7675, %v7816
    %v7864 = vadd.f32 %v7676, %v7818
    %v7865 = vadd.f32 %v7677, %v7857
    %v7866 = vadd.f32 %v7678, %v7859
    %v7867 = vrot.slane %v58, 6
    %v7868 = vrot.slane %v59, 6
    %v7869 = vrot.slane %v60, 6
    %v7870 = vrot.slane %v61, 6
    %v7875 = vadd.f32 %v7863, %v7867
    %v7876 = vadd.f32 %v7864, %v7868
    %v7877 = vadd.f32 %v7865, %v7869
    %v7878 = vadd.f32 %v7866, %v7870
    %v7879 = vmul.f32 %v7303, %v62
    %v7880 = vmul.f32 %v7304, %v63
    %v7881 = vmul.f32 %v7305, %v64
    %v7882 = vmul.f32 %v7306, %v65
    %v7883 = vsel %vm4060, %v7879, 0.0
    %v7884 = vsel %vm4060, %v7880, 0.0
    %v7885 = vadd.f32 %v7883, %v7884
    %v7886 = vsel %vm4060, %v7881, 0.0
    %v7887 = vadd.f32 %v7885, %v7886
    %v7888 = vsel %vm4060, %v7882, 0.0
    %v7889 = vadd.f32 %v7887, %v7888
    %7890 = vadd.xlane.f32.xlu0 %v7889
    %v7891 = vpop.xlane.xlu0 %7890
    %v7896 = vrot.slane %v62, 1
    %v7897 = vrot.slane %v63, 1
    %v7898 = vrot.slane %v64, 1
    %v7899 = vrot.slane %v65, 1
    %v7904 = vmul.f32 %v7875, %v7896
    %v7905 = vmul.f32 %v7876, %v7897
    %v7906 = vmul.f32 %v7877, %v7898
    %v7907 = vmul.f32 %v7878, %v7899
    %v7908 = vsel %vm4060, %v7904, 0.0
    %v7909 = vsel %vm4060, %v7905, 0.0
    %v7910 = vadd.f32 %v7908, %v7909
    %v7911 = vsel %vm4060, %v7906, 0.0
    %v7912 = vadd.f32 %v7910, %v7911
    %v7913 = vsel %vm4060, %v7907, 0.0
    %v7914 = vadd.f32 %v7912, %v7913
    %7915 = vadd.xlane.f32.xlu0 %v7914
    %v7916 = vpop.xlane.xlu0 %7915
    %v7917 = vadd.f32 %v7891, %v7916
    %v7918 = vrot.slane %v62, 2
    %v7920 = vadd.f32 %v7917, %v7918
    %v7921 = vsub.f32 0.0, %v7920
    %v7922 = vmul.f32 %v7921, 1.442695
    %v7923 = vpow.pop %v7922
    %v7924 = vadd.f32 %v7923, 1.0
    %v7925 = vrcp.pop %v7924
    %v7926 = vmul.f32 1.0, %v7925
    %7928 = vset.pattern.permute.xlu0 0
    %7929 = vperm.xlu0 %7928, %v7926
    %v7930 = vpop.permute.xlu0 %7929
    %v7932 = vmul.f32 %v7930, %v7303
    %v7933 = vmul.f32 %v7930, %v7304
    %v7934 = vmul.f32 %v7930, %v7305
    %v7935 = vmul.f32 %v7930, %v7306
    %v7936 = vsub.f32 1.0, %v7926
    %7938 = vset.pattern.permute.xlu0 0
    %7939 = vperm.xlu0 %7938, %v7936
    %v7940 = vpop.permute.xlu0 %7939
    %v7942 = vmul.f32 %v7940, %v7875
    %v7943 = vmul.f32 %v7940, %v7876
    %v7944 = vmul.f32 %v7940, %v7877
    %v7945 = vmul.f32 %v7940, %v7878
    %v7946 = vadd.f32 %v7932, %v7942
    %v7947 = vadd.f32 %v7933, %v7943
    %v7948 = vadd.f32 %v7934, %v7944
    %v7949 = vadd.f32 %v7935, %v7945
    %v7950 = vld [vmem:[%s9] sm:$0xff]
    %v7951 = vld [vmem:[%s9 + $0x8] sm:$0xff]
    %v7952 = vld [vmem:[%s9 + $0x10] sm:$0xff]
    %v7953 = vld [vmem:[%s9 + $0x18] sm:$0xff]
    %v7954 = vld [vmem:[%s9 + $0x20] sm:$0xff]
    %v7955 = vld [vmem:[%s9 + $0x28] sm:$0xff]
    %v7956 = vld [vmem:[%s9 + $0x30] sm:$0xff]
    %v7957 = vld [vmem:[%s9 + $0x38] sm:$0xff]
    %v7958 = vld [vmem:[%s9 + $0x40] sm:$0xff]
    %v7959 = vld [vmem:[%s9 + $0x48] sm:$0xff]
    %v7960 = vld [vmem:[%s9 + $0x50] sm:$0xff]
    %v7961 = vld [vmem:[%s9 + $0x58] sm:$0xff]
    %v7962 = vld [vmem:[%s9 + $0x60] sm:$0xff]
    %v7963 = vld [vmem:[%s9 + $0x68] sm:$0xff]
    %v7964 = vld [vmem:[%s9 + $0x70] sm:$0xff]
    %v7965 = vld [vmem:[%s9 + $0x78] sm:$0xff]
    %v7966 = vld [vmem:[%s9 + $0x80] sm:$0xff]
    %v7967 = vld [vmem:[%s9 + $0x88] sm:$0xff]
    %v7968 = vld [vmem:[%s9 + $0x90] sm:$0xff]
    %v7969 = vld [vmem:[%s9 + $0x98] sm:$0xff]
    %v7970 = vld [vmem:[%s9 + $0xa0] sm:$0xff]
    %v7971 = vld [vmem:[%s9 + $0xa8] sm:$0xff]
    %v7972 = vld [vmem:[%s9 + $0xb0] sm:$0xff]
    %v7973 = vld [vmem:[%s9 + $0xb8] sm:$0xff]
    %v7974 = vld [vmem:[%s9 + $0xc0] sm:$0xff]
    %v7975 = vld [vmem:[%s9 + $0xc8] sm:$0xff]
    %v7976 = vld [vmem:[%s9 + $0xd0] sm:$0xff]
    %v7977 = vld [vmem:[%s9 + $0xd8] sm:$0xff]
    %v7978 = vld [vmem:[%s9 + $0xe0] sm:$0xff]
    %v7979 = vld [vmem:[%s9 + $0xe8] sm:$0xff]
    %v7980 = vld [vmem:[%s9 + $0xf0] sm:$0xff]
    %v7981 = vld [vmem:[%s9 + $0xf8] sm:$0xff]
    %v7982 = vld [vmem:[%s9 + $0x100] sm:$0xff]
    %v7983 = vld [vmem:[%s9 + $0x108] sm:$0xff]
    %v7984 = vld [vmem:[%s9 + $0x110] sm:$0xff]
    %v7985 = vld [vmem:[%s9 + $0x118] sm:$0xff]
    %v7986 = vld [vmem:[%s9 + $0x120] sm:$0xff]
    %v7987 = vld [vmem:[%s9 + $0x128] sm:$0xff]
    %v7988 = vld [vmem:[%s9 + $0x130] sm:$0xff]
    %v7989 = vld [vmem:[%s9 + $0x138] sm:$0xff]
    %v7990 = vld [vmem:[%s9 + $0x140] sm:$0xff]
    %v7991 = vld [vmem:[%s9 + $0x148] sm:$0xff]
    %v7992 = vld [vmem:[%s9 + $0x150] sm:$0xff]
    %v7993 = vld [vmem:[%s9 + $0x158] sm:$0xff]
    %v7994 = vld [vmem:[%s9 + $0x160] sm:$0xff]
    %v7995 = vld [vmem:[%s9 + $0x168] sm:$0xff]
    %v7996 = vld [vmem:[%s9 + $0x170] sm:$0xff]
    %v7997 = vld [vmem:[%s9 + $0x178] sm:$0xff]
    %v7998 = vld [vmem:[%s9 + $0x180] sm:$0xff]
    %v7999 = vld [vmem:[%s9 + $0x188] sm:$0xff]
    %v8000 = vld [vmem:[%s9 + $0x190] sm:$0xff]
    %v8001 = vld [vmem:[%s9 + $0x198] sm:$0xff]
    %v8002 = vld [vmem:[%s9 + $0x1a0] sm:$0xff]
    %v8003 = vld [vmem:[%s9 + $0x1a8] sm:$0xff]
    %v8004 = vld [vmem:[%s9 + $0x1b0] sm:$0xff]
    %v8005 = vld [vmem:[%s9 + $0x1b8] sm:$0xff]
    %v8006 = vld [vmem:[%s9 + $0x1c0] sm:$0xff]
    %v8007 = vld [vmem:[%s9 + $0x1c8] sm:$0xff]
    %v8008 = vld [vmem:[%s9 + $0x1d0] sm:$0xff]
    %v8009 = vld [vmem:[%s9 + $0x1d8] sm:$0xff]
    %v8010 = vld [vmem:[%s9 + $0x1e0] sm:$0xff]
    %v8011 = vld [vmem:[%s9 + $0x1e8] sm:$0xff]
    %v8012 = vld [vmem:[%s9 + $0x1f0] sm:$0xff]
    %v8013 = vld [vmem:[%s9 + $0x1f8] sm:$0xff]
    %v8014 = vunpack.c.l.s8.bf16 %v7950
    %v8015 = vunpack.c.l.s8.bf16 %v7951
    %v8016 = vunpack.c.l.s8.bf16 %v7952
    %v8017 = vunpack.c.l.s8.bf16 %v7953
    %v8018 = vunpack.c.h.s8.bf16 %v7950
    %v8019 = vunpack.c.h.s8.bf16 %v7951
    %v8020 = vunpack.c.h.s8.bf16 %v7952
    %v8021 = vunpack.c.h.s8.bf16 %v7953
    %v8022 = vunpack.c.l.s8.bf16 %v7954
    %v8023 = vunpack.c.l.s8.bf16 %v7955
    %v8024 = vunpack.c.l.s8.bf16 %v7956
    %v8025 = vunpack.c.l.s8.bf16 %v7957
    %v8026 = vunpack.c.h.s8.bf16 %v7954
    %v8027 = vunpack.c.h.s8.bf16 %v7955
    %v8028 = vunpack.c.h.s8.bf16 %v7956
    %v8029 = vunpack.c.h.s8.bf16 %v7957
    %v8030 = vunpack.c.l.s8.bf16 %v7958
    %v8031 = vunpack.c.l.s8.bf16 %v7959
    %v8032 = vunpack.c.l.s8.bf16 %v7960
    %v8033 = vunpack.c.l.s8.bf16 %v7961
    %v8034 = vunpack.c.h.s8.bf16 %v7958
    %v8035 = vunpack.c.h.s8.bf16 %v7959
    %v8036 = vunpack.c.h.s8.bf16 %v7960
    %v8037 = vunpack.c.h.s8.bf16 %v7961
    %v8038 = vunpack.c.l.s8.bf16 %v7962
    %v8039 = vunpack.c.l.s8.bf16 %v7963
    %v8040 = vunpack.c.l.s8.bf16 %v7964
    %v8041 = vunpack.c.l.s8.bf16 %v7965
    %v8042 = vunpack.c.h.s8.bf16 %v7962
    %v8043 = vunpack.c.h.s8.bf16 %v7963
    %v8044 = vunpack.c.h.s8.bf16 %v7964
    %v8045 = vunpack.c.h.s8.bf16 %v7965
    %v8046 = vunpack.c.l.s8.bf16 %v7966
    %v8047 = vunpack.c.l.s8.bf16 %v7967
    %v8048 = vunpack.c.l.s8.bf16 %v7968
    %v8049 = vunpack.c.l.s8.bf16 %v7969
    %v8050 = vunpack.c.h.s8.bf16 %v7966
    %v8051 = vunpack.c.h.s8.bf16 %v7967
    %v8052 = vunpack.c.h.s8.bf16 %v7968
    %v8053 = vunpack.c.h.s8.bf16 %v7969
    %v8054 = vunpack.c.l.s8.bf16 %v7970
    %v8055 = vunpack.c.l.s8.bf16 %v7971
    %v8056 = vunpack.c.l.s8.bf16 %v7972
    %v8057 = vunpack.c.l.s8.bf16 %v7973
    %v8058 = vunpack.c.h.s8.bf16 %v7970
    %v8059 = vunpack.c.h.s8.bf16 %v7971
    %v8060 = vunpack.c.h.s8.bf16 %v7972
    %v8061 = vunpack.c.h.s8.bf16 %v7973
    %v8062 = vunpack.c.l.s8.bf16 %v7974
    %v8063 = vunpack.c.l.s8.bf16 %v7975
    %v8064 = vunpack.c.l.s8.bf16 %v7976
    %v8065 = vunpack.c.l.s8.bf16 %v7977
    %v8066 = vunpack.c.h.s8.bf16 %v7974
    %v8067 = vunpack.c.h.s8.bf16 %v7975
    %v8068 = vunpack.c.h.s8.bf16 %v7976
    %v8069 = vunpack.c.h.s8.bf16 %v7977
    %v8070 = vunpack.c.l.s8.bf16 %v7978
    %v8071 = vunpack.c.l.s8.bf16 %v7979
    %v8072 = vunpack.c.l.s8.bf16 %v7980
    %v8073 = vunpack.c.l.s8.bf16 %v7981
    %v8074 = vunpack.c.h.s8.bf16 %v7978
    %v8075 = vunpack.c.h.s8.bf16 %v7979
    %v8076 = vunpack.c.h.s8.bf16 %v7980
    %v8077 = vunpack.c.h.s8.bf16 %v7981
    %v8078 = vunpack.c.l.s8.bf16 %v7982
    %v8079 = vunpack.c.l.s8.bf16 %v7983
    %v8080 = vunpack.c.l.s8.bf16 %v7984
    %v8081 = vunpack.c.l.s8.bf16 %v7985
    %v8082 = vunpack.c.h.s8.bf16 %v7982
    %v8083 = vunpack.c.h.s8.bf16 %v7983
    %v8084 = vunpack.c.h.s8.bf16 %v7984
    %v8085 = vunpack.c.h.s8.bf16 %v7985
    %v8086 = vunpack.c.l.s8.bf16 %v7986
    %v8087 = vunpack.c.l.s8.bf16 %v7987
    %v8088 = vunpack.c.l.s8.bf16 %v7988
    %v8089 = vunpack.c.l.s8.bf16 %v7989
    %v8090 = vunpack.c.h.s8.bf16 %v7986
    %v8091 = vunpack.c.h.s8.bf16 %v7987
    %v8092 = vunpack.c.h.s8.bf16 %v7988
    %v8093 = vunpack.c.h.s8.bf16 %v7989
    %v8094 = vunpack.c.l.s8.bf16 %v7990
    %v8095 = vunpack.c.l.s8.bf16 %v7991
    %v8096 = vunpack.c.l.s8.bf16 %v7992
    %v8097 = vunpack.c.l.s8.bf16 %v7993
    %v8098 = vunpack.c.h.s8.bf16 %v7990
    %v8099 = vunpack.c.h.s8.bf16 %v7991
    %v8100 = vunpack.c.h.s8.bf16 %v7992
    %v8101 = vunpack.c.h.s8.bf16 %v7993
    %v8102 = vunpack.c.l.s8.bf16 %v7994
    %v8103 = vunpack.c.l.s8.bf16 %v7995
    %v8104 = vunpack.c.l.s8.bf16 %v7996
    %v8105 = vunpack.c.l.s8.bf16 %v7997
    %v8106 = vunpack.c.h.s8.bf16 %v7994
    %v8107 = vunpack.c.h.s8.bf16 %v7995
    %v8108 = vunpack.c.h.s8.bf16 %v7996
    %v8109 = vunpack.c.h.s8.bf16 %v7997
    %v8110 = vunpack.c.l.s8.bf16 %v7998
    %v8111 = vunpack.c.l.s8.bf16 %v7999
    %v8112 = vunpack.c.l.s8.bf16 %v8000
    %v8113 = vunpack.c.l.s8.bf16 %v8001
    %v8114 = vunpack.c.h.s8.bf16 %v7998
    %v8115 = vunpack.c.h.s8.bf16 %v7999
    %v8116 = vunpack.c.h.s8.bf16 %v8000
    %v8117 = vunpack.c.h.s8.bf16 %v8001
    %v8118 = vunpack.c.l.s8.bf16 %v8002
    %v8119 = vunpack.c.l.s8.bf16 %v8003
    %v8120 = vunpack.c.l.s8.bf16 %v8004
    %v8121 = vunpack.c.l.s8.bf16 %v8005
    %v8122 = vunpack.c.h.s8.bf16 %v8002
    %v8123 = vunpack.c.h.s8.bf16 %v8003
    %v8124 = vunpack.c.h.s8.bf16 %v8004
    %v8125 = vunpack.c.h.s8.bf16 %v8005
    %v8126 = vunpack.c.l.s8.bf16 %v8006
    %v8127 = vunpack.c.l.s8.bf16 %v8007
    %v8128 = vunpack.c.l.s8.bf16 %v8008
    %v8129 = vunpack.c.l.s8.bf16 %v8009
    %v8130 = vunpack.c.h.s8.bf16 %v8006
    %v8131 = vunpack.c.h.s8.bf16 %v8007
    %v8132 = vunpack.c.h.s8.bf16 %v8008
    %v8133 = vunpack.c.h.s8.bf16 %v8009
    %v8134 = vunpack.c.l.s8.bf16 %v8010
    %v8135 = vunpack.c.l.s8.bf16 %v8011
    %v8136 = vunpack.c.l.s8.bf16 %v8012
    %v8137 = vunpack.c.l.s8.bf16 %v8013
    %v8138 = vunpack.c.h.s8.bf16 %v8010
    %v8139 = vunpack.c.h.s8.bf16 %v8011
    %v8140 = vunpack.c.h.s8.bf16 %v8012
    %v8141 = vunpack.c.h.s8.bf16 %v8013
    %v8142 = vpack.c.bf16 %v7946, %v7946
    %v8143 = vpack.c.bf16 %v7947, %v7947
    %v8144 = vpack.c.bf16 %v7948, %v7948
    %v8145 = vpack.c.bf16 %v7949, %v7949
    %8146 = vmatprep.subr.bf16.mxu0 %v8015
    %8147 = vmatpush1.bf16.msra.mxu0 %v8014
    %8148 = vmatprep.subr.bf16.mxu0 %v8019
    %8149 = vmatpush1.bf16.msra.mxu0 %v8018
    %8150 = vmatprep.subr.bf16.mxu0 %v8023
    %8151 = vmatpush1.bf16.msra.mxu0 %v8022
    %8152 = vmatprep.subr.bf16.mxu0 %v8027
    %8153 = vmatpush1.bf16.msra.mxu0 %v8026
    %8154 = vmatprep.subr.bf16.mxu0 %v8031
    %8155 = vmatpush1.bf16.msra.mxu0 %v8030
    %8156 = vmatprep.subr.bf16.mxu0 %v8035
    %8157 = vmatpush1.bf16.msra.mxu0 %v8034
    %8158 = vmatprep.subr.bf16.mxu0 %v8039
    %8159 = vmatpush1.bf16.msra.mxu0 %v8038
    %8160 = vmatprep.subr.bf16.mxu0 %v8043
    %8161 = vmatpush1.bf16.msra.mxu0 %v8042
    %8162 = vmatprep.subr.bf16.mxu0 %v8047
    %8163 = vmatpush1.bf16.msra.mxu0 %v8046
    %8164 = vmatprep.subr.bf16.mxu0 %v8051
    %8165 = vmatpush1.bf16.msra.mxu0 %v8050
    %8166 = vmatprep.subr.bf16.mxu0 %v8055
    %8167 = vmatpush1.bf16.msra.mxu0 %v8054
    %8168 = vmatprep.subr.bf16.mxu0 %v8059
    %8169 = vmatpush1.bf16.msra.mxu0 %v8058
    %8170 = vmatprep.subr.bf16.mxu0 %v8063
    %8171 = vmatpush1.bf16.msra.mxu0 %v8062
    %8172 = vmatprep.subr.bf16.mxu0 %v8067
    %8173 = vmatpush1.bf16.msra.mxu0 %v8066
    %8174 = vmatprep.subr.bf16.mxu0 %v8071
    %8175 = vmatpush1.bf16.msra.mxu0 %v8070
    %8176 = vmatprep.subr.bf16.mxu0 %v8075
    %8177 = vmatpush1.bf16.msra.mxu0 %v8074
    %8178 = vmatprep.mubr.bf16.mxu0 %v8143
    %8179 = vmatmul.mubr.bf16.gmra.mrb[0].mxu0 %v8142
    %v8180 = vpop.f32.mrb[0].mxu0
    %v8181 = vadd.f32 0.0, %v8180
    %v8182 = vpop.f32.mrb[0].mxu0
    %v8183 = vadd.f32 0.0, %v8182
    %v8184 = vpop.f32.mrb[0].mxu0
    %v8185 = vpop.f32.mrb[0].mxu0
    %8186 = vdwg.mxu0
    %8187 = vmatprep.subr.bf16.mxu0 %v8079
    %8188 = vmatpush1.bf16.msra.mxu0 %v8078
    %8189 = vmatprep.subr.bf16.mxu0 %v8083
    %8190 = vmatpush1.bf16.msra.mxu0 %v8082
    %8191 = vmatprep.subr.bf16.mxu0 %v8087
    %8192 = vmatpush1.bf16.msra.mxu0 %v8086
    %8193 = vmatprep.subr.bf16.mxu0 %v8091
    %8194 = vmatpush1.bf16.msra.mxu0 %v8090
    %8195 = vmatprep.subr.bf16.mxu0 %v8095
    %8196 = vmatpush1.bf16.msra.mxu0 %v8094
    %8197 = vmatprep.subr.bf16.mxu0 %v8099
    %8198 = vmatpush1.bf16.msra.mxu0 %v8098
    %8199 = vmatprep.subr.bf16.mxu0 %v8103
    %8200 = vmatpush1.bf16.msra.mxu0 %v8102
    %8201 = vmatprep.subr.bf16.mxu0 %v8107
    %8202 = vmatpush1.bf16.msra.mxu0 %v8106
    %8203 = vmatprep.subr.bf16.mxu0 %v8111
    %8204 = vmatpush1.bf16.msra.mxu0 %v8110
    %8205 = vmatprep.subr.bf16.mxu0 %v8115
    %8206 = vmatpush1.bf16.msra.mxu0 %v8114
    %8207 = vmatprep.subr.bf16.mxu0 %v8119
    %8208 = vmatpush1.bf16.msra.mxu0 %v8118
    %8209 = vmatprep.subr.bf16.mxu0 %v8123
    %8210 = vmatpush1.bf16.msra.mxu0 %v8122
    %8211 = vmatprep.subr.bf16.mxu0 %v8127
    %8212 = vmatpush1.bf16.msra.mxu0 %v8126
    %8213 = vmatprep.subr.bf16.mxu0 %v8131
    %8214 = vmatpush1.bf16.msra.mxu0 %v8130
    %8215 = vmatprep.subr.bf16.mxu0 %v8135
    %8216 = vmatpush1.bf16.msra.mxu0 %v8134
    %8217 = vmatprep.subr.bf16.mxu0 %v8139
    %8218 = vmatpush1.bf16.msra.mxu0 %v8138
    %8219 = vmatprep.mubr.bf16.mxu0 %v8145
    %8220 = vmatmul.mubr.bf16.gmra.mrb[0].mxu0 %v8144
    %v8221 = vpop.f32.mrb[0].mxu0
    %v8222 = vadd.f32 %v8181, %v8221
    %v8223 = vpop.f32.mrb[0].mxu0
    %v8224 = vadd.f32 %v8183, %v8223
    %v8225 = vpop.f32.mrb[0].mxu0
    %v8226 = vpop.f32.mrb[0].mxu0
    %8227 = vdwg.mxu0
    %8228 = vmatprep.subr.bf16.mxu0 %v8017
    %8229 = vmatpush1.bf16.msra.mxu0 %v8016
    %8230 = vmatprep.subr.bf16.mxu0 %v8021
    %8231 = vmatpush1.bf16.msra.mxu0 %v8020
    %8232 = vmatprep.subr.bf16.mxu0 %v8025
    %8233 = vmatpush1.bf16.msra.mxu0 %v8024
    %8234 = vmatprep.subr.bf16.mxu0 %v8029
    %8235 = vmatpush1.bf16.msra.mxu0 %v8028
    %8236 = vmatprep.subr.bf16.mxu0 %v8033
    %8237 = vmatpush1.bf16.msra.mxu0 %v8032
    %8238 = vmatprep.subr.bf16.mxu0 %v8037
    %8239 = vmatpush1.bf16.msra.mxu0 %v8036
    %8240 = vmatprep.subr.bf16.mxu0 %v8041
    %8241 = vmatpush1.bf16.msra.mxu0 %v8040
    %8242 = vmatprep.subr.bf16.mxu0 %v8045
    %8243 = vmatpush1.bf16.msra.mxu0 %v8044
    %8244 = vmatprep.subr.bf16.mxu0 %v8049
    %8245 = vmatpush1.bf16.msra.mxu0 %v8048
    %8246 = vmatprep.subr.bf16.mxu0 %v8053
    %8247 = vmatpush1.bf16.msra.mxu0 %v8052
    %8248 = vmatprep.subr.bf16.mxu0 %v8057
    %8249 = vmatpush1.bf16.msra.mxu0 %v8056
    %8250 = vmatprep.subr.bf16.mxu0 %v8061
    %8251 = vmatpush1.bf16.msra.mxu0 %v8060
    %8252 = vmatprep.subr.bf16.mxu0 %v8065
    %8253 = vmatpush1.bf16.msra.mxu0 %v8064
    %8254 = vmatprep.subr.bf16.mxu0 %v8069
    %8255 = vmatpush1.bf16.msra.mxu0 %v8068
    %8256 = vmatprep.subr.bf16.mxu0 %v8073
    %8257 = vmatpush1.bf16.msra.mxu0 %v8072
    %8258 = vmatprep.subr.bf16.mxu0 %v8077
    %8259 = vmatpush1.bf16.msra.mxu0 %v8076
    %8260 = vmatprep.mubr.bf16.mxu0 %v8143
    %8261 = vmatmul.mubr.bf16.gmra.mrb[0].mxu0 %v8142
    %v8262 = vpop.f32.mrb[0].mxu0
    %v8263 = vadd.f32 0.0, %v8262
    %v8264 = vpop.f32.mrb[0].mxu0
    %v8265 = vadd.f32 0.0, %v8264
    %v8266 = vpop.f32.mrb[0].mxu0
    %v8267 = vpop.f32.mrb[0].mxu0
    %8268 = vdwg.mxu0
    %8269 = vmatprep.subr.bf16.mxu0 %v8081
    %8270 = vmatpush1.bf16.msra.mxu0 %v8080
    %8271 = vmatprep.subr.bf16.mxu0 %v8085
    %8272 = vmatpush1.bf16.msra.mxu0 %v8084
    %8273 = vmatprep.subr.bf16.mxu0 %v8089
    %8274 = vmatpush1.bf16.msra.mxu0 %v8088
    %8275 = vmatprep.subr.bf16.mxu0 %v8093
    %8276 = vmatpush1.bf16.msra.mxu0 %v8092
    %8277 = vmatprep.subr.bf16.mxu0 %v8097
    %8278 = vmatpush1.bf16.msra.mxu0 %v8096
    %8279 = vmatprep.subr.bf16.mxu0 %v8101
    %8280 = vmatpush1.bf16.msra.mxu0 %v8100
    %8281 = vmatprep.subr.bf16.mxu0 %v8105
    %8282 = vmatpush1.bf16.msra.mxu0 %v8104
    %8283 = vmatprep.subr.bf16.mxu0 %v8109
    %8284 = vmatpush1.bf16.msra.mxu0 %v8108
    %8285 = vmatprep.subr.bf16.mxu0 %v8113
    %8286 = vmatpush1.bf16.msra.mxu0 %v8112
    %8287 = vmatprep.subr.bf16.mxu0 %v8117
    %8288 = vmatpush1.bf16.msra.mxu0 %v8116
    %8289 = vmatprep.subr.bf16.mxu0 %v8121
    %8290 = vmatpush1.bf16.msra.mxu0 %v8120
    %8291 = vmatprep.subr.bf16.mxu0 %v8125
    %8292 = vmatpush1.bf16.msra.mxu0 %v8124
    %8293 = vmatprep.subr.bf16.mxu0 %v8129
    %8294 = vmatpush1.bf16.msra.mxu0 %v8128
    %8295 = vmatprep.subr.bf16.mxu0 %v8133
    %8296 = vmatpush1.bf16.msra.mxu0 %v8132
    %8297 = vmatprep.subr.bf16.mxu0 %v8137
    %8298 = vmatpush1.bf16.msra.mxu0 %v8136
    %8299 = vmatprep.subr.bf16.mxu0 %v8141
    %8300 = vmatpush1.bf16.msra.mxu0 %v8140
    %8301 = vmatprep.mubr.bf16.mxu0 %v8145
    %8302 = vmatmul.mubr.bf16.gmra.mrb[0].mxu0 %v8144
    %v8303 = vpop.f32.mrb[0].mxu0
    %v8304 = vadd.f32 %v8263, %v8303
    %v8305 = vpop.f32.mrb[0].mxu0
    %v8306 = vadd.f32 %v8265, %v8305
    %v8307 = vpop.f32.mrb[0].mxu0
    %v8308 = vpop.f32.mrb[0].mxu0
    %8309 = vdwg.mxu0
    %v8310 = vrot.slane %v62, 3
    %v8311 = vrot.slane %v63, 3
    %v8312 = vrot.slane %v64, 3
    %v8313 = vrot.slane %v65, 3
    %v8318 = vmul.f32 %v8222, %v8310
    %v8319 = vmul.f32 %v8224, %v8311
    %v8320 = vmul.f32 %v8304, %v8312
    %v8321 = vmul.f32 %v8306, %v8313
    %v8322 = vrot.slane %v62, 5
    %v8323 = vrot.slane %v63, 5
    %v8324 = vrot.slane %v64, 5
    %v8325 = vrot.slane %v65, 5
    %v8330 = vadd.f32 %v8318, %v8322
    %v8331 = vadd.f32 %v8319, %v8323
    %v8332 = vadd.f32 %v8320, %v8324
    %v8333 = vadd.f32 %v8321, %v8325
    %v8334 = vsel %vm4060, %v8330, 0.0
    %v8335 = vsel %vm4060, %v8331, 0.0
    %v8336 = vadd.f32 %v8334, %v8335
    %v8337 = vsel %vm4060, %v8332, 0.0
    %v8338 = vadd.f32 %v8336, %v8337
    %v8339 = vsel %vm4060, %v8333, 0.0
    %v8340 = vadd.f32 %v8338, %v8339
    %8341 = vadd.xlane.f32.xlu0 %v8340
    %v8342 = vpop.xlane.xlu0 %8341
    %v8343 = vmul.f32 %v8342, %v6435
    %v8344 = vsub.f32 %v8330, %v8343
    %v8345 = vsub.f32 %v8331, %v8343
    %v8346 = vsub.f32 %v8332, %v8343
    %v8347 = vsub.f32 %v8333, %v8343
    %v8348 = vmul.f32 %v8344, %v8344
    %v8349 = vmul.f32 %v8345, %v8345
    %v8350 = vmul.f32 %v8346, %v8346
    %v8351 = vmul.f32 %v8347, %v8347
    %v8352 = vsel %vm4060, %v8348, 0.0
    %v8353 = vsel %vm4060, %v8349, 0.0
    %v8354 = vadd.f32 %v8352, %v8353
    %v8355 = vsel %vm4060, %v8350, 0.0
    %v8356 = vadd.f32 %v8354, %v8355
    %v8357 = vsel %vm4060, %v8351, 0.0
    %v8358 = vadd.f32 %v8356, %v8357
    %8359 = vadd.xlane.f32.xlu0 %v8358
    %v8360 = vpop.xlane.xlu0 %8359
    %v8361 = vmul.f32 %v8360, %v6435
    %v8362 = vadd.f32 %v8361, 1e-05
    %v8363 = vrsqrt.pop %v8362
    %v8364 = vmul.f32 %v8344, %v8363
    %v8365 = vmul.f32 %v8345, %v8363
    %v8366 = vmul.f32 %v8346, %v8363
    %v8367 = vmul.f32 %v8347, %v8363
    %v8368 = vrot.slane %v62, 6
    %v8369 = vrot.slane %v63, 6
    %v8370 = vrot.slane %v64, 6
    %v8371 = vrot.slane %v65, 6
    %v8376 = vmul.f32 %v8364, %v8368
    %v8377 = vmul.f32 %v8365, %v8369
    %v8378 = vmul.f32 %v8366, %v8370
    %v8379 = vmul.f32 %v8367, %v8371
    %v8380 = vrot.slane %v62, 7
    %v8381 = vrot.slane %v63, 7
    %v8382 = vrot.slane %v64, 7
    %v8383 = vrot.slane %v65, 7
    %v8388 = vadd.f32 %v8376, %v8380
    %v8389 = vadd.f32 %v8377, %v8381
    %v8390 = vadd.f32 %v8378, %v8382
    %v8391 = vadd.f32 %v8379, %v8383
    %v8392 = vmul.f32 %v8388, 0.5
    %v8393 = vmul.f32 %v8389, 0.5
    %v8394 = vmul.f32 %v8390, 0.5
    %v8395 = vmul.f32 %v8391, 0.5
    %v8396 = vmul.f32 %v8388, 0.044715
    %v8397 = vmul.f32 %v8389, 0.044715
    %v8398 = vmul.f32 %v8390, 0.044715
    %v8399 = vmul.f32 %v8391, 0.044715
    %v8400 = vmul.f32 %v8396, %v8388
    %v8401 = vmul.f32 %v8397, %v8389
    %v8402 = vmul.f32 %v8398, %v8390
    %v8403 = vmul.f32 %v8399, %v8391
    %v8404 = vmul.f32 %v8400, %v8388
    %v8405 = vmul.f32 %v8401, %v8389
    %v8406 = vmul.f32 %v8402, %v8390
    %v8407 = vmul.f32 %v8403, %v8391
    %v8408 = vadd.f32 %v8388, %v8404
    %v8409 = vadd.f32 %v8389, %v8405
    %v8410 = vadd.f32 %v8390, %v8406
    %v8411 = vadd.f32 %v8391, %v8407
    %v8412 = vmul.f32 %v8408, 0.7978846
    %v8413 = vmul.f32 %v8409, 0.7978846
    %v8414 = vmul.f32 %v8410, 0.7978846
    %v8415 = vmul.f32 %v8411, 0.7978846
    %v8416 = vtanh.pop %v8412
    %v8417 = vtanh.pop %v8413
    %v8418 = vtanh.pop %v8414
    %v8419 = vtanh.pop %v8415
    %v8420 = vadd.f32 %v8416, 1.0
    %v8421 = vadd.f32 %v8417, 1.0
    %v8422 = vadd.f32 %v8418, 1.0
    %v8423 = vadd.f32 %v8419, 1.0
    %v8424 = vmul.f32 %v8392, %v8420
    %v8425 = vmul.f32 %v8393, %v8421
    %v8426 = vmul.f32 %v8394, %v8422
    %v8427 = vmul.f32 %v8395, %v8423
    %v8428 = vld [vmem:[%s10] sm:$0xff]
    %v8429 = vld [vmem:[%s10 + $0x8] sm:$0xff]
    %v8430 = vld [vmem:[%s10 + $0x10] sm:$0xff]
    %v8431 = vld [vmem:[%s10 + $0x18] sm:$0xff]
    %v8432 = vld [vmem:[%s10 + $0x20] sm:$0xff]
    %v8433 = vld [vmem:[%s10 + $0x28] sm:$0xff]
    %v8434 = vld [vmem:[%s10 + $0x30] sm:$0xff]
    %v8435 = vld [vmem:[%s10 + $0x38] sm:$0xff]
    %v8436 = vld [vmem:[%s10 + $0x40] sm:$0xff]
    %v8437 = vld [vmem:[%s10 + $0x48] sm:$0xff]
    %v8438 = vld [vmem:[%s10 + $0x50] sm:$0xff]
    %v8439 = vld [vmem:[%s10 + $0x58] sm:$0xff]
    %v8440 = vld [vmem:[%s10 + $0x60] sm:$0xff]
    %v8441 = vld [vmem:[%s10 + $0x68] sm:$0xff]
    %v8442 = vld [vmem:[%s10 + $0x70] sm:$0xff]
    %v8443 = vld [vmem:[%s10 + $0x78] sm:$0xff]
    %v8444 = vld [vmem:[%s10 + $0x80] sm:$0xff]
    %v8445 = vld [vmem:[%s10 + $0x88] sm:$0xff]
    %v8446 = vld [vmem:[%s10 + $0x90] sm:$0xff]
    %v8447 = vld [vmem:[%s10 + $0x98] sm:$0xff]
    %v8448 = vld [vmem:[%s10 + $0xa0] sm:$0xff]
    %v8449 = vld [vmem:[%s10 + $0xa8] sm:$0xff]
    %v8450 = vld [vmem:[%s10 + $0xb0] sm:$0xff]
    %v8451 = vld [vmem:[%s10 + $0xb8] sm:$0xff]
    %v8452 = vld [vmem:[%s10 + $0xc0] sm:$0xff]
    %v8453 = vld [vmem:[%s10 + $0xc8] sm:$0xff]
    %v8454 = vld [vmem:[%s10 + $0xd0] sm:$0xff]
    %v8455 = vld [vmem:[%s10 + $0xd8] sm:$0xff]
    %v8456 = vld [vmem:[%s10 + $0xe0] sm:$0xff]
    %v8457 = vld [vmem:[%s10 + $0xe8] sm:$0xff]
    %v8458 = vld [vmem:[%s10 + $0xf0] sm:$0xff]
    %v8459 = vld [vmem:[%s10 + $0xf8] sm:$0xff]
    %v8460 = vunpack.c.l.s8.bf16 %v8428
    %v8461 = vunpack.c.l.s8.bf16 %v8429
    %v8462 = vunpack.c.h.s8.bf16 %v8428
    %v8463 = vunpack.c.h.s8.bf16 %v8429
    %v8464 = vunpack.c.l.s8.bf16 %v8430
    %v8465 = vunpack.c.l.s8.bf16 %v8431
    %v8466 = vunpack.c.h.s8.bf16 %v8430
    %v8467 = vunpack.c.h.s8.bf16 %v8431
    %v8468 = vunpack.c.l.s8.bf16 %v8432
    %v8469 = vunpack.c.l.s8.bf16 %v8433
    %v8470 = vunpack.c.h.s8.bf16 %v8432
    %v8471 = vunpack.c.h.s8.bf16 %v8433
    %v8472 = vunpack.c.l.s8.bf16 %v8434
    %v8473 = vunpack.c.l.s8.bf16 %v8435
    %v8474 = vunpack.c.h.s8.bf16 %v8434
    %v8475 = vunpack.c.h.s8.bf16 %v8435
    %v8476 = vunpack.c.l.s8.bf16 %v8436
    %v8477 = vunpack.c.l.s8.bf16 %v8437
    %v8478 = vunpack.c.h.s8.bf16 %v8436
    %v8479 = vunpack.c.h.s8.bf16 %v8437
    %v8480 = vunpack.c.l.s8.bf16 %v8438
    %v8481 = vunpack.c.l.s8.bf16 %v8439
    %v8482 = vunpack.c.h.s8.bf16 %v8438
    %v8483 = vunpack.c.h.s8.bf16 %v8439
    %v8484 = vunpack.c.l.s8.bf16 %v8440
    %v8485 = vunpack.c.l.s8.bf16 %v8441
    %v8486 = vunpack.c.h.s8.bf16 %v8440
    %v8487 = vunpack.c.h.s8.bf16 %v8441
    %v8488 = vunpack.c.l.s8.bf16 %v8442
    %v8489 = vunpack.c.l.s8.bf16 %v8443
    %v8490 = vunpack.c.h.s8.bf16 %v8442
    %v8491 = vunpack.c.h.s8.bf16 %v8443
    %v8492 = vunpack.c.l.s8.bf16 %v8444
    %v8493 = vunpack.c.l.s8.bf16 %v8445
    %v8494 = vunpack.c.h.s8.bf16 %v8444
    %v8495 = vunpack.c.h.s8.bf16 %v8445
    %v8496 = vunpack.c.l.s8.bf16 %v8446
    %v8497 = vunpack.c.l.s8.bf16 %v8447
    %v8498 = vunpack.c.h.s8.bf16 %v8446
    %v8499 = vunpack.c.h.s8.bf16 %v8447
    %v8500 = vunpack.c.l.s8.bf16 %v8448
    %v8501 = vunpack.c.l.s8.bf16 %v8449
    %v8502 = vunpack.c.h.s8.bf16 %v8448
    %v8503 = vunpack.c.h.s8.bf16 %v8449
    %v8504 = vunpack.c.l.s8.bf16 %v8450
    %v8505 = vunpack.c.l.s8.bf16 %v8451
    %v8506 = vunpack.c.h.s8.bf16 %v8450
    %v8507 = vunpack.c.h.s8.bf16 %v8451
    %v8508 = vunpack.c.l.s8.bf16 %v8452
    %v8509 = vunpack.c.l.s8.bf16 %v8453
    %v8510 = vunpack.c.h.s8.bf16 %v8452
    %v8511 = vunpack.c.h.s8.bf16 %v8453
    %v8512 = vunpack.c.l.s8.bf16 %v8454
    %v8513 = vunpack.c.l.s8.bf16 %v8455
    %v8514 = vunpack.c.h.s8.bf16 %v8454
    %v8515 = vunpack.c.h.s8.bf16 %v8455
    %v8516 = vunpack.c.l.s8.bf16 %v8456
    %v8517 = vunpack.c.l.s8.bf16 %v8457
    %v8518 = vunpack.c.h.s8.bf16 %v8456
    %v8519 = vunpack.c.h.s8.bf16 %v8457
    %v8520 = vunpack.c.l.s8.bf16 %v8458
    %v8521 = vunpack.c.l.s8.bf16 %v8459
    %v8522 = vunpack.c.h.s8.bf16 %v8458
    %v8523 = vunpack.c.h.s8.bf16 %v8459
    %v8524 = vpack.c.bf16 %v8424, %v8424
    %v8525 = vpack.c.bf16 %v8425, %v8425
    %v8526 = vpack.c.bf16 %v8426, %v8426
    %v8527 = vpack.c.bf16 %v8427, %v8427
    %8528 = vmatprep.subr.bf16.mxu0 %v8461
    %8529 = vmatpush1.bf16.msra.mxu0 %v8460
    %8530 = vmatprep.subr.bf16.mxu0 %v8463
    %8531 = vmatpush1.bf16.msra.mxu0 %v8462
    %8532 = vmatprep.subr.bf16.mxu0 %v8465
    %8533 = vmatpush1.bf16.msra.mxu0 %v8464
    %8534 = vmatprep.subr.bf16.mxu0 %v8467
    %8535 = vmatpush1.bf16.msra.mxu0 %v8466
    %8536 = vmatprep.subr.bf16.mxu0 %v8469
    %8537 = vmatpush1.bf16.msra.mxu0 %v8468
    %8538 = vmatprep.subr.bf16.mxu0 %v8471
    %8539 = vmatpush1.bf16.msra.mxu0 %v8470
    %8540 = vmatprep.subr.bf16.mxu0 %v8473
    %8541 = vmatpush1.bf16.msra.mxu0 %v8472
    %8542 = vmatprep.subr.bf16.mxu0 %v8475
    %8543 = vmatpush1.bf16.msra.mxu0 %v8474
    %8544 = vmatprep.subr.bf16.mxu0 %v8477
    %8545 = vmatpush1.bf16.msra.mxu0 %v8476
    %8546 = vmatprep.subr.bf16.mxu0 %v8479
    %8547 = vmatpush1.bf16.msra.mxu0 %v8478
    %8548 = vmatprep.subr.bf16.mxu0 %v8481
    %8549 = vmatpush1.bf16.msra.mxu0 %v8480
    %8550 = vmatprep.subr.bf16.mxu0 %v8483
    %8551 = vmatpush1.bf16.msra.mxu0 %v8482
    %8552 = vmatprep.subr.bf16.mxu0 %v8485
    %8553 = vmatpush1.bf16.msra.mxu0 %v8484
    %8554 = vmatprep.subr.bf16.mxu0 %v8487
    %8555 = vmatpush1.bf16.msra.mxu0 %v8486
    %8556 = vmatprep.subr.bf16.mxu0 %v8489
    %8557 = vmatpush1.bf16.msra.mxu0 %v8488
    %8558 = vmatprep.subr.bf16.mxu0 %v8491
    %8559 = vmatpush1.bf16.msra.mxu0 %v8490
    %8560 = vmatprep.mubr.bf16.mxu0 %v8525
    %8561 = vmatmul.mubr.bf16.gmra.mrb[0].mxu0 %v8524
    %v8562 = vpop.f32.mrb[0].mxu0
    %v8563 = vadd.f32 0.0, %v8562
    %v8564 = vpop.f32.mrb[0].mxu0
    %v8565 = vadd.f32 0.0, %v8564
    %v8566 = vpop.f32.mrb[0].mxu0
    %v8567 = vpop.f32.mrb[0].mxu0
    %8568 = vdwg.mxu0
    %8569 = vmatprep.subr.bf16.mxu0 %v8493
    %8570 = vmatpush1.bf16.msra.mxu0 %v8492
    %8571 = vmatprep.subr.bf16.mxu0 %v8495
    %8572 = vmatpush1.bf16.msra.mxu0 %v8494
    %8573 = vmatprep.subr.bf16.mxu0 %v8497
    %8574 = vmatpush1.bf16.msra.mxu0 %v8496
    %8575 = vmatprep.subr.bf16.mxu0 %v8499
    %8576 = vmatpush1.bf16.msra.mxu0 %v8498
    %8577 = vmatprep.subr.bf16.mxu0 %v8501
    %8578 = vmatpush1.bf16.msra.mxu0 %v8500
    %8579 = vmatprep.subr.bf16.mxu0 %v8503
    %8580 = vmatpush1.bf16.msra.mxu0 %v8502
    %8581 = vmatprep.subr.bf16.mxu0 %v8505
    %8582 = vmatpush1.bf16.msra.mxu0 %v8504
    %8583 = vmatprep.subr.bf16.mxu0 %v8507
    %8584 = vmatpush1.bf16.msra.mxu0 %v8506
    %8585 = vmatprep.subr.bf16.mxu0 %v8509
    %8586 = vmatpush1.bf16.msra.mxu0 %v8508
    %8587 = vmatprep.subr.bf16.mxu0 %v8511
    %8588 = vmatpush1.bf16.msra.mxu0 %v8510
    %8589 = vmatprep.subr.bf16.mxu0 %v8513
    %8590 = vmatpush1.bf16.msra.mxu0 %v8512
    %8591 = vmatprep.subr.bf16.mxu0 %v8515
    %8592 = vmatpush1.bf16.msra.mxu0 %v8514
    %8593 = vmatprep.subr.bf16.mxu0 %v8517
    %8594 = vmatpush1.bf16.msra.mxu0 %v8516
    %8595 = vmatprep.subr.bf16.mxu0 %v8519
    %8596 = vmatpush1.bf16.msra.mxu0 %v8518
    %8597 = vmatprep.subr.bf16.mxu0 %v8521
    %8598 = vmatpush1.bf16.msra.mxu0 %v8520
    %8599 = vmatprep.subr.bf16.mxu0 %v8523
    %8600 = vmatpush1.bf16.msra.mxu0 %v8522
    %8601 = vmatprep.mubr.bf16.mxu0 %v8527
    %8602 = vmatmul.mubr.bf16.gmra.mrb[0].mxu0 %v8526
    %v8603 = vpop.f32.mrb[0].mxu0
    %v8604 = vadd.f32 %v8563, %v8603
    %v8605 = vpop.f32.mrb[0].mxu0
    %v8606 = vadd.f32 %v8565, %v8605
    %v8607 = vpop.f32.mrb[0].mxu0
    %v8608 = vpop.f32.mrb[0].mxu0
    %8609 = vdwg.mxu0
    %v8610 = vrot.slane %v62, 4
    %v8611 = vrot.slane %v63, 4
    %v8614 = vmul.f32 %v8604, %v8610
    %v8615 = vmul.f32 %v8606, %v8611
    %v8616 = vadd.f32 %v8614, %v66
    %v8617 = vadd.f32 %v8615, %v67
    %v8618 = vsel %vm4060, %v8616, 0.0
    %v8619 = vsel %vm4060, %v8617, 0.0
    %v8620 = vadd.f32 %v8618, %v8619
    %8621 = vadd.xlane.f32.xlu0 %v8620
    %v8622 = vpop.xlane.xlu0 %8621
    %v8623 = vrcp.pop 256.0
    %v8624 = vmul.f32 %v8622, %v8623
    %v8625 = vsub.f32 %v8616, %v8624
    %v8626 = vsub.f32 %v8617, %v8624
    %v8627 = vmul.f32 %v8625, %v8625
    %v8628 = vmul.f32 %v8626, %v8626
    %v8629 = vsel %vm4060, %v8627, 0.0
    %v8630 = vsel %vm4060, %v8628, 0.0
    %v8631 = vadd.f32 %v8629, %v8630
    %8632 = vadd.xlane.f32.xlu0 %v8631
    %v8633 = vpop.xlane.xlu0 %8632
    %v8634 = vmul.f32 %v8633, %v8623
    %v8635 = vadd.f32 %v8634, 1e-05
    %v8636 = vrsqrt.pop %v8635
    %v8637 = vmul.f32 %v8625, %v8636
    %v8638 = vmul.f32 %v8626, %v8636
    %v8641 = vrot.slane %v66, 1
    %v8642 = vrot.slane %v67, 1
    %v8645 = vmul.f32 %v8637, %v8641
    %v8646 = vmul.f32 %v8638, %v8642
    %v8647 = vrot.slane %v66, 2
    %v8648 = vrot.slane %v67, 2
    %v8651 = vadd.f32 %v8645, %v8647
    %v8652 = vadd.f32 %v8646, %v8648
    %v8653 = vmul.f32 %v8651, 0.5
    %v8654 = vmul.f32 %v8652, 0.5
    %v8655 = vmul.f32 %v8651, 0.044715
    %v8656 = vmul.f32 %v8652, 0.044715
    %v8657 = vmul.f32 %v8655, %v8651
    %v8658 = vmul.f32 %v8656, %v8652
    %v8659 = vmul.f32 %v8657, %v8651
    %v8660 = vmul.f32 %v8658, %v8652
    %v8661 = vadd.f32 %v8651, %v8659
    %v8662 = vadd.f32 %v8652, %v8660
    %v8663 = vmul.f32 %v8661, 0.7978846
    %v8664 = vmul.f32 %v8662, 0.7978846
    %v8665 = vtanh.pop %v8663
    %v8666 = vtanh.pop %v8664
    %v8667 = vadd.f32 %v8665, 1.0
    %v8668 = vadd.f32 %v8666, 1.0
    %v8669 = vmul.f32 %v8653, %v8667
    %v8670 = vmul.f32 %v8654, %v8668
    %v8671 = vld [vmem:[%s11 + $0x80] sm:$0xf]
    %v8672 = vld [vmem:[%s11 + $0x90] sm:$0xf]
    %v8673 = vld [vmem:[%s11 + $0xa0] sm:$0xf]
    %v8674 = vld [vmem:[%s11 + $0xb0] sm:$0xf]
    %v8675 = vld [vmem:[%s11 + $0xc0] sm:$0xf]
    %v8676 = vld [vmem:[%s11 + $0xd0] sm:$0xf]
    %v8677 = vld [vmem:[%s11 + $0xe0] sm:$0xf]
    %v8678 = vld [vmem:[%s11 + $0xf0] sm:$0xf]
    %v8679 = vld [vmem:[%s11 + $0x100] sm:$0xf]
    %v8680 = vld [vmem:[%s11 + $0x110] sm:$0xf]
    %v8681 = vld [vmem:[%s11 + $0x120] sm:$0xf]
    %v8682 = vld [vmem:[%s11 + $0x130] sm:$0xf]
    %v8683 = vld [vmem:[%s11 + $0x140] sm:$0xf]
    %v8684 = vld [vmem:[%s11 + $0x150] sm:$0xf]
    %v8685 = vld [vmem:[%s11 + $0x160] sm:$0xf]
    %v8686 = vld [vmem:[%s11 + $0x170] sm:$0xf]
    %v8687 = vld [vmem:[%s11 + $0x180] sm:$0xf]
    %v8688 = vld [vmem:[%s11 + $0x190] sm:$0xf]
    %v8689 = vld [vmem:[%s11 + $0x1a0] sm:$0xf]
    %v8690 = vld [vmem:[%s11 + $0x1b0] sm:$0xf]
    %v8691 = vld [vmem:[%s11 + $0x1c0] sm:$0xf]
    %v8692 = vld [vmem:[%s11 + $0x1d0] sm:$0xf]
    %v8693 = vld [vmem:[%s11 + $0x1e0] sm:$0xf]
    %v8694 = vld [vmem:[%s11 + $0x1f0] sm:$0xf]
    %v8695 = vld [vmem:[%s11 + $0x200] sm:$0xf]
    %v8696 = vld [vmem:[%s11 + $0x210] sm:$0xf]
    %v8697 = vld [vmem:[%s11 + $0x220] sm:$0xf]
    %v8698 = vld [vmem:[%s11 + $0x230] sm:$0xf]
    %v8699 = vld [vmem:[%s11 + $0x240] sm:$0xf]
    %v8700 = vld [vmem:[%s11 + $0x250] sm:$0xf]
    %v8701 = vld [vmem:[%s11 + $0x260] sm:$0xf]
    %v8702 = vld [vmem:[%s11 + $0x270] sm:$0xf]
    %v8703 = vpack.c.bf16 %v8669, %v8669
    %v8704 = vpack.c.bf16 %v8670, %v8670
    %v8737 = vunpack.c.l.b16 %v8671
    %v8738 = vunpack.c.l.b16 %v8672
    %v8739 = vunpack.c.l.b16 %v8673
    %v8740 = vunpack.c.l.b16 %v8674
    %v8741 = vunpack.c.l.b16 %v8675
    %v8742 = vunpack.c.l.b16 %v8676
    %v8743 = vunpack.c.l.b16 %v8677
    %v8744 = vunpack.c.l.b16 %v8678
    %v8745 = vunpack.c.l.b16 %v8679
    %v8746 = vunpack.c.l.b16 %v8680
    %v8747 = vunpack.c.l.b16 %v8681
    %v8748 = vunpack.c.l.b16 %v8682
    %v8749 = vunpack.c.l.b16 %v8683
    %v8750 = vunpack.c.l.b16 %v8684
    %v8751 = vunpack.c.l.b16 %v8685
    %v8752 = vunpack.c.l.b16 %v8686
    %v8753 = vunpack.c.l.b16 %v8687
    %v8754 = vunpack.c.l.b16 %v8688
    %v8755 = vunpack.c.l.b16 %v8689
    %v8756 = vunpack.c.l.b16 %v8690
    %v8757 = vunpack.c.l.b16 %v8691
    %v8758 = vunpack.c.l.b16 %v8692
    %v8759 = vunpack.c.l.b16 %v8693
    %v8760 = vunpack.c.l.b16 %v8694
    %v8761 = vunpack.c.l.b16 %v8695
    %v8762 = vunpack.c.l.b16 %v8696
    %v8763 = vunpack.c.l.b16 %v8697
    %v8764 = vunpack.c.l.b16 %v8698
    %v8765 = vunpack.c.l.b16 %v8699
    %v8766 = vunpack.c.l.b16 %v8700
    %v8767 = vunpack.c.l.b16 %v8701
    %v8768 = vunpack.c.l.b16 %v8702
    %v8769 = vpack.c.b16 %v8738, %v8737
    %v8770 = vpack.c.b16 %v8740, %v8739
    %v8771 = vpack.c.b16 %v8742, %v8741
    %v8772 = vpack.c.b16 %v8744, %v8743
    %v8773 = vpack.c.b16 %v8746, %v8745
    %v8774 = vpack.c.b16 %v8748, %v8747
    %v8775 = vpack.c.b16 %v8750, %v8749
    %v8776 = vpack.c.b16 %v8752, %v8751
    %v8777 = vpack.c.b16 %v8754, %v8753
    %v8778 = vpack.c.b16 %v8756, %v8755
    %v8779 = vpack.c.b16 %v8758, %v8757
    %v8780 = vpack.c.b16 %v8760, %v8759
    %v8781 = vpack.c.b16 %v8762, %v8761
    %v8782 = vpack.c.b16 %v8764, %v8763
    %v8783 = vpack.c.b16 %v8766, %v8765
    %v8784 = vpack.c.b16 %v8768, %v8767
    %v8801 = vrot.slane %v66, 3
    %8803 = vmatprep.subr.bf16.mxu0 0
    %8804 = vmatpush1.bf16.msra.mxu0 %v8769
    %8805 = vmatprep.subr.bf16.mxu0 0
    %8806 = vmatpush1.bf16.msra.mxu0 %v8770
    %8807 = vmatprep.subr.bf16.mxu0 0
    %8808 = vmatpush1.bf16.msra.mxu0 %v8771
    %8809 = vmatprep.subr.bf16.mxu0 0
    %8810 = vmatpush1.bf16.msra.mxu0 %v8772
    %8811 = vmatprep.subr.bf16.mxu0 0
    %8812 = vmatpush1.bf16.msra.mxu0 %v8773
    %8813 = vmatprep.subr.bf16.mxu0 0
    %8814 = vmatpush1.bf16.msra.mxu0 %v8774
    %8815 = vmatprep.subr.bf16.mxu0 0
    %8816 = vmatpush1.bf16.msra.mxu0 %v8775
    %8817 = vmatprep.subr.bf16.mxu0 0
    %8818 = vmatpush1.bf16.msra.mxu0 %v8776
    %8819 = vmatprep.subr.bf16.mxu0 0
    %8820 = vmatpush1.bf16.msra.mxu0 %v8777
    %8821 = vmatprep.subr.bf16.mxu0 0
    %8822 = vmatpush1.bf16.msra.mxu0 %v8778
    %8823 = vmatprep.subr.bf16.mxu0 0
    %8824 = vmatpush1.bf16.msra.mxu0 %v8779
    %8825 = vmatprep.subr.bf16.mxu0 0
    %8826 = vmatpush1.bf16.msra.mxu0 %v8780
    %8827 = vmatprep.subr.bf16.mxu0 0
    %8828 = vmatpush1.bf16.msra.mxu0 %v8781
    %8829 = vmatprep.subr.bf16.mxu0 0
    %8830 = vmatpush1.bf16.msra.mxu0 %v8782
    %8831 = vmatprep.subr.bf16.mxu0 0
    %8832 = vmatpush1.bf16.msra.mxu0 %v8783
    %8833 = vmatprep.subr.bf16.mxu0 0
    %8834 = vmatpush1.bf16.msra.mxu0 %v8784
    %8835 = vmatprep.mubr.bf16.mxu0 %v8704
    %8836 = vmatmul.mubr.bf16.gmra.mrb[0].mxu0 %v8703
    %v8837 = vpop.f32.mrb[0].mxu0
    %v8838 = vadd.f32 %v8801, %v8837
    %v8839 = vpop.f32.mrb[0].mxu0
    %v8840 = vpop.f32.mrb[0].mxu0
    %v8841 = vpop.f32.mrb[0].mxu0
    %8842 = vdwg.mxu0
    %v8843 = vsel %vm4060, %v8838, 0.0
    %8844 = vadd.xlane.f32.xlu0 %v8843
    %v8845 = vpop.xlane.xlu0 %8844
    %v8846 = vrcp.pop 128.0
    %v8847 = vmul.f32 %v8845, %v8846
    %v8848 = vsub.f32 %v8838, %v8847
    %v8849 = vmul.f32 %v8848, %v8848
    %v8850 = vsel %vm4060, %v8849, 0.0
    %8851 = vadd.xlane.f32.xlu0 %v8850
    %v8852 = vpop.xlane.xlu0 %8851
    %v8853 = vmul.f32 %v8852, %v8846
    %v8854 = vadd.f32 %v8853, 1e-05
    %v8855 = vrsqrt.pop %v8854
    %v8856 = vmul.f32 %v8848, %v8855
    %v8857 = vrot.slane %v66, 4
    %v8859 = vmul.f32 %v8856, %v8857
    %v8860 = vrot.slane %v66, 5
    %v8862 = vadd.f32 %v8859, %v8860
    %v8863 = vmul.f32 %v8862, 0.5
    %v8864 = vmul.f32 %v8862, 0.044715
    %v8865 = vmul.f32 %v8864, %v8862
    %v8866 = vmul.f32 %v8865, %v8862
    %v8867 = vadd.f32 %v8862, %v8866
    %v8868 = vmul.f32 %v8867, 0.7978846
    %v8869 = vtanh.pop %v8868
    %v8870 = vadd.f32 %v8869, 1.0
    %v8871 = vmul.f32 %v8863, %v8870
    %v8872 = vld [vmem:[%s11 + $0x84] sm:$0xf]
    %v8873 = vld [vmem:[%s11 + $0x94] sm:$0xf]
    %v8874 = vld [vmem:[%s11 + $0xa4] sm:$0xf]
    %v8875 = vld [vmem:[%s11 + $0xb4] sm:$0xf]
    %v8876 = vld [vmem:[%s11 + $0xc4] sm:$0xf]
    %v8877 = vld [vmem:[%s11 + $0xd4] sm:$0xf]
    %v8878 = vld [vmem:[%s11 + $0xe4] sm:$0xf]
    %v8879 = vld [vmem:[%s11 + $0xf4] sm:$0xf]
    %v8880 = vld [vmem:[%s11 + $0x104] sm:$0xf]
    %v8881 = vld [vmem:[%s11 + $0x114] sm:$0xf]
    %v8882 = vld [vmem:[%s11 + $0x124] sm:$0xf]
    %v8883 = vld [vmem:[%s11 + $0x134] sm:$0xf]
    %v8884 = vld [vmem:[%s11 + $0x144] sm:$0xf]
    %v8885 = vld [vmem:[%s11 + $0x154] sm:$0xf]
    %v8886 = vld [vmem:[%s11 + $0x164] sm:$0xf]
    %v8887 = vld [vmem:[%s11 + $0x174] sm:$0xf]
    %v8888 = vpack.c.bf16 %v8871, %v8871
    %v8905 = vunpack.c.l.b16 %v8872
    %v8906 = vunpack.c.l.b16 %v8873
    %v8907 = vunpack.c.l.b16 %v8874
    %v8908 = vunpack.c.l.b16 %v8875
    %v8909 = vunpack.c.l.b16 %v8876
    %v8910 = vunpack.c.l.b16 %v8877
    %v8911 = vunpack.c.l.b16 %v8878
    %v8912 = vunpack.c.l.b16 %v8879
    %v8913 = vunpack.c.l.b16 %v8880
    %v8914 = vunpack.c.l.b16 %v8881
    %v8915 = vunpack.c.l.b16 %v8882
    %v8916 = vunpack.c.l.b16 %v8883
    %v8917 = vunpack.c.l.b16 %v8884
    %v8918 = vunpack.c.l.b16 %v8885
    %v8919 = vunpack.c.l.b16 %v8886
    %v8920 = vunpack.c.l.b16 %v8887
    %v8921 = vpack.c.b16 %v8906, %v8905
    %v8922 = vpack.c.b16 %v8908, %v8907
    %v8923 = vpack.c.b16 %v8910, %v8909
    %v8924 = vpack.c.b16 %v8912, %v8911
    %v8925 = vpack.c.b16 %v8914, %v8913
    %v8926 = vpack.c.b16 %v8916, %v8915
    %v8927 = vpack.c.b16 %v8918, %v8917
    %v8928 = vpack.c.b16 %v8920, %v8919
    %v8937 = vrot.slane %v66, 6
    %8939 = vmatprep.subr.bf16.mxu0 0
    %8940 = vmatpush1.bf16.msra.mxu0 %v8921
    %8941 = vmatprep.subr.bf16.mxu0 0
    %8942 = vmatpush1.bf16.msra.mxu0 %v8922
    %8943 = vmatprep.subr.bf16.mxu0 0
    %8944 = vmatpush1.bf16.msra.mxu0 %v8923
    %8945 = vmatprep.subr.bf16.mxu0 0
    %8946 = vmatpush1.bf16.msra.mxu0 %v8924
    %8947 = vmatprep.subr.bf16.mxu0 0
    %8948 = vmatpush1.bf16.msra.mxu0 %v8925
    %8949 = vmatprep.subr.bf16.mxu0 0
    %8950 = vmatpush1.bf16.msra.mxu0 %v8926
    %8951 = vmatprep.subr.bf16.mxu0 0
    %8952 = vmatpush1.bf16.msra.mxu0 %v8927
    %8953 = vmatprep.subr.bf16.mxu0 0
    %8954 = vmatpush1.bf16.msra.mxu0 %v8928
    %8955 = vmatprep.subr.bf16.mxu0 0
    %8956 = vmatpush1.bf16.msra.mxu0 0
    %8957 = vmatprep.subr.bf16.mxu0 0
    %8958 = vmatpush1.bf16.msra.mxu0 0
    %8959 = vmatprep.subr.bf16.mxu0 0
    %8960 = vmatpush1.bf16.msra.mxu0 0
    %8961 = vmatprep.subr.bf16.mxu0 0
    %8962 = vmatpush1.bf16.msra.mxu0 0
    %8963 = vmatprep.subr.bf16.mxu0 0
    %8964 = vmatpush1.bf16.msra.mxu0 0
    %8965 = vmatprep.subr.bf16.mxu0 0
    %8966 = vmatpush1.bf16.msra.mxu0 0
    %8967 = vmatprep.subr.bf16.mxu0 0
    %8968 = vmatpush1.bf16.msra.mxu0 0
    %8969 = vmatprep.subr.bf16.mxu0 0
    %8970 = vmatpush1.bf16.msra.mxu0 0
    %8971 = vmatprep.mubr.bf16.mxu0 0
    %8972 = vmatmul.mubr.bf16.gmra.mrb[0].mxu0 %v8888
    %v8973 = vpop.f32.mrb[0].mxu0
    %v8974 = vadd.f32 %v8937, %v8973
    %v8975 = vpop.f32.mrb[0].mxu0
    %v8976 = vpop.f32.mrb[0].mxu0
    %v8977 = vpop.f32.mrb[0].mxu0
    %8978 = vdwg.mxu0
    %vm8979 = vcmask 516096
    %v8980 = vsel %vm8979, %v8974, 0.0
    %8981 = vadd.xlane.f32.xlu0 %v8980
    %v8982 = vpop.xlane.xlu0 %8981
    %v8983 = vrcp.pop 64.0
    %v8984 = vmul.f32 %v8982, %v8983
    %v8985 = vsub.f32 %v8974, %v8984
    %v8986 = vmul.f32 %v8985, %v8985
    %v8987 = vsel %vm8979, %v8986, 0.0
    %8988 = vadd.xlane.f32.xlu0 %v8987
    %v8989 = vpop.xlane.xlu0 %8988
    %v8990 = vmul.f32 %v8989, %v8983
    %v8991 = vadd.f32 %v8990, 1e-05
    %v8992 = vrsqrt.pop %v8991
    %v8993 = vmul.f32 %v8985, %v8992
    %v8994 = vrot.slane %v66, 7
    %v8996 = vmul.f32 %v8993, %v8994
    %v8997 = vadd.f32 %v8996, %v68
    %v8998 = vmul.f32 %v8997, 0.5
    %v8999 = vmul.f32 %v8997, 0.044715
    %v9000 = vmul.f32 %v8999, %v8997
    %v9001 = vmul.f32 %v9000, %v8997
    %v9002 = vadd.f32 %v8997, %v9001
    %v9003 = vmul.f32 %v9002, 0.7978846
    %v9004 = vtanh.pop %v9003
    %v9005 = vadd.f32 %v9004, 1.0
    %v9006 = vmul.f32 %v8998, %v9005
    %v9007 = vld [vmem:[%s11 + $0x88] sm:$0xf]
    %v9008 = vld [vmem:[%s11 + $0x98] sm:$0xf]
    %v9009 = vld [vmem:[%s11 + $0xa8] sm:$0xf]
    %v9010 = vld [vmem:[%s11 + $0xb8] sm:$0xf]
    %v9011 = vld [vmem:[%s11 + $0xc8] sm:$0xf]
    %v9012 = vld [vmem:[%s11 + $0xd8] sm:$0xf]
    %v9013 = vld [vmem:[%s11 + $0xe8] sm:$0xf]
    %v9014 = vld [vmem:[%s11 + $0xf8] sm:$0xf]
    %v9015 = vpack.c.bf16 %v9006, %v9006
    %v9024 = vunpack.c.l.b16 %v9007
    %v9025 = vunpack.c.l.b16 %v9008
    %v9026 = vunpack.c.l.b16 %v9009
    %v9027 = vunpack.c.l.b16 %v9010
    %v9028 = vunpack.c.l.b16 %v9011
    %v9029 = vunpack.c.l.b16 %v9012
    %v9030 = vunpack.c.l.b16 %v9013
    %v9031 = vunpack.c.l.b16 %v9014
    %v9032 = vpack.c.b16 %v9025, %v9024
    %v9033 = vpack.c.b16 %v9027, %v9026
    %v9034 = vpack.c.b16 %v9029, %v9028
    %v9035 = vpack.c.b16 %v9031, %v9030
    %v9041 = vrot.slane %v68, 1
    %v9044 = vsel %vm7777, %v9015, 0
    %9046 = vmatprep.subr.bf16.mxu0 0
    %9047 = vmatpush1.bf16.msra.mxu0 %v9032
    %9048 = vmatprep.subr.bf16.mxu0 0
    %9049 = vmatpush1.bf16.msra.mxu0 %v9033
    %9050 = vmatprep.subr.bf16.mxu0 0
    %9051 = vmatpush1.bf16.msra.mxu0 %v9034
    %9052 = vmatprep.subr.bf16.mxu0 0
    %9053 = vmatpush1.bf16.msra.mxu0 %v9035
    %9054 = vmatprep.subr.bf16.mxu0 0
    %9055 = vmatpush1.bf16.msra.mxu0 0
    %9056 = vmatprep.subr.bf16.mxu0 0
    %9057 = vmatpush1.bf16.msra.mxu0 0
    %9058 = vmatprep.subr.bf16.mxu0 0
    %9059 = vmatpush1.bf16.msra.mxu0 0
    %9060 = vmatprep.subr.bf16.mxu0 0
    %9061 = vmatpush1.bf16.msra.mxu0 0
    %9062 = vmatprep.subr.bf16.mxu0 0
    %9063 = vmatpush1.bf16.msra.mxu0 0
    %9064 = vmatprep.subr.bf16.mxu0 0
    %9065 = vmatpush1.bf16.msra.mxu0 0
    %9066 = vmatprep.subr.bf16.mxu0 0
    %9067 = vmatpush1.bf16.msra.mxu0 0
    %9068 = vmatprep.subr.bf16.mxu0 0
    %9069 = vmatpush1.bf16.msra.mxu0 0
    %9070 = vmatprep.subr.bf16.mxu0 0
    %9071 = vmatpush1.bf16.msra.mxu0 0
    %9072 = vmatprep.subr.bf16.mxu0 0
    %9073 = vmatpush1.bf16.msra.mxu0 0
    %9074 = vmatprep.subr.bf16.mxu0 0
    %9075 = vmatpush1.bf16.msra.mxu0 0
    %9076 = vmatprep.subr.bf16.mxu0 0
    %9077 = vmatpush1.bf16.msra.mxu0 0
    %9078 = vmatprep.mubr.bf16.mxu0 0
    %9079 = vmatmul.mubr.bf16.gmra.mrb[0].mxu0 %v9044
    %v9080 = vpop.f32.mrb[0].mxu0
    %v9081 = vadd.f32 %v9041, %v9080
    %v9082 = vpop.f32.mrb[0].mxu0
    %v9083 = vpop.f32.mrb[0].mxu0
    %v9084 = vpop.f32.mrb[0].mxu0
    %9085 = vdwg.mxu0
    %vm9086 = vcmask 253952
    %v9087 = vsel %vm9086, %v9081, 0.0
    %9088 = vadd.xlane.f32.xlu0 %v9087
    %v9089 = vpop.xlane.xlu0 %9088
    %v9090 = vrcp.pop 32.0
    %v9091 = vmul.f32 %v9089, %v9090
    %v9092 = vsub.f32 %v9081, %v9091
    %v9093 = vmul.f32 %v9092, %v9092
    %v9094 = vsel %vm9086, %v9093, 0.0
    %9095 = vadd.xlane.f32.xlu0 %v9094
    %v9096 = vpop.xlane.xlu0 %9095
    %v9097 = vmul.f32 %v9096, %v9090
    %v9098 = vadd.f32 %v9097, 1e-05
    %v9099 = vrsqrt.pop %v9098
    %v9100 = vmul.f32 %v9092, %v9099
    %v9101 = vrot.slane %v68, 2
    %v9103 = vmul.f32 %v9100, %v9101
    %v9104 = vrot.slane %v68, 3
    %v9106 = vadd.f32 %v9103, %v9104
    %v9107 = vmul.f32 %v9106, 0.5
    %v9108 = vmul.f32 %v9106, 0.044715
    %v9109 = vmul.f32 %v9108, %v9106
    %v9110 = vmul.f32 %v9109, %v9106
    %v9111 = vadd.f32 %v9106, %v9110
    %v9112 = vmul.f32 %v9111, 0.7978846
    %v9113 = vtanh.pop %v9112
    %v9114 = vadd.f32 %v9113, 1.0
    %v9115 = vmul.f32 %v9107, %v9114
    %v9116 = vld [vmem:[%s11 + $0x8c] sm:$0xf]
    %v9117 = vld [vmem:[%s11 + $0x9c] sm:$0xf]
    %v9118 = vld [vmem:[%s11 + $0xac] sm:$0xf]
    %v9119 = vld [vmem:[%s11 + $0xbc] sm:$0xf]
    %v9120 = vpack.c.bf16 %v9115, %v9115
    %v9125 = vunpack.c.l.b16 %v9116
    %v9126 = vunpack.c.l.b16 %v9117
    %v9127 = vunpack.c.l.b16 %v9118
    %v9128 = vunpack.c.l.b16 %v9119
    %v9129 = vpack.c.b16 %v9126, %v9125
    %v9130 = vpack.c.b16 %v9128, %v9127
    %v9133 = vrot.slane %v68, 4
    %v9136 = vsel %vm1968, %v9120, 0
    %9138 = vmatprep.subr.bf16.mxu0 0
    %9139 = vmatpush1.bf16.msra.mxu0 %v9129
    %9140 = vmatprep.subr.bf16.mxu0 0
    %9141 = vmatpush1.bf16.msra.mxu0 %v9130
    %9142 = vmatprep.subr.bf16.mxu0 0
    %9143 = vmatpush1.bf16.msra.mxu0 0
    %9144 = vmatprep.subr.bf16.mxu0 0
    %9145 = vmatpush1.bf16.msra.mxu0 0
    %9146 = vmatprep.subr.bf16.mxu0 0
    %9147 = vmatpush1.bf16.msra.mxu0 0
    %9148 = vmatprep.subr.bf16.mxu0 0
    %9149 = vmatpush1.bf16.msra.mxu0 0
    %9150 = vmatprep.subr.bf16.mxu0 0
    %9151 = vmatpush1.bf16.msra.mxu0 0
    %9152 = vmatprep.subr.bf16.mxu0 0
    %9153 = vmatpush1.bf16.msra.mxu0 0
    %9154 = vmatprep.subr.bf16.mxu0 0
    %9155 = vmatpush1.bf16.msra.mxu0 0
    %9156 = vmatprep.subr.bf16.mxu0 0
    %9157 = vmatpush1.bf16.msra.mxu0 0
    %9158 = vmatprep.subr.bf16.mxu0 0
    %9159 = vmatpush1.bf16.msra.mxu0 0
    %9160 = vmatprep.subr.bf16.mxu0 0
    %9161 = vmatpush1.bf16.msra.mxu0 0
    %9162 = vmatprep.subr.bf16.mxu0 0
    %9163 = vmatpush1.bf16.msra.mxu0 0
    %9164 = vmatprep.subr.bf16.mxu0 0
    %9165 = vmatpush1.bf16.msra.mxu0 0
    %9166 = vmatprep.subr.bf16.mxu0 0
    %9167 = vmatpush1.bf16.msra.mxu0 0
    %9168 = vmatprep.subr.bf16.mxu0 0
    %9169 = vmatpush1.bf16.msra.mxu0 0
    %9170 = vmatprep.mubr.bf16.mxu0 0
    %9171 = vmatmul.mubr.bf16.gmra.mrb[0].mxu0 %v9136
    %v9172 = vpop.f32.mrb[0].mxu0
    %v9173 = vadd.f32 %v9133, %v9172
    %v9174 = vpop.f32.mrb[0].mxu0
    %v9175 = vpop.f32.mrb[0].mxu0
    %v9176 = vpop.f32.mrb[0].mxu0
    %9177 = vdwg.mxu0
    %vm9178 = vcmask 122880
    %v9179 = vsel %vm9178, %v9173, 0.0
    %9180 = vadd.xlane.f32.xlu0 %v9179
    %v9181 = vpop.xlane.xlu0 %9180
    %v9182 = vrcp.pop 16.0
    %v9183 = vmul.f32 %v9181, %v9182
    %v9184 = vsub.f32 %v9173, %v9183
    %v9185 = vmul.f32 %v9184, %v9184
    %v9186 = vsel %vm9178, %v9185, 0.0
    %9187 = vadd.xlane.f32.xlu0 %v9186
    %v9188 = vpop.xlane.xlu0 %9187
    %v9189 = vmul.f32 %v9188, %v9182
    %v9190 = vadd.f32 %v9189, 1e-05
    %v9191 = vrsqrt.pop %v9190
    %v9192 = vmul.f32 %v9184, %v9191
    %v9193 = vrot.slane %v68, 5
    %v9195 = vmul.f32 %v9192, %v9193
    %v9196 = vrot.slane %v68, 6
    %v9198 = vadd.f32 %v9195, %v9196
    %v9199 = vmul.f32 %v9198, 0.5
    %v9200 = vmul.f32 %v9198, 0.044715
    %v9201 = vmul.f32 %v9200, %v9198
    %v9202 = vmul.f32 %v9201, %v9198
    %v9203 = vadd.f32 %v9198, %v9202
    %v9204 = vmul.f32 %v9203, 0.7978846
    %v9205 = vtanh.pop %v9204
    %v9206 = vadd.f32 %v9205, 1.0
    %v9207 = vmul.f32 %v9199, %v9206
    %v9208 = vrot.slane %v68, 7
    %v9210 = vmul.f32 %v9207, %v9208
    %v9211 = vsel %vm9178, %v9210, 0.0
    %9212 = vadd.xlane.f32.xlu0 %v9211
    %v9213 = vpop.xlane.xlu0 %9212
    %v9214 = vadd.f32 %v9213, %v69
    %v9215 = vsub.f32 0.0, %v9214
    %v9216 = vmul.f32 %v9215, 1.442695
    %v9217 = vpow.pop %v9216
    %v9218 = vadd.f32 %v9217, 1.0
    %v9219 = vrcp.pop %v9218
    %v9220 = vmul.f32 1.0, %v9219
    %9222 = vset.pattern.permute.xlu0 0
    %9223 = vperm.xlu0 %9222, %v9220
    %v9224 = vpop.permute.xlu0 %9223
    %9226 = vst [vmem:[#allocation2] sm:$0x1] %v9224
    // Predicated region
    $region58: #{tpu_custom_call.1} parent=1 // pred_check
      _
    $region59: #{tpu_custom_call.1} parent=1 // pred_check_branch
      %9228 = sbr.rel (0) target = $region61
    $region60: #{tpu_custom_call.1} parent=1 // pred_region
      %s9230 = ssub.s32 16, 16
      %9231 = vsyncadd [#allocation3], %s9230
      %s9233 = sshll.u32 [#allocation2], 4
      %s9234 = int_to_ptr.vmem [resolvable:$true] %s9233
      %9236 = dma.vmem_to_hbm [thread:$0]  %s9234, 16, %s14, [#allocation3]
    $region61: #{tpu_custom_call.1} parent=1 // pred_fallthru
      _
    // Predicated region
    $region62: #{tpu_custom_call.1} parent=1 // pred_check
      _
    $region63: #{tpu_custom_call.1} parent=1 // pred_check_branch
      %9238 = sbr.rel (0) target = $region65
    $region64: #{tpu_custom_call.1} parent=1 // pred_region
      %9239 = dma.done [#allocation3], 16
    $region65: #{tpu_custom_call.1} parent=1 // pred_fallthru
      _
    %9240 = vsyncpa [#allocation3], 1

</llo_original>
